<compile_context>
chip_gen: v5e
topology: v5e:2x2
jax: 0.10.0
libtpu: 0.0.40
codegen_flags: <defaults>
</compile_context>

<pallas_src>
import functools

import jax
import jax.numpy as jnp
from jax.experimental import pallas as pl
from jax.experimental.pallas import tpu as pltpu

EPS = 1e-5


def _conv_bn_relu_kernel(x_ref, w_ref, gamma_ref, beta_ref, o_ref, *, m_total):
    # x_ref:     [Cin, M]    bf16, resident across the whole grid
    # w_ref:     [TCo, Cin]  bf16, streamed per grid step (slab of out channels)
    # gamma_ref: [TCo, 1]    f32
    # beta_ref:  [TCo, 1]    f32
    # o_ref:     [TCo, M]    f32
    # 1x1 conv for this slab of output channels: bf16 MXU matmul, f32 accum.
    y = jnp.dot(w_ref[...], x_ref[...], preferred_element_type=jnp.float32)

    # BatchNorm2d (training mode) batch statistics over all N*H*W pixels
    # (lane axis), single pass: biased variance via E[y^2] - mean^2.
    inv_m = 1.0 / float(m_total)
    s = jnp.sum(y, axis=1, keepdims=True)        # [TCo, 1]
    sq = jnp.sum(y * y, axis=1, keepdims=True)   # [TCo, 1]
    mean = s * inv_m
    var = sq * inv_m - mean * mean
    inv_std = jax.lax.rsqrt(var + EPS)

    # Fold the affine into per-channel scale/bias -> one traversal + ReLU.
    scale = gamma_ref[...] * inv_std             # [TCo, 1]
    bias = beta_ref[...] - mean * scale          # [TCo, 1]
    o_ref[...] = jnp.maximum(y * scale + bias, 0.0).astype(o_ref.dtype)


def conv_bn_relu(x_nchw, conv_weight, gamma, beta, *, block_co=224):
    """x_nchw: [N, Cin, H, W], conv_weight: [Cout, Cin, 1, 1], gamma/beta: [Cout]."""
    n, cin, h, w = x_nchw.shape
    cout = conv_weight.shape[0]
    m = n * h * w

    # [N, Cin, H, W] -> [Cin, M].  For N == 1 this is a pure reshape (free).
    x_cm = jnp.transpose(x_nchw, (1, 0, 2, 3)).reshape(cin, m)
    w_mat = conv_weight.reshape(cout, cin)

    # bf16 operands for the MXU (halves the weight/activation DMA); BN in f32.
    x_bf16 = x_cm.astype(jnp.bfloat16)
    w_bf16 = w_mat.astype(jnp.bfloat16)
    gamma2 = gamma.reshape(cout, 1).astype(jnp.float32)
    beta2 = beta.reshape(cout, 1).astype(jnp.float32)

    n_co = pl.cdiv(cout, block_co)

    flops = 2 * cout * cin * m + 8 * cout * m
    bytes_accessed = (x_bf16.size * 2 + w_bf16.size * 2 + cout * m * 4
                      + gamma2.size * 4 + beta2.size * 4)

    out_cm = pl.pallas_call(
        functools.partial(_conv_bn_relu_kernel, m_total=m),
        out_shape=jax.ShapeDtypeStruct((cout, m), jnp.float32),
        grid=(n_co,),
        in_specs=[
            pl.BlockSpec((cin, m), lambda i: (0, 0)),          # X: resident
            pl.BlockSpec((block_co, cin), lambda i: (i, 0)),   # W: streamed
            pl.BlockSpec((block_co, 1), lambda i: (i, 0)),     # gamma slab
            pl.BlockSpec((block_co, 1), lambda i: (i, 0)),     # beta slab
        ],
        out_specs=pl.BlockSpec((block_co, m), lambda i: (i, 0)),
        compiler_params=pltpu.CompilerParams(
            dimension_semantics=("parallel",),
        ),
        cost_estimate=pl.CostEstimate(
            flops=int(flops),
            transcendentals=int(cout),
            bytes_accessed=int(bytes_accessed),
        ),
    )(x_bf16, w_bf16, gamma2, beta2)

    # [Cout, M] -> [N, Cout, H, W] (free for N == 1).
    return jnp.transpose(out_cm.reshape(cout, n, h, w), (1, 0, 2, 3))


def _reference(x_nchw, conv_weight, gamma, beta):
    """Pure-JAX f32 reference of the PyTorch forward (train-mode BN)."""
    n, cin, h, w = x_nchw.shape
    cout = conv_weight.shape[0]
    xm = jnp.transpose(x_nchw, (1, 0, 2, 3)).reshape(cin, n * h * w)
    y = conv_weight.reshape(cout, cin) @ xm
    mean = jnp.mean(y, axis=1, keepdims=True)
    var = jnp.mean((y - mean) ** 2, axis=1, keepdims=True)  # biased
    yn = (y - mean) * jax.lax.rsqrt(var + EPS) * gamma.reshape(-1, 1) + beta.reshape(-1, 1)
    out = jnp.maximum(yn, 0.0)
    return jnp.transpose(out.reshape(cout, n, h, w), (1, 0, 2, 3))


if __name__ == "__main__":
    # Module's actual forward shape: x77 = randn([1, 672, 28, 28]); channel
    # count 672 is fixed by the module definition.
    N, C, H, W = 1, 672, 28, 28

    key = jax.random.PRNGKey(0)
    k_x, k_w, k_g, k_b = jax.random.split(key, 4)

    x = jax.random.normal(k_x, (N, C, H, W), dtype=jnp.float32)
    # Conv2d(672, 672, kernel_size=(1,1), bias=False) weight: [Cout, Cin, 1, 1]
    conv_w = jax.random.normal(k_w, (C, C, 1, 1), dtype=jnp.float32) * 0.02
    # BatchNorm2d(672, affine=True): gamma, beta (deterministic, non-trivial)
    gamma = 1.0 + 0.1 * jax.random.normal(k_g, (C,), dtype=jnp.float32)
    beta = 0.1 * jax.random.normal(k_b, (C,), dtype=jnp.float32)

    out = conv_bn_relu(x, conv_w, gamma, beta)
    jax.block_until_ready(out)

    assert out.shape == (N, C, H, W)
    assert out.dtype == jnp.float32
    assert bool(jnp.all(out >= 0.0))  # ReLU sanity check

    # Loose numerical check vs f32 reference (bf16 MXU operands -> small drift).
    ref = _reference(x, conv_w, gamma, beta)
    max_err = float(jnp.max(jnp.abs(out - ref)))
    assert max_err < 5e-2, f"max abs error too large: {max_err}"

    print("KERNEL_OK")
</pallas_src>

<mosaic_0001>
module attributes {stable_mosaic.version = 11 : i64} {
  func.func @_conv_bn_relu_kernel(%arg0: i32, %arg1: memref<672x784xbf16, #tpu.memory_space<vmem>>, %arg2: memref<224x672xbf16, #tpu.memory_space<vmem>>, %arg3: memref<224x1xf32, #tpu.memory_space<vmem>>, %arg4: memref<224x1xf32, #tpu.memory_space<vmem>>, %arg5: memref<224x784xf32, #tpu.memory_space<vmem>>) attributes {dimension_semantics = [#tpu.dimension_semantics<parallel>], iteration_bounds = array<i64: 3>, scalar_prefetch = 0 : i64, scratch_operands = 0 : i64, tpu.core_type = #tpu.core_type<tc>, window_params = [{pipeline_mode = #tpu.pipeline_mode<synchronous>, transform_indices = @transform_0, window_bounds = array<i64: 672, 784>}, {transform_indices = @transform_1, window_bounds = array<i64: 224, 672>}, {transform_indices = @transform_2, window_bounds = array<i64: 224, 1>}, {transform_indices = @transform_3, window_bounds = array<i64: 224, 1>}, {transform_indices = @transform_4, window_bounds = array<i64: 224, 784>}]} {
    %c0 = arith.constant 0 : index
    %c0_0 = arith.constant 0 : index
    %0 = vector.load %arg2[%c0, %c0_0] : memref<224x672xbf16, #tpu.memory_space<vmem>>, vector<224x672xbf16>
    %c0_1 = arith.constant 0 : index
    %c0_2 = arith.constant 0 : index
    %1 = vector.load %arg1[%c0_1, %c0_2] : memref<672x784xbf16, #tpu.memory_space<vmem>>, vector<672x784xbf16>
    %cst = arith.constant dense<0.000000e+00> : vector<224x784xf32>
    %2 = tpu.matmul %0, %1, %cst {dimension_numbers = #tpu.dot_dimension_numbers<[1], [0], [0], [1], [0, 0, 1, 1], [], []>} : vector<224x672xbf16>, vector<672x784xbf16>, vector<224x784xf32> -> vector<224x784xf32>
    %cst_3 = arith.constant dense<0.000000e+00> : vector<224xf32>
    %3 = vector.multi_reduction <add>, %2, %cst_3 [1] : vector<224x784xf32> to vector<224xf32>
    %4 = vector.shape_cast %3 : vector<224xf32> to vector<224x1xf32>
    %5 = arith.mulf %2, %2 : vector<224x784xf32>
    %cst_4 = arith.constant dense<0.000000e+00> : vector<224xf32>
    %6 = vector.multi_reduction <add>, %5, %cst_4 [1] : vector<224x784xf32> to vector<224xf32>
    %7 = vector.shape_cast %6 : vector<224xf32> to vector<224x1xf32>
    %cst_5 = arith.constant 0.00127551018 : f32
    %8 = vector.broadcast %cst_5 : f32 to vector<224x1xf32>
    %9 = arith.mulf %4, %8 : vector<224x1xf32>
    %cst_6 = arith.constant 0.00127551018 : f32
    %10 = vector.broadcast %cst_6 : f32 to vector<224x1xf32>
    %11 = arith.mulf %7, %10 : vector<224x1xf32>
    %12 = arith.mulf %9, %9 : vector<224x1xf32>
    %13 = arith.subf %11, %12 : vector<224x1xf32>
    %cst_7 = arith.constant 9.99999974E-6 : f32
    %14 = vector.broadcast %cst_7 : f32 to vector<224x1xf32>
    %15 = arith.addf %13, %14 : vector<224x1xf32>
    %16 = math.rsqrt %15 : vector<224x1xf32>
    %c0_8 = arith.constant 0 : index
    %c0_9 = arith.constant 0 : index
    %17 = vector.load %arg3[%c0_8, %c0_9] : memref<224x1xf32, #tpu.memory_space<vmem>>, vector<224x1xf32>
    %18 = arith.mulf %17, %16 : vector<224x1xf32>
    %c0_10 = arith.constant 0 : index
    %c0_11 = arith.constant 0 : index
    %19 = vector.load %arg4[%c0_10, %c0_11] : memref<224x1xf32, #tpu.memory_space<vmem>>, vector<224x1xf32>
    %20 = arith.mulf %9, %18 : vector<224x1xf32>
    %21 = arith.subf %19, %20 : vector<224x1xf32>
    %22 = vector.broadcast %18 : vector<224x1xf32> to vector<224x784xf32>
    %23 = arith.mulf %2, %22 : vector<224x784xf32>
    %24 = vector.broadcast %21 : vector<224x1xf32> to vector<224x784xf32>
    %25 = arith.addf %23, %24 : vector<224x784xf32>
    %cst_12 = arith.constant 0.000000e+00 : f32
    %26 = vector.broadcast %cst_12 : f32 to vector<224x784xf32>
    %27 = arith.maximumf %25, %26 : vector<224x784xf32>
    %c0_13 = arith.constant 0 : index
    %c0_14 = arith.constant 0 : index
    %28 = vector.load %arg5[%c0_13, %c0_14] : memref<224x784xf32, #tpu.memory_space<vmem>>, vector<224x784xf32>
    tpu.vector_store %arg5[%c0_13, %c0_14], %27 {strides = array<i32>} : memref<224x784xf32, #tpu.memory_space<vmem>>, vector<224x784xf32>,
    return
  }
  func.func @transform_0(%arg0: i32) -> (i32, i32) {
    %c0_i32 = arith.constant 0 : i32
    %c0_i32_0 = arith.constant 0 : i32
    %c0_i32_1 = arith.constant 0 : i32
    return %c0_i32, %c0_i32_0 : i32, i32
  }
  func.func @transform_1(%arg0: i32) -> (i32, i32) {
    %c0_i32 = arith.constant 0 : i32
    %c0_i32_0 = arith.constant 0 : i32
    return %arg0, %c0_i32 : i32, i32
  }
  func.func @transform_2(%arg0: i32) -> (i32, i32) {
    %c0_i32 = arith.constant 0 : i32
    %c0_i32_0 = arith.constant 0 : i32
    return %arg0, %c0_i32 : i32, i32
  }
  func.func @transform_3(%arg0: i32) -> (i32, i32) {
    %c0_i32 = arith.constant 0 : i32
    %c0_i32_0 = arith.constant 0 : i32
    return %arg0, %c0_i32 : i32, i32
  }
  func.func @transform_4(%arg0: i32) -> (i32, i32) {
    %c0_i32 = arith.constant 0 : i32
    %c0_i32_0 = arith.constant 0 : i32
    return %arg0, %c0_i32 : i32, i32
  }
}

</mosaic_0001>

<llo_original>
// kernel: tpu_custom_call.1
$region0: #{tpu_custom_call.1}
  #allocation0 [shape = 'u32[]', space=smem, size = 0x4, offset = 0x4, fixed_abs, tag = 'smem constant byte address 0x4 - core index']
  #allocation1 [shape = 'u32[72,128]{1,0:T(1,128)}', space=vmem, size = 0x9000, scoped, tag = 'internal scratch']
  %s0 = inlined_call_operand.hbm [shape: bf16[672,784], index: 0, kind: input, shape index: {}]
  %s1 = inlined_call_operand.hbm [shape: bf16[672,672], index: 1, kind: input, shape index: {}]
  %s2 = inlined_call_operand.vmem [shape: f32[672,1], index: 2, kind: input, shape index: {}]
  %s3 = inlined_call_operand.vmem [shape: f32[672,1], index: 3, kind: input, shape index: {}]
  %s4 = inlined_call_operand.hbm [shape: f32[672,784], index: 4, kind: output, shape index: {}]
  %s5 = sld [smem:[#allocation0]]
  $region57: #{tpu_custom_call.1} parent=0
    _
  %s7 = ssub.s32 1, %s5
  %s8 = scalar_select 0, %s7, %s5
  $region1: #{tpu_custom_call.1} parent=0
    #allocation2 [shape = 'u8[1204224]{0}', space=vmem, size = 0x126000, scoped, tag = 'input window, operand 0, single buffered']
    #allocation3 [shape = 's32[2]{0}', space=sflag, size = 0x8, scoped, tag = 'scoped memory for tpu_custom_call.1']
    #allocation4 [shape = 's32[2]{0}', space=sflag, size = 0x8, scoped, tag = 'scoped memory for tpu_custom_call.1']
    #allocation5 [shape = 'u8[688128]{0}', space=vmem, size = 0xa8000, scoped, tag = 'input window, operand 1']
    #allocation6 [shape = 's32[2]{0}', space=sflag, size = 0x8, scoped, tag = 'scoped memory for tpu_custom_call.1']
    #allocation7 [shape = 'u8[1605632]{0}', space=vmem, size = 0x188000, scoped, tag = 'output window, operand 0']
    %9 = vsyncpa [#allocation3], 0
    %10 = vsyncpa [#allocation6], 0
    %s11 = scalar_lea.sflag [#allocation6], 1
    %12 = vsyncpa %s11, 0
    %13 = vsyncpa [#allocation4], 0
    %s14 = scalar_lea.sflag [#allocation4], 1
    %15 = vsyncpa %s14, 0
    loop: start=0, step=1, limit=5
    $region2: #{tpu_custom_call.1} parent=1 // loop_pre_header
      _
    $region3: #{tpu_custom_call.1} parent=1 // loop_header
      %s17 = sphi 0, %s21
      %p18 = scmp.ge.s32.totalorder %s17, 5
      %s25 = sphi 0, %s25
      %s27 = sphi 0, %s25
      %s28 = sphi 0, %s27
      %s42 = sphi 0, %s28
      %s48 = sphi 0, %s50
      %s51 = sphi 0, %s48
      %s52 = sphi 0, %s51
      %s68 = sphi 0, %s52
      %s74 = sphi 0, %s76
      %s77 = sphi 0, %s74
      %s78 = sphi 0, %s77
      %s94 = sphi 0, %s78
      %s100 = sphi 0, %s102
      %s103 = sphi 0, %s100
      %s104 = sphi 0, %s103
      %s120 = sphi 0, %s104
      %s126 = sphi 0, %s128
      %s129 = sphi 0, %s126
      %s130 = sphi 0, %s129
      %s146 = sphi 0, %s130
    $region4: #{tpu_custom_call.1} parent=1 // loop_header_branch
      %20 = sbr.rel (%p18) target = $region8
    $region5: #{tpu_custom_call.1} parent=1 // loop_body
      %s22 = ssub.s32 %s17, 1
      %s23 = ssub.s32 %s17, 2
      %s24 = sadd.s32 %s17, 1
      %s26 = sadd.s32 %s25, 1
      %p29 = scmp.eq.s32.totalorder %s17, 2
      %p30 = scmp.ne.s32.totalorder %s25, %s27
      %p31 = scmp.eq.s32.totalorder %s17, 0
      %p32 = por %p30, %p31
      %p33 = scmp.ne.s32.totalorder %s25, %s27
      %p34 = scmp.eq.s32.totalorder %s22, 2
      %p35 = por %p33, %p34
      %p36 = scmp.ne.s32.totalorder %s27, %s28
      %p37 = scmp.eq.s32.totalorder %s22, 0
      %p38 = por %p36, %p37
      %p39 = scmp.ne.s32.totalorder %s27, %s28
      %p40 = scmp.eq.s32.totalorder %s23, 2
      %p41 = por %p39, %p40
      %p43 = scmp.ne.s32.totalorder %s28, %s42
      %p44 = scmp.eq.s32.totalorder %s23, 0
      %p45 = por %p43, %p44
      %s46 = ssub.s32 %s17, %s24
      %p47 = scmp.eq.s32.totalorder %s46, 0
      %s49 = sadd.s32 %s48, 1
      %s50 = scalar_select %p47, %s48, %s49
      %p53 = pneg %p47
      %p54 = scmp.eq.s32.totalorder %s17, 2
      %p55 = por %p53, %p54
      %p56 = scmp.ne.s32.totalorder %s48, %s51
      %p57 = scmp.eq.s32.totalorder %s17, 0
      %p58 = por %p56, %p57
      %p59 = scmp.ne.s32.totalorder %s48, %s51
      %p60 = scmp.eq.s32.totalorder %s22, 2
      %p61 = por %p59, %p60
      %p62 = scmp.ne.s32.totalorder %s51, %s52
      %p63 = scmp.eq.s32.totalorder %s22, 0
      %p64 = por %p62, %p63
      %p65 = scmp.ne.s32.totalorder %s51, %s52
      %p66 = scmp.eq.s32.totalorder %s23, 2
      %p67 = por %p65, %p66
      %p69 = scmp.ne.s32.totalorder %s52, %s68
      %p70 = scmp.eq.s32.totalorder %s23, 0
      %p71 = por %p69, %p70
      %s72 = ssub.s32 %s17, %s24
      %p73 = scmp.eq.s32.totalorder %s72, 0
      %s75 = sadd.s32 %s74, 1
      %s76 = scalar_select %p73, %s74, %s75
      %p79 = pneg %p73
      %p80 = scmp.eq.s32.totalorder %s17, 2
      %p81 = por %p79, %p80
      %p82 = scmp.ne.s32.totalorder %s74, %s77
      %p83 = scmp.eq.s32.totalorder %s17, 0
      %p84 = por %p82, %p83
      %p85 = scmp.ne.s32.totalorder %s74, %s77
      %p86 = scmp.eq.s32.totalorder %s22, 2
      %p87 = por %p85, %p86
      %p88 = scmp.ne.s32.totalorder %s77, %s78
      %p89 = scmp.eq.s32.totalorder %s22, 0
      %p90 = por %p88, %p89
      %p91 = scmp.ne.s32.totalorder %s77, %s78
      %p92 = scmp.eq.s32.totalorder %s23, 2
      %p93 = por %p91, %p92
      %p95 = scmp.ne.s32.totalorder %s78, %s94
      %p96 = scmp.eq.s32.totalorder %s23, 0
      %p97 = por %p95, %p96
      %s98 = ssub.s32 %s17, %s24
      %p99 = scmp.eq.s32.totalorder %s98, 0
      %s101 = sadd.s32 %s100, 1
      %s102 = scalar_select %p99, %s100, %s101
      %p105 = pneg %p99
      %p106 = scmp.eq.s32.totalorder %s17, 2
      %p107 = por %p105, %p106
      %p108 = scmp.ne.s32.totalorder %s100, %s103
      %p109 = scmp.eq.s32.totalorder %s17, 0
      %p110 = por %p108, %p109
      %p111 = scmp.ne.s32.totalorder %s100, %s103
      %p112 = scmp.eq.s32.totalorder %s22, 2
      %p113 = por %p111, %p112
      %p114 = scmp.ne.s32.totalorder %s103, %s104
      %p115 = scmp.eq.s32.totalorder %s22, 0
      %p116 = por %p114, %p115
      %p117 = scmp.ne.s32.totalorder %s103, %s104
      %p118 = scmp.eq.s32.totalorder %s23, 2
      %p119 = por %p117, %p118
      %p121 = scmp.ne.s32.totalorder %s104, %s120
      %p122 = scmp.eq.s32.totalorder %s23, 0
      %p123 = por %p121, %p122
      %s124 = ssub.s32 %s17, %s24
      %p125 = scmp.eq.s32.totalorder %s124, 0
      %s127 = sadd.s32 %s126, 1
      %s128 = scalar_select %p125, %s126, %s127
      %p131 = pneg %p125
      %p132 = scmp.eq.s32.totalorder %s17, 2
      %p133 = por %p131, %p132
      %p134 = scmp.ne.s32.totalorder %s126, %s129
      %p135 = scmp.eq.s32.totalorder %s17, 0
      %p136 = por %p134, %p135
      %p137 = scmp.ne.s32.totalorder %s126, %s129
      %p138 = scmp.eq.s32.totalorder %s22, 2
      %p139 = por %p137, %p138
      %p140 = scmp.ne.s32.totalorder %s129, %s130
      %p141 = scmp.eq.s32.totalorder %s22, 0
      %p142 = por %p140, %p141
      %p143 = scmp.ne.s32.totalorder %s129, %s130
      %p144 = scmp.eq.s32.totalorder %s23, 2
      %p145 = por %p143, %p144
      %p147 = scmp.ne.s32.totalorder %s130, %s146
      %p148 = scmp.eq.s32.totalorder %s23, 0
      %p149 = por %p147, %p148
      %p150 = scmp.le.s32.totalorder 1, %s17
      %p151 = scmp.lt.s32.totalorder %s17, 4
      %p152 = pnand %p150, %p151
      %p153 = pneg %p152
      // Predicated region
      $region9: #{tpu_custom_call.1} parent=5 // pred_check
        _
      $region10: #{tpu_custom_call.1} parent=5 // pred_check_branch
        %155 = sbr.rel (%p152) target = $region12
      $region11: #{tpu_custom_call.1} parent=5 // pred_region
        %s156 = ssub.s32 %s17, 1
        // Predicated region
        $region13: #{tpu_custom_call.1} parent=11 // pred_check
          %p157 = pneg %p38
        $region14: #{tpu_custom_call.1} parent=11 // pred_check_branch
          %159 = sbr.rel (%p157) target = $region16
        $region15: #{tpu_custom_call.1} parent=11 // pred_region
          %161 = vsyncadd [#allocation3], 0
          %s162 = sshll.u32 %s0, 4
          %s163 = int_to_ptr.hbm [resolvable:$true] %s162
          %s164 = sshll.u32 [#allocation2], 4
          %s165 = int_to_ptr.vmem [resolvable:$true] %s164
          %170 = dma.hbm_to_vmem [thread:$0]  %s163, 37632, %s165, [#allocation3], 448, 448, 28
        $region16: #{tpu_custom_call.1} parent=11 // pred_fallthru
          _
      $region12: #{tpu_custom_call.1} parent=5 // pred_fallthru
        _
      %p171 = scmp.lt.s32.totalorder %s17, 3
      // Predicated region
      $region17: #{tpu_custom_call.1} parent=5 // pred_check
        %p172 = pneg %p171
      $region18: #{tpu_custom_call.1} parent=5 // pred_check_branch
        %174 = sbr.rel (%p172) target = $region20
      $region19: #{tpu_custom_call.1} parent=5 // pred_region
        // Predicated region
        $region21: #{tpu_custom_call.1} parent=19 // pred_check
          %p175 = pneg %p58
        $region22: #{tpu_custom_call.1} parent=19 // pred_check_branch
          %177 = sbr.rel (%p175) target = $region24
        $region23: #{tpu_custom_call.1} parent=19 // pred_region
          %s178 = sand.u32 %s48, 1
          %s179 = scalar_lea.sflag [#allocation6], %s178
          %s180 = sand.u32 %s48, 1
          %s181 = smul.addr %s180, 672
          %s182 = scalar_lea.vmem [#allocation5], %s181
          %s183 = smul.u32 28, %s17
          %185 = vsyncadd %s179, 0
          %s186 = smul.addr %s183, 6
          %s187 = smul.addr %s186, 4
          %s188 = scalar_lea.hbm %s1, %s187
          %s189 = sshll.u32 %s188, 4
          %s190 = int_to_ptr.hbm [resolvable:$true] %s189
          %s191 = sshll.u32 %s182, 4
          %s192 = int_to_ptr.vmem [resolvable:$true] %s191
          %197 = dma.hbm_to_vmem [thread:$0]  %s190, 10752, %s192, %s179, 384, 384, 24
        $region24: #{tpu_custom_call.1} parent=19 // pred_fallthru
          _
        // Predicated region
        $region25: #{tpu_custom_call.1} parent=19 // pred_check
          %p198 = pneg %p84
        $region26: #{tpu_custom_call.1} parent=19 // pred_check_branch
          %200 = sbr.rel (%p198) target = $region28
        $region27: #{tpu_custom_call.1} parent=19 // pred_region
          %s201 = smul.u32 28, %s17
          %p202 = scmp.lt.s32.totalorder %s201, 83
          %s203 = scalar_select %p202, %s201, 83
          %s204 = smul.addr %s203, 8
          %s205 = scalar_lea.vmem %s2, %s204
          %s206 = smul.u32 28, %s17
        $region28: #{tpu_custom_call.1} parent=19 // pred_fallthru
          _
        // Predicated region
        $region29: #{tpu_custom_call.1} parent=19 // pred_check
          %p207 = pneg %p110
        $region30: #{tpu_custom_call.1} parent=19 // pred_check_branch
          %209 = sbr.rel (%p207) target = $region32
        $region31: #{tpu_custom_call.1} parent=19 // pred_region
          %s210 = smul.u32 28, %s17
          %p211 = scmp.lt.s32.totalorder %s210, 83
          %s212 = scalar_select %p211, %s210, 83
          %s213 = smul.addr %s212, 8
          %s214 = scalar_lea.vmem %s3, %s213
          %s215 = smul.u32 28, %s17
        $region32: #{tpu_custom_call.1} parent=19 // pred_fallthru
          _
      $region20: #{tpu_custom_call.1} parent=5 // pred_fallthru
        _
      %p216 = scmp.le.s32.totalorder 1, %s17
      %p217 = scmp.lt.s32.totalorder %s17, 4
      %p218 = pnand %p216, %p217
      %p219 = pneg %p218
      // Predicated region
      $region33: #{tpu_custom_call.1} parent=5 // pred_check
        _
      $region34: #{tpu_custom_call.1} parent=5 // pred_check_branch
        %221 = sbr.rel (%p218) target = $region36
      $region35: #{tpu_custom_call.1} parent=5 // pred_region
        %s222 = ssub.s32 %s17, 1
        // Predicated region
        $region37: #{tpu_custom_call.1} parent=35 // pred_check
          %p223 = pneg %p38
        $region38: #{tpu_custom_call.1} parent=35 // pred_check_branch
          %225 = sbr.rel (%p223) target = $region40
        $region39: #{tpu_custom_call.1} parent=35 // pred_region
          %227 = dma.done [#allocation3], 37632
        $region40: #{tpu_custom_call.1} parent=35 // pred_fallthru
          _
        %s228 = sand.u32 %s51, 1
        %s229 = scalar_lea.sflag [#allocation6], %s228
        %s230 = sand.u32 %s51, 1
        %s231 = smul.addr %s230, 672
        %s232 = scalar_lea.vmem [#allocation5], %s231
        // Predicated region
        $region41: #{tpu_custom_call.1} parent=35 // pred_check
          %p233 = pneg %p64
        $region42: #{tpu_custom_call.1} parent=35 // pred_check_branch
          %235 = sbr.rel (%p233) target = $region44
        $region43: #{tpu_custom_call.1} parent=35 // pred_region
          %237 = dma.done %s229, 10752
        $region44: #{tpu_custom_call.1} parent=35 // pred_fallthru
          _
        %p238 = pneg %p38
        %p239 = pneg %p35
        %s240 = sand.u32 %s51, 1
        %s241 = scalar_lea.sflag [#allocation6], %s240
        %s242 = sand.u32 %s51, 1
        %s243 = smul.addr %s242, 672
        %s244 = scalar_lea.vmem [#allocation5], %s243
        %p245 = pneg %p64
        %p246 = pneg %p61
        %s247 = smul.u32 28, %s22
        %p248 = scmp.lt.s32.totalorder %s247, 83
        %s249 = scalar_select %p248, %s247, 83
        %s250 = smul.addr %s249, 8
        %s251 = scalar_lea.vmem %s2, %s250
        %p252 = pneg %p90
        %p253 = pneg %p87
        %s254 = smul.u32 28, %s22
        %p255 = scmp.lt.s32.totalorder %s254, 83
        %s256 = scalar_select %p255, %s254, 83
        %s257 = smul.addr %s256, 8
        %s258 = scalar_lea.vmem %s3, %s257
        %p259 = pneg %p116
        %p260 = pneg %p113
        %p261 = pneg %p142
        %p262 = pneg %p139
        %s263 = sand.u32 %s129, 1
        %s264 = scalar_lea.sflag [#allocation4], %s263
        %s265 = sand.u32 %s129, 1
        %s266 = smul.addr %s265, 1568
        %s267 = scalar_lea.vmem [#allocation7], %s266
        %s268 = smul.u32 28, %s22
        %s269 = smul.u32 28, %s22
        %p270 = scmp.lt.s32.totalorder %s269, 83
        %s271 = scalar_select %p270, %s269, 83
        %s272 = smul.addr %s271, 8
        %s273 = scalar_lea.vmem %s2, %s272
        %s274 = smul.u32 28, %s22
        %s275 = smul.u32 28, %s22
        %p276 = scmp.lt.s32.totalorder %s275, 83
        %s277 = scalar_select %p276, %s275, 83
        %s278 = smul.addr %s277, 8
        %s279 = scalar_lea.vmem %s3, %s278
        %s280 = smul.u32 28, %s22
        %s281 = smul.u32 28, %s22
        %v283 = vld [vmem:[%s232] sm:$0xff]
        %v284 = vld [vmem:[%s232 + $0x8] sm:$0xff]
        %v285 = vld [vmem:[%s232 + $0x10] sm:$0xff]
        %v286 = vld [vmem:[%s232 + $0x18] sm:$0xff]
        %v287 = vld [vmem:[%s232 + $0x20] sm:$0xff]
        %v288 = vld [vmem:[%s232 + $0x28] sm:$0xff]
        %v289 = vld [vmem:[%s232 + $0x30] sm:$0xff]
        %v290 = vld [vmem:[%s232 + $0x38] sm:$0xff]
        %v291 = vld [vmem:[%s232 + $0x40] sm:$0xff]
        %v292 = vld [vmem:[%s232 + $0x48] sm:$0xff]
        %v293 = vld [vmem:[%s232 + $0x50] sm:$0xff]
        %v294 = vld [vmem:[%s232 + $0x58] sm:$0xff]
        %v295 = vld [vmem:[%s232 + $0x60] sm:$0xff]
        %v296 = vld [vmem:[%s232 + $0x68] sm:$0xff]
        %v297 = vld [vmem:[%s232 + $0x70] sm:$0xff]
        %v298 = vld [vmem:[%s232 + $0x78] sm:$0xff]
        %v299 = vld [vmem:[%s232 + $0x80] sm:$0xff]
        %v300 = vld [vmem:[%s232 + $0x88] sm:$0xff]
        %v301 = vld [vmem:[%s232 + $0x90] sm:$0xff]
        %v302 = vld [vmem:[%s232 + $0x98] sm:$0xff]
        %v303 = vld [vmem:[%s232 + $0xa0] sm:$0xff]
        %v304 = vld [vmem:[%s232 + $0xa8] sm:$0xff]
        %v305 = vld [vmem:[%s232 + $0xb0] sm:$0xff]
        %v306 = vld [vmem:[%s232 + $0xb8] sm:$0xff]
        %v307 = vld [vmem:[%s232 + $0xc0] sm:$0xff]
        %v308 = vld [vmem:[%s232 + $0xc8] sm:$0xff]
        %v309 = vld [vmem:[%s232 + $0xd0] sm:$0xff]
        %v310 = vld [vmem:[%s232 + $0xd8] sm:$0xff]
        %v311 = vld [vmem:[%s232 + $0xe0] sm:$0xff]
        %v312 = vld [vmem:[%s232 + $0xe8] sm:$0xff]
        %v313 = vld [vmem:[%s232 + $0xf0] sm:$0xff]
        %v314 = vld [vmem:[%s232 + $0xf8] sm:$0xff]
        %v315 = vld [vmem:[%s232 + $0x100] sm:$0xff]
        %v316 = vld [vmem:[%s232 + $0x108] sm:$0xff]
        %v317 = vld [vmem:[%s232 + $0x110] sm:$0xff]
        %v318 = vld [vmem:[%s232 + $0x118] sm:$0xff]
        %v319 = vld [vmem:[%s232 + $0x120] sm:$0xff]
        %v320 = vld [vmem:[%s232 + $0x128] sm:$0xff]
        %v321 = vld [vmem:[%s232 + $0x130] sm:$0xff]
        %v322 = vld [vmem:[%s232 + $0x138] sm:$0xff]
        %v323 = vld [vmem:[%s232 + $0x140] sm:$0xff]
        %v324 = vld [vmem:[%s232 + $0x148] sm:$0xff]
        %v325 = vld [vmem:[%s232 + $0x150] sm:$0xff]
        %v326 = vld [vmem:[%s232 + $0x158] sm:$0xff]
        %v327 = vld [vmem:[%s232 + $0x160] sm:$0xff]
        %v328 = vld [vmem:[%s232 + $0x168] sm:$0xff]
        %v329 = vld [vmem:[%s232 + $0x170] sm:$0xff]
        %v330 = vld [vmem:[%s232 + $0x178] sm:$0xff]
        %v331 = vld [vmem:[%s232 + $0x180] sm:$0xff]
        %v332 = vld [vmem:[%s232 + $0x188] sm:$0xff]
        %v333 = vld [vmem:[%s232 + $0x190] sm:$0xff]
        %v334 = vld [vmem:[%s232 + $0x198] sm:$0xff]
        %v335 = vld [vmem:[%s232 + $0x1a0] sm:$0xff]
        %v336 = vld [vmem:[%s232 + $0x1a8] sm:$0xff]
        %v337 = vld [vmem:[%s232 + $0x1b0] sm:$0xff]
        %v338 = vld [vmem:[%s232 + $0x1b8] sm:$0xff]
        %v339 = vld [vmem:[%s232 + $0x1c0] sm:$0xff]
        %v340 = vld [vmem:[%s232 + $0x1c8] sm:$0xff]
        %v341 = vld [vmem:[%s232 + $0x1d0] sm:$0xff]
        %v342 = vld [vmem:[%s232 + $0x1d8] sm:$0xff]
        %v343 = vld [vmem:[%s232 + $0x1e0] sm:$0xff]
        %v344 = vld [vmem:[%s232 + $0x1e8] sm:$0xff]
        %v345 = vld [vmem:[%s232 + $0x1f0] sm:$0xff]
        %v346 = vld [vmem:[%s232 + $0x1f8] sm:$0xff]
        %v347 = vld [vmem:[%s232 + $0x200] sm:$0xff]
        %v348 = vld [vmem:[%s232 + $0x208] sm:$0xff]
        %v349 = vld [vmem:[%s232 + $0x210] sm:$0xff]
        %v350 = vld [vmem:[%s232 + $0x218] sm:$0xff]
        %v351 = vld [vmem:[%s232 + $0x220] sm:$0xff]
        %v352 = vld [vmem:[%s232 + $0x228] sm:$0xff]
        %v353 = vld [vmem:[%s232 + $0x230] sm:$0xff]
        %v354 = vld [vmem:[%s232 + $0x238] sm:$0xff]
        %v355 = vld [vmem:[%s232 + $0x240] sm:$0xff]
        %v356 = vld [vmem:[%s232 + $0x248] sm:$0xff]
        %v357 = vld [vmem:[%s232 + $0x250] sm:$0xff]
        %v358 = vld [vmem:[%s232 + $0x258] sm:$0xff]
        %v359 = vld [vmem:[%s232 + $0x260] sm:$0xff]
        %v360 = vld [vmem:[%s232 + $0x268] sm:$0xff]
        %v361 = vld [vmem:[%s232 + $0x270] sm:$0xff]
        %v362 = vld [vmem:[%s232 + $0x278] sm:$0xff]
        %v363 = vld [vmem:[%s232 + $0x280] sm:$0xff]
        %v364 = vld [vmem:[%s232 + $0x288] sm:$0xff]
        %v365 = vld [vmem:[%s232 + $0x290] sm:$0xff]
        %v366 = vld [vmem:[%s232 + $0x298] sm:$0xff]
        %v367 = vld [vmem:[#allocation2] sm:$0xff]
        %v368 = vld [vmem:[#allocation2 + $0x8] sm:$0xff]
        %v369 = vld [vmem:[#allocation2 + $0x10] sm:$0xff]
        %v370 = vld [vmem:[#allocation2 + $0x18] sm:$0xf]
        %v371 = vld [vmem:[#allocation2 + $0x1c] sm:$0xff]
        %v372 = vld [vmem:[#allocation2 + $0x24] sm:$0xff]
        %v373 = vld [vmem:[#allocation2 + $0x2c] sm:$0xff]
        %v374 = vld [vmem:[#allocation2 + $0x34] sm:$0xf]
        %v375 = vld [vmem:[#allocation2 + $0x38] sm:$0xff]
        %v376 = vld [vmem:[#allocation2 + $0x40] sm:$0xff]
        %v377 = vld [vmem:[#allocation2 + $0x48] sm:$0xff]
        %v378 = vld [vmem:[#allocation2 + $0x50] sm:$0xf]
        %v379 = vld [vmem:[#allocation2 + $0x54] sm:$0xff]
        %v380 = vld [vmem:[#allocation2 + $0x5c] sm:$0xff]
        %v381 = vld [vmem:[#allocation2 + $0x64] sm:$0xff]
        %v382 = vld [vmem:[#allocation2 + $0x6c] sm:$0xf]
        %v383 = vld [vmem:[#allocation2 + $0x70] sm:$0xff]
        %v384 = vld [vmem:[#allocation2 + $0x78] sm:$0xff]
        %v385 = vld [vmem:[#allocation2 + $0x80] sm:$0xff]
        %v386 = vld [vmem:[#allocation2 + $0x88] sm:$0xf]
        %v387 = vld [vmem:[#allocation2 + $0x8c] sm:$0xff]
        %v388 = vld [vmem:[#allocation2 + $0x94] sm:$0xff]
        %v389 = vld [vmem:[#allocation2 + $0x9c] sm:$0xff]
        %v390 = vld [vmem:[#allocation2 + $0xa4] sm:$0xf]
        %v391 = vld [vmem:[#allocation2 + $0xa8] sm:$0xff]
        %v392 = vld [vmem:[#allocation2 + $0xb0] sm:$0xff]
        %v393 = vld [vmem:[#allocation2 + $0xb8] sm:$0xff]
        %v394 = vld [vmem:[#allocation2 + $0xc0] sm:$0xf]
        %v395 = vld [vmem:[#allocation2 + $0xc4] sm:$0xff]
        %v396 = vld [vmem:[#allocation2 + $0xcc] sm:$0xff]
        %v397 = vld [vmem:[#allocation2 + $0xd4] sm:$0xff]
        %v398 = vld [vmem:[#allocation2 + $0xdc] sm:$0xf]
        %v399 = vld [vmem:[#allocation2 + $0xe0] sm:$0xff]
        %v400 = vld [vmem:[#allocation2 + $0xe8] sm:$0xff]
        %v401 = vld [vmem:[#allocation2 + $0xf0] sm:$0xff]
        %v402 = vld [vmem:[#allocation2 + $0xf8] sm:$0xf]
        %v403 = vld [vmem:[#allocation2 + $0xfc] sm:$0xff]
        %v404 = vld [vmem:[#allocation2 + $0x104] sm:$0xff]
        %v405 = vld [vmem:[#allocation2 + $0x10c] sm:$0xff]
        %v406 = vld [vmem:[#allocation2 + $0x114] sm:$0xf]
        %v407 = vld [vmem:[#allocation2 + $0x118] sm:$0xff]
        %v408 = vld [vmem:[#allocation2 + $0x120] sm:$0xff]
        %v409 = vld [vmem:[#allocation2 + $0x128] sm:$0xff]
        %v410 = vld [vmem:[#allocation2 + $0x130] sm:$0xf]
        %v411 = vld [vmem:[#allocation2 + $0x134] sm:$0xff]
        %v412 = vld [vmem:[#allocation2 + $0x13c] sm:$0xff]
        %v413 = vld [vmem:[#allocation2 + $0x144] sm:$0xff]
        %v414 = vld [vmem:[#allocation2 + $0x14c] sm:$0xf]
        %v415 = vld [vmem:[#allocation2 + $0x150] sm:$0xff]
        %v416 = vld [vmem:[#allocation2 + $0x158] sm:$0xff]
        %v417 = vld [vmem:[#allocation2 + $0x160] sm:$0xff]
        %v418 = vld [vmem:[#allocation2 + $0x168] sm:$0xf]
        %v419 = vld [vmem:[#allocation2 + $0x16c] sm:$0xff]
        %v420 = vld [vmem:[#allocation2 + $0x174] sm:$0xff]
        %v421 = vld [vmem:[#allocation2 + $0x17c] sm:$0xff]
        %v422 = vld [vmem:[#allocation2 + $0x184] sm:$0xf]
        %v423 = vld [vmem:[#allocation2 + $0x188] sm:$0xff]
        %v424 = vld [vmem:[#allocation2 + $0x190] sm:$0xff]
        %v425 = vld [vmem:[#allocation2 + $0x198] sm:$0xff]
        %v426 = vld [vmem:[#allocation2 + $0x1a0] sm:$0xf]
        %v427 = vld [vmem:[#allocation2 + $0x1a4] sm:$0xff]
        %v428 = vld [vmem:[#allocation2 + $0x1ac] sm:$0xff]
        %v429 = vld [vmem:[#allocation2 + $0x1b4] sm:$0xff]
        %v430 = vld [vmem:[#allocation2 + $0x1bc] sm:$0xf]
        %v431 = vld [vmem:[#allocation2 + $0x1c0] sm:$0xff]
        %v432 = vld [vmem:[#allocation2 + $0x1c8] sm:$0xff]
        %v433 = vld [vmem:[#allocation2 + $0x1d0] sm:$0xff]
        %v434 = vld [vmem:[#allocation2 + $0x1d8] sm:$0xf]
        %v435 = vld [vmem:[#allocation2 + $0x1dc] sm:$0xff]
        %v436 = vld [vmem:[#allocation2 + $0x1e4] sm:$0xff]
        %v437 = vld [vmem:[#allocation2 + $0x1ec] sm:$0xff]
        %v438 = vld [vmem:[#allocation2 + $0x1f4] sm:$0xf]
        %v439 = vld [vmem:[#allocation2 + $0x1f8] sm:$0xff]
        %v440 = vld [vmem:[#allocation2 + $0x200] sm:$0xff]
        %v441 = vld [vmem:[#allocation2 + $0x208] sm:$0xff]
        %v442 = vld [vmem:[#allocation2 + $0x210] sm:$0xf]
        %v443 = vld [vmem:[#allocation2 + $0x214] sm:$0xff]
        %v444 = vld [vmem:[#allocation2 + $0x21c] sm:$0xff]
        %v445 = vld [vmem:[#allocation2 + $0x224] sm:$0xff]
        %v446 = vld [vmem:[#allocation2 + $0x22c] sm:$0xf]
        %v447 = vld [vmem:[#allocation2 + $0x230] sm:$0xff]
        %v448 = vld [vmem:[#allocation2 + $0x238] sm:$0xff]
        %v449 = vld [vmem:[#allocation2 + $0x240] sm:$0xff]
        %v450 = vld [vmem:[#allocation2 + $0x248] sm:$0xf]
        %v451 = vld [vmem:[#allocation2 + $0x24c] sm:$0xff]
        %v452 = vld [vmem:[#allocation2 + $0x254] sm:$0xff]
        %v453 = vld [vmem:[#allocation2 + $0x25c] sm:$0xff]
        %v454 = vld [vmem:[#allocation2 + $0x264] sm:$0xf]
        %v455 = vld [vmem:[#allocation2 + $0x268] sm:$0xff]
        %v456 = vld [vmem:[#allocation2 + $0x270] sm:$0xff]
        %v457 = vld [vmem:[#allocation2 + $0x278] sm:$0xff]
        %v458 = vld [vmem:[#allocation2 + $0x280] sm:$0xf]
        %v459 = vld [vmem:[#allocation2 + $0x284] sm:$0xff]
        %v460 = vld [vmem:[#allocation2 + $0x28c] sm:$0xff]
        %v461 = vld [vmem:[#allocation2 + $0x294] sm:$0xff]
        %v462 = vld [vmem:[#allocation2 + $0x29c] sm:$0xf]
        %v463 = vld [vmem:[#allocation2 + $0x2a0] sm:$0xff]
        %v464 = vld [vmem:[#allocation2 + $0x2a8] sm:$0xff]
        %v465 = vld [vmem:[#allocation2 + $0x2b0] sm:$0xff]
        %v466 = vld [vmem:[#allocation2 + $0x2b8] sm:$0xf]
        %v467 = vld [vmem:[#allocation2 + $0x2bc] sm:$0xff]
        %v468 = vld [vmem:[#allocation2 + $0x2c4] sm:$0xff]
        %v469 = vld [vmem:[#allocation2 + $0x2cc] sm:$0xff]
        %v470 = vld [vmem:[#allocation2 + $0x2d4] sm:$0xf]
        %v471 = vld [vmem:[#allocation2 + $0x2d8] sm:$0xff]
        %v472 = vld [vmem:[#allocation2 + $0x2e0] sm:$0xff]
        %v473 = vld [vmem:[#allocation2 + $0x2e8] sm:$0xff]
        %v474 = vld [vmem:[#allocation2 + $0x2f0] sm:$0xf]
        %v475 = vld [vmem:[#allocation2 + $0x2f4] sm:$0xff]
        %v476 = vld [vmem:[#allocation2 + $0x2fc] sm:$0xff]
        %v477 = vld [vmem:[#allocation2 + $0x304] sm:$0xff]
        %v478 = vld [vmem:[#allocation2 + $0x30c] sm:$0xf]
        %v479 = vld [vmem:[#allocation2 + $0x310] sm:$0xff]
        %v480 = vld [vmem:[#allocation2 + $0x318] sm:$0xff]
        %v481 = vld [vmem:[#allocation2 + $0x320] sm:$0xff]
        %v482 = vld [vmem:[#allocation2 + $0x328] sm:$0xf]
        %v483 = vld [vmem:[#allocation2 + $0x32c] sm:$0xff]
        %v484 = vld [vmem:[#allocation2 + $0x334] sm:$0xff]
        %v485 = vld [vmem:[#allocation2 + $0x33c] sm:$0xff]
        %v486 = vld [vmem:[#allocation2 + $0x344] sm:$0xf]
        %v487 = vld [vmem:[#allocation2 + $0x348] sm:$0xff]
        %v488 = vld [vmem:[#allocation2 + $0x350] sm:$0xff]
        %v489 = vld [vmem:[#allocation2 + $0x358] sm:$0xff]
        %v490 = vld [vmem:[#allocation2 + $0x360] sm:$0xf]
        %v491 = vld [vmem:[#allocation2 + $0x364] sm:$0xff]
        %v492 = vld [vmem:[#allocation2 + $0x36c] sm:$0xff]
        %v493 = vld [vmem:[#allocation2 + $0x374] sm:$0xff]
        %v494 = vld [vmem:[#allocation2 + $0x37c] sm:$0xf]
        %v495 = vld [vmem:[#allocation2 + $0x380] sm:$0xff]
        %v496 = vld [vmem:[#allocation2 + $0x388] sm:$0xff]
        %v497 = vld [vmem:[#allocation2 + $0x390] sm:$0xff]
        %v498 = vld [vmem:[#allocation2 + $0x398] sm:$0xf]
        %v499 = vld [vmem:[#allocation2 + $0x39c] sm:$0xff]
        %v500 = vld [vmem:[#allocation2 + $0x3a4] sm:$0xff]
        %v501 = vld [vmem:[#allocation2 + $0x3ac] sm:$0xff]
        %v502 = vld [vmem:[#allocation2 + $0x3b4] sm:$0xf]
        %v503 = vld [vmem:[#allocation2 + $0x3b8] sm:$0xff]
        %v504 = vld [vmem:[#allocation2 + $0x3c0] sm:$0xff]
        %v505 = vld [vmem:[#allocation2 + $0x3c8] sm:$0xff]
        %v506 = vld [vmem:[#allocation2 + $0x3d0] sm:$0xf]
        %v507 = vld [vmem:[#allocation2 + $0x3d4] sm:$0xff]
        %v508 = vld [vmem:[#allocation2 + $0x3dc] sm:$0xff]
        %v509 = vld [vmem:[#allocation2 + $0x3e4] sm:$0xff]
        %v510 = vld [vmem:[#allocation2 + $0x3ec] sm:$0xf]
        %v511 = vld [vmem:[#allocation2 + $0x3f0] sm:$0xff]
        %v512 = vld [vmem:[#allocation2 + $0x3f8] sm:$0xff]
        %v513 = vld [vmem:[#allocation2 + $0x400] sm:$0xff]
        %v514 = vld [vmem:[#allocation2 + $0x408] sm:$0xf]
        %v515 = vld [vmem:[#allocation2 + $0x40c] sm:$0xff]
        %v516 = vld [vmem:[#allocation2 + $0x414] sm:$0xff]
        %v517 = vld [vmem:[#allocation2 + $0x41c] sm:$0xff]
        %v518 = vld [vmem:[#allocation2 + $0x424] sm:$0xf]
        %v519 = vld [vmem:[#allocation2 + $0x428] sm:$0xff]
        %v520 = vld [vmem:[#allocation2 + $0x430] sm:$0xff]
        %v521 = vld [vmem:[#allocation2 + $0x438] sm:$0xff]
        %v522 = vld [vmem:[#allocation2 + $0x440] sm:$0xf]
        %v523 = vld [vmem:[#allocation2 + $0x444] sm:$0xff]
        %v524 = vld [vmem:[#allocation2 + $0x44c] sm:$0xff]
        %v525 = vld [vmem:[#allocation2 + $0x454] sm:$0xff]
        %v526 = vld [vmem:[#allocation2 + $0x45c] sm:$0xf]
        %v527 = vld [vmem:[#allocation2 + $0x460] sm:$0xff]
        %v528 = vld [vmem:[#allocation2 + $0x468] sm:$0xff]
        %v529 = vld [vmem:[#allocation2 + $0x470] sm:$0xff]
        %v530 = vld [vmem:[#allocation2 + $0x478] sm:$0xf]
        %v531 = vld [vmem:[#allocation2 + $0x47c] sm:$0xff]
        %v532 = vld [vmem:[#allocation2 + $0x484] sm:$0xff]
        %v533 = vld [vmem:[#allocation2 + $0x48c] sm:$0xff]
        %v534 = vld [vmem:[#allocation2 + $0x494] sm:$0xf]
        %v535 = vld [vmem:[#allocation2 + $0x498] sm:$0xff]
        %v536 = vld [vmem:[#allocation2 + $0x4a0] sm:$0xff]
        %v537 = vld [vmem:[#allocation2 + $0x4a8] sm:$0xff]
        %v538 = vld [vmem:[#allocation2 + $0x4b0] sm:$0xf]
        %v539 = vld [vmem:[#allocation2 + $0x4b4] sm:$0xff]
        %v540 = vld [vmem:[#allocation2 + $0x4bc] sm:$0xff]
        %v541 = vld [vmem:[#allocation2 + $0x4c4] sm:$0xff]
        %v542 = vld [vmem:[#allocation2 + $0x4cc] sm:$0xf]
        %v543 = vld [vmem:[#allocation2 + $0x4d0] sm:$0xff]
        %v544 = vld [vmem:[#allocation2 + $0x4d8] sm:$0xff]
        %v545 = vld [vmem:[#allocation2 + $0x4e0] sm:$0xff]
        %v546 = vld [vmem:[#allocation2 + $0x4e8] sm:$0xf]
        %v547 = vld [vmem:[#allocation2 + $0x4ec] sm:$0xff]
        %v548 = vld [vmem:[#allocation2 + $0x4f4] sm:$0xff]
        %v549 = vld [vmem:[#allocation2 + $0x4fc] sm:$0xff]
        %v550 = vld [vmem:[#allocation2 + $0x504] sm:$0xf]
        %v551 = vld [vmem:[#allocation2 + $0x508] sm:$0xff]
        %v552 = vld [vmem:[#allocation2 + $0x510] sm:$0xff]
        %v553 = vld [vmem:[#allocation2 + $0x518] sm:$0xff]
        %v554 = vld [vmem:[#allocation2 + $0x520] sm:$0xf]
        %v555 = vld [vmem:[#allocation2 + $0x524] sm:$0xff]
        %v556 = vld [vmem:[#allocation2 + $0x52c] sm:$0xff]
        %v557 = vld [vmem:[#allocation2 + $0x534] sm:$0xff]
        %v558 = vld [vmem:[#allocation2 + $0x53c] sm:$0xf]
        %v559 = vld [vmem:[#allocation2 + $0x540] sm:$0xff]
        %v560 = vld [vmem:[#allocation2 + $0x548] sm:$0xff]
        %v561 = vld [vmem:[#allocation2 + $0x550] sm:$0xff]
        %v562 = vld [vmem:[#allocation2 + $0x558] sm:$0xf]
        %v563 = vld [vmem:[#allocation2 + $0x55c] sm:$0xff]
        %v564 = vld [vmem:[#allocation2 + $0x564] sm:$0xff]
        %v565 = vld [vmem:[#allocation2 + $0x56c] sm:$0xff]
        %v566 = vld [vmem:[#allocation2 + $0x574] sm:$0xf]
        %v567 = vld [vmem:[#allocation2 + $0x578] sm:$0xff]
        %v568 = vld [vmem:[#allocation2 + $0x580] sm:$0xff]
        %v569 = vld [vmem:[#allocation2 + $0x588] sm:$0xff]
        %v570 = vld [vmem:[#allocation2 + $0x590] sm:$0xf]
        %v571 = vld [vmem:[#allocation2 + $0x594] sm:$0xff]
        %v572 = vld [vmem:[#allocation2 + $0x59c] sm:$0xff]
        %v573 = vld [vmem:[#allocation2 + $0x5a4] sm:$0xff]
        %v574 = vld [vmem:[#allocation2 + $0x5ac] sm:$0xf]
        %v575 = vld [vmem:[#allocation2 + $0x5b0] sm:$0xff]
        %v576 = vld [vmem:[#allocation2 + $0x5b8] sm:$0xff]
        %v577 = vld [vmem:[#allocation2 + $0x5c0] sm:$0xff]
        %v578 = vld [vmem:[#allocation2 + $0x5c8] sm:$0xf]
        %v579 = vld [vmem:[#allocation2 + $0x5cc] sm:$0xff]
        %v580 = vld [vmem:[#allocation2 + $0x5d4] sm:$0xff]
        %v581 = vld [vmem:[#allocation2 + $0x5dc] sm:$0xff]
        %v582 = vld [vmem:[#allocation2 + $0x5e4] sm:$0xf]
        %v583 = vld [vmem:[#allocation2 + $0x5e8] sm:$0xff]
        %v584 = vld [vmem:[#allocation2 + $0x5f0] sm:$0xff]
        %v585 = vld [vmem:[#allocation2 + $0x5f8] sm:$0xff]
        %v586 = vld [vmem:[#allocation2 + $0x600] sm:$0xf]
        %v587 = vld [vmem:[#allocation2 + $0x604] sm:$0xff]
        %v588 = vld [vmem:[#allocation2 + $0x60c] sm:$0xff]
        %v589 = vld [vmem:[#allocation2 + $0x614] sm:$0xff]
        %v590 = vld [vmem:[#allocation2 + $0x61c] sm:$0xf]
        %v591 = vld [vmem:[#allocation2 + $0x620] sm:$0xff]
        %v592 = vld [vmem:[#allocation2 + $0x628] sm:$0xff]
        %v593 = vld [vmem:[#allocation2 + $0x630] sm:$0xff]
        %v594 = vld [vmem:[#allocation2 + $0x638] sm:$0xf]
        %v595 = vld [vmem:[#allocation2 + $0x63c] sm:$0xff]
        %v596 = vld [vmem:[#allocation2 + $0x644] sm:$0xff]
        %v597 = vld [vmem:[#allocation2 + $0x64c] sm:$0xff]
        %v598 = vld [vmem:[#allocation2 + $0x654] sm:$0xf]
        %v599 = vld [vmem:[#allocation2 + $0x658] sm:$0xff]
        %v600 = vld [vmem:[#allocation2 + $0x660] sm:$0xff]
        %v601 = vld [vmem:[#allocation2 + $0x668] sm:$0xff]
        %v602 = vld [vmem:[#allocation2 + $0x670] sm:$0xf]
        %v603 = vld [vmem:[#allocation2 + $0x674] sm:$0xff]
        %v604 = vld [vmem:[#allocation2 + $0x67c] sm:$0xff]
        %v605 = vld [vmem:[#allocation2 + $0x684] sm:$0xff]
        %v606 = vld [vmem:[#allocation2 + $0x68c] sm:$0xf]
        %v607 = vld [vmem:[#allocation2 + $0x690] sm:$0xff]
        %v608 = vld [vmem:[#allocation2 + $0x698] sm:$0xff]
        %v609 = vld [vmem:[#allocation2 + $0x6a0] sm:$0xff]
        %v610 = vld [vmem:[#allocation2 + $0x6a8] sm:$0xf]
        %v611 = vld [vmem:[#allocation2 + $0x6ac] sm:$0xff]
        %v612 = vld [vmem:[#allocation2 + $0x6b4] sm:$0xff]
        %v613 = vld [vmem:[#allocation2 + $0x6bc] sm:$0xff]
        %v614 = vld [vmem:[#allocation2 + $0x6c4] sm:$0xf]
        %v615 = vld [vmem:[#allocation2 + $0x6c8] sm:$0xff]
        %v616 = vld [vmem:[#allocation2 + $0x6d0] sm:$0xff]
        %v617 = vld [vmem:[#allocation2 + $0x6d8] sm:$0xff]
        %v618 = vld [vmem:[#allocation2 + $0x6e0] sm:$0xf]
        %v619 = vld [vmem:[#allocation2 + $0x6e4] sm:$0xff]
        %v620 = vld [vmem:[#allocation2 + $0x6ec] sm:$0xff]
        %v621 = vld [vmem:[#allocation2 + $0x6f4] sm:$0xff]
        %v622 = vld [vmem:[#allocation2 + $0x6fc] sm:$0xf]
        %v623 = vld [vmem:[#allocation2 + $0x700] sm:$0xff]
        %v624 = vld [vmem:[#allocation2 + $0x708] sm:$0xff]
        %v625 = vld [vmem:[#allocation2 + $0x710] sm:$0xff]
        %v626 = vld [vmem:[#allocation2 + $0x718] sm:$0xf]
        %v627 = vld [vmem:[#allocation2 + $0x71c] sm:$0xff]
        %v628 = vld [vmem:[#allocation2 + $0x724] sm:$0xff]
        %v629 = vld [vmem:[#allocation2 + $0x72c] sm:$0xff]
        %v630 = vld [vmem:[#allocation2 + $0x734] sm:$0xf]
        %v631 = vld [vmem:[#allocation2 + $0x738] sm:$0xff]
        %v632 = vld [vmem:[#allocation2 + $0x740] sm:$0xff]
        %v633 = vld [vmem:[#allocation2 + $0x748] sm:$0xff]
        %v634 = vld [vmem:[#allocation2 + $0x750] sm:$0xf]
        %v635 = vld [vmem:[#allocation2 + $0x754] sm:$0xff]
        %v636 = vld [vmem:[#allocation2 + $0x75c] sm:$0xff]
        %v637 = vld [vmem:[#allocation2 + $0x764] sm:$0xff]
        %v638 = vld [vmem:[#allocation2 + $0x76c] sm:$0xf]
        %v639 = vld [vmem:[#allocation2 + $0x770] sm:$0xff]
        %v640 = vld [vmem:[#allocation2 + $0x778] sm:$0xff]
        %v641 = vld [vmem:[#allocation2 + $0x780] sm:$0xff]
        %v642 = vld [vmem:[#allocation2 + $0x788] sm:$0xf]
        %v643 = vld [vmem:[#allocation2 + $0x78c] sm:$0xff]
        %v644 = vld [vmem:[#allocation2 + $0x794] sm:$0xff]
        %v645 = vld [vmem:[#allocation2 + $0x79c] sm:$0xff]
        %v646 = vld [vmem:[#allocation2 + $0x7a4] sm:$0xf]
        %v647 = vld [vmem:[#allocation2 + $0x7a8] sm:$0xff]
        %v648 = vld [vmem:[#allocation2 + $0x7b0] sm:$0xff]
        %v649 = vld [vmem:[#allocation2 + $0x7b8] sm:$0xff]
        %v650 = vld [vmem:[#allocation2 + $0x7c0] sm:$0xf]
        %v651 = vld [vmem:[#allocation2 + $0x7c4] sm:$0xff]
        %v652 = vld [vmem:[#allocation2 + $0x7cc] sm:$0xff]
        %v653 = vld [vmem:[#allocation2 + $0x7d4] sm:$0xff]
        %v654 = vld [vmem:[#allocation2 + $0x7dc] sm:$0xf]
        %v655 = vld [vmem:[#allocation2 + $0x7e0] sm:$0xff]
        %v656 = vld [vmem:[#allocation2 + $0x7e8] sm:$0xff]
        %v657 = vld [vmem:[#allocation2 + $0x7f0] sm:$0xff]
        %v658 = vld [vmem:[#allocation2 + $0x7f8] sm:$0xf]
        %v659 = vld [vmem:[#allocation2 + $0x7fc] sm:$0xff]
        %v660 = vld [vmem:[#allocation2 + $0x804] sm:$0xff]
        %v661 = vld [vmem:[#allocation2 + $0x80c] sm:$0xff]
        %v662 = vld [vmem:[#allocation2 + $0x814] sm:$0xf]
        %v663 = vld [vmem:[#allocation2 + $0x818] sm:$0xff]
        %v664 = vld [vmem:[#allocation2 + $0x820] sm:$0xff]
        %v665 = vld [vmem:[#allocation2 + $0x828] sm:$0xff]
        %v666 = vld [vmem:[#allocation2 + $0x830] sm:$0xf]
        %v667 = vld [vmem:[#allocation2 + $0x834] sm:$0xff]
        %v668 = vld [vmem:[#allocation2 + $0x83c] sm:$0xff]
        %v669 = vld [vmem:[#allocation2 + $0x844] sm:$0xff]
        %v670 = vld [vmem:[#allocation2 + $0x84c] sm:$0xf]
        %v671 = vld [vmem:[#allocation2 + $0x850] sm:$0xff]
        %v672 = vld [vmem:[#allocation2 + $0x858] sm:$0xff]
        %v673 = vld [vmem:[#allocation2 + $0x860] sm:$0xff]
        %v674 = vld [vmem:[#allocation2 + $0x868] sm:$0xf]
        %v675 = vld [vmem:[#allocation2 + $0x86c] sm:$0xff]
        %v676 = vld [vmem:[#allocation2 + $0x874] sm:$0xff]
        %v677 = vld [vmem:[#allocation2 + $0x87c] sm:$0xff]
        %v678 = vld [vmem:[#allocation2 + $0x884] sm:$0xf]
        %v679 = vld [vmem:[#allocation2 + $0x888] sm:$0xff]
        %v680 = vld [vmem:[#allocation2 + $0x890] sm:$0xff]
        %v681 = vld [vmem:[#allocation2 + $0x898] sm:$0xff]
        %v682 = vld [vmem:[#allocation2 + $0x8a0] sm:$0xf]
        %v683 = vld [vmem:[#allocation2 + $0x8a4] sm:$0xff]
        %v684 = vld [vmem:[#allocation2 + $0x8ac] sm:$0xff]
        %v685 = vld [vmem:[#allocation2 + $0x8b4] sm:$0xff]
        %v686 = vld [vmem:[#allocation2 + $0x8bc] sm:$0xf]
        %v687 = vld [vmem:[#allocation2 + $0x8c0] sm:$0xff]
        %v688 = vld [vmem:[#allocation2 + $0x8c8] sm:$0xff]
        %v689 = vld [vmem:[#allocation2 + $0x8d0] sm:$0xff]
        %v690 = vld [vmem:[#allocation2 + $0x8d8] sm:$0xf]
        %v691 = vld [vmem:[#allocation2 + $0x8dc] sm:$0xff]
        %v692 = vld [vmem:[#allocation2 + $0x8e4] sm:$0xff]
        %v693 = vld [vmem:[#allocation2 + $0x8ec] sm:$0xff]
        %v694 = vld [vmem:[#allocation2 + $0x8f4] sm:$0xf]
        %v695 = vld [vmem:[#allocation2 + $0x8f8] sm:$0xff]
        %v696 = vld [vmem:[#allocation2 + $0x900] sm:$0xff]
        %v697 = vld [vmem:[#allocation2 + $0x908] sm:$0xff]
        %v698 = vld [vmem:[#allocation2 + $0x910] sm:$0xf]
        %v699 = vld [vmem:[#allocation2 + $0x914] sm:$0xff]
        %v700 = vld [vmem:[#allocation2 + $0x91c] sm:$0xff]
        %v701 = vld [vmem:[#allocation2 + $0x924] sm:$0xff]
        %v702 = vld [vmem:[#allocation2 + $0x92c] sm:$0xf]
        %v787 = vunpack.c.l.b16 %v283
        %v788 = vunpack.c.h.b16 %v283
        %v789 = vunpack.c.l.b16 %v284
        %v790 = vunpack.c.h.b16 %v284
        %v791 = vunpack.c.l.b16 %v285
        %v792 = vunpack.c.h.b16 %v285
        %v793 = vunpack.c.l.b16 %v286
        %v794 = vunpack.c.h.b16 %v286
        %v795 = vunpack.c.l.b16 %v287
        %v796 = vunpack.c.h.b16 %v287
        %v797 = vunpack.c.l.b16 %v288
        %v798 = vunpack.c.h.b16 %v288
        %v799 = vunpack.c.l.b16 %v289
        %v800 = vunpack.c.h.b16 %v289
        %v801 = vunpack.c.l.b16 %v290
        %v802 = vunpack.c.h.b16 %v290
        %v803 = vunpack.c.l.b16 %v291
        %v804 = vunpack.c.h.b16 %v291
        %v805 = vunpack.c.l.b16 %v292
        %v806 = vunpack.c.h.b16 %v292
        %v807 = vunpack.c.l.b16 %v293
        %v808 = vunpack.c.h.b16 %v293
        %v809 = vunpack.c.l.b16 %v294
        %v810 = vunpack.c.h.b16 %v294
        %v811 = vunpack.c.l.b16 %v295
        %v812 = vunpack.c.h.b16 %v295
        %v813 = vunpack.c.l.b16 %v296
        %v814 = vunpack.c.h.b16 %v296
        %v815 = vunpack.c.l.b16 %v297
        %v816 = vunpack.c.h.b16 %v297
        %v817 = vunpack.c.l.b16 %v298
        %v818 = vunpack.c.h.b16 %v298
        %v819 = vunpack.c.l.b16 %v299
        %v820 = vunpack.c.h.b16 %v299
        %v821 = vunpack.c.l.b16 %v300
        %v822 = vunpack.c.h.b16 %v300
        %v823 = vunpack.c.l.b16 %v301
        %v824 = vunpack.c.h.b16 %v301
        %v825 = vunpack.c.l.b16 %v302
        %v826 = vunpack.c.h.b16 %v302
        %v827 = vunpack.c.l.b16 %v303
        %v828 = vunpack.c.h.b16 %v303
        %v829 = vunpack.c.l.b16 %v304
        %v830 = vunpack.c.h.b16 %v304
        %v831 = vunpack.c.l.b16 %v305
        %v832 = vunpack.c.h.b16 %v305
        %v833 = vunpack.c.l.b16 %v306
        %v834 = vunpack.c.h.b16 %v306
        %v835 = vunpack.c.l.b16 %v307
        %v836 = vunpack.c.h.b16 %v307
        %v837 = vunpack.c.l.b16 %v308
        %v838 = vunpack.c.h.b16 %v308
        %v839 = vunpack.c.l.b16 %v309
        %v840 = vunpack.c.h.b16 %v309
        %v841 = vunpack.c.l.b16 %v310
        %v842 = vunpack.c.h.b16 %v310
        %v843 = vunpack.c.l.b16 %v311
        %v844 = vunpack.c.h.b16 %v311
        %v845 = vunpack.c.l.b16 %v312
        %v846 = vunpack.c.h.b16 %v312
        %v847 = vunpack.c.l.b16 %v313
        %v848 = vunpack.c.h.b16 %v313
        %v849 = vunpack.c.l.b16 %v314
        %v850 = vunpack.c.h.b16 %v314
        %v851 = vunpack.c.l.b16 %v315
        %v852 = vunpack.c.h.b16 %v315
        %v853 = vunpack.c.l.b16 %v316
        %v854 = vunpack.c.h.b16 %v316
        %v855 = vunpack.c.l.b16 %v317
        %v856 = vunpack.c.h.b16 %v317
        %v857 = vunpack.c.l.b16 %v318
        %v858 = vunpack.c.h.b16 %v318
        %v859 = vunpack.c.l.b16 %v319
        %v860 = vunpack.c.h.b16 %v319
        %v861 = vunpack.c.l.b16 %v320
        %v862 = vunpack.c.h.b16 %v320
        %v863 = vunpack.c.l.b16 %v321
        %v864 = vunpack.c.h.b16 %v321
        %v865 = vunpack.c.l.b16 %v322
        %v866 = vunpack.c.h.b16 %v322
        %v867 = vunpack.c.l.b16 %v323
        %v868 = vunpack.c.h.b16 %v323
        %v869 = vunpack.c.l.b16 %v324
        %v870 = vunpack.c.h.b16 %v324
        %v871 = vunpack.c.l.b16 %v325
        %v872 = vunpack.c.h.b16 %v325
        %v873 = vunpack.c.l.b16 %v326
        %v874 = vunpack.c.h.b16 %v326
        %v875 = vunpack.c.l.b16 %v327
        %v876 = vunpack.c.h.b16 %v327
        %v877 = vunpack.c.l.b16 %v328
        %v878 = vunpack.c.h.b16 %v328
        %v879 = vunpack.c.l.b16 %v329
        %v880 = vunpack.c.h.b16 %v329
        %v881 = vunpack.c.l.b16 %v330
        %v882 = vunpack.c.h.b16 %v330
        %v883 = vunpack.c.l.b16 %v331
        %v884 = vunpack.c.h.b16 %v331
        %v885 = vunpack.c.l.b16 %v332
        %v886 = vunpack.c.h.b16 %v332
        %v887 = vunpack.c.l.b16 %v333
        %v888 = vunpack.c.h.b16 %v333
        %v889 = vunpack.c.l.b16 %v334
        %v890 = vunpack.c.h.b16 %v334
        %v891 = vunpack.c.l.b16 %v335
        %v892 = vunpack.c.h.b16 %v335
        %v893 = vunpack.c.l.b16 %v336
        %v894 = vunpack.c.h.b16 %v336
        %v895 = vunpack.c.l.b16 %v337
        %v896 = vunpack.c.h.b16 %v337
        %v897 = vunpack.c.l.b16 %v338
        %v898 = vunpack.c.h.b16 %v338
        %v899 = vunpack.c.l.b16 %v339
        %v900 = vunpack.c.h.b16 %v339
        %v901 = vunpack.c.l.b16 %v340
        %v902 = vunpack.c.h.b16 %v340
        %v903 = vunpack.c.l.b16 %v341
        %v904 = vunpack.c.h.b16 %v341
        %v905 = vunpack.c.l.b16 %v342
        %v906 = vunpack.c.h.b16 %v342
        %v907 = vunpack.c.l.b16 %v343
        %v908 = vunpack.c.h.b16 %v343
        %v909 = vunpack.c.l.b16 %v344
        %v910 = vunpack.c.h.b16 %v344
        %v911 = vunpack.c.l.b16 %v345
        %v912 = vunpack.c.h.b16 %v345
        %v913 = vunpack.c.l.b16 %v346
        %v914 = vunpack.c.h.b16 %v346
        %v915 = vunpack.c.l.b16 %v347
        %v916 = vunpack.c.h.b16 %v347
        %v917 = vunpack.c.l.b16 %v348
        %v918 = vunpack.c.h.b16 %v348
        %v919 = vunpack.c.l.b16 %v349
        %v920 = vunpack.c.h.b16 %v349
        %v921 = vunpack.c.l.b16 %v350
        %v922 = vunpack.c.h.b16 %v350
        %v923 = vunpack.c.l.b16 %v351
        %v924 = vunpack.c.h.b16 %v351
        %v925 = vunpack.c.l.b16 %v352
        %v926 = vunpack.c.h.b16 %v352
        %v927 = vunpack.c.l.b16 %v353
        %v928 = vunpack.c.h.b16 %v353
        %v929 = vunpack.c.l.b16 %v354
        %v930 = vunpack.c.h.b16 %v354
        %v931 = vunpack.c.l.b16 %v355
        %v932 = vunpack.c.h.b16 %v355
        %v933 = vunpack.c.l.b16 %v356
        %v934 = vunpack.c.h.b16 %v356
        %v935 = vunpack.c.l.b16 %v357
        %v936 = vunpack.c.h.b16 %v357
        %v937 = vunpack.c.l.b16 %v358
        %v938 = vunpack.c.h.b16 %v358
        %v939 = vunpack.c.l.b16 %v359
        %v940 = vunpack.c.h.b16 %v359
        %v941 = vunpack.c.l.b16 %v360
        %v942 = vunpack.c.h.b16 %v360
        %v943 = vunpack.c.l.b16 %v361
        %v944 = vunpack.c.h.b16 %v361
        %v945 = vunpack.c.l.b16 %v362
        %v946 = vunpack.c.h.b16 %v362
        %v947 = vunpack.c.l.b16 %v363
        %v948 = vunpack.c.h.b16 %v363
        %v949 = vunpack.c.l.b16 %v364
        %v950 = vunpack.c.h.b16 %v364
        %v951 = vunpack.c.l.b16 %v365
        %v952 = vunpack.c.h.b16 %v365
        %v953 = vunpack.c.l.b16 %v366
        %v954 = vunpack.c.h.b16 %v366
        %v955 = vpack.c.b16 %v793, %v787
        %v956 = vpack.c.b16 %v794, %v788
        %v957 = vpack.c.b16 %v795, %v789
        %v958 = vpack.c.b16 %v796, %v790
        %v959 = vpack.c.b16 %v797, %v791
        %v960 = vpack.c.b16 %v798, %v792
        %v961 = vpack.c.b16 %v805, %v799
        %v962 = vpack.c.b16 %v806, %v800
        %v963 = vpack.c.b16 %v807, %v801
        %v964 = vpack.c.b16 %v808, %v802
        %v965 = vpack.c.b16 %v809, %v803
        %v966 = vpack.c.b16 %v810, %v804
        %v967 = vpack.c.b16 %v817, %v811
        %v968 = vpack.c.b16 %v818, %v812
        %v969 = vpack.c.b16 %v819, %v813
        %v970 = vpack.c.b16 %v820, %v814
        %v971 = vpack.c.b16 %v821, %v815
        %v972 = vpack.c.b16 %v822, %v816
        %v973 = vpack.c.b16 %v829, %v823
        %v974 = vpack.c.b16 %v830, %v824
        %v975 = vpack.c.b16 %v831, %v825
        %v976 = vpack.c.b16 %v832, %v826
        %v977 = vpack.c.b16 %v833, %v827
        %v978 = vpack.c.b16 %v834, %v828
        %v979 = vpack.c.b16 %v841, %v835
        %v980 = vpack.c.b16 %v842, %v836
        %v981 = vpack.c.b16 %v843, %v837
        %v982 = vpack.c.b16 %v844, %v838
        %v983 = vpack.c.b16 %v845, %v839
        %v984 = vpack.c.b16 %v846, %v840
        %v985 = vpack.c.b16 %v853, %v847
        %v986 = vpack.c.b16 %v854, %v848
        %v987 = vpack.c.b16 %v855, %v849
        %v988 = vpack.c.b16 %v856, %v850
        %v989 = vpack.c.b16 %v857, %v851
        %v990 = vpack.c.b16 %v858, %v852
        %v991 = vpack.c.b16 %v865, %v859
        %v992 = vpack.c.b16 %v866, %v860
        %v993 = vpack.c.b16 %v867, %v861
        %v994 = vpack.c.b16 %v868, %v862
        %v995 = vpack.c.b16 %v869, %v863
        %v996 = vpack.c.b16 %v870, %v864
        %v997 = vpack.c.b16 %v877, %v871
        %v998 = vpack.c.b16 %v878, %v872
        %v999 = vpack.c.b16 %v879, %v873
        %v1000 = vpack.c.b16 %v880, %v874
        %v1001 = vpack.c.b16 %v881, %v875
        %v1002 = vpack.c.b16 %v882, %v876
        %v1003 = vpack.c.b16 %v889, %v883
        %v1004 = vpack.c.b16 %v890, %v884
        %v1005 = vpack.c.b16 %v891, %v885
        %v1006 = vpack.c.b16 %v892, %v886
        %v1007 = vpack.c.b16 %v893, %v887
        %v1008 = vpack.c.b16 %v894, %v888
        %v1009 = vpack.c.b16 %v901, %v895
        %v1010 = vpack.c.b16 %v902, %v896
        %v1011 = vpack.c.b16 %v903, %v897
        %v1012 = vpack.c.b16 %v904, %v898
        %v1013 = vpack.c.b16 %v905, %v899
        %v1014 = vpack.c.b16 %v906, %v900
        %v1015 = vpack.c.b16 %v913, %v907
        %v1016 = vpack.c.b16 %v914, %v908
        %v1017 = vpack.c.b16 %v915, %v909
        %v1018 = vpack.c.b16 %v916, %v910
        %v1019 = vpack.c.b16 %v917, %v911
        %v1020 = vpack.c.b16 %v918, %v912
        %v1021 = vpack.c.b16 %v925, %v919
        %v1022 = vpack.c.b16 %v926, %v920
        %v1023 = vpack.c.b16 %v927, %v921
        %v1024 = vpack.c.b16 %v928, %v922
        %v1025 = vpack.c.b16 %v929, %v923
        %v1026 = vpack.c.b16 %v930, %v924
        %v1027 = vpack.c.b16 %v937, %v931
        %v1028 = vpack.c.b16 %v938, %v932
        %v1029 = vpack.c.b16 %v939, %v933
        %v1030 = vpack.c.b16 %v940, %v934
        %v1031 = vpack.c.b16 %v941, %v935
        %v1032 = vpack.c.b16 %v942, %v936
        %v1033 = vpack.c.b16 %v949, %v943
        %v1034 = vpack.c.b16 %v950, %v944
        %v1035 = vpack.c.b16 %v951, %v945
        %v1036 = vpack.c.b16 %v952, %v946
        %v1037 = vpack.c.b16 %v953, %v947
        %v1038 = vpack.c.b16 %v954, %v948
        %v1445 = vunpack.c.l.b16 %v367
        %v1446 = vunpack.c.h.b16 %v367
        %v1447 = vunpack.c.l.b16 %v368
        %v1448 = vunpack.c.h.b16 %v368
        %v1449 = vunpack.c.l.b16 %v369
        %v1450 = vunpack.c.h.b16 %v369
        %v1451 = vunpack.c.l.b16 %v370
        %v1452 = vunpack.c.l.b16 %v371
        %v1453 = vunpack.c.h.b16 %v371
        %v1454 = vunpack.c.l.b16 %v372
        %v1455 = vunpack.c.h.b16 %v372
        %v1456 = vunpack.c.l.b16 %v373
        %v1457 = vunpack.c.h.b16 %v373
        %v1458 = vunpack.c.l.b16 %v374
        %v1459 = vunpack.c.l.b16 %v375
        %v1460 = vunpack.c.h.b16 %v375
        %v1461 = vunpack.c.l.b16 %v376
        %v1462 = vunpack.c.h.b16 %v376
        %v1463 = vunpack.c.l.b16 %v377
        %v1464 = vunpack.c.h.b16 %v377
        %v1465 = vunpack.c.l.b16 %v378
        %v1466 = vunpack.c.l.b16 %v379
        %v1467 = vunpack.c.h.b16 %v379
        %v1468 = vunpack.c.l.b16 %v380
        %v1469 = vunpack.c.h.b16 %v380
        %v1470 = vunpack.c.l.b16 %v381
        %v1471 = vunpack.c.h.b16 %v381
        %v1472 = vunpack.c.l.b16 %v382
        %v1473 = vunpack.c.l.b16 %v383
        %v1474 = vunpack.c.h.b16 %v383
        %v1475 = vunpack.c.l.b16 %v384
        %v1476 = vunpack.c.h.b16 %v384
        %v1477 = vunpack.c.l.b16 %v385
        %v1478 = vunpack.c.h.b16 %v385
        %v1479 = vunpack.c.l.b16 %v386
        %v1480 = vunpack.c.l.b16 %v387
        %v1481 = vunpack.c.h.b16 %v387
        %v1482 = vunpack.c.l.b16 %v388
        %v1483 = vunpack.c.h.b16 %v388
        %v1484 = vunpack.c.l.b16 %v389
        %v1485 = vunpack.c.h.b16 %v389
        %v1486 = vunpack.c.l.b16 %v390
        %v1487 = vunpack.c.l.b16 %v391
        %v1488 = vunpack.c.h.b16 %v391
        %v1489 = vunpack.c.l.b16 %v392
        %v1490 = vunpack.c.h.b16 %v392
        %v1491 = vunpack.c.l.b16 %v393
        %v1492 = vunpack.c.h.b16 %v393
        %v1493 = vunpack.c.l.b16 %v394
        %v1494 = vunpack.c.l.b16 %v395
        %v1495 = vunpack.c.h.b16 %v395
        %v1496 = vunpack.c.l.b16 %v396
        %v1497 = vunpack.c.h.b16 %v396
        %v1498 = vunpack.c.l.b16 %v397
        %v1499 = vunpack.c.h.b16 %v397
        %v1500 = vunpack.c.l.b16 %v398
        %v1501 = vunpack.c.l.b16 %v399
        %v1502 = vunpack.c.h.b16 %v399
        %v1503 = vunpack.c.l.b16 %v400
        %v1504 = vunpack.c.h.b16 %v400
        %v1505 = vunpack.c.l.b16 %v401
        %v1506 = vunpack.c.h.b16 %v401
        %v1507 = vunpack.c.l.b16 %v402
        %v1508 = vunpack.c.l.b16 %v403
        %v1509 = vunpack.c.h.b16 %v403
        %v1510 = vunpack.c.l.b16 %v404
        %v1511 = vunpack.c.h.b16 %v404
        %v1512 = vunpack.c.l.b16 %v405
        %v1513 = vunpack.c.h.b16 %v405
        %v1514 = vunpack.c.l.b16 %v406
        %v1515 = vunpack.c.l.b16 %v407
        %v1516 = vunpack.c.h.b16 %v407
        %v1517 = vunpack.c.l.b16 %v408
        %v1518 = vunpack.c.h.b16 %v408
        %v1519 = vunpack.c.l.b16 %v409
        %v1520 = vunpack.c.h.b16 %v409
        %v1521 = vunpack.c.l.b16 %v410
        %v1522 = vunpack.c.l.b16 %v411
        %v1523 = vunpack.c.h.b16 %v411
        %v1524 = vunpack.c.l.b16 %v412
        %v1525 = vunpack.c.h.b16 %v412
        %v1526 = vunpack.c.l.b16 %v413
        %v1527 = vunpack.c.h.b16 %v413
        %v1528 = vunpack.c.l.b16 %v414
        %v1529 = vunpack.c.l.b16 %v415
        %v1530 = vunpack.c.h.b16 %v415
        %v1531 = vunpack.c.l.b16 %v416
        %v1532 = vunpack.c.h.b16 %v416
        %v1533 = vunpack.c.l.b16 %v417
        %v1534 = vunpack.c.h.b16 %v417
        %v1535 = vunpack.c.l.b16 %v418
        %v1536 = vunpack.c.l.b16 %v419
        %v1537 = vunpack.c.h.b16 %v419
        %v1538 = vunpack.c.l.b16 %v420
        %v1539 = vunpack.c.h.b16 %v420
        %v1540 = vunpack.c.l.b16 %v421
        %v1541 = vunpack.c.h.b16 %v421
        %v1542 = vunpack.c.l.b16 %v422
        %v1543 = vunpack.c.l.b16 %v423
        %v1544 = vunpack.c.h.b16 %v423
        %v1545 = vunpack.c.l.b16 %v424
        %v1546 = vunpack.c.h.b16 %v424
        %v1547 = vunpack.c.l.b16 %v425
        %v1548 = vunpack.c.h.b16 %v425
        %v1549 = vunpack.c.l.b16 %v426
        %v1550 = vunpack.c.l.b16 %v427
        %v1551 = vunpack.c.h.b16 %v427
        %v1552 = vunpack.c.l.b16 %v428
        %v1553 = vunpack.c.h.b16 %v428
        %v1554 = vunpack.c.l.b16 %v429
        %v1555 = vunpack.c.h.b16 %v429
        %v1556 = vunpack.c.l.b16 %v430
        %v1557 = vunpack.c.l.b16 %v431
        %v1558 = vunpack.c.h.b16 %v431
        %v1559 = vunpack.c.l.b16 %v432
        %v1560 = vunpack.c.h.b16 %v432
        %v1561 = vunpack.c.l.b16 %v433
        %v1562 = vunpack.c.h.b16 %v433
        %v1563 = vunpack.c.l.b16 %v434
        %v1564 = vunpack.c.l.b16 %v435
        %v1565 = vunpack.c.h.b16 %v435
        %v1566 = vunpack.c.l.b16 %v436
        %v1567 = vunpack.c.h.b16 %v436
        %v1568 = vunpack.c.l.b16 %v437
        %v1569 = vunpack.c.h.b16 %v437
        %v1570 = vunpack.c.l.b16 %v438
        %v1571 = vunpack.c.l.b16 %v439
        %v1572 = vunpack.c.h.b16 %v439
        %v1573 = vunpack.c.l.b16 %v440
        %v1574 = vunpack.c.h.b16 %v440
        %v1575 = vunpack.c.l.b16 %v441
        %v1576 = vunpack.c.h.b16 %v441
        %v1577 = vunpack.c.l.b16 %v442
        %v1578 = vunpack.c.l.b16 %v443
        %v1579 = vunpack.c.h.b16 %v443
        %v1580 = vunpack.c.l.b16 %v444
        %v1581 = vunpack.c.h.b16 %v444
        %v1582 = vunpack.c.l.b16 %v445
        %v1583 = vunpack.c.h.b16 %v445
        %v1584 = vunpack.c.l.b16 %v446
        %v1585 = vunpack.c.l.b16 %v447
        %v1586 = vunpack.c.h.b16 %v447
        %v1587 = vunpack.c.l.b16 %v448
        %v1588 = vunpack.c.h.b16 %v448
        %v1589 = vunpack.c.l.b16 %v449
        %v1590 = vunpack.c.h.b16 %v449
        %v1591 = vunpack.c.l.b16 %v450
        %v1592 = vunpack.c.l.b16 %v451
        %v1593 = vunpack.c.h.b16 %v451
        %v1594 = vunpack.c.l.b16 %v452
        %v1595 = vunpack.c.h.b16 %v452
        %v1596 = vunpack.c.l.b16 %v453
        %v1597 = vunpack.c.h.b16 %v453
        %v1598 = vunpack.c.l.b16 %v454
        %v1599 = vunpack.c.l.b16 %v455
        %v1600 = vunpack.c.h.b16 %v455
        %v1601 = vunpack.c.l.b16 %v456
        %v1602 = vunpack.c.h.b16 %v456
        %v1603 = vunpack.c.l.b16 %v457
        %v1604 = vunpack.c.h.b16 %v457
        %v1605 = vunpack.c.l.b16 %v458
        %v1606 = vunpack.c.l.b16 %v459
        %v1607 = vunpack.c.h.b16 %v459
        %v1608 = vunpack.c.l.b16 %v460
        %v1609 = vunpack.c.h.b16 %v460
        %v1610 = vunpack.c.l.b16 %v461
        %v1611 = vunpack.c.h.b16 %v461
        %v1612 = vunpack.c.l.b16 %v462
        %v1613 = vunpack.c.l.b16 %v463
        %v1614 = vunpack.c.h.b16 %v463
        %v1615 = vunpack.c.l.b16 %v464
        %v1616 = vunpack.c.h.b16 %v464
        %v1617 = vunpack.c.l.b16 %v465
        %v1618 = vunpack.c.h.b16 %v465
        %v1619 = vunpack.c.l.b16 %v466
        %v1620 = vunpack.c.l.b16 %v467
        %v1621 = vunpack.c.h.b16 %v467
        %v1622 = vunpack.c.l.b16 %v468
        %v1623 = vunpack.c.h.b16 %v468
        %v1624 = vunpack.c.l.b16 %v469
        %v1625 = vunpack.c.h.b16 %v469
        %v1626 = vunpack.c.l.b16 %v470
        %v1627 = vunpack.c.l.b16 %v471
        %v1628 = vunpack.c.h.b16 %v471
        %v1629 = vunpack.c.l.b16 %v472
        %v1630 = vunpack.c.h.b16 %v472
        %v1631 = vunpack.c.l.b16 %v473
        %v1632 = vunpack.c.h.b16 %v473
        %v1633 = vunpack.c.l.b16 %v474
        %v1634 = vunpack.c.l.b16 %v475
        %v1635 = vunpack.c.h.b16 %v475
        %v1636 = vunpack.c.l.b16 %v476
        %v1637 = vunpack.c.h.b16 %v476
        %v1638 = vunpack.c.l.b16 %v477
        %v1639 = vunpack.c.h.b16 %v477
        %v1640 = vunpack.c.l.b16 %v478
        %v1641 = vunpack.c.l.b16 %v479
        %v1642 = vunpack.c.h.b16 %v479
        %v1643 = vunpack.c.l.b16 %v480
        %v1644 = vunpack.c.h.b16 %v480
        %v1645 = vunpack.c.l.b16 %v481
        %v1646 = vunpack.c.h.b16 %v481
        %v1647 = vunpack.c.l.b16 %v482
        %v1648 = vunpack.c.l.b16 %v483
        %v1649 = vunpack.c.h.b16 %v483
        %v1650 = vunpack.c.l.b16 %v484
        %v1651 = vunpack.c.h.b16 %v484
        %v1652 = vunpack.c.l.b16 %v485
        %v1653 = vunpack.c.h.b16 %v485
        %v1654 = vunpack.c.l.b16 %v486
        %v1655 = vunpack.c.l.b16 %v487
        %v1656 = vunpack.c.h.b16 %v487
        %v1657 = vunpack.c.l.b16 %v488
        %v1658 = vunpack.c.h.b16 %v488
        %v1659 = vunpack.c.l.b16 %v489
        %v1660 = vunpack.c.h.b16 %v489
        %v1661 = vunpack.c.l.b16 %v490
        %v1662 = vunpack.c.l.b16 %v491
        %v1663 = vunpack.c.h.b16 %v491
        %v1664 = vunpack.c.l.b16 %v492
        %v1665 = vunpack.c.h.b16 %v492
        %v1666 = vunpack.c.l.b16 %v493
        %v1667 = vunpack.c.h.b16 %v493
        %v1668 = vunpack.c.l.b16 %v494
        %v1669 = vunpack.c.l.b16 %v495
        %v1670 = vunpack.c.h.b16 %v495
        %v1671 = vunpack.c.l.b16 %v496
        %v1672 = vunpack.c.h.b16 %v496
        %v1673 = vunpack.c.l.b16 %v497
        %v1674 = vunpack.c.h.b16 %v497
        %v1675 = vunpack.c.l.b16 %v498
        %v1676 = vunpack.c.l.b16 %v499
        %v1677 = vunpack.c.h.b16 %v499
        %v1678 = vunpack.c.l.b16 %v500
        %v1679 = vunpack.c.h.b16 %v500
        %v1680 = vunpack.c.l.b16 %v501
        %v1681 = vunpack.c.h.b16 %v501
        %v1682 = vunpack.c.l.b16 %v502
        %v1683 = vunpack.c.l.b16 %v503
        %v1684 = vunpack.c.h.b16 %v503
        %v1685 = vunpack.c.l.b16 %v504
        %v1686 = vunpack.c.h.b16 %v504
        %v1687 = vunpack.c.l.b16 %v505
        %v1688 = vunpack.c.h.b16 %v505
        %v1689 = vunpack.c.l.b16 %v506
        %v1690 = vunpack.c.l.b16 %v507
        %v1691 = vunpack.c.h.b16 %v507
        %v1692 = vunpack.c.l.b16 %v508
        %v1693 = vunpack.c.h.b16 %v508
        %v1694 = vunpack.c.l.b16 %v509
        %v1695 = vunpack.c.h.b16 %v509
        %v1696 = vunpack.c.l.b16 %v510
        %v1697 = vunpack.c.l.b16 %v511
        %v1698 = vunpack.c.h.b16 %v511
        %v1699 = vunpack.c.l.b16 %v512
        %v1700 = vunpack.c.h.b16 %v512
        %v1701 = vunpack.c.l.b16 %v513
        %v1702 = vunpack.c.h.b16 %v513
        %v1703 = vunpack.c.l.b16 %v514
        %v1704 = vunpack.c.l.b16 %v515
        %v1705 = vunpack.c.h.b16 %v515
        %v1706 = vunpack.c.l.b16 %v516
        %v1707 = vunpack.c.h.b16 %v516
        %v1708 = vunpack.c.l.b16 %v517
        %v1709 = vunpack.c.h.b16 %v517
        %v1710 = vunpack.c.l.b16 %v518
        %v1711 = vunpack.c.l.b16 %v519
        %v1712 = vunpack.c.h.b16 %v519
        %v1713 = vunpack.c.l.b16 %v520
        %v1714 = vunpack.c.h.b16 %v520
        %v1715 = vunpack.c.l.b16 %v521
        %v1716 = vunpack.c.h.b16 %v521
        %v1717 = vunpack.c.l.b16 %v522
        %v1718 = vunpack.c.l.b16 %v523
        %v1719 = vunpack.c.h.b16 %v523
        %v1720 = vunpack.c.l.b16 %v524
        %v1721 = vunpack.c.h.b16 %v524
        %v1722 = vunpack.c.l.b16 %v525
        %v1723 = vunpack.c.h.b16 %v525
        %v1724 = vunpack.c.l.b16 %v526
        %v1725 = vunpack.c.l.b16 %v527
        %v1726 = vunpack.c.h.b16 %v527
        %v1727 = vunpack.c.l.b16 %v528
        %v1728 = vunpack.c.h.b16 %v528
        %v1729 = vunpack.c.l.b16 %v529
        %v1730 = vunpack.c.h.b16 %v529
        %v1731 = vunpack.c.l.b16 %v530
        %v1732 = vunpack.c.l.b16 %v531
        %v1733 = vunpack.c.h.b16 %v531
        %v1734 = vunpack.c.l.b16 %v532
        %v1735 = vunpack.c.h.b16 %v532
        %v1736 = vunpack.c.l.b16 %v533
        %v1737 = vunpack.c.h.b16 %v533
        %v1738 = vunpack.c.l.b16 %v534
        %v1739 = vunpack.c.l.b16 %v535
        %v1740 = vunpack.c.h.b16 %v535
        %v1741 = vunpack.c.l.b16 %v536
        %v1742 = vunpack.c.h.b16 %v536
        %v1743 = vunpack.c.l.b16 %v537
        %v1744 = vunpack.c.h.b16 %v537
        %v1745 = vunpack.c.l.b16 %v538
        %v1746 = vunpack.c.l.b16 %v539
        %v1747 = vunpack.c.h.b16 %v539
        %v1748 = vunpack.c.l.b16 %v540
        %v1749 = vunpack.c.h.b16 %v540
        %v1750 = vunpack.c.l.b16 %v541
        %v1751 = vunpack.c.h.b16 %v541
        %v1752 = vunpack.c.l.b16 %v542
        %v1753 = vunpack.c.l.b16 %v543
        %v1754 = vunpack.c.h.b16 %v543
        %v1755 = vunpack.c.l.b16 %v544
        %v1756 = vunpack.c.h.b16 %v544
        %v1757 = vunpack.c.l.b16 %v545
        %v1758 = vunpack.c.h.b16 %v545
        %v1759 = vunpack.c.l.b16 %v546
        %v1760 = vunpack.c.l.b16 %v547
        %v1761 = vunpack.c.h.b16 %v547
        %v1762 = vunpack.c.l.b16 %v548
        %v1763 = vunpack.c.h.b16 %v548
        %v1764 = vunpack.c.l.b16 %v549
        %v1765 = vunpack.c.h.b16 %v549
        %v1766 = vunpack.c.l.b16 %v550
        %v1767 = vunpack.c.l.b16 %v551
        %v1768 = vunpack.c.h.b16 %v551
        %v1769 = vunpack.c.l.b16 %v552
        %v1770 = vunpack.c.h.b16 %v552
        %v1771 = vunpack.c.l.b16 %v553
        %v1772 = vunpack.c.h.b16 %v553
        %v1773 = vunpack.c.l.b16 %v554
        %v1774 = vunpack.c.l.b16 %v555
        %v1775 = vunpack.c.h.b16 %v555
        %v1776 = vunpack.c.l.b16 %v556
        %v1777 = vunpack.c.h.b16 %v556
        %v1778 = vunpack.c.l.b16 %v557
        %v1779 = vunpack.c.h.b16 %v557
        %v1780 = vunpack.c.l.b16 %v558
        %v1781 = vunpack.c.l.b16 %v559
        %v1782 = vunpack.c.h.b16 %v559
        %v1783 = vunpack.c.l.b16 %v560
        %v1784 = vunpack.c.h.b16 %v560
        %v1785 = vunpack.c.l.b16 %v561
        %v1786 = vunpack.c.h.b16 %v561
        %v1787 = vunpack.c.l.b16 %v562
        %v1788 = vunpack.c.l.b16 %v563
        %v1789 = vunpack.c.h.b16 %v563
        %v1790 = vunpack.c.l.b16 %v564
        %v1791 = vunpack.c.h.b16 %v564
        %v1792 = vunpack.c.l.b16 %v565
        %v1793 = vunpack.c.h.b16 %v565
        %v1794 = vunpack.c.l.b16 %v566
        %v1795 = vunpack.c.l.b16 %v567
        %v1796 = vunpack.c.h.b16 %v567
        %v1797 = vunpack.c.l.b16 %v568
        %v1798 = vunpack.c.h.b16 %v568
        %v1799 = vunpack.c.l.b16 %v569
        %v1800 = vunpack.c.h.b16 %v569
        %v1801 = vunpack.c.l.b16 %v570
        %v1802 = vunpack.c.l.b16 %v571
        %v1803 = vunpack.c.h.b16 %v571
        %v1804 = vunpack.c.l.b16 %v572
        %v1805 = vunpack.c.h.b16 %v572
        %v1806 = vunpack.c.l.b16 %v573
        %v1807 = vunpack.c.h.b16 %v573
        %v1808 = vunpack.c.l.b16 %v574
        %v1809 = vunpack.c.l.b16 %v575
        %v1810 = vunpack.c.h.b16 %v575
        %v1811 = vunpack.c.l.b16 %v576
        %v1812 = vunpack.c.h.b16 %v576
        %v1813 = vunpack.c.l.b16 %v577
        %v1814 = vunpack.c.h.b16 %v577
        %v1815 = vunpack.c.l.b16 %v578
        %v1816 = vunpack.c.l.b16 %v579
        %v1817 = vunpack.c.h.b16 %v579
        %v1818 = vunpack.c.l.b16 %v580
        %v1819 = vunpack.c.h.b16 %v580
        %v1820 = vunpack.c.l.b16 %v581
        %v1821 = vunpack.c.h.b16 %v581
        %v1822 = vunpack.c.l.b16 %v582
        %v1823 = vunpack.c.l.b16 %v583
        %v1824 = vunpack.c.h.b16 %v583
        %v1825 = vunpack.c.l.b16 %v584
        %v1826 = vunpack.c.h.b16 %v584
        %v1827 = vunpack.c.l.b16 %v585
        %v1828 = vunpack.c.h.b16 %v585
        %v1829 = vunpack.c.l.b16 %v586
        %v1830 = vunpack.c.l.b16 %v587
        %v1831 = vunpack.c.h.b16 %v587
        %v1832 = vunpack.c.l.b16 %v588
        %v1833 = vunpack.c.h.b16 %v588
        %v1834 = vunpack.c.l.b16 %v589
        %v1835 = vunpack.c.h.b16 %v589
        %v1836 = vunpack.c.l.b16 %v590
        %v1837 = vunpack.c.l.b16 %v591
        %v1838 = vunpack.c.h.b16 %v591
        %v1839 = vunpack.c.l.b16 %v592
        %v1840 = vunpack.c.h.b16 %v592
        %v1841 = vunpack.c.l.b16 %v593
        %v1842 = vunpack.c.h.b16 %v593
        %v1843 = vunpack.c.l.b16 %v594
        %v1844 = vunpack.c.l.b16 %v595
        %v1845 = vunpack.c.h.b16 %v595
        %v1846 = vunpack.c.l.b16 %v596
        %v1847 = vunpack.c.h.b16 %v596
        %v1848 = vunpack.c.l.b16 %v597
        %v1849 = vunpack.c.h.b16 %v597
        %v1850 = vunpack.c.l.b16 %v598
        %v1851 = vunpack.c.l.b16 %v599
        %v1852 = vunpack.c.h.b16 %v599
        %v1853 = vunpack.c.l.b16 %v600
        %v1854 = vunpack.c.h.b16 %v600
        %v1855 = vunpack.c.l.b16 %v601
        %v1856 = vunpack.c.h.b16 %v601
        %v1857 = vunpack.c.l.b16 %v602
        %v1858 = vunpack.c.l.b16 %v603
        %v1859 = vunpack.c.h.b16 %v603
        %v1860 = vunpack.c.l.b16 %v604
        %v1861 = vunpack.c.h.b16 %v604
        %v1862 = vunpack.c.l.b16 %v605
        %v1863 = vunpack.c.h.b16 %v605
        %v1864 = vunpack.c.l.b16 %v606
        %v1865 = vunpack.c.l.b16 %v607
        %v1866 = vunpack.c.h.b16 %v607
        %v1867 = vunpack.c.l.b16 %v608
        %v1868 = vunpack.c.h.b16 %v608
        %v1869 = vunpack.c.l.b16 %v609
        %v1870 = vunpack.c.h.b16 %v609
        %v1871 = vunpack.c.l.b16 %v610
        %v1872 = vunpack.c.l.b16 %v611
        %v1873 = vunpack.c.h.b16 %v611
        %v1874 = vunpack.c.l.b16 %v612
        %v1875 = vunpack.c.h.b16 %v612
        %v1876 = vunpack.c.l.b16 %v613
        %v1877 = vunpack.c.h.b16 %v613
        %v1878 = vunpack.c.l.b16 %v614
        %v1879 = vunpack.c.l.b16 %v615
        %v1880 = vunpack.c.h.b16 %v615
        %v1881 = vunpack.c.l.b16 %v616
        %v1882 = vunpack.c.h.b16 %v616
        %v1883 = vunpack.c.l.b16 %v617
        %v1884 = vunpack.c.h.b16 %v617
        %v1885 = vunpack.c.l.b16 %v618
        %v1886 = vunpack.c.l.b16 %v619
        %v1887 = vunpack.c.h.b16 %v619
        %v1888 = vunpack.c.l.b16 %v620
        %v1889 = vunpack.c.h.b16 %v620
        %v1890 = vunpack.c.l.b16 %v621
        %v1891 = vunpack.c.h.b16 %v621
        %v1892 = vunpack.c.l.b16 %v622
        %v1893 = vunpack.c.l.b16 %v623
        %v1894 = vunpack.c.h.b16 %v623
        %v1895 = vunpack.c.l.b16 %v624
        %v1896 = vunpack.c.h.b16 %v624
        %v1897 = vunpack.c.l.b16 %v625
        %v1898 = vunpack.c.h.b16 %v625
        %v1899 = vunpack.c.l.b16 %v626
        %v1900 = vunpack.c.l.b16 %v627
        %v1901 = vunpack.c.h.b16 %v627
        %v1902 = vunpack.c.l.b16 %v628
        %v1903 = vunpack.c.h.b16 %v628
        %v1904 = vunpack.c.l.b16 %v629
        %v1905 = vunpack.c.h.b16 %v629
        %v1906 = vunpack.c.l.b16 %v630
        %v1907 = vunpack.c.l.b16 %v631
        %v1908 = vunpack.c.h.b16 %v631
        %v1909 = vunpack.c.l.b16 %v632
        %v1910 = vunpack.c.h.b16 %v632
        %v1911 = vunpack.c.l.b16 %v633
        %v1912 = vunpack.c.h.b16 %v633
        %v1913 = vunpack.c.l.b16 %v634
        %v1914 = vunpack.c.l.b16 %v635
        %v1915 = vunpack.c.h.b16 %v635
        %v1916 = vunpack.c.l.b16 %v636
        %v1917 = vunpack.c.h.b16 %v636
        %v1918 = vunpack.c.l.b16 %v637
        %v1919 = vunpack.c.h.b16 %v637
        %v1920 = vunpack.c.l.b16 %v638
        %v1921 = vunpack.c.l.b16 %v639
        %v1922 = vunpack.c.h.b16 %v639
        %v1923 = vunpack.c.l.b16 %v640
        %v1924 = vunpack.c.h.b16 %v640
        %v1925 = vunpack.c.l.b16 %v641
        %v1926 = vunpack.c.h.b16 %v641
        %v1927 = vunpack.c.l.b16 %v642
        %v1928 = vunpack.c.l.b16 %v643
        %v1929 = vunpack.c.h.b16 %v643
        %v1930 = vunpack.c.l.b16 %v644
        %v1931 = vunpack.c.h.b16 %v644
        %v1932 = vunpack.c.l.b16 %v645
        %v1933 = vunpack.c.h.b16 %v645
        %v1934 = vunpack.c.l.b16 %v646
        %v1935 = vunpack.c.l.b16 %v647
        %v1936 = vunpack.c.h.b16 %v647
        %v1937 = vunpack.c.l.b16 %v648
        %v1938 = vunpack.c.h.b16 %v648
        %v1939 = vunpack.c.l.b16 %v649
        %v1940 = vunpack.c.h.b16 %v649
        %v1941 = vunpack.c.l.b16 %v650
        %v1942 = vunpack.c.l.b16 %v651
        %v1943 = vunpack.c.h.b16 %v651
        %v1944 = vunpack.c.l.b16 %v652
        %v1945 = vunpack.c.h.b16 %v652
        %v1946 = vunpack.c.l.b16 %v653
        %v1947 = vunpack.c.h.b16 %v653
        %v1948 = vunpack.c.l.b16 %v654
        %v1949 = vunpack.c.l.b16 %v655
        %v1950 = vunpack.c.h.b16 %v655
        %v1951 = vunpack.c.l.b16 %v656
        %v1952 = vunpack.c.h.b16 %v656
        %v1953 = vunpack.c.l.b16 %v657
        %v1954 = vunpack.c.h.b16 %v657
        %v1955 = vunpack.c.l.b16 %v658
        %v1956 = vunpack.c.l.b16 %v659
        %v1957 = vunpack.c.h.b16 %v659
        %v1958 = vunpack.c.l.b16 %v660
        %v1959 = vunpack.c.h.b16 %v660
        %v1960 = vunpack.c.l.b16 %v661
        %v1961 = vunpack.c.h.b16 %v661
        %v1962 = vunpack.c.l.b16 %v662
        %v1963 = vunpack.c.l.b16 %v663
        %v1964 = vunpack.c.h.b16 %v663
        %v1965 = vunpack.c.l.b16 %v664
        %v1966 = vunpack.c.h.b16 %v664
        %v1967 = vunpack.c.l.b16 %v665
        %v1968 = vunpack.c.h.b16 %v665
        %v1969 = vunpack.c.l.b16 %v666
        %v1970 = vunpack.c.l.b16 %v667
        %v1971 = vunpack.c.h.b16 %v667
        %v1972 = vunpack.c.l.b16 %v668
        %v1973 = vunpack.c.h.b16 %v668
        %v1974 = vunpack.c.l.b16 %v669
        %v1975 = vunpack.c.h.b16 %v669
        %v1976 = vunpack.c.l.b16 %v670
        %v1977 = vunpack.c.l.b16 %v671
        %v1978 = vunpack.c.h.b16 %v671
        %v1979 = vunpack.c.l.b16 %v672
        %v1980 = vunpack.c.h.b16 %v672
        %v1981 = vunpack.c.l.b16 %v673
        %v1982 = vunpack.c.h.b16 %v673
        %v1983 = vunpack.c.l.b16 %v674
        %v1984 = vunpack.c.l.b16 %v675
        %v1985 = vunpack.c.h.b16 %v675
        %v1986 = vunpack.c.l.b16 %v676
        %v1987 = vunpack.c.h.b16 %v676
        %v1988 = vunpack.c.l.b16 %v677
        %v1989 = vunpack.c.h.b16 %v677
        %v1990 = vunpack.c.l.b16 %v678
        %v1991 = vunpack.c.l.b16 %v679
        %v1992 = vunpack.c.h.b16 %v679
        %v1993 = vunpack.c.l.b16 %v680
        %v1994 = vunpack.c.h.b16 %v680
        %v1995 = vunpack.c.l.b16 %v681
        %v1996 = vunpack.c.h.b16 %v681
        %v1997 = vunpack.c.l.b16 %v682
        %v1998 = vunpack.c.l.b16 %v683
        %v1999 = vunpack.c.h.b16 %v683
        %v2000 = vunpack.c.l.b16 %v684
        %v2001 = vunpack.c.h.b16 %v684
        %v2002 = vunpack.c.l.b16 %v685
        %v2003 = vunpack.c.h.b16 %v685
        %v2004 = vunpack.c.l.b16 %v686
        %v2005 = vunpack.c.l.b16 %v687
        %v2006 = vunpack.c.h.b16 %v687
        %v2007 = vunpack.c.l.b16 %v688
        %v2008 = vunpack.c.h.b16 %v688
        %v2009 = vunpack.c.l.b16 %v689
        %v2010 = vunpack.c.h.b16 %v689
        %v2011 = vunpack.c.l.b16 %v690
        %v2012 = vunpack.c.l.b16 %v691
        %v2013 = vunpack.c.h.b16 %v691
        %v2014 = vunpack.c.l.b16 %v692
        %v2015 = vunpack.c.h.b16 %v692
        %v2016 = vunpack.c.l.b16 %v693
        %v2017 = vunpack.c.h.b16 %v693
        %v2018 = vunpack.c.l.b16 %v694
        %v2019 = vunpack.c.l.b16 %v695
        %v2020 = vunpack.c.h.b16 %v695
        %v2021 = vunpack.c.l.b16 %v696
        %v2022 = vunpack.c.h.b16 %v696
        %v2023 = vunpack.c.l.b16 %v697
        %v2024 = vunpack.c.h.b16 %v697
        %v2025 = vunpack.c.l.b16 %v698
        %v2026 = vunpack.c.l.b16 %v699
        %v2027 = vunpack.c.h.b16 %v699
        %v2028 = vunpack.c.l.b16 %v700
        %v2029 = vunpack.c.h.b16 %v700
        %v2030 = vunpack.c.l.b16 %v701
        %v2031 = vunpack.c.h.b16 %v701
        %v2032 = vunpack.c.l.b16 %v702
        %v2033 = vpack.c.b16 %v1452, %v1445
        %v2034 = vpack.c.b16 %v1453, %v1446
        %v2035 = vpack.c.b16 %v1454, %v1447
        %v2036 = vpack.c.b16 %v1455, %v1448
        %v2037 = vpack.c.b16 %v1456, %v1449
        %v2038 = vpack.c.b16 %v1457, %v1450
        %v2039 = vpack.c.b16 %v1458, %v1451
        %v2040 = vpack.c.b16 %v1466, %v1459
        %v2041 = vpack.c.b16 %v1467, %v1460
        %v2042 = vpack.c.b16 %v1468, %v1461
        %v2043 = vpack.c.b16 %v1469, %v1462
        %v2044 = vpack.c.b16 %v1470, %v1463
        %v2045 = vpack.c.b16 %v1471, %v1464
        %v2046 = vpack.c.b16 %v1472, %v1465
        %v2047 = vpack.c.b16 %v1480, %v1473
        %v2048 = vpack.c.b16 %v1481, %v1474
        %v2049 = vpack.c.b16 %v1482, %v1475
        %v2050 = vpack.c.b16 %v1483, %v1476
        %v2051 = vpack.c.b16 %v1484, %v1477
        %v2052 = vpack.c.b16 %v1485, %v1478
        %v2053 = vpack.c.b16 %v1486, %v1479
        %v2054 = vpack.c.b16 %v1494, %v1487
        %v2055 = vpack.c.b16 %v1495, %v1488
        %v2056 = vpack.c.b16 %v1496, %v1489
        %v2057 = vpack.c.b16 %v1497, %v1490
        %v2058 = vpack.c.b16 %v1498, %v1491
        %v2059 = vpack.c.b16 %v1499, %v1492
        %v2060 = vpack.c.b16 %v1500, %v1493
        %v2061 = vpack.c.b16 %v1508, %v1501
        %v2062 = vpack.c.b16 %v1509, %v1502
        %v2063 = vpack.c.b16 %v1510, %v1503
        %v2064 = vpack.c.b16 %v1511, %v1504
        %v2065 = vpack.c.b16 %v1512, %v1505
        %v2066 = vpack.c.b16 %v1513, %v1506
        %v2067 = vpack.c.b16 %v1514, %v1507
        %v2068 = vpack.c.b16 %v1522, %v1515
        %v2069 = vpack.c.b16 %v1523, %v1516
        %v2070 = vpack.c.b16 %v1524, %v1517
        %v2071 = vpack.c.b16 %v1525, %v1518
        %v2072 = vpack.c.b16 %v1526, %v1519
        %v2073 = vpack.c.b16 %v1527, %v1520
        %v2074 = vpack.c.b16 %v1528, %v1521
        %v2075 = vpack.c.b16 %v1536, %v1529
        %v2076 = vpack.c.b16 %v1537, %v1530
        %v2077 = vpack.c.b16 %v1538, %v1531
        %v2078 = vpack.c.b16 %v1539, %v1532
        %v2079 = vpack.c.b16 %v1540, %v1533
        %v2080 = vpack.c.b16 %v1541, %v1534
        %v2081 = vpack.c.b16 %v1542, %v1535
        %v2082 = vpack.c.b16 %v1550, %v1543
        %v2083 = vpack.c.b16 %v1551, %v1544
        %v2084 = vpack.c.b16 %v1552, %v1545
        %v2085 = vpack.c.b16 %v1553, %v1546
        %v2086 = vpack.c.b16 %v1554, %v1547
        %v2087 = vpack.c.b16 %v1555, %v1548
        %v2088 = vpack.c.b16 %v1556, %v1549
        %v2089 = vpack.c.b16 %v1564, %v1557
        %v2090 = vpack.c.b16 %v1565, %v1558
        %v2091 = vpack.c.b16 %v1566, %v1559
        %v2092 = vpack.c.b16 %v1567, %v1560
        %v2093 = vpack.c.b16 %v1568, %v1561
        %v2094 = vpack.c.b16 %v1569, %v1562
        %v2095 = vpack.c.b16 %v1570, %v1563
        %v2096 = vpack.c.b16 %v1578, %v1571
        %v2097 = vpack.c.b16 %v1579, %v1572
        %v2098 = vpack.c.b16 %v1580, %v1573
        %v2099 = vpack.c.b16 %v1581, %v1574
        %v2100 = vpack.c.b16 %v1582, %v1575
        %v2101 = vpack.c.b16 %v1583, %v1576
        %v2102 = vpack.c.b16 %v1584, %v1577
        %v2103 = vpack.c.b16 %v1592, %v1585
        %v2104 = vpack.c.b16 %v1593, %v1586
        %v2105 = vpack.c.b16 %v1594, %v1587
        %v2106 = vpack.c.b16 %v1595, %v1588
        %v2107 = vpack.c.b16 %v1596, %v1589
        %v2108 = vpack.c.b16 %v1597, %v1590
        %v2109 = vpack.c.b16 %v1598, %v1591
        %v2110 = vpack.c.b16 %v1606, %v1599
        %v2111 = vpack.c.b16 %v1607, %v1600
        %v2112 = vpack.c.b16 %v1608, %v1601
        %v2113 = vpack.c.b16 %v1609, %v1602
        %v2114 = vpack.c.b16 %v1610, %v1603
        %v2115 = vpack.c.b16 %v1611, %v1604
        %v2116 = vpack.c.b16 %v1612, %v1605
        %v2117 = vpack.c.b16 %v1620, %v1613
        %v2118 = vpack.c.b16 %v1621, %v1614
        %v2119 = vpack.c.b16 %v1622, %v1615
        %v2120 = vpack.c.b16 %v1623, %v1616
        %v2121 = vpack.c.b16 %v1624, %v1617
        %v2122 = vpack.c.b16 %v1625, %v1618
        %v2123 = vpack.c.b16 %v1626, %v1619
        %v2124 = vpack.c.b16 %v1634, %v1627
        %v2125 = vpack.c.b16 %v1635, %v1628
        %v2126 = vpack.c.b16 %v1636, %v1629
        %v2127 = vpack.c.b16 %v1637, %v1630
        %v2128 = vpack.c.b16 %v1638, %v1631
        %v2129 = vpack.c.b16 %v1639, %v1632
        %v2130 = vpack.c.b16 %v1640, %v1633
        %v2131 = vpack.c.b16 %v1648, %v1641
        %v2132 = vpack.c.b16 %v1649, %v1642
        %v2133 = vpack.c.b16 %v1650, %v1643
        %v2134 = vpack.c.b16 %v1651, %v1644
        %v2135 = vpack.c.b16 %v1652, %v1645
        %v2136 = vpack.c.b16 %v1653, %v1646
        %v2137 = vpack.c.b16 %v1654, %v1647
        %v2138 = vpack.c.b16 %v1662, %v1655
        %v2139 = vpack.c.b16 %v1663, %v1656
        %v2140 = vpack.c.b16 %v1664, %v1657
        %v2141 = vpack.c.b16 %v1665, %v1658
        %v2142 = vpack.c.b16 %v1666, %v1659
        %v2143 = vpack.c.b16 %v1667, %v1660
        %v2144 = vpack.c.b16 %v1668, %v1661
        %v2145 = vpack.c.b16 %v1676, %v1669
        %v2146 = vpack.c.b16 %v1677, %v1670
        %v2147 = vpack.c.b16 %v1678, %v1671
        %v2148 = vpack.c.b16 %v1679, %v1672
        %v2149 = vpack.c.b16 %v1680, %v1673
        %v2150 = vpack.c.b16 %v1681, %v1674
        %v2151 = vpack.c.b16 %v1682, %v1675
        %v2152 = vpack.c.b16 %v1690, %v1683
        %v2153 = vpack.c.b16 %v1691, %v1684
        %v2154 = vpack.c.b16 %v1692, %v1685
        %v2155 = vpack.c.b16 %v1693, %v1686
        %v2156 = vpack.c.b16 %v1694, %v1687
        %v2157 = vpack.c.b16 %v1695, %v1688
        %v2158 = vpack.c.b16 %v1696, %v1689
        %v2159 = vpack.c.b16 %v1704, %v1697
        %v2160 = vpack.c.b16 %v1705, %v1698
        %v2161 = vpack.c.b16 %v1706, %v1699
        %v2162 = vpack.c.b16 %v1707, %v1700
        %v2163 = vpack.c.b16 %v1708, %v1701
        %v2164 = vpack.c.b16 %v1709, %v1702
        %v2165 = vpack.c.b16 %v1710, %v1703
        %v2166 = vpack.c.b16 %v1718, %v1711
        %v2167 = vpack.c.b16 %v1719, %v1712
        %v2168 = vpack.c.b16 %v1720, %v1713
        %v2169 = vpack.c.b16 %v1721, %v1714
        %v2170 = vpack.c.b16 %v1722, %v1715
        %v2171 = vpack.c.b16 %v1723, %v1716
        %v2172 = vpack.c.b16 %v1724, %v1717
        %v2173 = vpack.c.b16 %v1732, %v1725
        %v2174 = vpack.c.b16 %v1733, %v1726
        %v2175 = vpack.c.b16 %v1734, %v1727
        %v2176 = vpack.c.b16 %v1735, %v1728
        %v2177 = vpack.c.b16 %v1736, %v1729
        %v2178 = vpack.c.b16 %v1737, %v1730
        %v2179 = vpack.c.b16 %v1738, %v1731
        %v2180 = vpack.c.b16 %v1746, %v1739
        %v2181 = vpack.c.b16 %v1747, %v1740
        %v2182 = vpack.c.b16 %v1748, %v1741
        %v2183 = vpack.c.b16 %v1749, %v1742
        %v2184 = vpack.c.b16 %v1750, %v1743
        %v2185 = vpack.c.b16 %v1751, %v1744
        %v2186 = vpack.c.b16 %v1752, %v1745
        %v2187 = vpack.c.b16 %v1760, %v1753
        %v2188 = vpack.c.b16 %v1761, %v1754
        %v2189 = vpack.c.b16 %v1762, %v1755
        %v2190 = vpack.c.b16 %v1763, %v1756
        %v2191 = vpack.c.b16 %v1764, %v1757
        %v2192 = vpack.c.b16 %v1765, %v1758
        %v2193 = vpack.c.b16 %v1766, %v1759
        %v2194 = vpack.c.b16 %v1774, %v1767
        %v2195 = vpack.c.b16 %v1775, %v1768
        %v2196 = vpack.c.b16 %v1776, %v1769
        %v2197 = vpack.c.b16 %v1777, %v1770
        %v2198 = vpack.c.b16 %v1778, %v1771
        %v2199 = vpack.c.b16 %v1779, %v1772
        %v2200 = vpack.c.b16 %v1780, %v1773
        %v2201 = vpack.c.b16 %v1788, %v1781
        %v2202 = vpack.c.b16 %v1789, %v1782
        %v2203 = vpack.c.b16 %v1790, %v1783
        %v2204 = vpack.c.b16 %v1791, %v1784
        %v2205 = vpack.c.b16 %v1792, %v1785
        %v2206 = vpack.c.b16 %v1793, %v1786
        %v2207 = vpack.c.b16 %v1794, %v1787
        %v2208 = vpack.c.b16 %v1802, %v1795
        %v2209 = vpack.c.b16 %v1803, %v1796
        %v2210 = vpack.c.b16 %v1804, %v1797
        %v2211 = vpack.c.b16 %v1805, %v1798
        %v2212 = vpack.c.b16 %v1806, %v1799
        %v2213 = vpack.c.b16 %v1807, %v1800
        %v2214 = vpack.c.b16 %v1808, %v1801
        %v2215 = vpack.c.b16 %v1816, %v1809
        %v2216 = vpack.c.b16 %v1817, %v1810
        %v2217 = vpack.c.b16 %v1818, %v1811
        %v2218 = vpack.c.b16 %v1819, %v1812
        %v2219 = vpack.c.b16 %v1820, %v1813
        %v2220 = vpack.c.b16 %v1821, %v1814
        %v2221 = vpack.c.b16 %v1822, %v1815
        %v2222 = vpack.c.b16 %v1830, %v1823
        %v2223 = vpack.c.b16 %v1831, %v1824
        %v2224 = vpack.c.b16 %v1832, %v1825
        %v2225 = vpack.c.b16 %v1833, %v1826
        %v2226 = vpack.c.b16 %v1834, %v1827
        %v2227 = vpack.c.b16 %v1835, %v1828
        %v2228 = vpack.c.b16 %v1836, %v1829
        %v2229 = vpack.c.b16 %v1844, %v1837
        %v2230 = vpack.c.b16 %v1845, %v1838
        %v2231 = vpack.c.b16 %v1846, %v1839
        %v2232 = vpack.c.b16 %v1847, %v1840
        %v2233 = vpack.c.b16 %v1848, %v1841
        %v2234 = vpack.c.b16 %v1849, %v1842
        %v2235 = vpack.c.b16 %v1850, %v1843
        %v2236 = vpack.c.b16 %v1858, %v1851
        %v2237 = vpack.c.b16 %v1859, %v1852
        %v2238 = vpack.c.b16 %v1860, %v1853
        %v2239 = vpack.c.b16 %v1861, %v1854
        %v2240 = vpack.c.b16 %v1862, %v1855
        %v2241 = vpack.c.b16 %v1863, %v1856
        %v2242 = vpack.c.b16 %v1864, %v1857
        %v2243 = vpack.c.b16 %v1872, %v1865
        %v2244 = vpack.c.b16 %v1873, %v1866
        %v2245 = vpack.c.b16 %v1874, %v1867
        %v2246 = vpack.c.b16 %v1875, %v1868
        %v2247 = vpack.c.b16 %v1876, %v1869
        %v2248 = vpack.c.b16 %v1877, %v1870
        %v2249 = vpack.c.b16 %v1878, %v1871
        %v2250 = vpack.c.b16 %v1886, %v1879
        %v2251 = vpack.c.b16 %v1887, %v1880
        %v2252 = vpack.c.b16 %v1888, %v1881
        %v2253 = vpack.c.b16 %v1889, %v1882
        %v2254 = vpack.c.b16 %v1890, %v1883
        %v2255 = vpack.c.b16 %v1891, %v1884
        %v2256 = vpack.c.b16 %v1892, %v1885
        %v2257 = vpack.c.b16 %v1900, %v1893
        %v2258 = vpack.c.b16 %v1901, %v1894
        %v2259 = vpack.c.b16 %v1902, %v1895
        %v2260 = vpack.c.b16 %v1903, %v1896
        %v2261 = vpack.c.b16 %v1904, %v1897
        %v2262 = vpack.c.b16 %v1905, %v1898
        %v2263 = vpack.c.b16 %v1906, %v1899
        %v2264 = vpack.c.b16 %v1914, %v1907
        %v2265 = vpack.c.b16 %v1915, %v1908
        %v2266 = vpack.c.b16 %v1916, %v1909
        %v2267 = vpack.c.b16 %v1917, %v1910
        %v2268 = vpack.c.b16 %v1918, %v1911
        %v2269 = vpack.c.b16 %v1919, %v1912
        %v2270 = vpack.c.b16 %v1920, %v1913
        %v2271 = vpack.c.b16 %v1928, %v1921
        %v2272 = vpack.c.b16 %v1929, %v1922
        %v2273 = vpack.c.b16 %v1930, %v1923
        %v2274 = vpack.c.b16 %v1931, %v1924
        %v2275 = vpack.c.b16 %v1932, %v1925
        %v2276 = vpack.c.b16 %v1933, %v1926
        %v2277 = vpack.c.b16 %v1934, %v1927
        %v2278 = vpack.c.b16 %v1942, %v1935
        %v2279 = vpack.c.b16 %v1943, %v1936
        %v2280 = vpack.c.b16 %v1944, %v1937
        %v2281 = vpack.c.b16 %v1945, %v1938
        %v2282 = vpack.c.b16 %v1946, %v1939
        %v2283 = vpack.c.b16 %v1947, %v1940
        %v2284 = vpack.c.b16 %v1948, %v1941
        %v2285 = vpack.c.b16 %v1956, %v1949
        %v2286 = vpack.c.b16 %v1957, %v1950
        %v2287 = vpack.c.b16 %v1958, %v1951
        %v2288 = vpack.c.b16 %v1959, %v1952
        %v2289 = vpack.c.b16 %v1960, %v1953
        %v2290 = vpack.c.b16 %v1961, %v1954
        %v2291 = vpack.c.b16 %v1962, %v1955
        %v2292 = vpack.c.b16 %v1970, %v1963
        %v2293 = vpack.c.b16 %v1971, %v1964
        %v2294 = vpack.c.b16 %v1972, %v1965
        %v2295 = vpack.c.b16 %v1973, %v1966
        %v2296 = vpack.c.b16 %v1974, %v1967
        %v2297 = vpack.c.b16 %v1975, %v1968
        %v2298 = vpack.c.b16 %v1976, %v1969
        %v2299 = vpack.c.b16 %v1984, %v1977
        %v2300 = vpack.c.b16 %v1985, %v1978
        %v2301 = vpack.c.b16 %v1986, %v1979
        %v2302 = vpack.c.b16 %v1987, %v1980
        %v2303 = vpack.c.b16 %v1988, %v1981
        %v2304 = vpack.c.b16 %v1989, %v1982
        %v2305 = vpack.c.b16 %v1990, %v1983
        %v2306 = vpack.c.b16 %v1998, %v1991
        %v2307 = vpack.c.b16 %v1999, %v1992
        %v2308 = vpack.c.b16 %v2000, %v1993
        %v2309 = vpack.c.b16 %v2001, %v1994
        %v2310 = vpack.c.b16 %v2002, %v1995
        %v2311 = vpack.c.b16 %v2003, %v1996
        %v2312 = vpack.c.b16 %v2004, %v1997
        %v2313 = vpack.c.b16 %v2012, %v2005
        %v2314 = vpack.c.b16 %v2013, %v2006
        %v2315 = vpack.c.b16 %v2014, %v2007
        %v2316 = vpack.c.b16 %v2015, %v2008
        %v2317 = vpack.c.b16 %v2016, %v2009
        %v2318 = vpack.c.b16 %v2017, %v2010
        %v2319 = vpack.c.b16 %v2018, %v2011
        %v2320 = vpack.c.b16 %v2026, %v2019
        %v2321 = vpack.c.b16 %v2027, %v2020
        %v2322 = vpack.c.b16 %v2028, %v2021
        %v2323 = vpack.c.b16 %v2029, %v2022
        %v2324 = vpack.c.b16 %v2030, %v2023
        %v2325 = vpack.c.b16 %v2031, %v2024
        %v2326 = vpack.c.b16 %v2032, %v2025
        %vm2621 = vcmask 261120
        %v2623 = vsel %vm2621, %v960, 0
        %v2626 = vsel %vm2621, %v966, 0
        %v2629 = vsel %vm2621, %v972, 0
        %v2632 = vsel %vm2621, %v978, 0
        %v2635 = vsel %vm2621, %v984, 0
        %v2638 = vsel %vm2621, %v990, 0
        %v2641 = vsel %vm2621, %v996, 0
        %v2644 = vsel %vm2621, %v1002, 0
        %v2647 = vsel %vm2621, %v1008, 0
        %v2650 = vsel %vm2621, %v1014, 0
        %v2653 = vsel %vm2621, %v1020, 0
        %v2656 = vsel %vm2621, %v1026, 0
        %v2659 = vsel %vm2621, %v1032, 0
        %v2662 = vsel %vm2621, %v1038, 0
        %2664 = vmatpush.bf16.msra.mxu0 %v2082
        %2665 = vmatpush.bf16.msra.mxu0 %v2075
        %2666 = vmatpush.bf16.msra.mxu0 %v2068
        %2667 = vmatpush.bf16.msra.mxu0 %v2061
        %2668 = vmatpush.bf16.msra.mxu0 %v2054
        %2669 = vmatpush.bf16.msra.mxu0 %v2047
        %2670 = vmatpush.bf16.msra.mxu0 %v2040
        %2671 = vmatpush.bf16.msra.mxu0 %v2033
        %2672 = vmatmul.bf16.gmra.mxu0 %v955
        %v2673 = vpop.f32.mrf.mxu0
        %v2674 = vadd.f32 0.0, %v2673
        %v2675 = vpop.f32.mrf.mxu0
        %v2676 = vadd.f32 0.0, %v2675
        %2677 = vmatmul.bf16.gmra.mxu0 %v961
        %v2678 = vpop.f32.mrf.mxu0
        %v2679 = vadd.f32 0.0, %v2678
        %v2680 = vpop.f32.mrf.mxu0
        %v2681 = vadd.f32 0.0, %v2680
        %2682 = vmatmul.bf16.gmra.mxu0 %v967
        %v2683 = vpop.f32.mrf.mxu0
        %v2684 = vadd.f32 0.0, %v2683
        %v2685 = vpop.f32.mrf.mxu0
        %v2686 = vadd.f32 0.0, %v2685
        %2687 = vmatmul.bf16.gmra.mxu0 %v973
        %v2688 = vpop.f32.mrf.mxu0
        %v2689 = vadd.f32 0.0, %v2688
        %v2690 = vpop.f32.mrf.mxu0
        %v2691 = vadd.f32 0.0, %v2690
        %2692 = vmatmul.bf16.gmra.mxu0 %v979
        %v2693 = vpop.f32.mrf.mxu0
        %v2694 = vadd.f32 0.0, %v2693
        %v2695 = vpop.f32.mrf.mxu0
        %v2696 = vadd.f32 0.0, %v2695
        %2697 = vmatmul.bf16.gmra.mxu0 %v985
        %v2698 = vpop.f32.mrf.mxu0
        %v2699 = vadd.f32 0.0, %v2698
        %v2700 = vpop.f32.mrf.mxu0
        %v2701 = vadd.f32 0.0, %v2700
        %2702 = vmatmul.bf16.gmra.mxu0 %v991
        %v2703 = vpop.f32.mrf.mxu0
        %v2704 = vadd.f32 0.0, %v2703
        %v2705 = vpop.f32.mrf.mxu0
        %v2706 = vadd.f32 0.0, %v2705
        %2707 = vmatmul.bf16.gmra.mxu0 %v997
        %v2708 = vpop.f32.mrf.mxu0
        %v2709 = vadd.f32 0.0, %v2708
        %v2710 = vpop.f32.mrf.mxu0
        %v2711 = vadd.f32 0.0, %v2710
        %2712 = vmatmul.bf16.gmra.mxu0 %v1003
        %v2713 = vpop.f32.mrf.mxu0
        %v2714 = vadd.f32 0.0, %v2713
        %v2715 = vpop.f32.mrf.mxu0
        %v2716 = vadd.f32 0.0, %v2715
        %2717 = vmatmul.bf16.gmra.mxu0 %v1009
        %v2718 = vpop.f32.mrf.mxu0
        %v2719 = vadd.f32 0.0, %v2718
        %v2720 = vpop.f32.mrf.mxu0
        %v2721 = vadd.f32 0.0, %v2720
        %2722 = vmatmul.bf16.gmra.mxu0 %v1015
        %v2723 = vpop.f32.mrf.mxu0
        %v2724 = vadd.f32 0.0, %v2723
        %v2725 = vpop.f32.mrf.mxu0
        %v2726 = vadd.f32 0.0, %v2725
        %2727 = vmatmul.bf16.gmra.mxu0 %v1021
        %v2728 = vpop.f32.mrf.mxu0
        %v2729 = vadd.f32 0.0, %v2728
        %v2730 = vpop.f32.mrf.mxu0
        %v2731 = vadd.f32 0.0, %v2730
        %2732 = vmatmul.bf16.gmra.mxu0 %v1027
        %v2733 = vpop.f32.mrf.mxu0
        %v2734 = vadd.f32 0.0, %v2733
        %v2735 = vpop.f32.mrf.mxu0
        %v2736 = vadd.f32 0.0, %v2735
        %2737 = vmatmul.bf16.gmra.mxu0 %v1033
        %v2738 = vpop.f32.mrf.mxu0
        %v2739 = vadd.f32 0.0, %v2738
        %v2740 = vpop.f32.mrf.mxu0
        %v2741 = vadd.f32 0.0, %v2740
        %2742 = vdwg.mxu0
        %2743 = vmatpush.bf16.msra.mxu0 %v2138
        %2744 = vmatpush.bf16.msra.mxu0 %v2131
        %2745 = vmatpush.bf16.msra.mxu0 %v2124
        %2746 = vmatpush.bf16.msra.mxu0 %v2117
        %2747 = vmatpush.bf16.msra.mxu0 %v2110
        %2748 = vmatpush.bf16.msra.mxu0 %v2103
        %2749 = vmatpush.bf16.msra.mxu0 %v2096
        %2750 = vmatpush.bf16.msra.mxu0 %v2089
        %2751 = vmatmul.bf16.gmra.mxu0 %v956
        %v2752 = vpop.f32.mrf.mxu0
        %v2753 = vadd.f32 %v2674, %v2752
        %v2754 = vpop.f32.mrf.mxu0
        %v2755 = vadd.f32 %v2676, %v2754
        %2756 = vmatmul.bf16.gmra.mxu0 %v962
        %v2757 = vpop.f32.mrf.mxu0
        %v2758 = vadd.f32 %v2679, %v2757
        %v2759 = vpop.f32.mrf.mxu0
        %v2760 = vadd.f32 %v2681, %v2759
        %2761 = vmatmul.bf16.gmra.mxu0 %v968
        %v2762 = vpop.f32.mrf.mxu0
        %v2763 = vadd.f32 %v2684, %v2762
        %v2764 = vpop.f32.mrf.mxu0
        %v2765 = vadd.f32 %v2686, %v2764
        %2766 = vmatmul.bf16.gmra.mxu0 %v974
        %v2767 = vpop.f32.mrf.mxu0
        %v2768 = vadd.f32 %v2689, %v2767
        %v2769 = vpop.f32.mrf.mxu0
        %v2770 = vadd.f32 %v2691, %v2769
        %2771 = vmatmul.bf16.gmra.mxu0 %v980
        %v2772 = vpop.f32.mrf.mxu0
        %v2773 = vadd.f32 %v2694, %v2772
        %v2774 = vpop.f32.mrf.mxu0
        %v2775 = vadd.f32 %v2696, %v2774
        %2776 = vmatmul.bf16.gmra.mxu0 %v986
        %v2777 = vpop.f32.mrf.mxu0
        %v2778 = vadd.f32 %v2699, %v2777
        %v2779 = vpop.f32.mrf.mxu0
        %v2780 = vadd.f32 %v2701, %v2779
        %2781 = vmatmul.bf16.gmra.mxu0 %v992
        %v2782 = vpop.f32.mrf.mxu0
        %v2783 = vadd.f32 %v2704, %v2782
        %v2784 = vpop.f32.mrf.mxu0
        %v2785 = vadd.f32 %v2706, %v2784
        %2786 = vmatmul.bf16.gmra.mxu0 %v998
        %v2787 = vpop.f32.mrf.mxu0
        %v2788 = vadd.f32 %v2709, %v2787
        %v2789 = vpop.f32.mrf.mxu0
        %v2790 = vadd.f32 %v2711, %v2789
        %2791 = vmatmul.bf16.gmra.mxu0 %v1004
        %v2792 = vpop.f32.mrf.mxu0
        %v2793 = vadd.f32 %v2714, %v2792
        %v2794 = vpop.f32.mrf.mxu0
        %v2795 = vadd.f32 %v2716, %v2794
        %2796 = vmatmul.bf16.gmra.mxu0 %v1010
        %v2797 = vpop.f32.mrf.mxu0
        %v2798 = vadd.f32 %v2719, %v2797
        %v2799 = vpop.f32.mrf.mxu0
        %v2800 = vadd.f32 %v2721, %v2799
        %2801 = vmatmul.bf16.gmra.mxu0 %v1016
        %v2802 = vpop.f32.mrf.mxu0
        %v2803 = vadd.f32 %v2724, %v2802
        %v2804 = vpop.f32.mrf.mxu0
        %v2805 = vadd.f32 %v2726, %v2804
        %2806 = vmatmul.bf16.gmra.mxu0 %v1022
        %v2807 = vpop.f32.mrf.mxu0
        %v2808 = vadd.f32 %v2729, %v2807
        %v2809 = vpop.f32.mrf.mxu0
        %v2810 = vadd.f32 %v2731, %v2809
        %2811 = vmatmul.bf16.gmra.mxu0 %v1028
        %v2812 = vpop.f32.mrf.mxu0
        %v2813 = vadd.f32 %v2734, %v2812
        %v2814 = vpop.f32.mrf.mxu0
        %v2815 = vadd.f32 %v2736, %v2814
        %2816 = vmatmul.bf16.gmra.mxu0 %v1034
        %v2817 = vpop.f32.mrf.mxu0
        %v2818 = vadd.f32 %v2739, %v2817
        %v2819 = vpop.f32.mrf.mxu0
        %v2820 = vadd.f32 %v2741, %v2819
        %2821 = vdwg.mxu0
        %2822 = vmatpush.bf16.msra.mxu0 %v2194
        %2823 = vmatpush.bf16.msra.mxu0 %v2187
        %2824 = vmatpush.bf16.msra.mxu0 %v2180
        %2825 = vmatpush.bf16.msra.mxu0 %v2173
        %2826 = vmatpush.bf16.msra.mxu0 %v2166
        %2827 = vmatpush.bf16.msra.mxu0 %v2159
        %2828 = vmatpush.bf16.msra.mxu0 %v2152
        %2829 = vmatpush.bf16.msra.mxu0 %v2145
        %2830 = vmatmul.bf16.gmra.mxu0 %v957
        %v2831 = vpop.f32.mrf.mxu0
        %v2832 = vadd.f32 %v2753, %v2831
        %v2833 = vpop.f32.mrf.mxu0
        %v2834 = vadd.f32 %v2755, %v2833
        %2835 = vmatmul.bf16.gmra.mxu0 %v963
        %v2836 = vpop.f32.mrf.mxu0
        %v2837 = vadd.f32 %v2758, %v2836
        %v2838 = vpop.f32.mrf.mxu0
        %v2839 = vadd.f32 %v2760, %v2838
        %2840 = vmatmul.bf16.gmra.mxu0 %v969
        %v2841 = vpop.f32.mrf.mxu0
        %v2842 = vadd.f32 %v2763, %v2841
        %v2843 = vpop.f32.mrf.mxu0
        %v2844 = vadd.f32 %v2765, %v2843
        %2845 = vmatmul.bf16.gmra.mxu0 %v975
        %v2846 = vpop.f32.mrf.mxu0
        %v2847 = vadd.f32 %v2768, %v2846
        %v2848 = vpop.f32.mrf.mxu0
        %v2849 = vadd.f32 %v2770, %v2848
        %2850 = vmatmul.bf16.gmra.mxu0 %v981
        %v2851 = vpop.f32.mrf.mxu0
        %v2852 = vadd.f32 %v2773, %v2851
        %v2853 = vpop.f32.mrf.mxu0
        %v2854 = vadd.f32 %v2775, %v2853
        %2855 = vmatmul.bf16.gmra.mxu0 %v987
        %v2856 = vpop.f32.mrf.mxu0
        %v2857 = vadd.f32 %v2778, %v2856
        %v2858 = vpop.f32.mrf.mxu0
        %v2859 = vadd.f32 %v2780, %v2858
        %2860 = vmatmul.bf16.gmra.mxu0 %v993
        %v2861 = vpop.f32.mrf.mxu0
        %v2862 = vadd.f32 %v2783, %v2861
        %v2863 = vpop.f32.mrf.mxu0
        %v2864 = vadd.f32 %v2785, %v2863
        %2865 = vmatmul.bf16.gmra.mxu0 %v999
        %v2866 = vpop.f32.mrf.mxu0
        %v2867 = vadd.f32 %v2788, %v2866
        %v2868 = vpop.f32.mrf.mxu0
        %v2869 = vadd.f32 %v2790, %v2868
        %2870 = vmatmul.bf16.gmra.mxu0 %v1005
        %v2871 = vpop.f32.mrf.mxu0
        %v2872 = vadd.f32 %v2793, %v2871
        %v2873 = vpop.f32.mrf.mxu0
        %v2874 = vadd.f32 %v2795, %v2873
        %2875 = vmatmul.bf16.gmra.mxu0 %v1011
        %v2876 = vpop.f32.mrf.mxu0
        %v2877 = vadd.f32 %v2798, %v2876
        %v2878 = vpop.f32.mrf.mxu0
        %v2879 = vadd.f32 %v2800, %v2878
        %2880 = vmatmul.bf16.gmra.mxu0 %v1017
        %v2881 = vpop.f32.mrf.mxu0
        %v2882 = vadd.f32 %v2803, %v2881
        %v2883 = vpop.f32.mrf.mxu0
        %v2884 = vadd.f32 %v2805, %v2883
        %2885 = vmatmul.bf16.gmra.mxu0 %v1023
        %v2886 = vpop.f32.mrf.mxu0
        %v2887 = vadd.f32 %v2808, %v2886
        %v2888 = vpop.f32.mrf.mxu0
        %v2889 = vadd.f32 %v2810, %v2888
        %2890 = vmatmul.bf16.gmra.mxu0 %v1029
        %v2891 = vpop.f32.mrf.mxu0
        %v2892 = vadd.f32 %v2813, %v2891
        %v2893 = vpop.f32.mrf.mxu0
        %v2894 = vadd.f32 %v2815, %v2893
        %2895 = vmatmul.bf16.gmra.mxu0 %v1035
        %v2896 = vpop.f32.mrf.mxu0
        %v2897 = vadd.f32 %v2818, %v2896
        %v2898 = vpop.f32.mrf.mxu0
        %v2899 = vadd.f32 %v2820, %v2898
        %2900 = vdwg.mxu0
        %2901 = vmatpush.bf16.msra.mxu0 %v2250
        %2902 = vmatpush.bf16.msra.mxu0 %v2243
        %2903 = vmatpush.bf16.msra.mxu0 %v2236
        %2904 = vmatpush.bf16.msra.mxu0 %v2229
        %2905 = vmatpush.bf16.msra.mxu0 %v2222
        %2906 = vmatpush.bf16.msra.mxu0 %v2215
        %2907 = vmatpush.bf16.msra.mxu0 %v2208
        %2908 = vmatpush.bf16.msra.mxu0 %v2201
        %2909 = vmatmul.bf16.gmra.mxu0 %v958
        %v2910 = vpop.f32.mrf.mxu0
        %v2911 = vadd.f32 %v2832, %v2910
        %v2912 = vpop.f32.mrf.mxu0
        %v2913 = vadd.f32 %v2834, %v2912
        %2914 = vmatmul.bf16.gmra.mxu0 %v964
        %v2915 = vpop.f32.mrf.mxu0
        %v2916 = vadd.f32 %v2837, %v2915
        %v2917 = vpop.f32.mrf.mxu0
        %v2918 = vadd.f32 %v2839, %v2917
        %2919 = vmatmul.bf16.gmra.mxu0 %v970
        %v2920 = vpop.f32.mrf.mxu0
        %v2921 = vadd.f32 %v2842, %v2920
        %v2922 = vpop.f32.mrf.mxu0
        %v2923 = vadd.f32 %v2844, %v2922
        %2924 = vmatmul.bf16.gmra.mxu0 %v976
        %v2925 = vpop.f32.mrf.mxu0
        %v2926 = vadd.f32 %v2847, %v2925
        %v2927 = vpop.f32.mrf.mxu0
        %v2928 = vadd.f32 %v2849, %v2927
        %2929 = vmatmul.bf16.gmra.mxu0 %v982
        %v2930 = vpop.f32.mrf.mxu0
        %v2931 = vadd.f32 %v2852, %v2930
        %v2932 = vpop.f32.mrf.mxu0
        %v2933 = vadd.f32 %v2854, %v2932
        %2934 = vmatmul.bf16.gmra.mxu0 %v988
        %v2935 = vpop.f32.mrf.mxu0
        %v2936 = vadd.f32 %v2857, %v2935
        %v2937 = vpop.f32.mrf.mxu0
        %v2938 = vadd.f32 %v2859, %v2937
        %2939 = vmatmul.bf16.gmra.mxu0 %v994
        %v2940 = vpop.f32.mrf.mxu0
        %v2941 = vadd.f32 %v2862, %v2940
        %v2942 = vpop.f32.mrf.mxu0
        %v2943 = vadd.f32 %v2864, %v2942
        %2944 = vmatmul.bf16.gmra.mxu0 %v1000
        %v2945 = vpop.f32.mrf.mxu0
        %v2946 = vadd.f32 %v2867, %v2945
        %v2947 = vpop.f32.mrf.mxu0
        %v2948 = vadd.f32 %v2869, %v2947
        %2949 = vmatmul.bf16.gmra.mxu0 %v1006
        %v2950 = vpop.f32.mrf.mxu0
        %v2951 = vadd.f32 %v2872, %v2950
        %v2952 = vpop.f32.mrf.mxu0
        %v2953 = vadd.f32 %v2874, %v2952
        %2954 = vmatmul.bf16.gmra.mxu0 %v1012
        %v2955 = vpop.f32.mrf.mxu0
        %v2956 = vadd.f32 %v2877, %v2955
        %v2957 = vpop.f32.mrf.mxu0
        %v2958 = vadd.f32 %v2879, %v2957
        %2959 = vmatmul.bf16.gmra.mxu0 %v1018
        %v2960 = vpop.f32.mrf.mxu0
        %v2961 = vadd.f32 %v2882, %v2960
        %v2962 = vpop.f32.mrf.mxu0
        %v2963 = vadd.f32 %v2884, %v2962
        %2964 = vmatmul.bf16.gmra.mxu0 %v1024
        %v2965 = vpop.f32.mrf.mxu0
        %v2966 = vadd.f32 %v2887, %v2965
        %v2967 = vpop.f32.mrf.mxu0
        %v2968 = vadd.f32 %v2889, %v2967
        %2969 = vmatmul.bf16.gmra.mxu0 %v1030
        %v2970 = vpop.f32.mrf.mxu0
        %v2971 = vadd.f32 %v2892, %v2970
        %v2972 = vpop.f32.mrf.mxu0
        %v2973 = vadd.f32 %v2894, %v2972
        %2974 = vmatmul.bf16.gmra.mxu0 %v1036
        %v2975 = vpop.f32.mrf.mxu0
        %v2976 = vadd.f32 %v2897, %v2975
        %v2977 = vpop.f32.mrf.mxu0
        %v2978 = vadd.f32 %v2899, %v2977
        %2979 = vdwg.mxu0
        %2980 = vmatpush.bf16.msra.mxu0 %v2306
        %2981 = vmatpush.bf16.msra.mxu0 %v2299
        %2982 = vmatpush.bf16.msra.mxu0 %v2292
        %2983 = vmatpush.bf16.msra.mxu0 %v2285
        %2984 = vmatpush.bf16.msra.mxu0 %v2278
        %2985 = vmatpush.bf16.msra.mxu0 %v2271
        %2986 = vmatpush.bf16.msra.mxu0 %v2264
        %2987 = vmatpush.bf16.msra.mxu0 %v2257
        %2988 = vmatmul.bf16.gmra.mxu0 %v959
        %v2989 = vpop.f32.mrf.mxu0
        %v2990 = vadd.f32 %v2911, %v2989
        %v2991 = vpop.f32.mrf.mxu0
        %v2992 = vadd.f32 %v2913, %v2991
        %2993 = vmatmul.bf16.gmra.mxu0 %v965
        %v2994 = vpop.f32.mrf.mxu0
        %v2995 = vadd.f32 %v2916, %v2994
        %v2996 = vpop.f32.mrf.mxu0
        %v2997 = vadd.f32 %v2918, %v2996
        %2998 = vmatmul.bf16.gmra.mxu0 %v971
        %v2999 = vpop.f32.mrf.mxu0
        %v3000 = vadd.f32 %v2921, %v2999
        %v3001 = vpop.f32.mrf.mxu0
        %v3002 = vadd.f32 %v2923, %v3001
        %3003 = vmatmul.bf16.gmra.mxu0 %v977
        %v3004 = vpop.f32.mrf.mxu0
        %v3005 = vadd.f32 %v2926, %v3004
        %v3006 = vpop.f32.mrf.mxu0
        %v3007 = vadd.f32 %v2928, %v3006
        %3008 = vmatmul.bf16.gmra.mxu0 %v983
        %v3009 = vpop.f32.mrf.mxu0
        %v3010 = vadd.f32 %v2931, %v3009
        %v3011 = vpop.f32.mrf.mxu0
        %v3012 = vadd.f32 %v2933, %v3011
        %3013 = vmatmul.bf16.gmra.mxu0 %v989
        %v3014 = vpop.f32.mrf.mxu0
        %v3015 = vadd.f32 %v2936, %v3014
        %v3016 = vpop.f32.mrf.mxu0
        %v3017 = vadd.f32 %v2938, %v3016
        %3018 = vmatmul.bf16.gmra.mxu0 %v995
        %v3019 = vpop.f32.mrf.mxu0
        %v3020 = vadd.f32 %v2941, %v3019
        %v3021 = vpop.f32.mrf.mxu0
        %v3022 = vadd.f32 %v2943, %v3021
        %3023 = vmatmul.bf16.gmra.mxu0 %v1001
        %v3024 = vpop.f32.mrf.mxu0
        %v3025 = vadd.f32 %v2946, %v3024
        %v3026 = vpop.f32.mrf.mxu0
        %v3027 = vadd.f32 %v2948, %v3026
        %3028 = vmatmul.bf16.gmra.mxu0 %v1007
        %v3029 = vpop.f32.mrf.mxu0
        %v3030 = vadd.f32 %v2951, %v3029
        %v3031 = vpop.f32.mrf.mxu0
        %v3032 = vadd.f32 %v2953, %v3031
        %3033 = vmatmul.bf16.gmra.mxu0 %v1013
        %v3034 = vpop.f32.mrf.mxu0
        %v3035 = vadd.f32 %v2956, %v3034
        %v3036 = vpop.f32.mrf.mxu0
        %v3037 = vadd.f32 %v2958, %v3036
        %3038 = vmatmul.bf16.gmra.mxu0 %v1019
        %v3039 = vpop.f32.mrf.mxu0
        %v3040 = vadd.f32 %v2961, %v3039
        %v3041 = vpop.f32.mrf.mxu0
        %v3042 = vadd.f32 %v2963, %v3041
        %3043 = vmatmul.bf16.gmra.mxu0 %v1025
        %v3044 = vpop.f32.mrf.mxu0
        %v3045 = vadd.f32 %v2966, %v3044
        %v3046 = vpop.f32.mrf.mxu0
        %v3047 = vadd.f32 %v2968, %v3046
        %3048 = vmatmul.bf16.gmra.mxu0 %v1031
        %v3049 = vpop.f32.mrf.mxu0
        %v3050 = vadd.f32 %v2971, %v3049
        %v3051 = vpop.f32.mrf.mxu0
        %v3052 = vadd.f32 %v2973, %v3051
        %3053 = vmatmul.bf16.gmra.mxu0 %v1037
        %v3054 = vpop.f32.mrf.mxu0
        %v3055 = vadd.f32 %v2976, %v3054
        %v3056 = vpop.f32.mrf.mxu0
        %v3057 = vadd.f32 %v2978, %v3056
        %3058 = vdwg.mxu0
        %3059 = vmatpush.bf16.msra.mxu0 0
        %3060 = vmatpush.bf16.msra.mxu0 0
        %3061 = vmatpush.bf16.msra.mxu0 0
        %3062 = vmatpush.bf16.msra.mxu0 0
        %3063 = vmatpush.bf16.msra.mxu0 0
        %3064 = vmatpush.bf16.msra.mxu0 0
        %3065 = vmatpush.bf16.msra.mxu0 %v2320
        %3066 = vmatpush.bf16.msra.mxu0 %v2313
        %3067 = vmatmul.bf16.gmra.mxu0 %v2623
        %v3068 = vpop.f32.mrf.mxu0
        %v3069 = vadd.f32 %v2990, %v3068
        %v3070 = vpop.f32.mrf.mxu0
        %v3071 = vadd.f32 %v2992, %v3070
        %3072 = vmatmul.bf16.gmra.mxu0 %v2626
        %v3073 = vpop.f32.mrf.mxu0
        %v3074 = vadd.f32 %v2995, %v3073
        %v3075 = vpop.f32.mrf.mxu0
        %v3076 = vadd.f32 %v2997, %v3075
        %3077 = vmatmul.bf16.gmra.mxu0 %v2629
        %v3078 = vpop.f32.mrf.mxu0
        %v3079 = vadd.f32 %v3000, %v3078
        %v3080 = vpop.f32.mrf.mxu0
        %v3081 = vadd.f32 %v3002, %v3080
        %3082 = vmatmul.bf16.gmra.mxu0 %v2632
        %v3083 = vpop.f32.mrf.mxu0
        %v3084 = vadd.f32 %v3005, %v3083
        %v3085 = vpop.f32.mrf.mxu0
        %v3086 = vadd.f32 %v3007, %v3085
        %3087 = vmatmul.bf16.gmra.mxu0 %v2635
        %v3088 = vpop.f32.mrf.mxu0
        %v3089 = vadd.f32 %v3010, %v3088
        %v3090 = vpop.f32.mrf.mxu0
        %v3091 = vadd.f32 %v3012, %v3090
        %3092 = vmatmul.bf16.gmra.mxu0 %v2638
        %v3093 = vpop.f32.mrf.mxu0
        %v3094 = vadd.f32 %v3015, %v3093
        %v3095 = vpop.f32.mrf.mxu0
        %v3096 = vadd.f32 %v3017, %v3095
        %3097 = vmatmul.bf16.gmra.mxu0 %v2641
        %v3098 = vpop.f32.mrf.mxu0
        %v3099 = vadd.f32 %v3020, %v3098
        %v3100 = vpop.f32.mrf.mxu0
        %v3101 = vadd.f32 %v3022, %v3100
        %3102 = vmatmul.bf16.gmra.mxu0 %v2644
        %v3103 = vpop.f32.mrf.mxu0
        %v3104 = vadd.f32 %v3025, %v3103
        %v3105 = vpop.f32.mrf.mxu0
        %v3106 = vadd.f32 %v3027, %v3105
        %3107 = vmatmul.bf16.gmra.mxu0 %v2647
        %v3108 = vpop.f32.mrf.mxu0
        %v3109 = vadd.f32 %v3030, %v3108
        %v3110 = vpop.f32.mrf.mxu0
        %v3111 = vadd.f32 %v3032, %v3110
        %3112 = vmatmul.bf16.gmra.mxu0 %v2650
        %v3113 = vpop.f32.mrf.mxu0
        %v3114 = vadd.f32 %v3035, %v3113
        %v3115 = vpop.f32.mrf.mxu0
        %v3116 = vadd.f32 %v3037, %v3115
        %3117 = vmatmul.bf16.gmra.mxu0 %v2653
        %v3118 = vpop.f32.mrf.mxu0
        %v3119 = vadd.f32 %v3040, %v3118
        %v3120 = vpop.f32.mrf.mxu0
        %v3121 = vadd.f32 %v3042, %v3120
        %3122 = vmatmul.bf16.gmra.mxu0 %v2656
        %v3123 = vpop.f32.mrf.mxu0
        %v3124 = vadd.f32 %v3045, %v3123
        %v3125 = vpop.f32.mrf.mxu0
        %v3126 = vadd.f32 %v3047, %v3125
        %3127 = vmatmul.bf16.gmra.mxu0 %v2659
        %v3128 = vpop.f32.mrf.mxu0
        %v3129 = vadd.f32 %v3050, %v3128
        %v3130 = vpop.f32.mrf.mxu0
        %v3131 = vadd.f32 %v3052, %v3130
        %3132 = vmatmul.bf16.gmra.mxu0 %v2662
        %v3133 = vpop.f32.mrf.mxu0
        %v3134 = vadd.f32 %v3055, %v3133
        %v3135 = vpop.f32.mrf.mxu0
        %v3136 = vadd.f32 %v3057, %v3135
        %3137 = vdwg.mxu0
        %3138 = vmatpush.bf16.msra.mxu0 %v2083
        %3139 = vmatpush.bf16.msra.mxu0 %v2076
        %3140 = vmatpush.bf16.msra.mxu0 %v2069
        %3141 = vmatpush.bf16.msra.mxu0 %v2062
        %3142 = vmatpush.bf16.msra.mxu0 %v2055
        %3143 = vmatpush.bf16.msra.mxu0 %v2048
        %3144 = vmatpush.bf16.msra.mxu0 %v2041
        %3145 = vmatpush.bf16.msra.mxu0 %v2034
        %3146 = vmatmul.bf16.gmra.mxu0 %v955
        %v3147 = vpop.f32.mrf.mxu0
        %v3148 = vadd.f32 0.0, %v3147
        %v3149 = vpop.f32.mrf.mxu0
        %v3150 = vadd.f32 0.0, %v3149
        %3151 = vmatmul.bf16.gmra.mxu0 %v961
        %v3152 = vpop.f32.mrf.mxu0
        %v3153 = vadd.f32 0.0, %v3152
        %v3154 = vpop.f32.mrf.mxu0
        %v3155 = vadd.f32 0.0, %v3154
        %3156 = vmatmul.bf16.gmra.mxu0 %v967
        %v3157 = vpop.f32.mrf.mxu0
        %v3158 = vadd.f32 0.0, %v3157
        %v3159 = vpop.f32.mrf.mxu0
        %v3160 = vadd.f32 0.0, %v3159
        %3161 = vmatmul.bf16.gmra.mxu0 %v973
        %v3162 = vpop.f32.mrf.mxu0
        %v3163 = vadd.f32 0.0, %v3162
        %v3164 = vpop.f32.mrf.mxu0
        %v3165 = vadd.f32 0.0, %v3164
        %3166 = vmatmul.bf16.gmra.mxu0 %v979
        %v3167 = vpop.f32.mrf.mxu0
        %v3168 = vadd.f32 0.0, %v3167
        %v3169 = vpop.f32.mrf.mxu0
        %v3170 = vadd.f32 0.0, %v3169
        %3171 = vmatmul.bf16.gmra.mxu0 %v985
        %v3172 = vpop.f32.mrf.mxu0
        %v3173 = vadd.f32 0.0, %v3172
        %v3174 = vpop.f32.mrf.mxu0
        %v3175 = vadd.f32 0.0, %v3174
        %3176 = vmatmul.bf16.gmra.mxu0 %v991
        %v3177 = vpop.f32.mrf.mxu0
        %v3178 = vadd.f32 0.0, %v3177
        %v3179 = vpop.f32.mrf.mxu0
        %v3180 = vadd.f32 0.0, %v3179
        %3181 = vmatmul.bf16.gmra.mxu0 %v997
        %v3182 = vpop.f32.mrf.mxu0
        %v3183 = vadd.f32 0.0, %v3182
        %v3184 = vpop.f32.mrf.mxu0
        %v3185 = vadd.f32 0.0, %v3184
        %3186 = vmatmul.bf16.gmra.mxu0 %v1003
        %v3187 = vpop.f32.mrf.mxu0
        %v3188 = vadd.f32 0.0, %v3187
        %v3189 = vpop.f32.mrf.mxu0
        %v3190 = vadd.f32 0.0, %v3189
        %3191 = vmatmul.bf16.gmra.mxu0 %v1009
        %v3192 = vpop.f32.mrf.mxu0
        %v3193 = vadd.f32 0.0, %v3192
        %v3194 = vpop.f32.mrf.mxu0
        %v3195 = vadd.f32 0.0, %v3194
        %3196 = vmatmul.bf16.gmra.mxu0 %v1015
        %v3197 = vpop.f32.mrf.mxu0
        %v3198 = vadd.f32 0.0, %v3197
        %v3199 = vpop.f32.mrf.mxu0
        %v3200 = vadd.f32 0.0, %v3199
        %3201 = vmatmul.bf16.gmra.mxu0 %v1021
        %v3202 = vpop.f32.mrf.mxu0
        %v3203 = vadd.f32 0.0, %v3202
        %v3204 = vpop.f32.mrf.mxu0
        %v3205 = vadd.f32 0.0, %v3204
        %3206 = vmatmul.bf16.gmra.mxu0 %v1027
        %v3207 = vpop.f32.mrf.mxu0
        %v3208 = vadd.f32 0.0, %v3207
        %v3209 = vpop.f32.mrf.mxu0
        %v3210 = vadd.f32 0.0, %v3209
        %3211 = vmatmul.bf16.gmra.mxu0 %v1033
        %v3212 = vpop.f32.mrf.mxu0
        %v3213 = vadd.f32 0.0, %v3212
        %v3214 = vpop.f32.mrf.mxu0
        %v3215 = vadd.f32 0.0, %v3214
        %3216 = vdwg.mxu0
        %3217 = vmatpush.bf16.msra.mxu0 %v2139
        %3218 = vmatpush.bf16.msra.mxu0 %v2132
        %3219 = vmatpush.bf16.msra.mxu0 %v2125
        %3220 = vmatpush.bf16.msra.mxu0 %v2118
        %3221 = vmatpush.bf16.msra.mxu0 %v2111
        %3222 = vmatpush.bf16.msra.mxu0 %v2104
        %3223 = vmatpush.bf16.msra.mxu0 %v2097
        %3224 = vmatpush.bf16.msra.mxu0 %v2090
        %3225 = vmatmul.bf16.gmra.mxu0 %v956
        %v3226 = vpop.f32.mrf.mxu0
        %v3227 = vadd.f32 %v3148, %v3226
        %v3228 = vpop.f32.mrf.mxu0
        %v3229 = vadd.f32 %v3150, %v3228
        %3230 = vmatmul.bf16.gmra.mxu0 %v962
        %v3231 = vpop.f32.mrf.mxu0
        %v3232 = vadd.f32 %v3153, %v3231
        %v3233 = vpop.f32.mrf.mxu0
        %v3234 = vadd.f32 %v3155, %v3233
        %3235 = vmatmul.bf16.gmra.mxu0 %v968
        %v3236 = vpop.f32.mrf.mxu0
        %v3237 = vadd.f32 %v3158, %v3236
        %v3238 = vpop.f32.mrf.mxu0
        %v3239 = vadd.f32 %v3160, %v3238
        %3240 = vmatmul.bf16.gmra.mxu0 %v974
        %v3241 = vpop.f32.mrf.mxu0
        %v3242 = vadd.f32 %v3163, %v3241
        %v3243 = vpop.f32.mrf.mxu0
        %v3244 = vadd.f32 %v3165, %v3243
        %3245 = vmatmul.bf16.gmra.mxu0 %v980
        %v3246 = vpop.f32.mrf.mxu0
        %v3247 = vadd.f32 %v3168, %v3246
        %v3248 = vpop.f32.mrf.mxu0
        %v3249 = vadd.f32 %v3170, %v3248
        %3250 = vmatmul.bf16.gmra.mxu0 %v986
        %v3251 = vpop.f32.mrf.mxu0
        %v3252 = vadd.f32 %v3173, %v3251
        %v3253 = vpop.f32.mrf.mxu0
        %v3254 = vadd.f32 %v3175, %v3253
        %3255 = vmatmul.bf16.gmra.mxu0 %v992
        %v3256 = vpop.f32.mrf.mxu0
        %v3257 = vadd.f32 %v3178, %v3256
        %v3258 = vpop.f32.mrf.mxu0
        %v3259 = vadd.f32 %v3180, %v3258
        %3260 = vmatmul.bf16.gmra.mxu0 %v998
        %v3261 = vpop.f32.mrf.mxu0
        %v3262 = vadd.f32 %v3183, %v3261
        %v3263 = vpop.f32.mrf.mxu0
        %v3264 = vadd.f32 %v3185, %v3263
        %3265 = vmatmul.bf16.gmra.mxu0 %v1004
        %v3266 = vpop.f32.mrf.mxu0
        %v3267 = vadd.f32 %v3188, %v3266
        %v3268 = vpop.f32.mrf.mxu0
        %v3269 = vadd.f32 %v3190, %v3268
        %3270 = vmatmul.bf16.gmra.mxu0 %v1010
        %v3271 = vpop.f32.mrf.mxu0
        %v3272 = vadd.f32 %v3193, %v3271
        %v3273 = vpop.f32.mrf.mxu0
        %v3274 = vadd.f32 %v3195, %v3273
        %3275 = vmatmul.bf16.gmra.mxu0 %v1016
        %v3276 = vpop.f32.mrf.mxu0
        %v3277 = vadd.f32 %v3198, %v3276
        %v3278 = vpop.f32.mrf.mxu0
        %v3279 = vadd.f32 %v3200, %v3278
        %3280 = vmatmul.bf16.gmra.mxu0 %v1022
        %v3281 = vpop.f32.mrf.mxu0
        %v3282 = vadd.f32 %v3203, %v3281
        %v3283 = vpop.f32.mrf.mxu0
        %v3284 = vadd.f32 %v3205, %v3283
        %3285 = vmatmul.bf16.gmra.mxu0 %v1028
        %v3286 = vpop.f32.mrf.mxu0
        %v3287 = vadd.f32 %v3208, %v3286
        %v3288 = vpop.f32.mrf.mxu0
        %v3289 = vadd.f32 %v3210, %v3288
        %3290 = vmatmul.bf16.gmra.mxu0 %v1034
        %v3291 = vpop.f32.mrf.mxu0
        %v3292 = vadd.f32 %v3213, %v3291
        %v3293 = vpop.f32.mrf.mxu0
        %v3294 = vadd.f32 %v3215, %v3293
        %3295 = vdwg.mxu0
        %3296 = vmatpush.bf16.msra.mxu0 %v2195
        %3297 = vmatpush.bf16.msra.mxu0 %v2188
        %3298 = vmatpush.bf16.msra.mxu0 %v2181
        %3299 = vmatpush.bf16.msra.mxu0 %v2174
        %3300 = vmatpush.bf16.msra.mxu0 %v2167
        %3301 = vmatpush.bf16.msra.mxu0 %v2160
        %3302 = vmatpush.bf16.msra.mxu0 %v2153
        %3303 = vmatpush.bf16.msra.mxu0 %v2146
        %3304 = vmatmul.bf16.gmra.mxu0 %v957
        %v3305 = vpop.f32.mrf.mxu0
        %v3306 = vadd.f32 %v3227, %v3305
        %v3307 = vpop.f32.mrf.mxu0
        %v3308 = vadd.f32 %v3229, %v3307
        %3309 = vmatmul.bf16.gmra.mxu0 %v963
        %v3310 = vpop.f32.mrf.mxu0
        %v3311 = vadd.f32 %v3232, %v3310
        %v3312 = vpop.f32.mrf.mxu0
        %v3313 = vadd.f32 %v3234, %v3312
        %3314 = vmatmul.bf16.gmra.mxu0 %v969
        %v3315 = vpop.f32.mrf.mxu0
        %v3316 = vadd.f32 %v3237, %v3315
        %v3317 = vpop.f32.mrf.mxu0
        %v3318 = vadd.f32 %v3239, %v3317
        %3319 = vmatmul.bf16.gmra.mxu0 %v975
        %v3320 = vpop.f32.mrf.mxu0
        %v3321 = vadd.f32 %v3242, %v3320
        %v3322 = vpop.f32.mrf.mxu0
        %v3323 = vadd.f32 %v3244, %v3322
        %3324 = vmatmul.bf16.gmra.mxu0 %v981
        %v3325 = vpop.f32.mrf.mxu0
        %v3326 = vadd.f32 %v3247, %v3325
        %v3327 = vpop.f32.mrf.mxu0
        %v3328 = vadd.f32 %v3249, %v3327
        %3329 = vmatmul.bf16.gmra.mxu0 %v987
        %v3330 = vpop.f32.mrf.mxu0
        %v3331 = vadd.f32 %v3252, %v3330
        %v3332 = vpop.f32.mrf.mxu0
        %v3333 = vadd.f32 %v3254, %v3332
        %3334 = vmatmul.bf16.gmra.mxu0 %v993
        %v3335 = vpop.f32.mrf.mxu0
        %v3336 = vadd.f32 %v3257, %v3335
        %v3337 = vpop.f32.mrf.mxu0
        %v3338 = vadd.f32 %v3259, %v3337
        %3339 = vmatmul.bf16.gmra.mxu0 %v999
        %v3340 = vpop.f32.mrf.mxu0
        %v3341 = vadd.f32 %v3262, %v3340
        %v3342 = vpop.f32.mrf.mxu0
        %v3343 = vadd.f32 %v3264, %v3342
        %3344 = vmatmul.bf16.gmra.mxu0 %v1005
        %v3345 = vpop.f32.mrf.mxu0
        %v3346 = vadd.f32 %v3267, %v3345
        %v3347 = vpop.f32.mrf.mxu0
        %v3348 = vadd.f32 %v3269, %v3347
        %3349 = vmatmul.bf16.gmra.mxu0 %v1011
        %v3350 = vpop.f32.mrf.mxu0
        %v3351 = vadd.f32 %v3272, %v3350
        %v3352 = vpop.f32.mrf.mxu0
        %v3353 = vadd.f32 %v3274, %v3352
        %3354 = vmatmul.bf16.gmra.mxu0 %v1017
        %v3355 = vpop.f32.mrf.mxu0
        %v3356 = vadd.f32 %v3277, %v3355
        %v3357 = vpop.f32.mrf.mxu0
        %v3358 = vadd.f32 %v3279, %v3357
        %3359 = vmatmul.bf16.gmra.mxu0 %v1023
        %v3360 = vpop.f32.mrf.mxu0
        %v3361 = vadd.f32 %v3282, %v3360
        %v3362 = vpop.f32.mrf.mxu0
        %v3363 = vadd.f32 %v3284, %v3362
        %3364 = vmatmul.bf16.gmra.mxu0 %v1029
        %v3365 = vpop.f32.mrf.mxu0
        %v3366 = vadd.f32 %v3287, %v3365
        %v3367 = vpop.f32.mrf.mxu0
        %v3368 = vadd.f32 %v3289, %v3367
        %3369 = vmatmul.bf16.gmra.mxu0 %v1035
        %v3370 = vpop.f32.mrf.mxu0
        %v3371 = vadd.f32 %v3292, %v3370
        %v3372 = vpop.f32.mrf.mxu0
        %v3373 = vadd.f32 %v3294, %v3372
        %3374 = vdwg.mxu0
        %3375 = vmatpush.bf16.msra.mxu0 %v2251
        %3376 = vmatpush.bf16.msra.mxu0 %v2244
        %3377 = vmatpush.bf16.msra.mxu0 %v2237
        %3378 = vmatpush.bf16.msra.mxu0 %v2230
        %3379 = vmatpush.bf16.msra.mxu0 %v2223
        %3380 = vmatpush.bf16.msra.mxu0 %v2216
        %3381 = vmatpush.bf16.msra.mxu0 %v2209
        %3382 = vmatpush.bf16.msra.mxu0 %v2202
        %3383 = vmatmul.bf16.gmra.mxu0 %v958
        %v3384 = vpop.f32.mrf.mxu0
        %v3385 = vadd.f32 %v3306, %v3384
        %v3386 = vpop.f32.mrf.mxu0
        %v3387 = vadd.f32 %v3308, %v3386
        %3388 = vmatmul.bf16.gmra.mxu0 %v964
        %v3389 = vpop.f32.mrf.mxu0
        %v3390 = vadd.f32 %v3311, %v3389
        %v3391 = vpop.f32.mrf.mxu0
        %v3392 = vadd.f32 %v3313, %v3391
        %3393 = vmatmul.bf16.gmra.mxu0 %v970
        %v3394 = vpop.f32.mrf.mxu0
        %v3395 = vadd.f32 %v3316, %v3394
        %v3396 = vpop.f32.mrf.mxu0
        %v3397 = vadd.f32 %v3318, %v3396
        %3398 = vmatmul.bf16.gmra.mxu0 %v976
        %v3399 = vpop.f32.mrf.mxu0
        %v3400 = vadd.f32 %v3321, %v3399
        %v3401 = vpop.f32.mrf.mxu0
        %v3402 = vadd.f32 %v3323, %v3401
        %3403 = vmatmul.bf16.gmra.mxu0 %v982
        %v3404 = vpop.f32.mrf.mxu0
        %v3405 = vadd.f32 %v3326, %v3404
        %v3406 = vpop.f32.mrf.mxu0
        %v3407 = vadd.f32 %v3328, %v3406
        %3408 = vmatmul.bf16.gmra.mxu0 %v988
        %v3409 = vpop.f32.mrf.mxu0
        %v3410 = vadd.f32 %v3331, %v3409
        %v3411 = vpop.f32.mrf.mxu0
        %v3412 = vadd.f32 %v3333, %v3411
        %3413 = vmatmul.bf16.gmra.mxu0 %v994
        %v3414 = vpop.f32.mrf.mxu0
        %v3415 = vadd.f32 %v3336, %v3414
        %v3416 = vpop.f32.mrf.mxu0
        %v3417 = vadd.f32 %v3338, %v3416
        %3418 = vmatmul.bf16.gmra.mxu0 %v1000
        %v3419 = vpop.f32.mrf.mxu0
        %v3420 = vadd.f32 %v3341, %v3419
        %v3421 = vpop.f32.mrf.mxu0
        %v3422 = vadd.f32 %v3343, %v3421
        %3423 = vmatmul.bf16.gmra.mxu0 %v1006
        %v3424 = vpop.f32.mrf.mxu0
        %v3425 = vadd.f32 %v3346, %v3424
        %v3426 = vpop.f32.mrf.mxu0
        %v3427 = vadd.f32 %v3348, %v3426
        %3428 = vmatmul.bf16.gmra.mxu0 %v1012
        %v3429 = vpop.f32.mrf.mxu0
        %v3430 = vadd.f32 %v3351, %v3429
        %v3431 = vpop.f32.mrf.mxu0
        %v3432 = vadd.f32 %v3353, %v3431
        %3433 = vmatmul.bf16.gmra.mxu0 %v1018
        %v3434 = vpop.f32.mrf.mxu0
        %v3435 = vadd.f32 %v3356, %v3434
        %v3436 = vpop.f32.mrf.mxu0
        %v3437 = vadd.f32 %v3358, %v3436
        %3438 = vmatmul.bf16.gmra.mxu0 %v1024
        %v3439 = vpop.f32.mrf.mxu0
        %v3440 = vadd.f32 %v3361, %v3439
        %v3441 = vpop.f32.mrf.mxu0
        %v3442 = vadd.f32 %v3363, %v3441
        %3443 = vmatmul.bf16.gmra.mxu0 %v1030
        %v3444 = vpop.f32.mrf.mxu0
        %v3445 = vadd.f32 %v3366, %v3444
        %v3446 = vpop.f32.mrf.mxu0
        %v3447 = vadd.f32 %v3368, %v3446
        %3448 = vmatmul.bf16.gmra.mxu0 %v1036
        %v3449 = vpop.f32.mrf.mxu0
        %v3450 = vadd.f32 %v3371, %v3449
        %v3451 = vpop.f32.mrf.mxu0
        %v3452 = vadd.f32 %v3373, %v3451
        %3453 = vdwg.mxu0
        %3454 = vmatpush.bf16.msra.mxu0 %v2307
        %3455 = vmatpush.bf16.msra.mxu0 %v2300
        %3456 = vmatpush.bf16.msra.mxu0 %v2293
        %3457 = vmatpush.bf16.msra.mxu0 %v2286
        %3458 = vmatpush.bf16.msra.mxu0 %v2279
        %3459 = vmatpush.bf16.msra.mxu0 %v2272
        %3460 = vmatpush.bf16.msra.mxu0 %v2265
        %3461 = vmatpush.bf16.msra.mxu0 %v2258
        %3462 = vmatmul.bf16.gmra.mxu0 %v959
        %v3463 = vpop.f32.mrf.mxu0
        %v3464 = vadd.f32 %v3385, %v3463
        %v3465 = vpop.f32.mrf.mxu0
        %v3466 = vadd.f32 %v3387, %v3465
        %3467 = vmatmul.bf16.gmra.mxu0 %v965
        %v3468 = vpop.f32.mrf.mxu0
        %v3469 = vadd.f32 %v3390, %v3468
        %v3470 = vpop.f32.mrf.mxu0
        %v3471 = vadd.f32 %v3392, %v3470
        %3472 = vmatmul.bf16.gmra.mxu0 %v971
        %v3473 = vpop.f32.mrf.mxu0
        %v3474 = vadd.f32 %v3395, %v3473
        %v3475 = vpop.f32.mrf.mxu0
        %v3476 = vadd.f32 %v3397, %v3475
        %3477 = vmatmul.bf16.gmra.mxu0 %v977
        %v3478 = vpop.f32.mrf.mxu0
        %v3479 = vadd.f32 %v3400, %v3478
        %v3480 = vpop.f32.mrf.mxu0
        %v3481 = vadd.f32 %v3402, %v3480
        %3482 = vmatmul.bf16.gmra.mxu0 %v983
        %v3483 = vpop.f32.mrf.mxu0
        %v3484 = vadd.f32 %v3405, %v3483
        %v3485 = vpop.f32.mrf.mxu0
        %v3486 = vadd.f32 %v3407, %v3485
        %3487 = vmatmul.bf16.gmra.mxu0 %v989
        %v3488 = vpop.f32.mrf.mxu0
        %v3489 = vadd.f32 %v3410, %v3488
        %v3490 = vpop.f32.mrf.mxu0
        %v3491 = vadd.f32 %v3412, %v3490
        %3492 = vmatmul.bf16.gmra.mxu0 %v995
        %v3493 = vpop.f32.mrf.mxu0
        %v3494 = vadd.f32 %v3415, %v3493
        %v3495 = vpop.f32.mrf.mxu0
        %v3496 = vadd.f32 %v3417, %v3495
        %3497 = vmatmul.bf16.gmra.mxu0 %v1001
        %v3498 = vpop.f32.mrf.mxu0
        %v3499 = vadd.f32 %v3420, %v3498
        %v3500 = vpop.f32.mrf.mxu0
        %v3501 = vadd.f32 %v3422, %v3500
        %3502 = vmatmul.bf16.gmra.mxu0 %v1007
        %v3503 = vpop.f32.mrf.mxu0
        %v3504 = vadd.f32 %v3425, %v3503
        %v3505 = vpop.f32.mrf.mxu0
        %v3506 = vadd.f32 %v3427, %v3505
        %3507 = vmatmul.bf16.gmra.mxu0 %v1013
        %v3508 = vpop.f32.mrf.mxu0
        %v3509 = vadd.f32 %v3430, %v3508
        %v3510 = vpop.f32.mrf.mxu0
        %v3511 = vadd.f32 %v3432, %v3510
        %3512 = vmatmul.bf16.gmra.mxu0 %v1019
        %v3513 = vpop.f32.mrf.mxu0
        %v3514 = vadd.f32 %v3435, %v3513
        %v3515 = vpop.f32.mrf.mxu0
        %v3516 = vadd.f32 %v3437, %v3515
        %3517 = vmatmul.bf16.gmra.mxu0 %v1025
        %v3518 = vpop.f32.mrf.mxu0
        %v3519 = vadd.f32 %v3440, %v3518
        %v3520 = vpop.f32.mrf.mxu0
        %v3521 = vadd.f32 %v3442, %v3520
        %3522 = vmatmul.bf16.gmra.mxu0 %v1031
        %v3523 = vpop.f32.mrf.mxu0
        %v3524 = vadd.f32 %v3445, %v3523
        %v3525 = vpop.f32.mrf.mxu0
        %v3526 = vadd.f32 %v3447, %v3525
        %3527 = vmatmul.bf16.gmra.mxu0 %v1037
        %v3528 = vpop.f32.mrf.mxu0
        %v3529 = vadd.f32 %v3450, %v3528
        %v3530 = vpop.f32.mrf.mxu0
        %v3531 = vadd.f32 %v3452, %v3530
        %3532 = vdwg.mxu0
        %3533 = vmatpush.bf16.msra.mxu0 0
        %3534 = vmatpush.bf16.msra.mxu0 0
        %3535 = vmatpush.bf16.msra.mxu0 0
        %3536 = vmatpush.bf16.msra.mxu0 0
        %3537 = vmatpush.bf16.msra.mxu0 0
        %3538 = vmatpush.bf16.msra.mxu0 0
        %3539 = vmatpush.bf16.msra.mxu0 %v2321
        %3540 = vmatpush.bf16.msra.mxu0 %v2314
        %3541 = vmatmul.bf16.gmra.mxu0 %v2623
        %v3542 = vpop.f32.mrf.mxu0
        %v3543 = vadd.f32 %v3464, %v3542
        %v3544 = vpop.f32.mrf.mxu0
        %v3545 = vadd.f32 %v3466, %v3544
        %3546 = vmatmul.bf16.gmra.mxu0 %v2626
        %v3547 = vpop.f32.mrf.mxu0
        %v3548 = vadd.f32 %v3469, %v3547
        %v3549 = vpop.f32.mrf.mxu0
        %v3550 = vadd.f32 %v3471, %v3549
        %3551 = vmatmul.bf16.gmra.mxu0 %v2629
        %v3552 = vpop.f32.mrf.mxu0
        %v3553 = vadd.f32 %v3474, %v3552
        %v3554 = vpop.f32.mrf.mxu0
        %v3555 = vadd.f32 %v3476, %v3554
        %3556 = vmatmul.bf16.gmra.mxu0 %v2632
        %v3557 = vpop.f32.mrf.mxu0
        %v3558 = vadd.f32 %v3479, %v3557
        %v3559 = vpop.f32.mrf.mxu0
        %v3560 = vadd.f32 %v3481, %v3559
        %3561 = vmatmul.bf16.gmra.mxu0 %v2635
        %v3562 = vpop.f32.mrf.mxu0
        %v3563 = vadd.f32 %v3484, %v3562
        %v3564 = vpop.f32.mrf.mxu0
        %v3565 = vadd.f32 %v3486, %v3564
        %3566 = vmatmul.bf16.gmra.mxu0 %v2638
        %v3567 = vpop.f32.mrf.mxu0
        %v3568 = vadd.f32 %v3489, %v3567
        %v3569 = vpop.f32.mrf.mxu0
        %v3570 = vadd.f32 %v3491, %v3569
        %3571 = vmatmul.bf16.gmra.mxu0 %v2641
        %v3572 = vpop.f32.mrf.mxu0
        %v3573 = vadd.f32 %v3494, %v3572
        %v3574 = vpop.f32.mrf.mxu0
        %v3575 = vadd.f32 %v3496, %v3574
        %3576 = vmatmul.bf16.gmra.mxu0 %v2644
        %v3577 = vpop.f32.mrf.mxu0
        %v3578 = vadd.f32 %v3499, %v3577
        %v3579 = vpop.f32.mrf.mxu0
        %v3580 = vadd.f32 %v3501, %v3579
        %3581 = vmatmul.bf16.gmra.mxu0 %v2647
        %v3582 = vpop.f32.mrf.mxu0
        %v3583 = vadd.f32 %v3504, %v3582
        %v3584 = vpop.f32.mrf.mxu0
        %v3585 = vadd.f32 %v3506, %v3584
        %3586 = vmatmul.bf16.gmra.mxu0 %v2650
        %v3587 = vpop.f32.mrf.mxu0
        %v3588 = vadd.f32 %v3509, %v3587
        %v3589 = vpop.f32.mrf.mxu0
        %v3590 = vadd.f32 %v3511, %v3589
        %3591 = vmatmul.bf16.gmra.mxu0 %v2653
        %v3592 = vpop.f32.mrf.mxu0
        %v3593 = vadd.f32 %v3514, %v3592
        %v3594 = vpop.f32.mrf.mxu0
        %v3595 = vadd.f32 %v3516, %v3594
        %3596 = vmatmul.bf16.gmra.mxu0 %v2656
        %v3597 = vpop.f32.mrf.mxu0
        %v3598 = vadd.f32 %v3519, %v3597
        %v3599 = vpop.f32.mrf.mxu0
        %v3600 = vadd.f32 %v3521, %v3599
        %3601 = vmatmul.bf16.gmra.mxu0 %v2659
        %v3602 = vpop.f32.mrf.mxu0
        %v3603 = vadd.f32 %v3524, %v3602
        %v3604 = vpop.f32.mrf.mxu0
        %v3605 = vadd.f32 %v3526, %v3604
        %3606 = vmatmul.bf16.gmra.mxu0 %v2662
        %v3607 = vpop.f32.mrf.mxu0
        %v3608 = vadd.f32 %v3529, %v3607
        %v3609 = vpop.f32.mrf.mxu0
        %v3610 = vadd.f32 %v3531, %v3609
        %3611 = vdwg.mxu0
        %3612 = vmatpush.bf16.msra.mxu0 %v2084
        %3613 = vmatpush.bf16.msra.mxu0 %v2077
        %3614 = vmatpush.bf16.msra.mxu0 %v2070
        %3615 = vmatpush.bf16.msra.mxu0 %v2063
        %3616 = vmatpush.bf16.msra.mxu0 %v2056
        %3617 = vmatpush.bf16.msra.mxu0 %v2049
        %3618 = vmatpush.bf16.msra.mxu0 %v2042
        %3619 = vmatpush.bf16.msra.mxu0 %v2035
        %3620 = vmatmul.bf16.gmra.mxu0 %v955
        %v3621 = vpop.f32.mrf.mxu0
        %v3622 = vadd.f32 0.0, %v3621
        %v3623 = vpop.f32.mrf.mxu0
        %v3624 = vadd.f32 0.0, %v3623
        %3625 = vmatmul.bf16.gmra.mxu0 %v961
        %v3626 = vpop.f32.mrf.mxu0
        %v3627 = vadd.f32 0.0, %v3626
        %v3628 = vpop.f32.mrf.mxu0
        %v3629 = vadd.f32 0.0, %v3628
        %3630 = vmatmul.bf16.gmra.mxu0 %v967
        %v3631 = vpop.f32.mrf.mxu0
        %v3632 = vadd.f32 0.0, %v3631
        %v3633 = vpop.f32.mrf.mxu0
        %v3634 = vadd.f32 0.0, %v3633
        %3635 = vmatmul.bf16.gmra.mxu0 %v973
        %v3636 = vpop.f32.mrf.mxu0
        %v3637 = vadd.f32 0.0, %v3636
        %v3638 = vpop.f32.mrf.mxu0
        %v3639 = vadd.f32 0.0, %v3638
        %3640 = vmatmul.bf16.gmra.mxu0 %v979
        %v3641 = vpop.f32.mrf.mxu0
        %v3642 = vadd.f32 0.0, %v3641
        %v3643 = vpop.f32.mrf.mxu0
        %v3644 = vadd.f32 0.0, %v3643
        %3645 = vmatmul.bf16.gmra.mxu0 %v985
        %v3646 = vpop.f32.mrf.mxu0
        %v3647 = vadd.f32 0.0, %v3646
        %v3648 = vpop.f32.mrf.mxu0
        %v3649 = vadd.f32 0.0, %v3648
        %3650 = vmatmul.bf16.gmra.mxu0 %v991
        %v3651 = vpop.f32.mrf.mxu0
        %v3652 = vadd.f32 0.0, %v3651
        %v3653 = vpop.f32.mrf.mxu0
        %v3654 = vadd.f32 0.0, %v3653
        %3655 = vmatmul.bf16.gmra.mxu0 %v997
        %v3656 = vpop.f32.mrf.mxu0
        %v3657 = vadd.f32 0.0, %v3656
        %v3658 = vpop.f32.mrf.mxu0
        %v3659 = vadd.f32 0.0, %v3658
        %3660 = vmatmul.bf16.gmra.mxu0 %v1003
        %v3661 = vpop.f32.mrf.mxu0
        %v3662 = vadd.f32 0.0, %v3661
        %v3663 = vpop.f32.mrf.mxu0
        %v3664 = vadd.f32 0.0, %v3663
        %3665 = vmatmul.bf16.gmra.mxu0 %v1009
        %v3666 = vpop.f32.mrf.mxu0
        %v3667 = vadd.f32 0.0, %v3666
        %v3668 = vpop.f32.mrf.mxu0
        %v3669 = vadd.f32 0.0, %v3668
        %3670 = vmatmul.bf16.gmra.mxu0 %v1015
        %v3671 = vpop.f32.mrf.mxu0
        %v3672 = vadd.f32 0.0, %v3671
        %v3673 = vpop.f32.mrf.mxu0
        %v3674 = vadd.f32 0.0, %v3673
        %3675 = vmatmul.bf16.gmra.mxu0 %v1021
        %v3676 = vpop.f32.mrf.mxu0
        %v3677 = vadd.f32 0.0, %v3676
        %v3678 = vpop.f32.mrf.mxu0
        %v3679 = vadd.f32 0.0, %v3678
        %3680 = vmatmul.bf16.gmra.mxu0 %v1027
        %v3681 = vpop.f32.mrf.mxu0
        %v3682 = vadd.f32 0.0, %v3681
        %v3683 = vpop.f32.mrf.mxu0
        %v3684 = vadd.f32 0.0, %v3683
        %3685 = vmatmul.bf16.gmra.mxu0 %v1033
        %v3686 = vpop.f32.mrf.mxu0
        %v3687 = vadd.f32 0.0, %v3686
        %v3688 = vpop.f32.mrf.mxu0
        %v3689 = vadd.f32 0.0, %v3688
        %3690 = vdwg.mxu0
        %3691 = vmatpush.bf16.msra.mxu0 %v2140
        %3692 = vmatpush.bf16.msra.mxu0 %v2133
        %3693 = vmatpush.bf16.msra.mxu0 %v2126
        %3694 = vmatpush.bf16.msra.mxu0 %v2119
        %3695 = vmatpush.bf16.msra.mxu0 %v2112
        %3696 = vmatpush.bf16.msra.mxu0 %v2105
        %3697 = vmatpush.bf16.msra.mxu0 %v2098
        %3698 = vmatpush.bf16.msra.mxu0 %v2091
        %3699 = vmatmul.bf16.gmra.mxu0 %v956
        %v3700 = vpop.f32.mrf.mxu0
        %v3701 = vadd.f32 %v3622, %v3700
        %v3702 = vpop.f32.mrf.mxu0
        %v3703 = vadd.f32 %v3624, %v3702
        %3704 = vmatmul.bf16.gmra.mxu0 %v962
        %v3705 = vpop.f32.mrf.mxu0
        %v3706 = vadd.f32 %v3627, %v3705
        %v3707 = vpop.f32.mrf.mxu0
        %v3708 = vadd.f32 %v3629, %v3707
        %3709 = vmatmul.bf16.gmra.mxu0 %v968
        %v3710 = vpop.f32.mrf.mxu0
        %v3711 = vadd.f32 %v3632, %v3710
        %v3712 = vpop.f32.mrf.mxu0
        %v3713 = vadd.f32 %v3634, %v3712
        %3714 = vmatmul.bf16.gmra.mxu0 %v974
        %v3715 = vpop.f32.mrf.mxu0
        %v3716 = vadd.f32 %v3637, %v3715
        %v3717 = vpop.f32.mrf.mxu0
        %v3718 = vadd.f32 %v3639, %v3717
        %3719 = vmatmul.bf16.gmra.mxu0 %v980
        %v3720 = vpop.f32.mrf.mxu0
        %v3721 = vadd.f32 %v3642, %v3720
        %v3722 = vpop.f32.mrf.mxu0
        %v3723 = vadd.f32 %v3644, %v3722
        %3724 = vmatmul.bf16.gmra.mxu0 %v986
        %v3725 = vpop.f32.mrf.mxu0
        %v3726 = vadd.f32 %v3647, %v3725
        %v3727 = vpop.f32.mrf.mxu0
        %v3728 = vadd.f32 %v3649, %v3727
        %3729 = vmatmul.bf16.gmra.mxu0 %v992
        %v3730 = vpop.f32.mrf.mxu0
        %v3731 = vadd.f32 %v3652, %v3730
        %v3732 = vpop.f32.mrf.mxu0
        %v3733 = vadd.f32 %v3654, %v3732
        %3734 = vmatmul.bf16.gmra.mxu0 %v998
        %v3735 = vpop.f32.mrf.mxu0
        %v3736 = vadd.f32 %v3657, %v3735
        %v3737 = vpop.f32.mrf.mxu0
        %v3738 = vadd.f32 %v3659, %v3737
        %3739 = vmatmul.bf16.gmra.mxu0 %v1004
        %v3740 = vpop.f32.mrf.mxu0
        %v3741 = vadd.f32 %v3662, %v3740
        %v3742 = vpop.f32.mrf.mxu0
        %v3743 = vadd.f32 %v3664, %v3742
        %3744 = vmatmul.bf16.gmra.mxu0 %v1010
        %v3745 = vpop.f32.mrf.mxu0
        %v3746 = vadd.f32 %v3667, %v3745
        %v3747 = vpop.f32.mrf.mxu0
        %v3748 = vadd.f32 %v3669, %v3747
        %3749 = vmatmul.bf16.gmra.mxu0 %v1016
        %v3750 = vpop.f32.mrf.mxu0
        %v3751 = vadd.f32 %v3672, %v3750
        %v3752 = vpop.f32.mrf.mxu0
        %v3753 = vadd.f32 %v3674, %v3752
        %3754 = vmatmul.bf16.gmra.mxu0 %v1022
        %v3755 = vpop.f32.mrf.mxu0
        %v3756 = vadd.f32 %v3677, %v3755
        %v3757 = vpop.f32.mrf.mxu0
        %v3758 = vadd.f32 %v3679, %v3757
        %3759 = vmatmul.bf16.gmra.mxu0 %v1028
        %v3760 = vpop.f32.mrf.mxu0
        %v3761 = vadd.f32 %v3682, %v3760
        %v3762 = vpop.f32.mrf.mxu0
        %v3763 = vadd.f32 %v3684, %v3762
        %3764 = vmatmul.bf16.gmra.mxu0 %v1034
        %v3765 = vpop.f32.mrf.mxu0
        %v3766 = vadd.f32 %v3687, %v3765
        %v3767 = vpop.f32.mrf.mxu0
        %v3768 = vadd.f32 %v3689, %v3767
        %3769 = vdwg.mxu0
        %3770 = vmatpush.bf16.msra.mxu0 %v2196
        %3771 = vmatpush.bf16.msra.mxu0 %v2189
        %3772 = vmatpush.bf16.msra.mxu0 %v2182
        %3773 = vmatpush.bf16.msra.mxu0 %v2175
        %3774 = vmatpush.bf16.msra.mxu0 %v2168
        %3775 = vmatpush.bf16.msra.mxu0 %v2161
        %3776 = vmatpush.bf16.msra.mxu0 %v2154
        %3777 = vmatpush.bf16.msra.mxu0 %v2147
        %3778 = vmatmul.bf16.gmra.mxu0 %v957
        %v3779 = vpop.f32.mrf.mxu0
        %v3780 = vadd.f32 %v3701, %v3779
        %v3781 = vpop.f32.mrf.mxu0
        %v3782 = vadd.f32 %v3703, %v3781
        %3783 = vmatmul.bf16.gmra.mxu0 %v963
        %v3784 = vpop.f32.mrf.mxu0
        %v3785 = vadd.f32 %v3706, %v3784
        %v3786 = vpop.f32.mrf.mxu0
        %v3787 = vadd.f32 %v3708, %v3786
        %3788 = vmatmul.bf16.gmra.mxu0 %v969
        %v3789 = vpop.f32.mrf.mxu0
        %v3790 = vadd.f32 %v3711, %v3789
        %v3791 = vpop.f32.mrf.mxu0
        %v3792 = vadd.f32 %v3713, %v3791
        %3793 = vmatmul.bf16.gmra.mxu0 %v975
        %v3794 = vpop.f32.mrf.mxu0
        %v3795 = vadd.f32 %v3716, %v3794
        %v3796 = vpop.f32.mrf.mxu0
        %v3797 = vadd.f32 %v3718, %v3796
        %3798 = vmatmul.bf16.gmra.mxu0 %v981
        %v3799 = vpop.f32.mrf.mxu0
        %v3800 = vadd.f32 %v3721, %v3799
        %v3801 = vpop.f32.mrf.mxu0
        %v3802 = vadd.f32 %v3723, %v3801
        %3803 = vmatmul.bf16.gmra.mxu0 %v987
        %v3804 = vpop.f32.mrf.mxu0
        %v3805 = vadd.f32 %v3726, %v3804
        %v3806 = vpop.f32.mrf.mxu0
        %v3807 = vadd.f32 %v3728, %v3806
        %3808 = vmatmul.bf16.gmra.mxu0 %v993
        %v3809 = vpop.f32.mrf.mxu0
        %v3810 = vadd.f32 %v3731, %v3809
        %v3811 = vpop.f32.mrf.mxu0
        %v3812 = vadd.f32 %v3733, %v3811
        %3813 = vmatmul.bf16.gmra.mxu0 %v999
        %v3814 = vpop.f32.mrf.mxu0
        %v3815 = vadd.f32 %v3736, %v3814
        %v3816 = vpop.f32.mrf.mxu0
        %v3817 = vadd.f32 %v3738, %v3816
        %3818 = vmatmul.bf16.gmra.mxu0 %v1005
        %v3819 = vpop.f32.mrf.mxu0
        %v3820 = vadd.f32 %v3741, %v3819
        %v3821 = vpop.f32.mrf.mxu0
        %v3822 = vadd.f32 %v3743, %v3821
        %3823 = vmatmul.bf16.gmra.mxu0 %v1011
        %v3824 = vpop.f32.mrf.mxu0
        %v3825 = vadd.f32 %v3746, %v3824
        %v3826 = vpop.f32.mrf.mxu0
        %v3827 = vadd.f32 %v3748, %v3826
        %3828 = vmatmul.bf16.gmra.mxu0 %v1017
        %v3829 = vpop.f32.mrf.mxu0
        %v3830 = vadd.f32 %v3751, %v3829
        %v3831 = vpop.f32.mrf.mxu0
        %v3832 = vadd.f32 %v3753, %v3831
        %3833 = vmatmul.bf16.gmra.mxu0 %v1023
        %v3834 = vpop.f32.mrf.mxu0
        %v3835 = vadd.f32 %v3756, %v3834
        %v3836 = vpop.f32.mrf.mxu0
        %v3837 = vadd.f32 %v3758, %v3836
        %3838 = vmatmul.bf16.gmra.mxu0 %v1029
        %v3839 = vpop.f32.mrf.mxu0
        %v3840 = vadd.f32 %v3761, %v3839
        %v3841 = vpop.f32.mrf.mxu0
        %v3842 = vadd.f32 %v3763, %v3841
        %3843 = vmatmul.bf16.gmra.mxu0 %v1035
        %v3844 = vpop.f32.mrf.mxu0
        %v3845 = vadd.f32 %v3766, %v3844
        %v3846 = vpop.f32.mrf.mxu0
        %v3847 = vadd.f32 %v3768, %v3846
        %3848 = vdwg.mxu0
        %3849 = vmatpush.bf16.msra.mxu0 %v2252
        %3850 = vmatpush.bf16.msra.mxu0 %v2245
        %3851 = vmatpush.bf16.msra.mxu0 %v2238
        %3852 = vmatpush.bf16.msra.mxu0 %v2231
        %3853 = vmatpush.bf16.msra.mxu0 %v2224
        %3854 = vmatpush.bf16.msra.mxu0 %v2217
        %3855 = vmatpush.bf16.msra.mxu0 %v2210
        %3856 = vmatpush.bf16.msra.mxu0 %v2203
        %3857 = vmatmul.bf16.gmra.mxu0 %v958
        %v3858 = vpop.f32.mrf.mxu0
        %v3859 = vadd.f32 %v3780, %v3858
        %v3860 = vpop.f32.mrf.mxu0
        %v3861 = vadd.f32 %v3782, %v3860
        %3862 = vmatmul.bf16.gmra.mxu0 %v964
        %v3863 = vpop.f32.mrf.mxu0
        %v3864 = vadd.f32 %v3785, %v3863
        %v3865 = vpop.f32.mrf.mxu0
        %v3866 = vadd.f32 %v3787, %v3865
        %3867 = vmatmul.bf16.gmra.mxu0 %v970
        %v3868 = vpop.f32.mrf.mxu0
        %v3869 = vadd.f32 %v3790, %v3868
        %v3870 = vpop.f32.mrf.mxu0
        %v3871 = vadd.f32 %v3792, %v3870
        %3872 = vmatmul.bf16.gmra.mxu0 %v976
        %v3873 = vpop.f32.mrf.mxu0
        %v3874 = vadd.f32 %v3795, %v3873
        %v3875 = vpop.f32.mrf.mxu0
        %v3876 = vadd.f32 %v3797, %v3875
        %3877 = vmatmul.bf16.gmra.mxu0 %v982
        %v3878 = vpop.f32.mrf.mxu0
        %v3879 = vadd.f32 %v3800, %v3878
        %v3880 = vpop.f32.mrf.mxu0
        %v3881 = vadd.f32 %v3802, %v3880
        %3882 = vmatmul.bf16.gmra.mxu0 %v988
        %v3883 = vpop.f32.mrf.mxu0
        %v3884 = vadd.f32 %v3805, %v3883
        %v3885 = vpop.f32.mrf.mxu0
        %v3886 = vadd.f32 %v3807, %v3885
        %3887 = vmatmul.bf16.gmra.mxu0 %v994
        %v3888 = vpop.f32.mrf.mxu0
        %v3889 = vadd.f32 %v3810, %v3888
        %v3890 = vpop.f32.mrf.mxu0
        %v3891 = vadd.f32 %v3812, %v3890
        %3892 = vmatmul.bf16.gmra.mxu0 %v1000
        %v3893 = vpop.f32.mrf.mxu0
        %v3894 = vadd.f32 %v3815, %v3893
        %v3895 = vpop.f32.mrf.mxu0
        %v3896 = vadd.f32 %v3817, %v3895
        %3897 = vmatmul.bf16.gmra.mxu0 %v1006
        %v3898 = vpop.f32.mrf.mxu0
        %v3899 = vadd.f32 %v3820, %v3898
        %v3900 = vpop.f32.mrf.mxu0
        %v3901 = vadd.f32 %v3822, %v3900
        %3902 = vmatmul.bf16.gmra.mxu0 %v1012
        %v3903 = vpop.f32.mrf.mxu0
        %v3904 = vadd.f32 %v3825, %v3903
        %v3905 = vpop.f32.mrf.mxu0
        %v3906 = vadd.f32 %v3827, %v3905
        %3907 = vmatmul.bf16.gmra.mxu0 %v1018
        %v3908 = vpop.f32.mrf.mxu0
        %v3909 = vadd.f32 %v3830, %v3908
        %v3910 = vpop.f32.mrf.mxu0
        %v3911 = vadd.f32 %v3832, %v3910
        %3912 = vmatmul.bf16.gmra.mxu0 %v1024
        %v3913 = vpop.f32.mrf.mxu0
        %v3914 = vadd.f32 %v3835, %v3913
        %v3915 = vpop.f32.mrf.mxu0
        %v3916 = vadd.f32 %v3837, %v3915
        %3917 = vmatmul.bf16.gmra.mxu0 %v1030
        %v3918 = vpop.f32.mrf.mxu0
        %v3919 = vadd.f32 %v3840, %v3918
        %v3920 = vpop.f32.mrf.mxu0
        %v3921 = vadd.f32 %v3842, %v3920
        %3922 = vmatmul.bf16.gmra.mxu0 %v1036
        %v3923 = vpop.f32.mrf.mxu0
        %v3924 = vadd.f32 %v3845, %v3923
        %v3925 = vpop.f32.mrf.mxu0
        %v3926 = vadd.f32 %v3847, %v3925
        %3927 = vdwg.mxu0
        %3928 = vmatpush.bf16.msra.mxu0 %v2308
        %3929 = vmatpush.bf16.msra.mxu0 %v2301
        %3930 = vmatpush.bf16.msra.mxu0 %v2294
        %3931 = vmatpush.bf16.msra.mxu0 %v2287
        %3932 = vmatpush.bf16.msra.mxu0 %v2280
        %3933 = vmatpush.bf16.msra.mxu0 %v2273
        %3934 = vmatpush.bf16.msra.mxu0 %v2266
        %3935 = vmatpush.bf16.msra.mxu0 %v2259
        %3936 = vmatmul.bf16.gmra.mxu0 %v959
        %v3937 = vpop.f32.mrf.mxu0
        %v3938 = vadd.f32 %v3859, %v3937
        %v3939 = vpop.f32.mrf.mxu0
        %v3940 = vadd.f32 %v3861, %v3939
        %3941 = vmatmul.bf16.gmra.mxu0 %v965
        %v3942 = vpop.f32.mrf.mxu0
        %v3943 = vadd.f32 %v3864, %v3942
        %v3944 = vpop.f32.mrf.mxu0
        %v3945 = vadd.f32 %v3866, %v3944
        %3946 = vmatmul.bf16.gmra.mxu0 %v971
        %v3947 = vpop.f32.mrf.mxu0
        %v3948 = vadd.f32 %v3869, %v3947
        %v3949 = vpop.f32.mrf.mxu0
        %v3950 = vadd.f32 %v3871, %v3949
        %3951 = vmatmul.bf16.gmra.mxu0 %v977
        %v3952 = vpop.f32.mrf.mxu0
        %v3953 = vadd.f32 %v3874, %v3952
        %v3954 = vpop.f32.mrf.mxu0
        %v3955 = vadd.f32 %v3876, %v3954
        %3956 = vmatmul.bf16.gmra.mxu0 %v983
        %v3957 = vpop.f32.mrf.mxu0
        %v3958 = vadd.f32 %v3879, %v3957
        %v3959 = vpop.f32.mrf.mxu0
        %v3960 = vadd.f32 %v3881, %v3959
        %3961 = vmatmul.bf16.gmra.mxu0 %v989
        %v3962 = vpop.f32.mrf.mxu0
        %v3963 = vadd.f32 %v3884, %v3962
        %v3964 = vpop.f32.mrf.mxu0
        %v3965 = vadd.f32 %v3886, %v3964
        %3966 = vmatmul.bf16.gmra.mxu0 %v995
        %v3967 = vpop.f32.mrf.mxu0
        %v3968 = vadd.f32 %v3889, %v3967
        %v3969 = vpop.f32.mrf.mxu0
        %v3970 = vadd.f32 %v3891, %v3969
        %3971 = vmatmul.bf16.gmra.mxu0 %v1001
        %v3972 = vpop.f32.mrf.mxu0
        %v3973 = vadd.f32 %v3894, %v3972
        %v3974 = vpop.f32.mrf.mxu0
        %v3975 = vadd.f32 %v3896, %v3974
        %3976 = vmatmul.bf16.gmra.mxu0 %v1007
        %v3977 = vpop.f32.mrf.mxu0
        %v3978 = vadd.f32 %v3899, %v3977
        %v3979 = vpop.f32.mrf.mxu0
        %v3980 = vadd.f32 %v3901, %v3979
        %3981 = vmatmul.bf16.gmra.mxu0 %v1013
        %v3982 = vpop.f32.mrf.mxu0
        %v3983 = vadd.f32 %v3904, %v3982
        %v3984 = vpop.f32.mrf.mxu0
        %v3985 = vadd.f32 %v3906, %v3984
        %3986 = vmatmul.bf16.gmra.mxu0 %v1019
        %v3987 = vpop.f32.mrf.mxu0
        %v3988 = vadd.f32 %v3909, %v3987
        %v3989 = vpop.f32.mrf.mxu0
        %v3990 = vadd.f32 %v3911, %v3989
        %3991 = vmatmul.bf16.gmra.mxu0 %v1025
        %v3992 = vpop.f32.mrf.mxu0
        %v3993 = vadd.f32 %v3914, %v3992
        %v3994 = vpop.f32.mrf.mxu0
        %v3995 = vadd.f32 %v3916, %v3994
        %3996 = vmatmul.bf16.gmra.mxu0 %v1031
        %v3997 = vpop.f32.mrf.mxu0
        %v3998 = vadd.f32 %v3919, %v3997
        %v3999 = vpop.f32.mrf.mxu0
        %v4000 = vadd.f32 %v3921, %v3999
        %4001 = vmatmul.bf16.gmra.mxu0 %v1037
        %v4002 = vpop.f32.mrf.mxu0
        %v4003 = vadd.f32 %v3924, %v4002
        %v4004 = vpop.f32.mrf.mxu0
        %v4005 = vadd.f32 %v3926, %v4004
        %4006 = vdwg.mxu0
        %4007 = vmatpush.bf16.msra.mxu0 0
        %4008 = vmatpush.bf16.msra.mxu0 0
        %4009 = vmatpush.bf16.msra.mxu0 0
        %4010 = vmatpush.bf16.msra.mxu0 0
        %4011 = vmatpush.bf16.msra.mxu0 0
        %4012 = vmatpush.bf16.msra.mxu0 0
        %4013 = vmatpush.bf16.msra.mxu0 %v2322
        %4014 = vmatpush.bf16.msra.mxu0 %v2315
        %4015 = vmatmul.bf16.gmra.mxu0 %v2623
        %v4016 = vpop.f32.mrf.mxu0
        %v4017 = vadd.f32 %v3938, %v4016
        %v4018 = vpop.f32.mrf.mxu0
        %v4019 = vadd.f32 %v3940, %v4018
        %4020 = vmatmul.bf16.gmra.mxu0 %v2626
        %v4021 = vpop.f32.mrf.mxu0
        %v4022 = vadd.f32 %v3943, %v4021
        %v4023 = vpop.f32.mrf.mxu0
        %v4024 = vadd.f32 %v3945, %v4023
        %4025 = vmatmul.bf16.gmra.mxu0 %v2629
        %v4026 = vpop.f32.mrf.mxu0
        %v4027 = vadd.f32 %v3948, %v4026
        %v4028 = vpop.f32.mrf.mxu0
        %v4029 = vadd.f32 %v3950, %v4028
        %4030 = vmatmul.bf16.gmra.mxu0 %v2632
        %v4031 = vpop.f32.mrf.mxu0
        %v4032 = vadd.f32 %v3953, %v4031
        %v4033 = vpop.f32.mrf.mxu0
        %v4034 = vadd.f32 %v3955, %v4033
        %4035 = vmatmul.bf16.gmra.mxu0 %v2635
        %v4036 = vpop.f32.mrf.mxu0
        %v4037 = vadd.f32 %v3958, %v4036
        %v4038 = vpop.f32.mrf.mxu0
        %v4039 = vadd.f32 %v3960, %v4038
        %4040 = vmatmul.bf16.gmra.mxu0 %v2638
        %v4041 = vpop.f32.mrf.mxu0
        %v4042 = vadd.f32 %v3963, %v4041
        %v4043 = vpop.f32.mrf.mxu0
        %v4044 = vadd.f32 %v3965, %v4043
        %4045 = vmatmul.bf16.gmra.mxu0 %v2641
        %v4046 = vpop.f32.mrf.mxu0
        %v4047 = vadd.f32 %v3968, %v4046
        %v4048 = vpop.f32.mrf.mxu0
        %v4049 = vadd.f32 %v3970, %v4048
        %4050 = vmatmul.bf16.gmra.mxu0 %v2644
        %v4051 = vpop.f32.mrf.mxu0
        %v4052 = vadd.f32 %v3973, %v4051
        %v4053 = vpop.f32.mrf.mxu0
        %v4054 = vadd.f32 %v3975, %v4053
        %4055 = vmatmul.bf16.gmra.mxu0 %v2647
        %v4056 = vpop.f32.mrf.mxu0
        %v4057 = vadd.f32 %v3978, %v4056
        %v4058 = vpop.f32.mrf.mxu0
        %v4059 = vadd.f32 %v3980, %v4058
        %4060 = vmatmul.bf16.gmra.mxu0 %v2650
        %v4061 = vpop.f32.mrf.mxu0
        %v4062 = vadd.f32 %v3983, %v4061
        %v4063 = vpop.f32.mrf.mxu0
        %v4064 = vadd.f32 %v3985, %v4063
        %4065 = vmatmul.bf16.gmra.mxu0 %v2653
        %v4066 = vpop.f32.mrf.mxu0
        %v4067 = vadd.f32 %v3988, %v4066
        %v4068 = vpop.f32.mrf.mxu0
        %v4069 = vadd.f32 %v3990, %v4068
        %4070 = vmatmul.bf16.gmra.mxu0 %v2656
        %v4071 = vpop.f32.mrf.mxu0
        %v4072 = vadd.f32 %v3993, %v4071
        %v4073 = vpop.f32.mrf.mxu0
        %v4074 = vadd.f32 %v3995, %v4073
        %4075 = vmatmul.bf16.gmra.mxu0 %v2659
        %v4076 = vpop.f32.mrf.mxu0
        %v4077 = vadd.f32 %v3998, %v4076
        %v4078 = vpop.f32.mrf.mxu0
        %v4079 = vadd.f32 %v4000, %v4078
        %4080 = vmatmul.bf16.gmra.mxu0 %v2662
        %v4081 = vpop.f32.mrf.mxu0
        %v4082 = vadd.f32 %v4003, %v4081
        %v4083 = vpop.f32.mrf.mxu0
        %v4084 = vadd.f32 %v4005, %v4083
        %4085 = vdwg.mxu0
        %4086 = vmatpush.bf16.msra.mxu0 %v2085
        %4087 = vmatpush.bf16.msra.mxu0 %v2078
        %4088 = vmatpush.bf16.msra.mxu0 %v2071
        %4089 = vmatpush.bf16.msra.mxu0 %v2064
        %4090 = vmatpush.bf16.msra.mxu0 %v2057
        %4091 = vmatpush.bf16.msra.mxu0 %v2050
        %4092 = vmatpush.bf16.msra.mxu0 %v2043
        %4093 = vmatpush.bf16.msra.mxu0 %v2036
        %4094 = vmatmul.bf16.gmra.mxu0 %v955
        %v4095 = vpop.f32.mrf.mxu0
        %v4096 = vadd.f32 0.0, %v4095
        %v4097 = vpop.f32.mrf.mxu0
        %v4098 = vadd.f32 0.0, %v4097
        %4099 = vmatmul.bf16.gmra.mxu0 %v961
        %v4100 = vpop.f32.mrf.mxu0
        %v4101 = vadd.f32 0.0, %v4100
        %v4102 = vpop.f32.mrf.mxu0
        %v4103 = vadd.f32 0.0, %v4102
        %4104 = vmatmul.bf16.gmra.mxu0 %v967
        %v4105 = vpop.f32.mrf.mxu0
        %v4106 = vadd.f32 0.0, %v4105
        %v4107 = vpop.f32.mrf.mxu0
        %v4108 = vadd.f32 0.0, %v4107
        %4109 = vmatmul.bf16.gmra.mxu0 %v973
        %v4110 = vpop.f32.mrf.mxu0
        %v4111 = vadd.f32 0.0, %v4110
        %v4112 = vpop.f32.mrf.mxu0
        %v4113 = vadd.f32 0.0, %v4112
        %4114 = vmatmul.bf16.gmra.mxu0 %v979
        %v4115 = vpop.f32.mrf.mxu0
        %v4116 = vadd.f32 0.0, %v4115
        %v4117 = vpop.f32.mrf.mxu0
        %v4118 = vadd.f32 0.0, %v4117
        %4119 = vmatmul.bf16.gmra.mxu0 %v985
        %v4120 = vpop.f32.mrf.mxu0
        %v4121 = vadd.f32 0.0, %v4120
        %v4122 = vpop.f32.mrf.mxu0
        %v4123 = vadd.f32 0.0, %v4122
        %4124 = vmatmul.bf16.gmra.mxu0 %v991
        %v4125 = vpop.f32.mrf.mxu0
        %v4126 = vadd.f32 0.0, %v4125
        %v4127 = vpop.f32.mrf.mxu0
        %v4128 = vadd.f32 0.0, %v4127
        %4129 = vmatmul.bf16.gmra.mxu0 %v997
        %v4130 = vpop.f32.mrf.mxu0
        %v4131 = vadd.f32 0.0, %v4130
        %v4132 = vpop.f32.mrf.mxu0
        %v4133 = vadd.f32 0.0, %v4132
        %4134 = vmatmul.bf16.gmra.mxu0 %v1003
        %v4135 = vpop.f32.mrf.mxu0
        %v4136 = vadd.f32 0.0, %v4135
        %v4137 = vpop.f32.mrf.mxu0
        %v4138 = vadd.f32 0.0, %v4137
        %4139 = vmatmul.bf16.gmra.mxu0 %v1009
        %v4140 = vpop.f32.mrf.mxu0
        %v4141 = vadd.f32 0.0, %v4140
        %v4142 = vpop.f32.mrf.mxu0
        %v4143 = vadd.f32 0.0, %v4142
        %4144 = vmatmul.bf16.gmra.mxu0 %v1015
        %v4145 = vpop.f32.mrf.mxu0
        %v4146 = vadd.f32 0.0, %v4145
        %v4147 = vpop.f32.mrf.mxu0
        %v4148 = vadd.f32 0.0, %v4147
        %4149 = vmatmul.bf16.gmra.mxu0 %v1021
        %v4150 = vpop.f32.mrf.mxu0
        %v4151 = vadd.f32 0.0, %v4150
        %v4152 = vpop.f32.mrf.mxu0
        %v4153 = vadd.f32 0.0, %v4152
        %4154 = vmatmul.bf16.gmra.mxu0 %v1027
        %v4155 = vpop.f32.mrf.mxu0
        %v4156 = vadd.f32 0.0, %v4155
        %v4157 = vpop.f32.mrf.mxu0
        %v4158 = vadd.f32 0.0, %v4157
        %4159 = vmatmul.bf16.gmra.mxu0 %v1033
        %v4160 = vpop.f32.mrf.mxu0
        %v4161 = vadd.f32 0.0, %v4160
        %v4162 = vpop.f32.mrf.mxu0
        %v4163 = vadd.f32 0.0, %v4162
        %4164 = vdwg.mxu0
        %4165 = vmatpush.bf16.msra.mxu0 %v2141
        %4166 = vmatpush.bf16.msra.mxu0 %v2134
        %4167 = vmatpush.bf16.msra.mxu0 %v2127
        %4168 = vmatpush.bf16.msra.mxu0 %v2120
        %4169 = vmatpush.bf16.msra.mxu0 %v2113
        %4170 = vmatpush.bf16.msra.mxu0 %v2106
        %4171 = vmatpush.bf16.msra.mxu0 %v2099
        %4172 = vmatpush.bf16.msra.mxu0 %v2092
        %4173 = vmatmul.bf16.gmra.mxu0 %v956
        %v4174 = vpop.f32.mrf.mxu0
        %v4175 = vadd.f32 %v4096, %v4174
        %v4176 = vpop.f32.mrf.mxu0
        %v4177 = vadd.f32 %v4098, %v4176
        %4178 = vmatmul.bf16.gmra.mxu0 %v962
        %v4179 = vpop.f32.mrf.mxu0
        %v4180 = vadd.f32 %v4101, %v4179
        %v4181 = vpop.f32.mrf.mxu0
        %v4182 = vadd.f32 %v4103, %v4181
        %4183 = vmatmul.bf16.gmra.mxu0 %v968
        %v4184 = vpop.f32.mrf.mxu0
        %v4185 = vadd.f32 %v4106, %v4184
        %v4186 = vpop.f32.mrf.mxu0
        %v4187 = vadd.f32 %v4108, %v4186
        %4188 = vmatmul.bf16.gmra.mxu0 %v974
        %v4189 = vpop.f32.mrf.mxu0
        %v4190 = vadd.f32 %v4111, %v4189
        %v4191 = vpop.f32.mrf.mxu0
        %v4192 = vadd.f32 %v4113, %v4191
        %4193 = vmatmul.bf16.gmra.mxu0 %v980
        %v4194 = vpop.f32.mrf.mxu0
        %v4195 = vadd.f32 %v4116, %v4194
        %v4196 = vpop.f32.mrf.mxu0
        %v4197 = vadd.f32 %v4118, %v4196
        %4198 = vmatmul.bf16.gmra.mxu0 %v986
        %v4199 = vpop.f32.mrf.mxu0
        %v4200 = vadd.f32 %v4121, %v4199
        %v4201 = vpop.f32.mrf.mxu0
        %v4202 = vadd.f32 %v4123, %v4201
        %4203 = vmatmul.bf16.gmra.mxu0 %v992
        %v4204 = vpop.f32.mrf.mxu0
        %v4205 = vadd.f32 %v4126, %v4204
        %v4206 = vpop.f32.mrf.mxu0
        %v4207 = vadd.f32 %v4128, %v4206
        %4208 = vmatmul.bf16.gmra.mxu0 %v998
        %v4209 = vpop.f32.mrf.mxu0
        %v4210 = vadd.f32 %v4131, %v4209
        %v4211 = vpop.f32.mrf.mxu0
        %v4212 = vadd.f32 %v4133, %v4211
        %4213 = vmatmul.bf16.gmra.mxu0 %v1004
        %v4214 = vpop.f32.mrf.mxu0
        %v4215 = vadd.f32 %v4136, %v4214
        %v4216 = vpop.f32.mrf.mxu0
        %v4217 = vadd.f32 %v4138, %v4216
        %4218 = vmatmul.bf16.gmra.mxu0 %v1010
        %v4219 = vpop.f32.mrf.mxu0
        %v4220 = vadd.f32 %v4141, %v4219
        %v4221 = vpop.f32.mrf.mxu0
        %v4222 = vadd.f32 %v4143, %v4221
        %4223 = vmatmul.bf16.gmra.mxu0 %v1016
        %v4224 = vpop.f32.mrf.mxu0
        %v4225 = vadd.f32 %v4146, %v4224
        %v4226 = vpop.f32.mrf.mxu0
        %v4227 = vadd.f32 %v4148, %v4226
        %4228 = vmatmul.bf16.gmra.mxu0 %v1022
        %v4229 = vpop.f32.mrf.mxu0
        %v4230 = vadd.f32 %v4151, %v4229
        %v4231 = vpop.f32.mrf.mxu0
        %v4232 = vadd.f32 %v4153, %v4231
        %4233 = vmatmul.bf16.gmra.mxu0 %v1028
        %v4234 = vpop.f32.mrf.mxu0
        %v4235 = vadd.f32 %v4156, %v4234
        %v4236 = vpop.f32.mrf.mxu0
        %v4237 = vadd.f32 %v4158, %v4236
        %4238 = vmatmul.bf16.gmra.mxu0 %v1034
        %v4239 = vpop.f32.mrf.mxu0
        %v4240 = vadd.f32 %v4161, %v4239
        %v4241 = vpop.f32.mrf.mxu0
        %v4242 = vadd.f32 %v4163, %v4241
        %4243 = vdwg.mxu0
        %4244 = vmatpush.bf16.msra.mxu0 %v2197
        %4245 = vmatpush.bf16.msra.mxu0 %v2190
        %4246 = vmatpush.bf16.msra.mxu0 %v2183
        %4247 = vmatpush.bf16.msra.mxu0 %v2176
        %4248 = vmatpush.bf16.msra.mxu0 %v2169
        %4249 = vmatpush.bf16.msra.mxu0 %v2162
        %4250 = vmatpush.bf16.msra.mxu0 %v2155
        %4251 = vmatpush.bf16.msra.mxu0 %v2148
        %4252 = vmatmul.bf16.gmra.mxu0 %v957
        %v4253 = vpop.f32.mrf.mxu0
        %v4254 = vadd.f32 %v4175, %v4253
        %v4255 = vpop.f32.mrf.mxu0
        %v4256 = vadd.f32 %v4177, %v4255
        %4257 = vmatmul.bf16.gmra.mxu0 %v963
        %v4258 = vpop.f32.mrf.mxu0
        %v4259 = vadd.f32 %v4180, %v4258
        %v4260 = vpop.f32.mrf.mxu0
        %v4261 = vadd.f32 %v4182, %v4260
        %4262 = vmatmul.bf16.gmra.mxu0 %v969
        %v4263 = vpop.f32.mrf.mxu0
        %v4264 = vadd.f32 %v4185, %v4263
        %v4265 = vpop.f32.mrf.mxu0
        %v4266 = vadd.f32 %v4187, %v4265
        %4267 = vmatmul.bf16.gmra.mxu0 %v975
        %v4268 = vpop.f32.mrf.mxu0
        %v4269 = vadd.f32 %v4190, %v4268
        %v4270 = vpop.f32.mrf.mxu0
        %v4271 = vadd.f32 %v4192, %v4270
        %4272 = vmatmul.bf16.gmra.mxu0 %v981
        %v4273 = vpop.f32.mrf.mxu0
        %v4274 = vadd.f32 %v4195, %v4273
        %v4275 = vpop.f32.mrf.mxu0
        %v4276 = vadd.f32 %v4197, %v4275
        %4277 = vmatmul.bf16.gmra.mxu0 %v987
        %v4278 = vpop.f32.mrf.mxu0
        %v4279 = vadd.f32 %v4200, %v4278
        %v4280 = vpop.f32.mrf.mxu0
        %v4281 = vadd.f32 %v4202, %v4280
        %4282 = vmatmul.bf16.gmra.mxu0 %v993
        %v4283 = vpop.f32.mrf.mxu0
        %v4284 = vadd.f32 %v4205, %v4283
        %v4285 = vpop.f32.mrf.mxu0
        %v4286 = vadd.f32 %v4207, %v4285
        %4287 = vmatmul.bf16.gmra.mxu0 %v999
        %v4288 = vpop.f32.mrf.mxu0
        %v4289 = vadd.f32 %v4210, %v4288
        %v4290 = vpop.f32.mrf.mxu0
        %v4291 = vadd.f32 %v4212, %v4290
        %4292 = vmatmul.bf16.gmra.mxu0 %v1005
        %v4293 = vpop.f32.mrf.mxu0
        %v4294 = vadd.f32 %v4215, %v4293
        %v4295 = vpop.f32.mrf.mxu0
        %v4296 = vadd.f32 %v4217, %v4295
        %4297 = vmatmul.bf16.gmra.mxu0 %v1011
        %v4298 = vpop.f32.mrf.mxu0
        %v4299 = vadd.f32 %v4220, %v4298
        %v4300 = vpop.f32.mrf.mxu0
        %v4301 = vadd.f32 %v4222, %v4300
        %4302 = vmatmul.bf16.gmra.mxu0 %v1017
        %v4303 = vpop.f32.mrf.mxu0
        %v4304 = vadd.f32 %v4225, %v4303
        %v4305 = vpop.f32.mrf.mxu0
        %v4306 = vadd.f32 %v4227, %v4305
        %4307 = vmatmul.bf16.gmra.mxu0 %v1023
        %v4308 = vpop.f32.mrf.mxu0
        %v4309 = vadd.f32 %v4230, %v4308
        %v4310 = vpop.f32.mrf.mxu0
        %v4311 = vadd.f32 %v4232, %v4310
        %4312 = vmatmul.bf16.gmra.mxu0 %v1029
        %v4313 = vpop.f32.mrf.mxu0
        %v4314 = vadd.f32 %v4235, %v4313
        %v4315 = vpop.f32.mrf.mxu0
        %v4316 = vadd.f32 %v4237, %v4315
        %4317 = vmatmul.bf16.gmra.mxu0 %v1035
        %v4318 = vpop.f32.mrf.mxu0
        %v4319 = vadd.f32 %v4240, %v4318
        %v4320 = vpop.f32.mrf.mxu0
        %v4321 = vadd.f32 %v4242, %v4320
        %4322 = vdwg.mxu0
        %4323 = vmatpush.bf16.msra.mxu0 %v2253
        %4324 = vmatpush.bf16.msra.mxu0 %v2246
        %4325 = vmatpush.bf16.msra.mxu0 %v2239
        %4326 = vmatpush.bf16.msra.mxu0 %v2232
        %4327 = vmatpush.bf16.msra.mxu0 %v2225
        %4328 = vmatpush.bf16.msra.mxu0 %v2218
        %4329 = vmatpush.bf16.msra.mxu0 %v2211
        %4330 = vmatpush.bf16.msra.mxu0 %v2204
        %4331 = vmatmul.bf16.gmra.mxu0 %v958
        %v4332 = vpop.f32.mrf.mxu0
        %v4333 = vadd.f32 %v4254, %v4332
        %v4334 = vpop.f32.mrf.mxu0
        %v4335 = vadd.f32 %v4256, %v4334
        %4336 = vmatmul.bf16.gmra.mxu0 %v964
        %v4337 = vpop.f32.mrf.mxu0
        %v4338 = vadd.f32 %v4259, %v4337
        %v4339 = vpop.f32.mrf.mxu0
        %v4340 = vadd.f32 %v4261, %v4339
        %4341 = vmatmul.bf16.gmra.mxu0 %v970
        %v4342 = vpop.f32.mrf.mxu0
        %v4343 = vadd.f32 %v4264, %v4342
        %v4344 = vpop.f32.mrf.mxu0
        %v4345 = vadd.f32 %v4266, %v4344
        %4346 = vmatmul.bf16.gmra.mxu0 %v976
        %v4347 = vpop.f32.mrf.mxu0
        %v4348 = vadd.f32 %v4269, %v4347
        %v4349 = vpop.f32.mrf.mxu0
        %v4350 = vadd.f32 %v4271, %v4349
        %4351 = vmatmul.bf16.gmra.mxu0 %v982
        %v4352 = vpop.f32.mrf.mxu0
        %v4353 = vadd.f32 %v4274, %v4352
        %v4354 = vpop.f32.mrf.mxu0
        %v4355 = vadd.f32 %v4276, %v4354
        %4356 = vmatmul.bf16.gmra.mxu0 %v988
        %v4357 = vpop.f32.mrf.mxu0
        %v4358 = vadd.f32 %v4279, %v4357
        %v4359 = vpop.f32.mrf.mxu0
        %v4360 = vadd.f32 %v4281, %v4359
        %4361 = vmatmul.bf16.gmra.mxu0 %v994
        %v4362 = vpop.f32.mrf.mxu0
        %v4363 = vadd.f32 %v4284, %v4362
        %v4364 = vpop.f32.mrf.mxu0
        %v4365 = vadd.f32 %v4286, %v4364
        %4366 = vmatmul.bf16.gmra.mxu0 %v1000
        %v4367 = vpop.f32.mrf.mxu0
        %v4368 = vadd.f32 %v4289, %v4367
        %v4369 = vpop.f32.mrf.mxu0
        %v4370 = vadd.f32 %v4291, %v4369
        %4371 = vmatmul.bf16.gmra.mxu0 %v1006
        %v4372 = vpop.f32.mrf.mxu0
        %v4373 = vadd.f32 %v4294, %v4372
        %v4374 = vpop.f32.mrf.mxu0
        %v4375 = vadd.f32 %v4296, %v4374
        %4376 = vmatmul.bf16.gmra.mxu0 %v1012
        %v4377 = vpop.f32.mrf.mxu0
        %v4378 = vadd.f32 %v4299, %v4377
        %v4379 = vpop.f32.mrf.mxu0
        %v4380 = vadd.f32 %v4301, %v4379
        %4381 = vmatmul.bf16.gmra.mxu0 %v1018
        %v4382 = vpop.f32.mrf.mxu0
        %v4383 = vadd.f32 %v4304, %v4382
        %v4384 = vpop.f32.mrf.mxu0
        %v4385 = vadd.f32 %v4306, %v4384
        %4386 = vmatmul.bf16.gmra.mxu0 %v1024
        %v4387 = vpop.f32.mrf.mxu0
        %v4388 = vadd.f32 %v4309, %v4387
        %v4389 = vpop.f32.mrf.mxu0
        %v4390 = vadd.f32 %v4311, %v4389
        %4391 = vmatmul.bf16.gmra.mxu0 %v1030
        %v4392 = vpop.f32.mrf.mxu0
        %v4393 = vadd.f32 %v4314, %v4392
        %v4394 = vpop.f32.mrf.mxu0
        %v4395 = vadd.f32 %v4316, %v4394
        %4396 = vmatmul.bf16.gmra.mxu0 %v1036
        %v4397 = vpop.f32.mrf.mxu0
        %v4398 = vadd.f32 %v4319, %v4397
        %v4399 = vpop.f32.mrf.mxu0
        %v4400 = vadd.f32 %v4321, %v4399
        %4401 = vdwg.mxu0
        %4402 = vmatpush.bf16.msra.mxu0 %v2309
        %4403 = vmatpush.bf16.msra.mxu0 %v2302
        %4404 = vmatpush.bf16.msra.mxu0 %v2295
        %4405 = vmatpush.bf16.msra.mxu0 %v2288
        %4406 = vmatpush.bf16.msra.mxu0 %v2281
        %4407 = vmatpush.bf16.msra.mxu0 %v2274
        %4408 = vmatpush.bf16.msra.mxu0 %v2267
        %4409 = vmatpush.bf16.msra.mxu0 %v2260
        %4410 = vmatmul.bf16.gmra.mxu0 %v959
        %v4411 = vpop.f32.mrf.mxu0
        %v4412 = vadd.f32 %v4333, %v4411
        %v4413 = vpop.f32.mrf.mxu0
        %v4414 = vadd.f32 %v4335, %v4413
        %4415 = vmatmul.bf16.gmra.mxu0 %v965
        %v4416 = vpop.f32.mrf.mxu0
        %v4417 = vadd.f32 %v4338, %v4416
        %v4418 = vpop.f32.mrf.mxu0
        %v4419 = vadd.f32 %v4340, %v4418
        %4420 = vmatmul.bf16.gmra.mxu0 %v971
        %v4421 = vpop.f32.mrf.mxu0
        %v4422 = vadd.f32 %v4343, %v4421
        %v4423 = vpop.f32.mrf.mxu0
        %v4424 = vadd.f32 %v4345, %v4423
        %4425 = vmatmul.bf16.gmra.mxu0 %v977
        %v4426 = vpop.f32.mrf.mxu0
        %v4427 = vadd.f32 %v4348, %v4426
        %v4428 = vpop.f32.mrf.mxu0
        %v4429 = vadd.f32 %v4350, %v4428
        %4430 = vmatmul.bf16.gmra.mxu0 %v983
        %v4431 = vpop.f32.mrf.mxu0
        %v4432 = vadd.f32 %v4353, %v4431
        %v4433 = vpop.f32.mrf.mxu0
        %v4434 = vadd.f32 %v4355, %v4433
        %4435 = vmatmul.bf16.gmra.mxu0 %v989
        %v4436 = vpop.f32.mrf.mxu0
        %v4437 = vadd.f32 %v4358, %v4436
        %v4438 = vpop.f32.mrf.mxu0
        %v4439 = vadd.f32 %v4360, %v4438
        %4440 = vmatmul.bf16.gmra.mxu0 %v995
        %v4441 = vpop.f32.mrf.mxu0
        %v4442 = vadd.f32 %v4363, %v4441
        %v4443 = vpop.f32.mrf.mxu0
        %v4444 = vadd.f32 %v4365, %v4443
        %4445 = vmatmul.bf16.gmra.mxu0 %v1001
        %v4446 = vpop.f32.mrf.mxu0
        %v4447 = vadd.f32 %v4368, %v4446
        %v4448 = vpop.f32.mrf.mxu0
        %v4449 = vadd.f32 %v4370, %v4448
        %4450 = vmatmul.bf16.gmra.mxu0 %v1007
        %v4451 = vpop.f32.mrf.mxu0
        %v4452 = vadd.f32 %v4373, %v4451
        %v4453 = vpop.f32.mrf.mxu0
        %v4454 = vadd.f32 %v4375, %v4453
        %4455 = vmatmul.bf16.gmra.mxu0 %v1013
        %v4456 = vpop.f32.mrf.mxu0
        %v4457 = vadd.f32 %v4378, %v4456
        %v4458 = vpop.f32.mrf.mxu0
        %v4459 = vadd.f32 %v4380, %v4458
        %4460 = vmatmul.bf16.gmra.mxu0 %v1019
        %v4461 = vpop.f32.mrf.mxu0
        %v4462 = vadd.f32 %v4383, %v4461
        %v4463 = vpop.f32.mrf.mxu0
        %v4464 = vadd.f32 %v4385, %v4463
        %4465 = vmatmul.bf16.gmra.mxu0 %v1025
        %v4466 = vpop.f32.mrf.mxu0
        %v4467 = vadd.f32 %v4388, %v4466
        %v4468 = vpop.f32.mrf.mxu0
        %v4469 = vadd.f32 %v4390, %v4468
        %4470 = vmatmul.bf16.gmra.mxu0 %v1031
        %v4471 = vpop.f32.mrf.mxu0
        %v4472 = vadd.f32 %v4393, %v4471
        %v4473 = vpop.f32.mrf.mxu0
        %v4474 = vadd.f32 %v4395, %v4473
        %4475 = vmatmul.bf16.gmra.mxu0 %v1037
        %v4476 = vpop.f32.mrf.mxu0
        %v4477 = vadd.f32 %v4398, %v4476
        %v4478 = vpop.f32.mrf.mxu0
        %v4479 = vadd.f32 %v4400, %v4478
        %4480 = vdwg.mxu0
        %4481 = vmatpush.bf16.msra.mxu0 0
        %4482 = vmatpush.bf16.msra.mxu0 0
        %4483 = vmatpush.bf16.msra.mxu0 0
        %4484 = vmatpush.bf16.msra.mxu0 0
        %4485 = vmatpush.bf16.msra.mxu0 0
        %4486 = vmatpush.bf16.msra.mxu0 0
        %4487 = vmatpush.bf16.msra.mxu0 %v2323
        %4488 = vmatpush.bf16.msra.mxu0 %v2316
        %4489 = vmatmul.bf16.gmra.mxu0 %v2623
        %v4490 = vpop.f32.mrf.mxu0
        %v4491 = vadd.f32 %v4412, %v4490
        %v4492 = vpop.f32.mrf.mxu0
        %v4493 = vadd.f32 %v4414, %v4492
        %4494 = vmatmul.bf16.gmra.mxu0 %v2626
        %v4495 = vpop.f32.mrf.mxu0
        %v4496 = vadd.f32 %v4417, %v4495
        %v4497 = vpop.f32.mrf.mxu0
        %v4498 = vadd.f32 %v4419, %v4497
        %4499 = vmatmul.bf16.gmra.mxu0 %v2629
        %v4500 = vpop.f32.mrf.mxu0
        %v4501 = vadd.f32 %v4422, %v4500
        %v4502 = vpop.f32.mrf.mxu0
        %v4503 = vadd.f32 %v4424, %v4502
        %4504 = vmatmul.bf16.gmra.mxu0 %v2632
        %v4505 = vpop.f32.mrf.mxu0
        %v4506 = vadd.f32 %v4427, %v4505
        %v4507 = vpop.f32.mrf.mxu0
        %v4508 = vadd.f32 %v4429, %v4507
        %4509 = vmatmul.bf16.gmra.mxu0 %v2635
        %v4510 = vpop.f32.mrf.mxu0
        %v4511 = vadd.f32 %v4432, %v4510
        %v4512 = vpop.f32.mrf.mxu0
        %v4513 = vadd.f32 %v4434, %v4512
        %4514 = vmatmul.bf16.gmra.mxu0 %v2638
        %v4515 = vpop.f32.mrf.mxu0
        %v4516 = vadd.f32 %v4437, %v4515
        %v4517 = vpop.f32.mrf.mxu0
        %v4518 = vadd.f32 %v4439, %v4517
        %4519 = vmatmul.bf16.gmra.mxu0 %v2641
        %v4520 = vpop.f32.mrf.mxu0
        %v4521 = vadd.f32 %v4442, %v4520
        %v4522 = vpop.f32.mrf.mxu0
        %v4523 = vadd.f32 %v4444, %v4522
        %4524 = vmatmul.bf16.gmra.mxu0 %v2644
        %v4525 = vpop.f32.mrf.mxu0
        %v4526 = vadd.f32 %v4447, %v4525
        %v4527 = vpop.f32.mrf.mxu0
        %v4528 = vadd.f32 %v4449, %v4527
        %4529 = vmatmul.bf16.gmra.mxu0 %v2647
        %v4530 = vpop.f32.mrf.mxu0
        %v4531 = vadd.f32 %v4452, %v4530
        %v4532 = vpop.f32.mrf.mxu0
        %v4533 = vadd.f32 %v4454, %v4532
        %4534 = vmatmul.bf16.gmra.mxu0 %v2650
        %v4535 = vpop.f32.mrf.mxu0
        %v4536 = vadd.f32 %v4457, %v4535
        %v4537 = vpop.f32.mrf.mxu0
        %v4538 = vadd.f32 %v4459, %v4537
        %4539 = vmatmul.bf16.gmra.mxu0 %v2653
        %v4540 = vpop.f32.mrf.mxu0
        %v4541 = vadd.f32 %v4462, %v4540
        %v4542 = vpop.f32.mrf.mxu0
        %v4543 = vadd.f32 %v4464, %v4542
        %4544 = vmatmul.bf16.gmra.mxu0 %v2656
        %v4545 = vpop.f32.mrf.mxu0
        %v4546 = vadd.f32 %v4467, %v4545
        %v4547 = vpop.f32.mrf.mxu0
        %v4548 = vadd.f32 %v4469, %v4547
        %4549 = vmatmul.bf16.gmra.mxu0 %v2659
        %v4550 = vpop.f32.mrf.mxu0
        %v4551 = vadd.f32 %v4472, %v4550
        %v4552 = vpop.f32.mrf.mxu0
        %v4553 = vadd.f32 %v4474, %v4552
        %4554 = vmatmul.bf16.gmra.mxu0 %v2662
        %v4555 = vpop.f32.mrf.mxu0
        %v4556 = vadd.f32 %v4477, %v4555
        %v4557 = vpop.f32.mrf.mxu0
        %v4558 = vadd.f32 %v4479, %v4557
        %4559 = vdwg.mxu0
        %4560 = vmatpush.bf16.msra.mxu0 %v2086
        %4561 = vmatpush.bf16.msra.mxu0 %v2079
        %4562 = vmatpush.bf16.msra.mxu0 %v2072
        %4563 = vmatpush.bf16.msra.mxu0 %v2065
        %4564 = vmatpush.bf16.msra.mxu0 %v2058
        %4565 = vmatpush.bf16.msra.mxu0 %v2051
        %4566 = vmatpush.bf16.msra.mxu0 %v2044
        %4567 = vmatpush.bf16.msra.mxu0 %v2037
        %4568 = vmatmul.bf16.gmra.mxu0 %v955
        %v4569 = vpop.f32.mrf.mxu0
        %v4570 = vadd.f32 0.0, %v4569
        %v4571 = vpop.f32.mrf.mxu0
        %v4572 = vadd.f32 0.0, %v4571
        %4573 = vmatmul.bf16.gmra.mxu0 %v961
        %v4574 = vpop.f32.mrf.mxu0
        %v4575 = vadd.f32 0.0, %v4574
        %v4576 = vpop.f32.mrf.mxu0
        %v4577 = vadd.f32 0.0, %v4576
        %4578 = vmatmul.bf16.gmra.mxu0 %v967
        %v4579 = vpop.f32.mrf.mxu0
        %v4580 = vadd.f32 0.0, %v4579
        %v4581 = vpop.f32.mrf.mxu0
        %v4582 = vadd.f32 0.0, %v4581
        %4583 = vmatmul.bf16.gmra.mxu0 %v973
        %v4584 = vpop.f32.mrf.mxu0
        %v4585 = vadd.f32 0.0, %v4584
        %v4586 = vpop.f32.mrf.mxu0
        %v4587 = vadd.f32 0.0, %v4586
        %4588 = vmatmul.bf16.gmra.mxu0 %v979
        %v4589 = vpop.f32.mrf.mxu0
        %v4590 = vadd.f32 0.0, %v4589
        %v4591 = vpop.f32.mrf.mxu0
        %v4592 = vadd.f32 0.0, %v4591
        %4593 = vmatmul.bf16.gmra.mxu0 %v985
        %v4594 = vpop.f32.mrf.mxu0
        %v4595 = vadd.f32 0.0, %v4594
        %v4596 = vpop.f32.mrf.mxu0
        %v4597 = vadd.f32 0.0, %v4596
        %4598 = vmatmul.bf16.gmra.mxu0 %v991
        %v4599 = vpop.f32.mrf.mxu0
        %v4600 = vadd.f32 0.0, %v4599
        %v4601 = vpop.f32.mrf.mxu0
        %v4602 = vadd.f32 0.0, %v4601
        %4603 = vmatmul.bf16.gmra.mxu0 %v997
        %v4604 = vpop.f32.mrf.mxu0
        %v4605 = vadd.f32 0.0, %v4604
        %v4606 = vpop.f32.mrf.mxu0
        %v4607 = vadd.f32 0.0, %v4606
        %4608 = vmatmul.bf16.gmra.mxu0 %v1003
        %v4609 = vpop.f32.mrf.mxu0
        %v4610 = vadd.f32 0.0, %v4609
        %v4611 = vpop.f32.mrf.mxu0
        %v4612 = vadd.f32 0.0, %v4611
        %4613 = vmatmul.bf16.gmra.mxu0 %v1009
        %v4614 = vpop.f32.mrf.mxu0
        %v4615 = vadd.f32 0.0, %v4614
        %v4616 = vpop.f32.mrf.mxu0
        %v4617 = vadd.f32 0.0, %v4616
        %4618 = vmatmul.bf16.gmra.mxu0 %v1015
        %v4619 = vpop.f32.mrf.mxu0
        %v4620 = vadd.f32 0.0, %v4619
        %v4621 = vpop.f32.mrf.mxu0
        %v4622 = vadd.f32 0.0, %v4621
        %4623 = vmatmul.bf16.gmra.mxu0 %v1021
        %v4624 = vpop.f32.mrf.mxu0
        %v4625 = vadd.f32 0.0, %v4624
        %v4626 = vpop.f32.mrf.mxu0
        %v4627 = vadd.f32 0.0, %v4626
        %4628 = vmatmul.bf16.gmra.mxu0 %v1027
        %v4629 = vpop.f32.mrf.mxu0
        %v4630 = vadd.f32 0.0, %v4629
        %v4631 = vpop.f32.mrf.mxu0
        %v4632 = vadd.f32 0.0, %v4631
        %4633 = vmatmul.bf16.gmra.mxu0 %v1033
        %v4634 = vpop.f32.mrf.mxu0
        %v4635 = vadd.f32 0.0, %v4634
        %v4636 = vpop.f32.mrf.mxu0
        %v4637 = vadd.f32 0.0, %v4636
        %4638 = vdwg.mxu0
        %4639 = vmatpush.bf16.msra.mxu0 %v2142
        %4640 = vmatpush.bf16.msra.mxu0 %v2135
        %4641 = vmatpush.bf16.msra.mxu0 %v2128
        %4642 = vmatpush.bf16.msra.mxu0 %v2121
        %4643 = vmatpush.bf16.msra.mxu0 %v2114
        %4644 = vmatpush.bf16.msra.mxu0 %v2107
        %4645 = vmatpush.bf16.msra.mxu0 %v2100
        %4646 = vmatpush.bf16.msra.mxu0 %v2093
        %4647 = vmatmul.bf16.gmra.mxu0 %v956
        %v4648 = vpop.f32.mrf.mxu0
        %v4649 = vadd.f32 %v4570, %v4648
        %v4650 = vpop.f32.mrf.mxu0
        %v4651 = vadd.f32 %v4572, %v4650
        %4652 = vmatmul.bf16.gmra.mxu0 %v962
        %v4653 = vpop.f32.mrf.mxu0
        %v4654 = vadd.f32 %v4575, %v4653
        %v4655 = vpop.f32.mrf.mxu0
        %v4656 = vadd.f32 %v4577, %v4655
        %4657 = vmatmul.bf16.gmra.mxu0 %v968
        %v4658 = vpop.f32.mrf.mxu0
        %v4659 = vadd.f32 %v4580, %v4658
        %v4660 = vpop.f32.mrf.mxu0
        %v4661 = vadd.f32 %v4582, %v4660
        %4662 = vmatmul.bf16.gmra.mxu0 %v974
        %v4663 = vpop.f32.mrf.mxu0
        %v4664 = vadd.f32 %v4585, %v4663
        %v4665 = vpop.f32.mrf.mxu0
        %v4666 = vadd.f32 %v4587, %v4665
        %4667 = vmatmul.bf16.gmra.mxu0 %v980
        %v4668 = vpop.f32.mrf.mxu0
        %v4669 = vadd.f32 %v4590, %v4668
        %v4670 = vpop.f32.mrf.mxu0
        %v4671 = vadd.f32 %v4592, %v4670
        %4672 = vmatmul.bf16.gmra.mxu0 %v986
        %v4673 = vpop.f32.mrf.mxu0
        %v4674 = vadd.f32 %v4595, %v4673
        %v4675 = vpop.f32.mrf.mxu0
        %v4676 = vadd.f32 %v4597, %v4675
        %4677 = vmatmul.bf16.gmra.mxu0 %v992
        %v4678 = vpop.f32.mrf.mxu0
        %v4679 = vadd.f32 %v4600, %v4678
        %v4680 = vpop.f32.mrf.mxu0
        %v4681 = vadd.f32 %v4602, %v4680
        %4682 = vmatmul.bf16.gmra.mxu0 %v998
        %v4683 = vpop.f32.mrf.mxu0
        %v4684 = vadd.f32 %v4605, %v4683
        %v4685 = vpop.f32.mrf.mxu0
        %v4686 = vadd.f32 %v4607, %v4685
        %4687 = vmatmul.bf16.gmra.mxu0 %v1004
        %v4688 = vpop.f32.mrf.mxu0
        %v4689 = vadd.f32 %v4610, %v4688
        %v4690 = vpop.f32.mrf.mxu0
        %v4691 = vadd.f32 %v4612, %v4690
        %4692 = vmatmul.bf16.gmra.mxu0 %v1010
        %v4693 = vpop.f32.mrf.mxu0
        %v4694 = vadd.f32 %v4615, %v4693
        %v4695 = vpop.f32.mrf.mxu0
        %v4696 = vadd.f32 %v4617, %v4695
        %4697 = vmatmul.bf16.gmra.mxu0 %v1016
        %v4698 = vpop.f32.mrf.mxu0
        %v4699 = vadd.f32 %v4620, %v4698
        %v4700 = vpop.f32.mrf.mxu0
        %v4701 = vadd.f32 %v4622, %v4700
        %4702 = vmatmul.bf16.gmra.mxu0 %v1022
        %v4703 = vpop.f32.mrf.mxu0
        %v4704 = vadd.f32 %v4625, %v4703
        %v4705 = vpop.f32.mrf.mxu0
        %v4706 = vadd.f32 %v4627, %v4705
        %4707 = vmatmul.bf16.gmra.mxu0 %v1028
        %v4708 = vpop.f32.mrf.mxu0
        %v4709 = vadd.f32 %v4630, %v4708
        %v4710 = vpop.f32.mrf.mxu0
        %v4711 = vadd.f32 %v4632, %v4710
        %4712 = vmatmul.bf16.gmra.mxu0 %v1034
        %v4713 = vpop.f32.mrf.mxu0
        %v4714 = vadd.f32 %v4635, %v4713
        %v4715 = vpop.f32.mrf.mxu0
        %v4716 = vadd.f32 %v4637, %v4715
        %4717 = vdwg.mxu0
        %4718 = vmatpush.bf16.msra.mxu0 %v2198
        %4719 = vmatpush.bf16.msra.mxu0 %v2191
        %4720 = vmatpush.bf16.msra.mxu0 %v2184
        %4721 = vmatpush.bf16.msra.mxu0 %v2177
        %4722 = vmatpush.bf16.msra.mxu0 %v2170
        %4723 = vmatpush.bf16.msra.mxu0 %v2163
        %4724 = vmatpush.bf16.msra.mxu0 %v2156
        %4725 = vmatpush.bf16.msra.mxu0 %v2149
        %4726 = vmatmul.bf16.gmra.mxu0 %v957
        %v4727 = vpop.f32.mrf.mxu0
        %v4728 = vadd.f32 %v4649, %v4727
        %v4729 = vpop.f32.mrf.mxu0
        %v4730 = vadd.f32 %v4651, %v4729
        %4731 = vmatmul.bf16.gmra.mxu0 %v963
        %v4732 = vpop.f32.mrf.mxu0
        %v4733 = vadd.f32 %v4654, %v4732
        %v4734 = vpop.f32.mrf.mxu0
        %v4735 = vadd.f32 %v4656, %v4734
        %4736 = vmatmul.bf16.gmra.mxu0 %v969
        %v4737 = vpop.f32.mrf.mxu0
        %v4738 = vadd.f32 %v4659, %v4737
        %v4739 = vpop.f32.mrf.mxu0
        %v4740 = vadd.f32 %v4661, %v4739
        %4741 = vmatmul.bf16.gmra.mxu0 %v975
        %v4742 = vpop.f32.mrf.mxu0
        %v4743 = vadd.f32 %v4664, %v4742
        %v4744 = vpop.f32.mrf.mxu0
        %v4745 = vadd.f32 %v4666, %v4744
        %4746 = vmatmul.bf16.gmra.mxu0 %v981
        %v4747 = vpop.f32.mrf.mxu0
        %v4748 = vadd.f32 %v4669, %v4747
        %v4749 = vpop.f32.mrf.mxu0
        %v4750 = vadd.f32 %v4671, %v4749
        %4751 = vmatmul.bf16.gmra.mxu0 %v987
        %v4752 = vpop.f32.mrf.mxu0
        %v4753 = vadd.f32 %v4674, %v4752
        %v4754 = vpop.f32.mrf.mxu0
        %v4755 = vadd.f32 %v4676, %v4754
        %4756 = vmatmul.bf16.gmra.mxu0 %v993
        %v4757 = vpop.f32.mrf.mxu0
        %v4758 = vadd.f32 %v4679, %v4757
        %v4759 = vpop.f32.mrf.mxu0
        %v4760 = vadd.f32 %v4681, %v4759
        %4761 = vmatmul.bf16.gmra.mxu0 %v999
        %v4762 = vpop.f32.mrf.mxu0
        %v4763 = vadd.f32 %v4684, %v4762
        %v4764 = vpop.f32.mrf.mxu0
        %v4765 = vadd.f32 %v4686, %v4764
        %4766 = vmatmul.bf16.gmra.mxu0 %v1005
        %v4767 = vpop.f32.mrf.mxu0
        %v4768 = vadd.f32 %v4689, %v4767
        %v4769 = vpop.f32.mrf.mxu0
        %v4770 = vadd.f32 %v4691, %v4769
        %4771 = vmatmul.bf16.gmra.mxu0 %v1011
        %v4772 = vpop.f32.mrf.mxu0
        %v4773 = vadd.f32 %v4694, %v4772
        %v4774 = vpop.f32.mrf.mxu0
        %v4775 = vadd.f32 %v4696, %v4774
        %4776 = vmatmul.bf16.gmra.mxu0 %v1017
        %v4777 = vpop.f32.mrf.mxu0
        %v4778 = vadd.f32 %v4699, %v4777
        %v4779 = vpop.f32.mrf.mxu0
        %v4780 = vadd.f32 %v4701, %v4779
        %4781 = vmatmul.bf16.gmra.mxu0 %v1023
        %v4782 = vpop.f32.mrf.mxu0
        %v4783 = vadd.f32 %v4704, %v4782
        %v4784 = vpop.f32.mrf.mxu0
        %v4785 = vadd.f32 %v4706, %v4784
        %4786 = vmatmul.bf16.gmra.mxu0 %v1029
        %v4787 = vpop.f32.mrf.mxu0
        %v4788 = vadd.f32 %v4709, %v4787
        %v4789 = vpop.f32.mrf.mxu0
        %v4790 = vadd.f32 %v4711, %v4789
        %4791 = vmatmul.bf16.gmra.mxu0 %v1035
        %v4792 = vpop.f32.mrf.mxu0
        %v4793 = vadd.f32 %v4714, %v4792
        %v4794 = vpop.f32.mrf.mxu0
        %v4795 = vadd.f32 %v4716, %v4794
        %4796 = vdwg.mxu0
        %4797 = vmatpush.bf16.msra.mxu0 %v2254
        %4798 = vmatpush.bf16.msra.mxu0 %v2247
        %4799 = vmatpush.bf16.msra.mxu0 %v2240
        %4800 = vmatpush.bf16.msra.mxu0 %v2233
        %4801 = vmatpush.bf16.msra.mxu0 %v2226
        %4802 = vmatpush.bf16.msra.mxu0 %v2219
        %4803 = vmatpush.bf16.msra.mxu0 %v2212
        %4804 = vmatpush.bf16.msra.mxu0 %v2205
        %4805 = vmatmul.bf16.gmra.mxu0 %v958
        %v4806 = vpop.f32.mrf.mxu0
        %v4807 = vadd.f32 %v4728, %v4806
        %v4808 = vpop.f32.mrf.mxu0
        %v4809 = vadd.f32 %v4730, %v4808
        %4810 = vmatmul.bf16.gmra.mxu0 %v964
        %v4811 = vpop.f32.mrf.mxu0
        %v4812 = vadd.f32 %v4733, %v4811
        %v4813 = vpop.f32.mrf.mxu0
        %v4814 = vadd.f32 %v4735, %v4813
        %4815 = vmatmul.bf16.gmra.mxu0 %v970
        %v4816 = vpop.f32.mrf.mxu0
        %v4817 = vadd.f32 %v4738, %v4816
        %v4818 = vpop.f32.mrf.mxu0
        %v4819 = vadd.f32 %v4740, %v4818
        %4820 = vmatmul.bf16.gmra.mxu0 %v976
        %v4821 = vpop.f32.mrf.mxu0
        %v4822 = vadd.f32 %v4743, %v4821
        %v4823 = vpop.f32.mrf.mxu0
        %v4824 = vadd.f32 %v4745, %v4823
        %4825 = vmatmul.bf16.gmra.mxu0 %v982
        %v4826 = vpop.f32.mrf.mxu0
        %v4827 = vadd.f32 %v4748, %v4826
        %v4828 = vpop.f32.mrf.mxu0
        %v4829 = vadd.f32 %v4750, %v4828
        %4830 = vmatmul.bf16.gmra.mxu0 %v988
        %v4831 = vpop.f32.mrf.mxu0
        %v4832 = vadd.f32 %v4753, %v4831
        %v4833 = vpop.f32.mrf.mxu0
        %v4834 = vadd.f32 %v4755, %v4833
        %4835 = vmatmul.bf16.gmra.mxu0 %v994
        %v4836 = vpop.f32.mrf.mxu0
        %v4837 = vadd.f32 %v4758, %v4836
        %v4838 = vpop.f32.mrf.mxu0
        %v4839 = vadd.f32 %v4760, %v4838
        %4840 = vmatmul.bf16.gmra.mxu0 %v1000
        %v4841 = vpop.f32.mrf.mxu0
        %v4842 = vadd.f32 %v4763, %v4841
        %v4843 = vpop.f32.mrf.mxu0
        %v4844 = vadd.f32 %v4765, %v4843
        %4845 = vmatmul.bf16.gmra.mxu0 %v1006
        %v4846 = vpop.f32.mrf.mxu0
        %v4847 = vadd.f32 %v4768, %v4846
        %v4848 = vpop.f32.mrf.mxu0
        %v4849 = vadd.f32 %v4770, %v4848
        %4850 = vmatmul.bf16.gmra.mxu0 %v1012
        %v4851 = vpop.f32.mrf.mxu0
        %v4852 = vadd.f32 %v4773, %v4851
        %v4853 = vpop.f32.mrf.mxu0
        %v4854 = vadd.f32 %v4775, %v4853
        %4855 = vmatmul.bf16.gmra.mxu0 %v1018
        %v4856 = vpop.f32.mrf.mxu0
        %v4857 = vadd.f32 %v4778, %v4856
        %v4858 = vpop.f32.mrf.mxu0
        %v4859 = vadd.f32 %v4780, %v4858
        %4860 = vmatmul.bf16.gmra.mxu0 %v1024
        %v4861 = vpop.f32.mrf.mxu0
        %v4862 = vadd.f32 %v4783, %v4861
        %v4863 = vpop.f32.mrf.mxu0
        %v4864 = vadd.f32 %v4785, %v4863
        %4865 = vmatmul.bf16.gmra.mxu0 %v1030
        %v4866 = vpop.f32.mrf.mxu0
        %v4867 = vadd.f32 %v4788, %v4866
        %v4868 = vpop.f32.mrf.mxu0
        %v4869 = vadd.f32 %v4790, %v4868
        %4870 = vmatmul.bf16.gmra.mxu0 %v1036
        %v4871 = vpop.f32.mrf.mxu0
        %v4872 = vadd.f32 %v4793, %v4871
        %v4873 = vpop.f32.mrf.mxu0
        %v4874 = vadd.f32 %v4795, %v4873
        %4875 = vdwg.mxu0
        %4876 = vmatpush.bf16.msra.mxu0 %v2310
        %4877 = vmatpush.bf16.msra.mxu0 %v2303
        %4878 = vmatpush.bf16.msra.mxu0 %v2296
        %4879 = vmatpush.bf16.msra.mxu0 %v2289
        %4880 = vmatpush.bf16.msra.mxu0 %v2282
        %4881 = vmatpush.bf16.msra.mxu0 %v2275
        %4882 = vmatpush.bf16.msra.mxu0 %v2268
        %4883 = vmatpush.bf16.msra.mxu0 %v2261
        %4884 = vmatmul.bf16.gmra.mxu0 %v959
        %v4885 = vpop.f32.mrf.mxu0
        %v4886 = vadd.f32 %v4807, %v4885
        %v4887 = vpop.f32.mrf.mxu0
        %v4888 = vadd.f32 %v4809, %v4887
        %4889 = vmatmul.bf16.gmra.mxu0 %v965
        %v4890 = vpop.f32.mrf.mxu0
        %v4891 = vadd.f32 %v4812, %v4890
        %v4892 = vpop.f32.mrf.mxu0
        %v4893 = vadd.f32 %v4814, %v4892
        %4894 = vmatmul.bf16.gmra.mxu0 %v971
        %v4895 = vpop.f32.mrf.mxu0
        %v4896 = vadd.f32 %v4817, %v4895
        %v4897 = vpop.f32.mrf.mxu0
        %v4898 = vadd.f32 %v4819, %v4897
        %4899 = vmatmul.bf16.gmra.mxu0 %v977
        %v4900 = vpop.f32.mrf.mxu0
        %v4901 = vadd.f32 %v4822, %v4900
        %v4902 = vpop.f32.mrf.mxu0
        %v4903 = vadd.f32 %v4824, %v4902
        %4904 = vmatmul.bf16.gmra.mxu0 %v983
        %v4905 = vpop.f32.mrf.mxu0
        %v4906 = vadd.f32 %v4827, %v4905
        %v4907 = vpop.f32.mrf.mxu0
        %v4908 = vadd.f32 %v4829, %v4907
        %4909 = vmatmul.bf16.gmra.mxu0 %v989
        %v4910 = vpop.f32.mrf.mxu0
        %v4911 = vadd.f32 %v4832, %v4910
        %v4912 = vpop.f32.mrf.mxu0
        %v4913 = vadd.f32 %v4834, %v4912
        %4914 = vmatmul.bf16.gmra.mxu0 %v995
        %v4915 = vpop.f32.mrf.mxu0
        %v4916 = vadd.f32 %v4837, %v4915
        %v4917 = vpop.f32.mrf.mxu0
        %v4918 = vadd.f32 %v4839, %v4917
        %4919 = vmatmul.bf16.gmra.mxu0 %v1001
        %v4920 = vpop.f32.mrf.mxu0
        %v4921 = vadd.f32 %v4842, %v4920
        %v4922 = vpop.f32.mrf.mxu0
        %v4923 = vadd.f32 %v4844, %v4922
        %4924 = vmatmul.bf16.gmra.mxu0 %v1007
        %v4925 = vpop.f32.mrf.mxu0
        %v4926 = vadd.f32 %v4847, %v4925
        %v4927 = vpop.f32.mrf.mxu0
        %v4928 = vadd.f32 %v4849, %v4927
        %4929 = vmatmul.bf16.gmra.mxu0 %v1013
        %v4930 = vpop.f32.mrf.mxu0
        %v4931 = vadd.f32 %v4852, %v4930
        %v4932 = vpop.f32.mrf.mxu0
        %v4933 = vadd.f32 %v4854, %v4932
        %4934 = vmatmul.bf16.gmra.mxu0 %v1019
        %v4935 = vpop.f32.mrf.mxu0
        %v4936 = vadd.f32 %v4857, %v4935
        %v4937 = vpop.f32.mrf.mxu0
        %v4938 = vadd.f32 %v4859, %v4937
        %4939 = vmatmul.bf16.gmra.mxu0 %v1025
        %v4940 = vpop.f32.mrf.mxu0
        %v4941 = vadd.f32 %v4862, %v4940
        %v4942 = vpop.f32.mrf.mxu0
        %v4943 = vadd.f32 %v4864, %v4942
        %4944 = vmatmul.bf16.gmra.mxu0 %v1031
        %v4945 = vpop.f32.mrf.mxu0
        %v4946 = vadd.f32 %v4867, %v4945
        %v4947 = vpop.f32.mrf.mxu0
        %v4948 = vadd.f32 %v4869, %v4947
        %4949 = vmatmul.bf16.gmra.mxu0 %v1037
        %v4950 = vpop.f32.mrf.mxu0
        %v4951 = vadd.f32 %v4872, %v4950
        %v4952 = vpop.f32.mrf.mxu0
        %v4953 = vadd.f32 %v4874, %v4952
        %4954 = vdwg.mxu0
        %4955 = vmatpush.bf16.msra.mxu0 0
        %4956 = vmatpush.bf16.msra.mxu0 0
        %4957 = vmatpush.bf16.msra.mxu0 0
        %4958 = vmatpush.bf16.msra.mxu0 0
        %4959 = vmatpush.bf16.msra.mxu0 0
        %4960 = vmatpush.bf16.msra.mxu0 0
        %4961 = vmatpush.bf16.msra.mxu0 %v2324
        %4962 = vmatpush.bf16.msra.mxu0 %v2317
        %4963 = vmatmul.bf16.gmra.mxu0 %v2623
        %v4964 = vpop.f32.mrf.mxu0
        %v4965 = vadd.f32 %v4886, %v4964
        %v4966 = vpop.f32.mrf.mxu0
        %v4967 = vadd.f32 %v4888, %v4966
        %4968 = vmatmul.bf16.gmra.mxu0 %v2626
        %v4969 = vpop.f32.mrf.mxu0
        %v4970 = vadd.f32 %v4891, %v4969
        %v4971 = vpop.f32.mrf.mxu0
        %v4972 = vadd.f32 %v4893, %v4971
        %4973 = vmatmul.bf16.gmra.mxu0 %v2629
        %v4974 = vpop.f32.mrf.mxu0
        %v4975 = vadd.f32 %v4896, %v4974
        %v4976 = vpop.f32.mrf.mxu0
        %v4977 = vadd.f32 %v4898, %v4976
        %4978 = vmatmul.bf16.gmra.mxu0 %v2632
        %v4979 = vpop.f32.mrf.mxu0
        %v4980 = vadd.f32 %v4901, %v4979
        %v4981 = vpop.f32.mrf.mxu0
        %v4982 = vadd.f32 %v4903, %v4981
        %4983 = vmatmul.bf16.gmra.mxu0 %v2635
        %v4984 = vpop.f32.mrf.mxu0
        %v4985 = vadd.f32 %v4906, %v4984
        %v4986 = vpop.f32.mrf.mxu0
        %v4987 = vadd.f32 %v4908, %v4986
        %4988 = vmatmul.bf16.gmra.mxu0 %v2638
        %v4989 = vpop.f32.mrf.mxu0
        %v4990 = vadd.f32 %v4911, %v4989
        %v4991 = vpop.f32.mrf.mxu0
        %v4992 = vadd.f32 %v4913, %v4991
        %4993 = vmatmul.bf16.gmra.mxu0 %v2641
        %v4994 = vpop.f32.mrf.mxu0
        %v4995 = vadd.f32 %v4916, %v4994
        %v4996 = vpop.f32.mrf.mxu0
        %v4997 = vadd.f32 %v4918, %v4996
        %4998 = vmatmul.bf16.gmra.mxu0 %v2644
        %v4999 = vpop.f32.mrf.mxu0
        %v5000 = vadd.f32 %v4921, %v4999
        %v5001 = vpop.f32.mrf.mxu0
        %v5002 = vadd.f32 %v4923, %v5001
        %5003 = vmatmul.bf16.gmra.mxu0 %v2647
        %v5004 = vpop.f32.mrf.mxu0
        %v5005 = vadd.f32 %v4926, %v5004
        %v5006 = vpop.f32.mrf.mxu0
        %v5007 = vadd.f32 %v4928, %v5006
        %5008 = vmatmul.bf16.gmra.mxu0 %v2650
        %v5009 = vpop.f32.mrf.mxu0
        %v5010 = vadd.f32 %v4931, %v5009
        %v5011 = vpop.f32.mrf.mxu0
        %v5012 = vadd.f32 %v4933, %v5011
        %5013 = vmatmul.bf16.gmra.mxu0 %v2653
        %v5014 = vpop.f32.mrf.mxu0
        %v5015 = vadd.f32 %v4936, %v5014
        %v5016 = vpop.f32.mrf.mxu0
        %v5017 = vadd.f32 %v4938, %v5016
        %5018 = vmatmul.bf16.gmra.mxu0 %v2656
        %v5019 = vpop.f32.mrf.mxu0
        %v5020 = vadd.f32 %v4941, %v5019
        %v5021 = vpop.f32.mrf.mxu0
        %v5022 = vadd.f32 %v4943, %v5021
        %5023 = vmatmul.bf16.gmra.mxu0 %v2659
        %v5024 = vpop.f32.mrf.mxu0
        %v5025 = vadd.f32 %v4946, %v5024
        %v5026 = vpop.f32.mrf.mxu0
        %v5027 = vadd.f32 %v4948, %v5026
        %5028 = vmatmul.bf16.gmra.mxu0 %v2662
        %v5029 = vpop.f32.mrf.mxu0
        %v5030 = vadd.f32 %v4951, %v5029
        %v5031 = vpop.f32.mrf.mxu0
        %v5032 = vadd.f32 %v4953, %v5031
        %5033 = vdwg.mxu0
        %5034 = vmatpush.bf16.msra.mxu0 %v2087
        %5035 = vmatpush.bf16.msra.mxu0 %v2080
        %5036 = vmatpush.bf16.msra.mxu0 %v2073
        %5037 = vmatpush.bf16.msra.mxu0 %v2066
        %5038 = vmatpush.bf16.msra.mxu0 %v2059
        %5039 = vmatpush.bf16.msra.mxu0 %v2052
        %5040 = vmatpush.bf16.msra.mxu0 %v2045
        %5041 = vmatpush.bf16.msra.mxu0 %v2038
        %5042 = vmatmul.bf16.gmra.mxu0 %v955
        %v5043 = vpop.f32.mrf.mxu0
        %v5044 = vadd.f32 0.0, %v5043
        %v5045 = vpop.f32.mrf.mxu0
        %v5046 = vadd.f32 0.0, %v5045
        %5047 = vmatmul.bf16.gmra.mxu0 %v961
        %v5048 = vpop.f32.mrf.mxu0
        %v5049 = vadd.f32 0.0, %v5048
        %v5050 = vpop.f32.mrf.mxu0
        %v5051 = vadd.f32 0.0, %v5050
        %5052 = vmatmul.bf16.gmra.mxu0 %v967
        %v5053 = vpop.f32.mrf.mxu0
        %v5054 = vadd.f32 0.0, %v5053
        %v5055 = vpop.f32.mrf.mxu0
        %v5056 = vadd.f32 0.0, %v5055
        %5057 = vmatmul.bf16.gmra.mxu0 %v973
        %v5058 = vpop.f32.mrf.mxu0
        %v5059 = vadd.f32 0.0, %v5058
        %v5060 = vpop.f32.mrf.mxu0
        %v5061 = vadd.f32 0.0, %v5060
        %5062 = vmatmul.bf16.gmra.mxu0 %v979
        %v5063 = vpop.f32.mrf.mxu0
        %v5064 = vadd.f32 0.0, %v5063
        %v5065 = vpop.f32.mrf.mxu0
        %v5066 = vadd.f32 0.0, %v5065
        %5067 = vmatmul.bf16.gmra.mxu0 %v985
        %v5068 = vpop.f32.mrf.mxu0
        %v5069 = vadd.f32 0.0, %v5068
        %v5070 = vpop.f32.mrf.mxu0
        %v5071 = vadd.f32 0.0, %v5070
        %5072 = vmatmul.bf16.gmra.mxu0 %v991
        %v5073 = vpop.f32.mrf.mxu0
        %v5074 = vadd.f32 0.0, %v5073
        %v5075 = vpop.f32.mrf.mxu0
        %v5076 = vadd.f32 0.0, %v5075
        %5077 = vmatmul.bf16.gmra.mxu0 %v997
        %v5078 = vpop.f32.mrf.mxu0
        %v5079 = vadd.f32 0.0, %v5078
        %v5080 = vpop.f32.mrf.mxu0
        %v5081 = vadd.f32 0.0, %v5080
        %5082 = vmatmul.bf16.gmra.mxu0 %v1003
        %v5083 = vpop.f32.mrf.mxu0
        %v5084 = vadd.f32 0.0, %v5083
        %v5085 = vpop.f32.mrf.mxu0
        %v5086 = vadd.f32 0.0, %v5085
        %5087 = vmatmul.bf16.gmra.mxu0 %v1009
        %v5088 = vpop.f32.mrf.mxu0
        %v5089 = vadd.f32 0.0, %v5088
        %v5090 = vpop.f32.mrf.mxu0
        %v5091 = vadd.f32 0.0, %v5090
        %5092 = vmatmul.bf16.gmra.mxu0 %v1015
        %v5093 = vpop.f32.mrf.mxu0
        %v5094 = vadd.f32 0.0, %v5093
        %v5095 = vpop.f32.mrf.mxu0
        %v5096 = vadd.f32 0.0, %v5095
        %5097 = vmatmul.bf16.gmra.mxu0 %v1021
        %v5098 = vpop.f32.mrf.mxu0
        %v5099 = vadd.f32 0.0, %v5098
        %v5100 = vpop.f32.mrf.mxu0
        %v5101 = vadd.f32 0.0, %v5100
        %5102 = vmatmul.bf16.gmra.mxu0 %v1027
        %v5103 = vpop.f32.mrf.mxu0
        %v5104 = vadd.f32 0.0, %v5103
        %v5105 = vpop.f32.mrf.mxu0
        %v5106 = vadd.f32 0.0, %v5105
        %5107 = vmatmul.bf16.gmra.mxu0 %v1033
        %v5108 = vpop.f32.mrf.mxu0
        %v5109 = vadd.f32 0.0, %v5108
        %v5110 = vpop.f32.mrf.mxu0
        %v5111 = vadd.f32 0.0, %v5110
        %5112 = vdwg.mxu0
        %5113 = vmatpush.bf16.msra.mxu0 %v2143
        %5114 = vmatpush.bf16.msra.mxu0 %v2136
        %5115 = vmatpush.bf16.msra.mxu0 %v2129
        %5116 = vmatpush.bf16.msra.mxu0 %v2122
        %5117 = vmatpush.bf16.msra.mxu0 %v2115
        %5118 = vmatpush.bf16.msra.mxu0 %v2108
        %5119 = vmatpush.bf16.msra.mxu0 %v2101
        %5120 = vmatpush.bf16.msra.mxu0 %v2094
        %5121 = vmatmul.bf16.gmra.mxu0 %v956
        %v5122 = vpop.f32.mrf.mxu0
        %v5123 = vadd.f32 %v5044, %v5122
        %v5124 = vpop.f32.mrf.mxu0
        %v5125 = vadd.f32 %v5046, %v5124
        %5126 = vmatmul.bf16.gmra.mxu0 %v962
        %v5127 = vpop.f32.mrf.mxu0
        %v5128 = vadd.f32 %v5049, %v5127
        %v5129 = vpop.f32.mrf.mxu0
        %v5130 = vadd.f32 %v5051, %v5129
        %5131 = vmatmul.bf16.gmra.mxu0 %v968
        %v5132 = vpop.f32.mrf.mxu0
        %v5133 = vadd.f32 %v5054, %v5132
        %v5134 = vpop.f32.mrf.mxu0
        %v5135 = vadd.f32 %v5056, %v5134
        %5136 = vmatmul.bf16.gmra.mxu0 %v974
        %v5137 = vpop.f32.mrf.mxu0
        %v5138 = vadd.f32 %v5059, %v5137
        %v5139 = vpop.f32.mrf.mxu0
        %v5140 = vadd.f32 %v5061, %v5139
        %5141 = vmatmul.bf16.gmra.mxu0 %v980
        %v5142 = vpop.f32.mrf.mxu0
        %v5143 = vadd.f32 %v5064, %v5142
        %v5144 = vpop.f32.mrf.mxu0
        %v5145 = vadd.f32 %v5066, %v5144
        %5146 = vmatmul.bf16.gmra.mxu0 %v986
        %v5147 = vpop.f32.mrf.mxu0
        %v5148 = vadd.f32 %v5069, %v5147
        %v5149 = vpop.f32.mrf.mxu0
        %v5150 = vadd.f32 %v5071, %v5149
        %5151 = vmatmul.bf16.gmra.mxu0 %v992
        %v5152 = vpop.f32.mrf.mxu0
        %v5153 = vadd.f32 %v5074, %v5152
        %v5154 = vpop.f32.mrf.mxu0
        %v5155 = vadd.f32 %v5076, %v5154
        %5156 = vmatmul.bf16.gmra.mxu0 %v998
        %v5157 = vpop.f32.mrf.mxu0
        %v5158 = vadd.f32 %v5079, %v5157
        %v5159 = vpop.f32.mrf.mxu0
        %v5160 = vadd.f32 %v5081, %v5159
        %5161 = vmatmul.bf16.gmra.mxu0 %v1004
        %v5162 = vpop.f32.mrf.mxu0
        %v5163 = vadd.f32 %v5084, %v5162
        %v5164 = vpop.f32.mrf.mxu0
        %v5165 = vadd.f32 %v5086, %v5164
        %5166 = vmatmul.bf16.gmra.mxu0 %v1010
        %v5167 = vpop.f32.mrf.mxu0
        %v5168 = vadd.f32 %v5089, %v5167
        %v5169 = vpop.f32.mrf.mxu0
        %v5170 = vadd.f32 %v5091, %v5169
        %5171 = vmatmul.bf16.gmra.mxu0 %v1016
        %v5172 = vpop.f32.mrf.mxu0
        %v5173 = vadd.f32 %v5094, %v5172
        %v5174 = vpop.f32.mrf.mxu0
        %v5175 = vadd.f32 %v5096, %v5174
        %5176 = vmatmul.bf16.gmra.mxu0 %v1022
        %v5177 = vpop.f32.mrf.mxu0
        %v5178 = vadd.f32 %v5099, %v5177
        %v5179 = vpop.f32.mrf.mxu0
        %v5180 = vadd.f32 %v5101, %v5179
        %5181 = vmatmul.bf16.gmra.mxu0 %v1028
        %v5182 = vpop.f32.mrf.mxu0
        %v5183 = vadd.f32 %v5104, %v5182
        %v5184 = vpop.f32.mrf.mxu0
        %v5185 = vadd.f32 %v5106, %v5184
        %5186 = vmatmul.bf16.gmra.mxu0 %v1034
        %v5187 = vpop.f32.mrf.mxu0
        %v5188 = vadd.f32 %v5109, %v5187
        %v5189 = vpop.f32.mrf.mxu0
        %v5190 = vadd.f32 %v5111, %v5189
        %5191 = vdwg.mxu0
        %5192 = vmatpush.bf16.msra.mxu0 %v2199
        %5193 = vmatpush.bf16.msra.mxu0 %v2192
        %5194 = vmatpush.bf16.msra.mxu0 %v2185
        %5195 = vmatpush.bf16.msra.mxu0 %v2178
        %5196 = vmatpush.bf16.msra.mxu0 %v2171
        %5197 = vmatpush.bf16.msra.mxu0 %v2164
        %5198 = vmatpush.bf16.msra.mxu0 %v2157
        %5199 = vmatpush.bf16.msra.mxu0 %v2150
        %5200 = vmatmul.bf16.gmra.mxu0 %v957
        %v5201 = vpop.f32.mrf.mxu0
        %v5202 = vadd.f32 %v5123, %v5201
        %v5203 = vpop.f32.mrf.mxu0
        %v5204 = vadd.f32 %v5125, %v5203
        %5205 = vmatmul.bf16.gmra.mxu0 %v963
        %v5206 = vpop.f32.mrf.mxu0
        %v5207 = vadd.f32 %v5128, %v5206
        %v5208 = vpop.f32.mrf.mxu0
        %v5209 = vadd.f32 %v5130, %v5208
        %5210 = vmatmul.bf16.gmra.mxu0 %v969
        %v5211 = vpop.f32.mrf.mxu0
        %v5212 = vadd.f32 %v5133, %v5211
        %v5213 = vpop.f32.mrf.mxu0
        %v5214 = vadd.f32 %v5135, %v5213
        %5215 = vmatmul.bf16.gmra.mxu0 %v975
        %v5216 = vpop.f32.mrf.mxu0
        %v5217 = vadd.f32 %v5138, %v5216
        %v5218 = vpop.f32.mrf.mxu0
        %v5219 = vadd.f32 %v5140, %v5218
        %5220 = vmatmul.bf16.gmra.mxu0 %v981
        %v5221 = vpop.f32.mrf.mxu0
        %v5222 = vadd.f32 %v5143, %v5221
        %v5223 = vpop.f32.mrf.mxu0
        %v5224 = vadd.f32 %v5145, %v5223
        %5225 = vmatmul.bf16.gmra.mxu0 %v987
        %v5226 = vpop.f32.mrf.mxu0
        %v5227 = vadd.f32 %v5148, %v5226
        %v5228 = vpop.f32.mrf.mxu0
        %v5229 = vadd.f32 %v5150, %v5228
        %5230 = vmatmul.bf16.gmra.mxu0 %v993
        %v5231 = vpop.f32.mrf.mxu0
        %v5232 = vadd.f32 %v5153, %v5231
        %v5233 = vpop.f32.mrf.mxu0
        %v5234 = vadd.f32 %v5155, %v5233
        %5235 = vmatmul.bf16.gmra.mxu0 %v999
        %v5236 = vpop.f32.mrf.mxu0
        %v5237 = vadd.f32 %v5158, %v5236
        %v5238 = vpop.f32.mrf.mxu0
        %v5239 = vadd.f32 %v5160, %v5238
        %5240 = vmatmul.bf16.gmra.mxu0 %v1005
        %v5241 = vpop.f32.mrf.mxu0
        %v5242 = vadd.f32 %v5163, %v5241
        %v5243 = vpop.f32.mrf.mxu0
        %v5244 = vadd.f32 %v5165, %v5243
        %5245 = vmatmul.bf16.gmra.mxu0 %v1011
        %v5246 = vpop.f32.mrf.mxu0
        %v5247 = vadd.f32 %v5168, %v5246
        %v5248 = vpop.f32.mrf.mxu0
        %v5249 = vadd.f32 %v5170, %v5248
        %5250 = vmatmul.bf16.gmra.mxu0 %v1017
        %v5251 = vpop.f32.mrf.mxu0
        %v5252 = vadd.f32 %v5173, %v5251
        %v5253 = vpop.f32.mrf.mxu0
        %v5254 = vadd.f32 %v5175, %v5253
        %5255 = vmatmul.bf16.gmra.mxu0 %v1023
        %v5256 = vpop.f32.mrf.mxu0
        %v5257 = vadd.f32 %v5178, %v5256
        %v5258 = vpop.f32.mrf.mxu0
        %v5259 = vadd.f32 %v5180, %v5258
        %5260 = vmatmul.bf16.gmra.mxu0 %v1029
        %v5261 = vpop.f32.mrf.mxu0
        %v5262 = vadd.f32 %v5183, %v5261
        %v5263 = vpop.f32.mrf.mxu0
        %v5264 = vadd.f32 %v5185, %v5263
        %5265 = vmatmul.bf16.gmra.mxu0 %v1035
        %v5266 = vpop.f32.mrf.mxu0
        %v5267 = vadd.f32 %v5188, %v5266
        %v5268 = vpop.f32.mrf.mxu0
        %v5269 = vadd.f32 %v5190, %v5268
        %5270 = vdwg.mxu0
        %5271 = vmatpush.bf16.msra.mxu0 %v2255
        %5272 = vmatpush.bf16.msra.mxu0 %v2248
        %5273 = vmatpush.bf16.msra.mxu0 %v2241
        %5274 = vmatpush.bf16.msra.mxu0 %v2234
        %5275 = vmatpush.bf16.msra.mxu0 %v2227
        %5276 = vmatpush.bf16.msra.mxu0 %v2220
        %5277 = vmatpush.bf16.msra.mxu0 %v2213
        %5278 = vmatpush.bf16.msra.mxu0 %v2206
        %5279 = vmatmul.bf16.gmra.mxu0 %v958
        %v5280 = vpop.f32.mrf.mxu0
        %v5281 = vadd.f32 %v5202, %v5280
        %v5282 = vpop.f32.mrf.mxu0
        %v5283 = vadd.f32 %v5204, %v5282
        %5284 = vmatmul.bf16.gmra.mxu0 %v964
        %v5285 = vpop.f32.mrf.mxu0
        %v5286 = vadd.f32 %v5207, %v5285
        %v5287 = vpop.f32.mrf.mxu0
        %v5288 = vadd.f32 %v5209, %v5287
        %5289 = vmatmul.bf16.gmra.mxu0 %v970
        %v5290 = vpop.f32.mrf.mxu0
        %v5291 = vadd.f32 %v5212, %v5290
        %v5292 = vpop.f32.mrf.mxu0
        %v5293 = vadd.f32 %v5214, %v5292
        %5294 = vmatmul.bf16.gmra.mxu0 %v976
        %v5295 = vpop.f32.mrf.mxu0
        %v5296 = vadd.f32 %v5217, %v5295
        %v5297 = vpop.f32.mrf.mxu0
        %v5298 = vadd.f32 %v5219, %v5297
        %5299 = vmatmul.bf16.gmra.mxu0 %v982
        %v5300 = vpop.f32.mrf.mxu0
        %v5301 = vadd.f32 %v5222, %v5300
        %v5302 = vpop.f32.mrf.mxu0
        %v5303 = vadd.f32 %v5224, %v5302
        %5304 = vmatmul.bf16.gmra.mxu0 %v988
        %v5305 = vpop.f32.mrf.mxu0
        %v5306 = vadd.f32 %v5227, %v5305
        %v5307 = vpop.f32.mrf.mxu0
        %v5308 = vadd.f32 %v5229, %v5307
        %5309 = vmatmul.bf16.gmra.mxu0 %v994
        %v5310 = vpop.f32.mrf.mxu0
        %v5311 = vadd.f32 %v5232, %v5310
        %v5312 = vpop.f32.mrf.mxu0
        %v5313 = vadd.f32 %v5234, %v5312
        %5314 = vmatmul.bf16.gmra.mxu0 %v1000
        %v5315 = vpop.f32.mrf.mxu0
        %v5316 = vadd.f32 %v5237, %v5315
        %v5317 = vpop.f32.mrf.mxu0
        %v5318 = vadd.f32 %v5239, %v5317
        %5319 = vmatmul.bf16.gmra.mxu0 %v1006
        %v5320 = vpop.f32.mrf.mxu0
        %v5321 = vadd.f32 %v5242, %v5320
        %v5322 = vpop.f32.mrf.mxu0
        %v5323 = vadd.f32 %v5244, %v5322
        %5324 = vmatmul.bf16.gmra.mxu0 %v1012
        %v5325 = vpop.f32.mrf.mxu0
        %v5326 = vadd.f32 %v5247, %v5325
        %v5327 = vpop.f32.mrf.mxu0
        %v5328 = vadd.f32 %v5249, %v5327
        %5329 = vmatmul.bf16.gmra.mxu0 %v1018
        %v5330 = vpop.f32.mrf.mxu0
        %v5331 = vadd.f32 %v5252, %v5330
        %v5332 = vpop.f32.mrf.mxu0
        %v5333 = vadd.f32 %v5254, %v5332
        %5334 = vmatmul.bf16.gmra.mxu0 %v1024
        %v5335 = vpop.f32.mrf.mxu0
        %v5336 = vadd.f32 %v5257, %v5335
        %v5337 = vpop.f32.mrf.mxu0
        %v5338 = vadd.f32 %v5259, %v5337
        %5339 = vmatmul.bf16.gmra.mxu0 %v1030
        %v5340 = vpop.f32.mrf.mxu0
        %v5341 = vadd.f32 %v5262, %v5340
        %v5342 = vpop.f32.mrf.mxu0
        %v5343 = vadd.f32 %v5264, %v5342
        %5344 = vmatmul.bf16.gmra.mxu0 %v1036
        %v5345 = vpop.f32.mrf.mxu0
        %v5346 = vadd.f32 %v5267, %v5345
        %v5347 = vpop.f32.mrf.mxu0
        %v5348 = vadd.f32 %v5269, %v5347
        %5349 = vdwg.mxu0
        %5350 = vmatpush.bf16.msra.mxu0 %v2311
        %5351 = vmatpush.bf16.msra.mxu0 %v2304
        %5352 = vmatpush.bf16.msra.mxu0 %v2297
        %5353 = vmatpush.bf16.msra.mxu0 %v2290
        %5354 = vmatpush.bf16.msra.mxu0 %v2283
        %5355 = vmatpush.bf16.msra.mxu0 %v2276
        %5356 = vmatpush.bf16.msra.mxu0 %v2269
        %5357 = vmatpush.bf16.msra.mxu0 %v2262
        %5358 = vmatmul.bf16.gmra.mxu0 %v959
        %v5359 = vpop.f32.mrf.mxu0
        %v5360 = vadd.f32 %v5281, %v5359
        %v5361 = vpop.f32.mrf.mxu0
        %v5362 = vadd.f32 %v5283, %v5361
        %5363 = vmatmul.bf16.gmra.mxu0 %v965
        %v5364 = vpop.f32.mrf.mxu0
        %v5365 = vadd.f32 %v5286, %v5364
        %v5366 = vpop.f32.mrf.mxu0
        %v5367 = vadd.f32 %v5288, %v5366
        %5368 = vmatmul.bf16.gmra.mxu0 %v971
        %v5369 = vpop.f32.mrf.mxu0
        %v5370 = vadd.f32 %v5291, %v5369
        %v5371 = vpop.f32.mrf.mxu0
        %v5372 = vadd.f32 %v5293, %v5371
        %5373 = vmatmul.bf16.gmra.mxu0 %v977
        %v5374 = vpop.f32.mrf.mxu0
        %v5375 = vadd.f32 %v5296, %v5374
        %v5376 = vpop.f32.mrf.mxu0
        %v5377 = vadd.f32 %v5298, %v5376
        %5378 = vmatmul.bf16.gmra.mxu0 %v983
        %v5379 = vpop.f32.mrf.mxu0
        %v5380 = vadd.f32 %v5301, %v5379
        %v5381 = vpop.f32.mrf.mxu0
        %v5382 = vadd.f32 %v5303, %v5381
        %5383 = vmatmul.bf16.gmra.mxu0 %v989
        %v5384 = vpop.f32.mrf.mxu0
        %v5385 = vadd.f32 %v5306, %v5384
        %v5386 = vpop.f32.mrf.mxu0
        %v5387 = vadd.f32 %v5308, %v5386
        %5388 = vmatmul.bf16.gmra.mxu0 %v995
        %v5389 = vpop.f32.mrf.mxu0
        %v5390 = vadd.f32 %v5311, %v5389
        %v5391 = vpop.f32.mrf.mxu0
        %v5392 = vadd.f32 %v5313, %v5391
        %5393 = vmatmul.bf16.gmra.mxu0 %v1001
        %v5394 = vpop.f32.mrf.mxu0
        %v5395 = vadd.f32 %v5316, %v5394
        %v5396 = vpop.f32.mrf.mxu0
        %v5397 = vadd.f32 %v5318, %v5396
        %5398 = vmatmul.bf16.gmra.mxu0 %v1007
        %v5399 = vpop.f32.mrf.mxu0
        %v5400 = vadd.f32 %v5321, %v5399
        %v5401 = vpop.f32.mrf.mxu0
        %v5402 = vadd.f32 %v5323, %v5401
        %5403 = vmatmul.bf16.gmra.mxu0 %v1013
        %v5404 = vpop.f32.mrf.mxu0
        %v5405 = vadd.f32 %v5326, %v5404
        %v5406 = vpop.f32.mrf.mxu0
        %v5407 = vadd.f32 %v5328, %v5406
        %5408 = vmatmul.bf16.gmra.mxu0 %v1019
        %v5409 = vpop.f32.mrf.mxu0
        %v5410 = vadd.f32 %v5331, %v5409
        %v5411 = vpop.f32.mrf.mxu0
        %v5412 = vadd.f32 %v5333, %v5411
        %5413 = vmatmul.bf16.gmra.mxu0 %v1025
        %v5414 = vpop.f32.mrf.mxu0
        %v5415 = vadd.f32 %v5336, %v5414
        %v5416 = vpop.f32.mrf.mxu0
        %v5417 = vadd.f32 %v5338, %v5416
        %5418 = vmatmul.bf16.gmra.mxu0 %v1031
        %v5419 = vpop.f32.mrf.mxu0
        %v5420 = vadd.f32 %v5341, %v5419
        %v5421 = vpop.f32.mrf.mxu0
        %v5422 = vadd.f32 %v5343, %v5421
        %5423 = vmatmul.bf16.gmra.mxu0 %v1037
        %v5424 = vpop.f32.mrf.mxu0
        %v5425 = vadd.f32 %v5346, %v5424
        %v5426 = vpop.f32.mrf.mxu0
        %v5427 = vadd.f32 %v5348, %v5426
        %5428 = vdwg.mxu0
        %5429 = vmatpush.bf16.msra.mxu0 0
        %5430 = vmatpush.bf16.msra.mxu0 0
        %5431 = vmatpush.bf16.msra.mxu0 0
        %5432 = vmatpush.bf16.msra.mxu0 0
        %5433 = vmatpush.bf16.msra.mxu0 0
        %5434 = vmatpush.bf16.msra.mxu0 0
        %5435 = vmatpush.bf16.msra.mxu0 %v2325
        %5436 = vmatpush.bf16.msra.mxu0 %v2318
        %5437 = vmatmul.bf16.gmra.mxu0 %v2623
        %v5438 = vpop.f32.mrf.mxu0
        %v5439 = vadd.f32 %v5360, %v5438
        %v5440 = vpop.f32.mrf.mxu0
        %v5441 = vadd.f32 %v5362, %v5440
        %5442 = vmatmul.bf16.gmra.mxu0 %v2626
        %v5443 = vpop.f32.mrf.mxu0
        %v5444 = vadd.f32 %v5365, %v5443
        %v5445 = vpop.f32.mrf.mxu0
        %v5446 = vadd.f32 %v5367, %v5445
        %5447 = vmatmul.bf16.gmra.mxu0 %v2629
        %v5448 = vpop.f32.mrf.mxu0
        %v5449 = vadd.f32 %v5370, %v5448
        %v5450 = vpop.f32.mrf.mxu0
        %v5451 = vadd.f32 %v5372, %v5450
        %5452 = vmatmul.bf16.gmra.mxu0 %v2632
        %v5453 = vpop.f32.mrf.mxu0
        %v5454 = vadd.f32 %v5375, %v5453
        %v5455 = vpop.f32.mrf.mxu0
        %v5456 = vadd.f32 %v5377, %v5455
        %5457 = vmatmul.bf16.gmra.mxu0 %v2635
        %v5458 = vpop.f32.mrf.mxu0
        %v5459 = vadd.f32 %v5380, %v5458
        %v5460 = vpop.f32.mrf.mxu0
        %v5461 = vadd.f32 %v5382, %v5460
        %5462 = vmatmul.bf16.gmra.mxu0 %v2638
        %v5463 = vpop.f32.mrf.mxu0
        %v5464 = vadd.f32 %v5385, %v5463
        %v5465 = vpop.f32.mrf.mxu0
        %v5466 = vadd.f32 %v5387, %v5465
        %5467 = vmatmul.bf16.gmra.mxu0 %v2641
        %v5468 = vpop.f32.mrf.mxu0
        %v5469 = vadd.f32 %v5390, %v5468
        %v5470 = vpop.f32.mrf.mxu0
        %v5471 = vadd.f32 %v5392, %v5470
        %5472 = vmatmul.bf16.gmra.mxu0 %v2644
        %v5473 = vpop.f32.mrf.mxu0
        %v5474 = vadd.f32 %v5395, %v5473
        %v5475 = vpop.f32.mrf.mxu0
        %v5476 = vadd.f32 %v5397, %v5475
        %5477 = vmatmul.bf16.gmra.mxu0 %v2647
        %v5478 = vpop.f32.mrf.mxu0
        %v5479 = vadd.f32 %v5400, %v5478
        %v5480 = vpop.f32.mrf.mxu0
        %v5481 = vadd.f32 %v5402, %v5480
        %5482 = vmatmul.bf16.gmra.mxu0 %v2650
        %v5483 = vpop.f32.mrf.mxu0
        %v5484 = vadd.f32 %v5405, %v5483
        %v5485 = vpop.f32.mrf.mxu0
        %v5486 = vadd.f32 %v5407, %v5485
        %5487 = vmatmul.bf16.gmra.mxu0 %v2653
        %v5488 = vpop.f32.mrf.mxu0
        %v5489 = vadd.f32 %v5410, %v5488
        %v5490 = vpop.f32.mrf.mxu0
        %v5491 = vadd.f32 %v5412, %v5490
        %5492 = vmatmul.bf16.gmra.mxu0 %v2656
        %v5493 = vpop.f32.mrf.mxu0
        %v5494 = vadd.f32 %v5415, %v5493
        %v5495 = vpop.f32.mrf.mxu0
        %v5496 = vadd.f32 %v5417, %v5495
        %5497 = vmatmul.bf16.gmra.mxu0 %v2659
        %v5498 = vpop.f32.mrf.mxu0
        %v5499 = vadd.f32 %v5420, %v5498
        %v5500 = vpop.f32.mrf.mxu0
        %v5501 = vadd.f32 %v5422, %v5500
        %5502 = vmatmul.bf16.gmra.mxu0 %v2662
        %v5503 = vpop.f32.mrf.mxu0
        %v5504 = vadd.f32 %v5425, %v5503
        %v5505 = vpop.f32.mrf.mxu0
        %v5506 = vadd.f32 %v5427, %v5505
        %5507 = vdwg.mxu0
        %5508 = vmatpush.bf16.msra.mxu0 %v2088
        %5509 = vmatpush.bf16.msra.mxu0 %v2081
        %5510 = vmatpush.bf16.msra.mxu0 %v2074
        %5511 = vmatpush.bf16.msra.mxu0 %v2067
        %5512 = vmatpush.bf16.msra.mxu0 %v2060
        %5513 = vmatpush.bf16.msra.mxu0 %v2053
        %5514 = vmatpush.bf16.msra.mxu0 %v2046
        %5515 = vmatpush.bf16.msra.mxu0 %v2039
        %5516 = vmatmul.bf16.gmra.mxu0 %v955
        %v5517 = vpop.f32.mrf.mxu0
        %v5518 = vadd.f32 0.0, %v5517
        %v5519 = vpop.f32.mrf.mxu0
        %v5520 = vadd.f32 0.0, %v5519
        %5521 = vmatmul.bf16.gmra.mxu0 %v961
        %v5522 = vpop.f32.mrf.mxu0
        %v5523 = vadd.f32 0.0, %v5522
        %v5524 = vpop.f32.mrf.mxu0
        %v5525 = vadd.f32 0.0, %v5524
        %5526 = vmatmul.bf16.gmra.mxu0 %v967
        %v5527 = vpop.f32.mrf.mxu0
        %v5528 = vadd.f32 0.0, %v5527
        %v5529 = vpop.f32.mrf.mxu0
        %v5530 = vadd.f32 0.0, %v5529
        %5531 = vmatmul.bf16.gmra.mxu0 %v973
        %v5532 = vpop.f32.mrf.mxu0
        %v5533 = vadd.f32 0.0, %v5532
        %v5534 = vpop.f32.mrf.mxu0
        %v5535 = vadd.f32 0.0, %v5534
        %5536 = vmatmul.bf16.gmra.mxu0 %v979
        %v5537 = vpop.f32.mrf.mxu0
        %v5538 = vadd.f32 0.0, %v5537
        %v5539 = vpop.f32.mrf.mxu0
        %v5540 = vadd.f32 0.0, %v5539
        %5541 = vmatmul.bf16.gmra.mxu0 %v985
        %v5542 = vpop.f32.mrf.mxu0
        %v5543 = vadd.f32 0.0, %v5542
        %v5544 = vpop.f32.mrf.mxu0
        %v5545 = vadd.f32 0.0, %v5544
        %5546 = vmatmul.bf16.gmra.mxu0 %v991
        %v5547 = vpop.f32.mrf.mxu0
        %v5548 = vadd.f32 0.0, %v5547
        %v5549 = vpop.f32.mrf.mxu0
        %v5550 = vadd.f32 0.0, %v5549
        %5551 = vmatmul.bf16.gmra.mxu0 %v997
        %v5552 = vpop.f32.mrf.mxu0
        %v5553 = vadd.f32 0.0, %v5552
        %v5554 = vpop.f32.mrf.mxu0
        %v5555 = vadd.f32 0.0, %v5554
        %5556 = vmatmul.bf16.gmra.mxu0 %v1003
        %v5557 = vpop.f32.mrf.mxu0
        %v5558 = vadd.f32 0.0, %v5557
        %v5559 = vpop.f32.mrf.mxu0
        %v5560 = vadd.f32 0.0, %v5559
        %5561 = vmatmul.bf16.gmra.mxu0 %v1009
        %v5562 = vpop.f32.mrf.mxu0
        %v5563 = vadd.f32 0.0, %v5562
        %v5564 = vpop.f32.mrf.mxu0
        %v5565 = vadd.f32 0.0, %v5564
        %5566 = vmatmul.bf16.gmra.mxu0 %v1015
        %v5567 = vpop.f32.mrf.mxu0
        %v5568 = vadd.f32 0.0, %v5567
        %v5569 = vpop.f32.mrf.mxu0
        %v5570 = vadd.f32 0.0, %v5569
        %5571 = vmatmul.bf16.gmra.mxu0 %v1021
        %v5572 = vpop.f32.mrf.mxu0
        %v5573 = vadd.f32 0.0, %v5572
        %v5574 = vpop.f32.mrf.mxu0
        %v5575 = vadd.f32 0.0, %v5574
        %5576 = vmatmul.bf16.gmra.mxu0 %v1027
        %v5577 = vpop.f32.mrf.mxu0
        %v5578 = vadd.f32 0.0, %v5577
        %v5579 = vpop.f32.mrf.mxu0
        %v5580 = vadd.f32 0.0, %v5579
        %5581 = vmatmul.bf16.gmra.mxu0 %v1033
        %v5582 = vpop.f32.mrf.mxu0
        %v5583 = vadd.f32 0.0, %v5582
        %v5584 = vpop.f32.mrf.mxu0
        %v5585 = vadd.f32 0.0, %v5584
        %5586 = vdwg.mxu0
        %5587 = vmatpush.bf16.msra.mxu0 %v2144
        %5588 = vmatpush.bf16.msra.mxu0 %v2137
        %5589 = vmatpush.bf16.msra.mxu0 %v2130
        %5590 = vmatpush.bf16.msra.mxu0 %v2123
        %5591 = vmatpush.bf16.msra.mxu0 %v2116
        %5592 = vmatpush.bf16.msra.mxu0 %v2109
        %5593 = vmatpush.bf16.msra.mxu0 %v2102
        %5594 = vmatpush.bf16.msra.mxu0 %v2095
        %5595 = vmatmul.bf16.gmra.mxu0 %v956
        %v5596 = vpop.f32.mrf.mxu0
        %v5597 = vadd.f32 %v5518, %v5596
        %v5598 = vpop.f32.mrf.mxu0
        %v5599 = vadd.f32 %v5520, %v5598
        %5600 = vmatmul.bf16.gmra.mxu0 %v962
        %v5601 = vpop.f32.mrf.mxu0
        %v5602 = vadd.f32 %v5523, %v5601
        %v5603 = vpop.f32.mrf.mxu0
        %v5604 = vadd.f32 %v5525, %v5603
        %5605 = vmatmul.bf16.gmra.mxu0 %v968
        %v5606 = vpop.f32.mrf.mxu0
        %v5607 = vadd.f32 %v5528, %v5606
        %v5608 = vpop.f32.mrf.mxu0
        %v5609 = vadd.f32 %v5530, %v5608
        %5610 = vmatmul.bf16.gmra.mxu0 %v974
        %v5611 = vpop.f32.mrf.mxu0
        %v5612 = vadd.f32 %v5533, %v5611
        %v5613 = vpop.f32.mrf.mxu0
        %v5614 = vadd.f32 %v5535, %v5613
        %5615 = vmatmul.bf16.gmra.mxu0 %v980
        %v5616 = vpop.f32.mrf.mxu0
        %v5617 = vadd.f32 %v5538, %v5616
        %v5618 = vpop.f32.mrf.mxu0
        %v5619 = vadd.f32 %v5540, %v5618
        %5620 = vmatmul.bf16.gmra.mxu0 %v986
        %v5621 = vpop.f32.mrf.mxu0
        %v5622 = vadd.f32 %v5543, %v5621
        %v5623 = vpop.f32.mrf.mxu0
        %v5624 = vadd.f32 %v5545, %v5623
        %5625 = vmatmul.bf16.gmra.mxu0 %v992
        %v5626 = vpop.f32.mrf.mxu0
        %v5627 = vadd.f32 %v5548, %v5626
        %v5628 = vpop.f32.mrf.mxu0
        %v5629 = vadd.f32 %v5550, %v5628
        %5630 = vmatmul.bf16.gmra.mxu0 %v998
        %v5631 = vpop.f32.mrf.mxu0
        %v5632 = vadd.f32 %v5553, %v5631
        %v5633 = vpop.f32.mrf.mxu0
        %v5634 = vadd.f32 %v5555, %v5633
        %5635 = vmatmul.bf16.gmra.mxu0 %v1004
        %v5636 = vpop.f32.mrf.mxu0
        %v5637 = vadd.f32 %v5558, %v5636
        %v5638 = vpop.f32.mrf.mxu0
        %v5639 = vadd.f32 %v5560, %v5638
        %5640 = vmatmul.bf16.gmra.mxu0 %v1010
        %v5641 = vpop.f32.mrf.mxu0
        %v5642 = vadd.f32 %v5563, %v5641
        %v5643 = vpop.f32.mrf.mxu0
        %v5644 = vadd.f32 %v5565, %v5643
        %5645 = vmatmul.bf16.gmra.mxu0 %v1016
        %v5646 = vpop.f32.mrf.mxu0
        %v5647 = vadd.f32 %v5568, %v5646
        %v5648 = vpop.f32.mrf.mxu0
        %v5649 = vadd.f32 %v5570, %v5648
        %5650 = vmatmul.bf16.gmra.mxu0 %v1022
        %v5651 = vpop.f32.mrf.mxu0
        %v5652 = vadd.f32 %v5573, %v5651
        %v5653 = vpop.f32.mrf.mxu0
        %v5654 = vadd.f32 %v5575, %v5653
        %5655 = vmatmul.bf16.gmra.mxu0 %v1028
        %v5656 = vpop.f32.mrf.mxu0
        %v5657 = vadd.f32 %v5578, %v5656
        %v5658 = vpop.f32.mrf.mxu0
        %v5659 = vadd.f32 %v5580, %v5658
        %5660 = vmatmul.bf16.gmra.mxu0 %v1034
        %v5661 = vpop.f32.mrf.mxu0
        %v5662 = vadd.f32 %v5583, %v5661
        %v5663 = vpop.f32.mrf.mxu0
        %v5664 = vadd.f32 %v5585, %v5663
        %5665 = vdwg.mxu0
        %5666 = vmatpush.bf16.msra.mxu0 %v2200
        %5667 = vmatpush.bf16.msra.mxu0 %v2193
        %5668 = vmatpush.bf16.msra.mxu0 %v2186
        %5669 = vmatpush.bf16.msra.mxu0 %v2179
        %5670 = vmatpush.bf16.msra.mxu0 %v2172
        %5671 = vmatpush.bf16.msra.mxu0 %v2165
        %5672 = vmatpush.bf16.msra.mxu0 %v2158
        %5673 = vmatpush.bf16.msra.mxu0 %v2151
        %5674 = vmatmul.bf16.gmra.mxu0 %v957
        %v5675 = vpop.f32.mrf.mxu0
        %v5676 = vadd.f32 %v5597, %v5675
        %v5677 = vpop.f32.mrf.mxu0
        %v5678 = vadd.f32 %v5599, %v5677
        %5679 = vmatmul.bf16.gmra.mxu0 %v963
        %v5680 = vpop.f32.mrf.mxu0
        %v5681 = vadd.f32 %v5602, %v5680
        %v5682 = vpop.f32.mrf.mxu0
        %v5683 = vadd.f32 %v5604, %v5682
        %5684 = vmatmul.bf16.gmra.mxu0 %v969
        %v5685 = vpop.f32.mrf.mxu0
        %v5686 = vadd.f32 %v5607, %v5685
        %v5687 = vpop.f32.mrf.mxu0
        %v5688 = vadd.f32 %v5609, %v5687
        %5689 = vmatmul.bf16.gmra.mxu0 %v975
        %v5690 = vpop.f32.mrf.mxu0
        %v5691 = vadd.f32 %v5612, %v5690
        %v5692 = vpop.f32.mrf.mxu0
        %v5693 = vadd.f32 %v5614, %v5692
        %5694 = vmatmul.bf16.gmra.mxu0 %v981
        %v5695 = vpop.f32.mrf.mxu0
        %v5696 = vadd.f32 %v5617, %v5695
        %v5697 = vpop.f32.mrf.mxu0
        %v5698 = vadd.f32 %v5619, %v5697
        %5699 = vmatmul.bf16.gmra.mxu0 %v987
        %v5700 = vpop.f32.mrf.mxu0
        %v5701 = vadd.f32 %v5622, %v5700
        %v5702 = vpop.f32.mrf.mxu0
        %v5703 = vadd.f32 %v5624, %v5702
        %5704 = vmatmul.bf16.gmra.mxu0 %v993
        %v5705 = vpop.f32.mrf.mxu0
        %v5706 = vadd.f32 %v5627, %v5705
        %v5707 = vpop.f32.mrf.mxu0
        %v5708 = vadd.f32 %v5629, %v5707
        %5709 = vmatmul.bf16.gmra.mxu0 %v999
        %v5710 = vpop.f32.mrf.mxu0
        %v5711 = vadd.f32 %v5632, %v5710
        %v5712 = vpop.f32.mrf.mxu0
        %v5713 = vadd.f32 %v5634, %v5712
        %5714 = vmatmul.bf16.gmra.mxu0 %v1005
        %v5715 = vpop.f32.mrf.mxu0
        %v5716 = vadd.f32 %v5637, %v5715
        %v5717 = vpop.f32.mrf.mxu0
        %v5718 = vadd.f32 %v5639, %v5717
        %5719 = vmatmul.bf16.gmra.mxu0 %v1011
        %v5720 = vpop.f32.mrf.mxu0
        %v5721 = vadd.f32 %v5642, %v5720
        %v5722 = vpop.f32.mrf.mxu0
        %v5723 = vadd.f32 %v5644, %v5722
        %5724 = vmatmul.bf16.gmra.mxu0 %v1017
        %v5725 = vpop.f32.mrf.mxu0
        %v5726 = vadd.f32 %v5647, %v5725
        %v5727 = vpop.f32.mrf.mxu0
        %v5728 = vadd.f32 %v5649, %v5727
        %5729 = vmatmul.bf16.gmra.mxu0 %v1023
        %v5730 = vpop.f32.mrf.mxu0
        %v5731 = vadd.f32 %v5652, %v5730
        %v5732 = vpop.f32.mrf.mxu0
        %v5733 = vadd.f32 %v5654, %v5732
        %5734 = vmatmul.bf16.gmra.mxu0 %v1029
        %v5735 = vpop.f32.mrf.mxu0
        %v5736 = vadd.f32 %v5657, %v5735
        %v5737 = vpop.f32.mrf.mxu0
        %v5738 = vadd.f32 %v5659, %v5737
        %5739 = vmatmul.bf16.gmra.mxu0 %v1035
        %v5740 = vpop.f32.mrf.mxu0
        %v5741 = vadd.f32 %v5662, %v5740
        %v5742 = vpop.f32.mrf.mxu0
        %v5743 = vadd.f32 %v5664, %v5742
        %5744 = vdwg.mxu0
        %5745 = vmatpush.bf16.msra.mxu0 %v2256
        %5746 = vmatpush.bf16.msra.mxu0 %v2249
        %5747 = vmatpush.bf16.msra.mxu0 %v2242
        %5748 = vmatpush.bf16.msra.mxu0 %v2235
        %5749 = vmatpush.bf16.msra.mxu0 %v2228
        %5750 = vmatpush.bf16.msra.mxu0 %v2221
        %5751 = vmatpush.bf16.msra.mxu0 %v2214
        %5752 = vmatpush.bf16.msra.mxu0 %v2207
        %5753 = vmatmul.bf16.gmra.mxu0 %v958
        %v5754 = vpop.f32.mrf.mxu0
        %v5755 = vadd.f32 %v5676, %v5754
        %v5756 = vpop.f32.mrf.mxu0
        %v5757 = vadd.f32 %v5678, %v5756
        %5758 = vmatmul.bf16.gmra.mxu0 %v964
        %v5759 = vpop.f32.mrf.mxu0
        %v5760 = vadd.f32 %v5681, %v5759
        %v5761 = vpop.f32.mrf.mxu0
        %v5762 = vadd.f32 %v5683, %v5761
        %5763 = vmatmul.bf16.gmra.mxu0 %v970
        %v5764 = vpop.f32.mrf.mxu0
        %v5765 = vadd.f32 %v5686, %v5764
        %v5766 = vpop.f32.mrf.mxu0
        %v5767 = vadd.f32 %v5688, %v5766
        %5768 = vmatmul.bf16.gmra.mxu0 %v976
        %v5769 = vpop.f32.mrf.mxu0
        %v5770 = vadd.f32 %v5691, %v5769
        %v5771 = vpop.f32.mrf.mxu0
        %v5772 = vadd.f32 %v5693, %v5771
        %5773 = vmatmul.bf16.gmra.mxu0 %v982
        %v5774 = vpop.f32.mrf.mxu0
        %v5775 = vadd.f32 %v5696, %v5774
        %v5776 = vpop.f32.mrf.mxu0
        %v5777 = vadd.f32 %v5698, %v5776
        %5778 = vmatmul.bf16.gmra.mxu0 %v988
        %v5779 = vpop.f32.mrf.mxu0
        %v5780 = vadd.f32 %v5701, %v5779
        %v5781 = vpop.f32.mrf.mxu0
        %v5782 = vadd.f32 %v5703, %v5781
        %5783 = vmatmul.bf16.gmra.mxu0 %v994
        %v5784 = vpop.f32.mrf.mxu0
        %v5785 = vadd.f32 %v5706, %v5784
        %v5786 = vpop.f32.mrf.mxu0
        %v5787 = vadd.f32 %v5708, %v5786
        %5788 = vmatmul.bf16.gmra.mxu0 %v1000
        %v5789 = vpop.f32.mrf.mxu0
        %v5790 = vadd.f32 %v5711, %v5789
        %v5791 = vpop.f32.mrf.mxu0
        %v5792 = vadd.f32 %v5713, %v5791
        %5793 = vmatmul.bf16.gmra.mxu0 %v1006
        %v5794 = vpop.f32.mrf.mxu0
        %v5795 = vadd.f32 %v5716, %v5794
        %v5796 = vpop.f32.mrf.mxu0
        %v5797 = vadd.f32 %v5718, %v5796
        %5798 = vmatmul.bf16.gmra.mxu0 %v1012
        %v5799 = vpop.f32.mrf.mxu0
        %v5800 = vadd.f32 %v5721, %v5799
        %v5801 = vpop.f32.mrf.mxu0
        %v5802 = vadd.f32 %v5723, %v5801
        %5803 = vmatmul.bf16.gmra.mxu0 %v1018
        %v5804 = vpop.f32.mrf.mxu0
        %v5805 = vadd.f32 %v5726, %v5804
        %v5806 = vpop.f32.mrf.mxu0
        %v5807 = vadd.f32 %v5728, %v5806
        %5808 = vmatmul.bf16.gmra.mxu0 %v1024
        %v5809 = vpop.f32.mrf.mxu0
        %v5810 = vadd.f32 %v5731, %v5809
        %v5811 = vpop.f32.mrf.mxu0
        %v5812 = vadd.f32 %v5733, %v5811
        %5813 = vmatmul.bf16.gmra.mxu0 %v1030
        %v5814 = vpop.f32.mrf.mxu0
        %v5815 = vadd.f32 %v5736, %v5814
        %v5816 = vpop.f32.mrf.mxu0
        %v5817 = vadd.f32 %v5738, %v5816
        %5818 = vmatmul.bf16.gmra.mxu0 %v1036
        %v5819 = vpop.f32.mrf.mxu0
        %v5820 = vadd.f32 %v5741, %v5819
        %v5821 = vpop.f32.mrf.mxu0
        %v5822 = vadd.f32 %v5743, %v5821
        %5823 = vdwg.mxu0
        %5824 = vmatpush.bf16.msra.mxu0 %v2312
        %5825 = vmatpush.bf16.msra.mxu0 %v2305
        %5826 = vmatpush.bf16.msra.mxu0 %v2298
        %5827 = vmatpush.bf16.msra.mxu0 %v2291
        %5828 = vmatpush.bf16.msra.mxu0 %v2284
        %5829 = vmatpush.bf16.msra.mxu0 %v2277
        %5830 = vmatpush.bf16.msra.mxu0 %v2270
        %5831 = vmatpush.bf16.msra.mxu0 %v2263
        %5832 = vmatmul.bf16.gmra.mxu0 %v959
        %v5833 = vpop.f32.mrf.mxu0
        %v5834 = vadd.f32 %v5755, %v5833
        %v5835 = vpop.f32.mrf.mxu0
        %v5836 = vadd.f32 %v5757, %v5835
        %5837 = vmatmul.bf16.gmra.mxu0 %v965
        %v5838 = vpop.f32.mrf.mxu0
        %v5839 = vadd.f32 %v5760, %v5838
        %v5840 = vpop.f32.mrf.mxu0
        %v5841 = vadd.f32 %v5762, %v5840
        %5842 = vmatmul.bf16.gmra.mxu0 %v971
        %v5843 = vpop.f32.mrf.mxu0
        %v5844 = vadd.f32 %v5765, %v5843
        %v5845 = vpop.f32.mrf.mxu0
        %v5846 = vadd.f32 %v5767, %v5845
        %5847 = vmatmul.bf16.gmra.mxu0 %v977
        %v5848 = vpop.f32.mrf.mxu0
        %v5849 = vadd.f32 %v5770, %v5848
        %v5850 = vpop.f32.mrf.mxu0
        %v5851 = vadd.f32 %v5772, %v5850
        %5852 = vmatmul.bf16.gmra.mxu0 %v983
        %v5853 = vpop.f32.mrf.mxu0
        %v5854 = vadd.f32 %v5775, %v5853
        %v5855 = vpop.f32.mrf.mxu0
        %v5856 = vadd.f32 %v5777, %v5855
        %5857 = vmatmul.bf16.gmra.mxu0 %v989
        %v5858 = vpop.f32.mrf.mxu0
        %v5859 = vadd.f32 %v5780, %v5858
        %v5860 = vpop.f32.mrf.mxu0
        %v5861 = vadd.f32 %v5782, %v5860
        %5862 = vmatmul.bf16.gmra.mxu0 %v995
        %v5863 = vpop.f32.mrf.mxu0
        %v5864 = vadd.f32 %v5785, %v5863
        %v5865 = vpop.f32.mrf.mxu0
        %v5866 = vadd.f32 %v5787, %v5865
        %5867 = vmatmul.bf16.gmra.mxu0 %v1001
        %v5868 = vpop.f32.mrf.mxu0
        %v5869 = vadd.f32 %v5790, %v5868
        %v5870 = vpop.f32.mrf.mxu0
        %v5871 = vadd.f32 %v5792, %v5870
        %5872 = vmatmul.bf16.gmra.mxu0 %v1007
        %v5873 = vpop.f32.mrf.mxu0
        %v5874 = vadd.f32 %v5795, %v5873
        %v5875 = vpop.f32.mrf.mxu0
        %v5876 = vadd.f32 %v5797, %v5875
        %5877 = vmatmul.bf16.gmra.mxu0 %v1013
        %v5878 = vpop.f32.mrf.mxu0
        %v5879 = vadd.f32 %v5800, %v5878
        %v5880 = vpop.f32.mrf.mxu0
        %v5881 = vadd.f32 %v5802, %v5880
        %5882 = vmatmul.bf16.gmra.mxu0 %v1019
        %v5883 = vpop.f32.mrf.mxu0
        %v5884 = vadd.f32 %v5805, %v5883
        %v5885 = vpop.f32.mrf.mxu0
        %v5886 = vadd.f32 %v5807, %v5885
        %5887 = vmatmul.bf16.gmra.mxu0 %v1025
        %v5888 = vpop.f32.mrf.mxu0
        %v5889 = vadd.f32 %v5810, %v5888
        %v5890 = vpop.f32.mrf.mxu0
        %v5891 = vadd.f32 %v5812, %v5890
        %5892 = vmatmul.bf16.gmra.mxu0 %v1031
        %v5893 = vpop.f32.mrf.mxu0
        %v5894 = vadd.f32 %v5815, %v5893
        %v5895 = vpop.f32.mrf.mxu0
        %v5896 = vadd.f32 %v5817, %v5895
        %5897 = vmatmul.bf16.gmra.mxu0 %v1037
        %v5898 = vpop.f32.mrf.mxu0
        %v5899 = vadd.f32 %v5820, %v5898
        %v5900 = vpop.f32.mrf.mxu0
        %v5901 = vadd.f32 %v5822, %v5900
        %5902 = vdwg.mxu0
        %5903 = vmatpush.bf16.msra.mxu0 0
        %5904 = vmatpush.bf16.msra.mxu0 0
        %5905 = vmatpush.bf16.msra.mxu0 0
        %5906 = vmatpush.bf16.msra.mxu0 0
        %5907 = vmatpush.bf16.msra.mxu0 0
        %5908 = vmatpush.bf16.msra.mxu0 0
        %5909 = vmatpush.bf16.msra.mxu0 %v2326
        %5910 = vmatpush.bf16.msra.mxu0 %v2319
        %5911 = vmatmul.bf16.gmra.mxu0 %v2623
        %v5912 = vpop.f32.mrf.mxu0
        %v5913 = vadd.f32 %v5834, %v5912
        %v5914 = vpop.f32.mrf.mxu0
        %v5915 = vadd.f32 %v5836, %v5914
        %5916 = vmatmul.bf16.gmra.mxu0 %v2626
        %v5917 = vpop.f32.mrf.mxu0
        %v5918 = vadd.f32 %v5839, %v5917
        %v5919 = vpop.f32.mrf.mxu0
        %v5920 = vadd.f32 %v5841, %v5919
        %5921 = vmatmul.bf16.gmra.mxu0 %v2629
        %v5922 = vpop.f32.mrf.mxu0
        %v5923 = vadd.f32 %v5844, %v5922
        %v5924 = vpop.f32.mrf.mxu0
        %v5925 = vadd.f32 %v5846, %v5924
        %5926 = vmatmul.bf16.gmra.mxu0 %v2632
        %v5927 = vpop.f32.mrf.mxu0
        %v5928 = vadd.f32 %v5849, %v5927
        %v5929 = vpop.f32.mrf.mxu0
        %v5930 = vadd.f32 %v5851, %v5929
        %5931 = vmatmul.bf16.gmra.mxu0 %v2635
        %v5932 = vpop.f32.mrf.mxu0
        %v5933 = vadd.f32 %v5854, %v5932
        %v5934 = vpop.f32.mrf.mxu0
        %v5935 = vadd.f32 %v5856, %v5934
        %5936 = vmatmul.bf16.gmra.mxu0 %v2638
        %v5937 = vpop.f32.mrf.mxu0
        %v5938 = vadd.f32 %v5859, %v5937
        %v5939 = vpop.f32.mrf.mxu0
        %v5940 = vadd.f32 %v5861, %v5939
        %5941 = vmatmul.bf16.gmra.mxu0 %v2641
        %v5942 = vpop.f32.mrf.mxu0
        %v5943 = vadd.f32 %v5864, %v5942
        %v5944 = vpop.f32.mrf.mxu0
        %v5945 = vadd.f32 %v5866, %v5944
        %5946 = vmatmul.bf16.gmra.mxu0 %v2644
        %v5947 = vpop.f32.mrf.mxu0
        %v5948 = vadd.f32 %v5869, %v5947
        %v5949 = vpop.f32.mrf.mxu0
        %v5950 = vadd.f32 %v5871, %v5949
        %5951 = vmatmul.bf16.gmra.mxu0 %v2647
        %v5952 = vpop.f32.mrf.mxu0
        %v5953 = vadd.f32 %v5874, %v5952
        %v5954 = vpop.f32.mrf.mxu0
        %v5955 = vadd.f32 %v5876, %v5954
        %5956 = vmatmul.bf16.gmra.mxu0 %v2650
        %v5957 = vpop.f32.mrf.mxu0
        %v5958 = vadd.f32 %v5879, %v5957
        %v5959 = vpop.f32.mrf.mxu0
        %v5960 = vadd.f32 %v5881, %v5959
        %5961 = vmatmul.bf16.gmra.mxu0 %v2653
        %v5962 = vpop.f32.mrf.mxu0
        %v5963 = vadd.f32 %v5884, %v5962
        %v5964 = vpop.f32.mrf.mxu0
        %v5965 = vadd.f32 %v5886, %v5964
        %5966 = vmatmul.bf16.gmra.mxu0 %v2656
        %v5967 = vpop.f32.mrf.mxu0
        %v5968 = vadd.f32 %v5889, %v5967
        %v5969 = vpop.f32.mrf.mxu0
        %v5970 = vadd.f32 %v5891, %v5969
        %5971 = vmatmul.bf16.gmra.mxu0 %v2659
        %v5972 = vpop.f32.mrf.mxu0
        %v5973 = vadd.f32 %v5894, %v5972
        %v5974 = vpop.f32.mrf.mxu0
        %v5975 = vadd.f32 %v5896, %v5974
        %5976 = vmatmul.bf16.gmra.mxu0 %v2662
        %v5977 = vpop.f32.mrf.mxu0
        %v5978 = vadd.f32 %v5899, %v5977
        %v5979 = vpop.f32.mrf.mxu0
        %v5980 = vadd.f32 %v5901, %v5979
        %5981 = vdwg.mxu0
        %v5982 = vadd.f32 %v3069, %v3543
        %v5983 = vadd.f32 %v5982, %v4017
        %v5984 = vadd.f32 %v5983, %v4491
        %v5985 = vadd.f32 %v5984, %v4965
        %v5986 = vadd.f32 %v5985, %v5439
        %vm5987 = vcmask 130048
        %v5988 = vsel %vm5987, %v5913, 0.0
        %v5989 = vadd.f32 %v5986, %v5988
        %5990 = vadd.xlane.f32.xlu0 %v5989
        %v5991 = vpop.xlane.xlu0 %5990
        %v5992 = vadd.f32 %v3071, %v3545
        %v5993 = vadd.f32 %v5992, %v4019
        %v5994 = vadd.f32 %v5993, %v4493
        %v5995 = vadd.f32 %v5994, %v4967
        %v5996 = vadd.f32 %v5995, %v5441
        %v5997 = vsel %vm5987, %v5915, 0.0
        %v5998 = vadd.f32 %v5996, %v5997
        %5999 = vadd.xlane.f32.xlu0 %v5998
        %v6000 = vpop.xlane.xlu0 %5999
        %v6001 = vadd.f32 %v3074, %v3548
        %v6002 = vadd.f32 %v6001, %v4022
        %v6003 = vadd.f32 %v6002, %v4496
        %v6004 = vadd.f32 %v6003, %v4970
        %v6005 = vadd.f32 %v6004, %v5444
        %v6006 = vsel %vm5987, %v5918, 0.0
        %v6007 = vadd.f32 %v6005, %v6006
        %6008 = vadd.xlane.f32.xlu0 %v6007
        %v6009 = vpop.xlane.xlu0 %6008
        %v6010 = vadd.f32 %v3076, %v3550
        %v6011 = vadd.f32 %v6010, %v4024
        %v6012 = vadd.f32 %v6011, %v4498
        %v6013 = vadd.f32 %v6012, %v4972
        %v6014 = vadd.f32 %v6013, %v5446
        %v6015 = vsel %vm5987, %v5920, 0.0
        %v6016 = vadd.f32 %v6014, %v6015
        %6017 = vadd.xlane.f32.xlu0 %v6016
        %v6018 = vpop.xlane.xlu0 %6017
        %v6019 = vadd.f32 %v3079, %v3553
        %v6020 = vadd.f32 %v6019, %v4027
        %v6021 = vadd.f32 %v6020, %v4501
        %v6022 = vadd.f32 %v6021, %v4975
        %v6023 = vadd.f32 %v6022, %v5449
        %v6024 = vsel %vm5987, %v5923, 0.0
        %v6025 = vadd.f32 %v6023, %v6024
        %6026 = vadd.xlane.f32.xlu0 %v6025
        %v6027 = vpop.xlane.xlu0 %6026
        %v6028 = vadd.f32 %v3081, %v3555
        %v6029 = vadd.f32 %v6028, %v4029
        %v6030 = vadd.f32 %v6029, %v4503
        %v6031 = vadd.f32 %v6030, %v4977
        %v6032 = vadd.f32 %v6031, %v5451
        %v6033 = vsel %vm5987, %v5925, 0.0
        %v6034 = vadd.f32 %v6032, %v6033
        %6035 = vadd.xlane.f32.xlu0 %v6034
        %v6036 = vpop.xlane.xlu0 %6035
        %v6037 = vadd.f32 %v3084, %v3558
        %v6038 = vadd.f32 %v6037, %v4032
        %v6039 = vadd.f32 %v6038, %v4506
        %v6040 = vadd.f32 %v6039, %v4980
        %v6041 = vadd.f32 %v6040, %v5454
        %v6042 = vsel %vm5987, %v5928, 0.0
        %v6043 = vadd.f32 %v6041, %v6042
        %6044 = vadd.xlane.f32.xlu0 %v6043
        %v6045 = vpop.xlane.xlu0 %6044
        %v6046 = vadd.f32 %v3086, %v3560
        %v6047 = vadd.f32 %v6046, %v4034
        %v6048 = vadd.f32 %v6047, %v4508
        %v6049 = vadd.f32 %v6048, %v4982
        %v6050 = vadd.f32 %v6049, %v5456
        %v6051 = vsel %vm5987, %v5930, 0.0
        %v6052 = vadd.f32 %v6050, %v6051
        %6053 = vadd.xlane.f32.xlu0 %v6052
        %v6054 = vpop.xlane.xlu0 %6053
        %v6055 = vadd.f32 %v3089, %v3563
        %v6056 = vadd.f32 %v6055, %v4037
        %v6057 = vadd.f32 %v6056, %v4511
        %v6058 = vadd.f32 %v6057, %v4985
        %v6059 = vadd.f32 %v6058, %v5459
        %v6060 = vsel %vm5987, %v5933, 0.0
        %v6061 = vadd.f32 %v6059, %v6060
        %6062 = vadd.xlane.f32.xlu0 %v6061
        %v6063 = vpop.xlane.xlu0 %6062
        %v6064 = vadd.f32 %v3091, %v3565
        %v6065 = vadd.f32 %v6064, %v4039
        %v6066 = vadd.f32 %v6065, %v4513
        %v6067 = vadd.f32 %v6066, %v4987
        %v6068 = vadd.f32 %v6067, %v5461
        %v6069 = vsel %vm5987, %v5935, 0.0
        %v6070 = vadd.f32 %v6068, %v6069
        %6071 = vadd.xlane.f32.xlu0 %v6070
        %v6072 = vpop.xlane.xlu0 %6071
        %v6073 = vadd.f32 %v3094, %v3568
        %v6074 = vadd.f32 %v6073, %v4042
        %v6075 = vadd.f32 %v6074, %v4516
        %v6076 = vadd.f32 %v6075, %v4990
        %v6077 = vadd.f32 %v6076, %v5464
        %v6078 = vsel %vm5987, %v5938, 0.0
        %v6079 = vadd.f32 %v6077, %v6078
        %6080 = vadd.xlane.f32.xlu0 %v6079
        %v6081 = vpop.xlane.xlu0 %6080
        %v6082 = vadd.f32 %v3096, %v3570
        %v6083 = vadd.f32 %v6082, %v4044
        %v6084 = vadd.f32 %v6083, %v4518
        %v6085 = vadd.f32 %v6084, %v4992
        %v6086 = vadd.f32 %v6085, %v5466
        %v6087 = vsel %vm5987, %v5940, 0.0
        %v6088 = vadd.f32 %v6086, %v6087
        %6089 = vadd.xlane.f32.xlu0 %v6088
        %v6090 = vpop.xlane.xlu0 %6089
        %v6091 = vadd.f32 %v3099, %v3573
        %v6092 = vadd.f32 %v6091, %v4047
        %v6093 = vadd.f32 %v6092, %v4521
        %v6094 = vadd.f32 %v6093, %v4995
        %v6095 = vadd.f32 %v6094, %v5469
        %v6096 = vsel %vm5987, %v5943, 0.0
        %v6097 = vadd.f32 %v6095, %v6096
        %6098 = vadd.xlane.f32.xlu0 %v6097
        %v6099 = vpop.xlane.xlu0 %6098
        %v6100 = vadd.f32 %v3101, %v3575
        %v6101 = vadd.f32 %v6100, %v4049
        %v6102 = vadd.f32 %v6101, %v4523
        %v6103 = vadd.f32 %v6102, %v4997
        %v6104 = vadd.f32 %v6103, %v5471
        %v6105 = vsel %vm5987, %v5945, 0.0
        %v6106 = vadd.f32 %v6104, %v6105
        %6107 = vadd.xlane.f32.xlu0 %v6106
        %v6108 = vpop.xlane.xlu0 %6107
        %v6109 = vadd.f32 %v3104, %v3578
        %v6110 = vadd.f32 %v6109, %v4052
        %v6111 = vadd.f32 %v6110, %v4526
        %v6112 = vadd.f32 %v6111, %v5000
        %v6113 = vadd.f32 %v6112, %v5474
        %v6114 = vsel %vm5987, %v5948, 0.0
        %v6115 = vadd.f32 %v6113, %v6114
        %6116 = vadd.xlane.f32.xlu0 %v6115
        %v6117 = vpop.xlane.xlu0 %6116
        %v6118 = vadd.f32 %v3106, %v3580
        %v6119 = vadd.f32 %v6118, %v4054
        %v6120 = vadd.f32 %v6119, %v4528
        %v6121 = vadd.f32 %v6120, %v5002
        %v6122 = vadd.f32 %v6121, %v5476
        %v6123 = vsel %vm5987, %v5950, 0.0
        %v6124 = vadd.f32 %v6122, %v6123
        %6125 = vadd.xlane.f32.xlu0 %v6124
        %v6126 = vpop.xlane.xlu0 %6125
        %v6127 = vadd.f32 %v3109, %v3583
        %v6128 = vadd.f32 %v6127, %v4057
        %v6129 = vadd.f32 %v6128, %v4531
        %v6130 = vadd.f32 %v6129, %v5005
        %v6131 = vadd.f32 %v6130, %v5479
        %v6132 = vsel %vm5987, %v5953, 0.0
        %v6133 = vadd.f32 %v6131, %v6132
        %6134 = vadd.xlane.f32.xlu0 %v6133
        %v6135 = vpop.xlane.xlu0 %6134
        %v6136 = vadd.f32 %v3111, %v3585
        %v6137 = vadd.f32 %v6136, %v4059
        %v6138 = vadd.f32 %v6137, %v4533
        %v6139 = vadd.f32 %v6138, %v5007
        %v6140 = vadd.f32 %v6139, %v5481
        %v6141 = vsel %vm5987, %v5955, 0.0
        %v6142 = vadd.f32 %v6140, %v6141
        %6143 = vadd.xlane.f32.xlu0 %v6142
        %v6144 = vpop.xlane.xlu0 %6143
        %v6145 = vadd.f32 %v3114, %v3588
        %v6146 = vadd.f32 %v6145, %v4062
        %v6147 = vadd.f32 %v6146, %v4536
        %v6148 = vadd.f32 %v6147, %v5010
        %v6149 = vadd.f32 %v6148, %v5484
        %v6150 = vsel %vm5987, %v5958, 0.0
        %v6151 = vadd.f32 %v6149, %v6150
        %6152 = vadd.xlane.f32.xlu0 %v6151
        %v6153 = vpop.xlane.xlu0 %6152
        %v6154 = vadd.f32 %v3116, %v3590
        %v6155 = vadd.f32 %v6154, %v4064
        %v6156 = vadd.f32 %v6155, %v4538
        %v6157 = vadd.f32 %v6156, %v5012
        %v6158 = vadd.f32 %v6157, %v5486
        %v6159 = vsel %vm5987, %v5960, 0.0
        %v6160 = vadd.f32 %v6158, %v6159
        %6161 = vadd.xlane.f32.xlu0 %v6160
        %v6162 = vpop.xlane.xlu0 %6161
        %v6163 = vadd.f32 %v3119, %v3593
        %v6164 = vadd.f32 %v6163, %v4067
        %v6165 = vadd.f32 %v6164, %v4541
        %v6166 = vadd.f32 %v6165, %v5015
        %v6167 = vadd.f32 %v6166, %v5489
        %v6168 = vsel %vm5987, %v5963, 0.0
        %v6169 = vadd.f32 %v6167, %v6168
        %6170 = vadd.xlane.f32.xlu0 %v6169
        %v6171 = vpop.xlane.xlu0 %6170
        %v6172 = vadd.f32 %v3121, %v3595
        %v6173 = vadd.f32 %v6172, %v4069
        %v6174 = vadd.f32 %v6173, %v4543
        %v6175 = vadd.f32 %v6174, %v5017
        %v6176 = vadd.f32 %v6175, %v5491
        %v6177 = vsel %vm5987, %v5965, 0.0
        %v6178 = vadd.f32 %v6176, %v6177
        %6179 = vadd.xlane.f32.xlu0 %v6178
        %v6180 = vpop.xlane.xlu0 %6179
        %v6181 = vadd.f32 %v3124, %v3598
        %v6182 = vadd.f32 %v6181, %v4072
        %v6183 = vadd.f32 %v6182, %v4546
        %v6184 = vadd.f32 %v6183, %v5020
        %v6185 = vadd.f32 %v6184, %v5494
        %v6186 = vsel %vm5987, %v5968, 0.0
        %v6187 = vadd.f32 %v6185, %v6186
        %6188 = vadd.xlane.f32.xlu0 %v6187
        %v6189 = vpop.xlane.xlu0 %6188
        %v6190 = vadd.f32 %v3126, %v3600
        %v6191 = vadd.f32 %v6190, %v4074
        %v6192 = vadd.f32 %v6191, %v4548
        %v6193 = vadd.f32 %v6192, %v5022
        %v6194 = vadd.f32 %v6193, %v5496
        %v6195 = vsel %vm5987, %v5970, 0.0
        %v6196 = vadd.f32 %v6194, %v6195
        %6197 = vadd.xlane.f32.xlu0 %v6196
        %v6198 = vpop.xlane.xlu0 %6197
        %v6199 = vadd.f32 %v3129, %v3603
        %v6200 = vadd.f32 %v6199, %v4077
        %v6201 = vadd.f32 %v6200, %v4551
        %v6202 = vadd.f32 %v6201, %v5025
        %v6203 = vadd.f32 %v6202, %v5499
        %v6204 = vsel %vm5987, %v5973, 0.0
        %v6205 = vadd.f32 %v6203, %v6204
        %6206 = vadd.xlane.f32.xlu0 %v6205
        %v6207 = vpop.xlane.xlu0 %6206
        %v6208 = vadd.f32 %v3131, %v3605
        %v6209 = vadd.f32 %v6208, %v4079
        %v6210 = vadd.f32 %v6209, %v4553
        %v6211 = vadd.f32 %v6210, %v5027
        %v6212 = vadd.f32 %v6211, %v5501
        %v6213 = vsel %vm5987, %v5975, 0.0
        %v6214 = vadd.f32 %v6212, %v6213
        %6215 = vadd.xlane.f32.xlu0 %v6214
        %v6216 = vpop.xlane.xlu0 %6215
        %v6217 = vadd.f32 %v3134, %v3608
        %v6218 = vadd.f32 %v6217, %v4082
        %v6219 = vadd.f32 %v6218, %v4556
        %v6220 = vadd.f32 %v6219, %v5030
        %v6221 = vadd.f32 %v6220, %v5504
        %v6222 = vsel %vm5987, %v5978, 0.0
        %v6223 = vadd.f32 %v6221, %v6222
        %6224 = vadd.xlane.f32.xlu0 %v6223
        %v6225 = vpop.xlane.xlu0 %6224
        %v6226 = vadd.f32 %v3136, %v3610
        %v6227 = vadd.f32 %v6226, %v4084
        %v6228 = vadd.f32 %v6227, %v4558
        %v6229 = vadd.f32 %v6228, %v5032
        %v6230 = vadd.f32 %v6229, %v5506
        %v6231 = vsel %vm5987, %v5980, 0.0
        %v6232 = vadd.f32 %v6230, %v6231
        %6233 = vadd.xlane.f32.xlu0 %v6232
        %v6234 = vpop.xlane.xlu0 %6233
        %v6235 = vmul.f32 %v3069, %v3069
        %v6236 = vmul.f32 %v3543, %v3543
        %v6237 = vmul.f32 %v4017, %v4017
        %v6238 = vmul.f32 %v4491, %v4491
        %v6239 = vmul.f32 %v4965, %v4965
        %v6240 = vmul.f32 %v5439, %v5439
        %v6241 = vmul.f32 %v5913, %v5913
        %v6242 = vmul.f32 %v3071, %v3071
        %v6243 = vmul.f32 %v3545, %v3545
        %v6244 = vmul.f32 %v4019, %v4019
        %v6245 = vmul.f32 %v4493, %v4493
        %v6246 = vmul.f32 %v4967, %v4967
        %v6247 = vmul.f32 %v5441, %v5441
        %v6248 = vmul.f32 %v5915, %v5915
        %v6249 = vmul.f32 %v3074, %v3074
        %v6250 = vmul.f32 %v3548, %v3548
        %v6251 = vmul.f32 %v4022, %v4022
        %v6252 = vmul.f32 %v4496, %v4496
        %v6253 = vmul.f32 %v4970, %v4970
        %v6254 = vmul.f32 %v5444, %v5444
        %v6255 = vmul.f32 %v5918, %v5918
        %v6256 = vmul.f32 %v3076, %v3076
        %v6257 = vmul.f32 %v3550, %v3550
        %v6258 = vmul.f32 %v4024, %v4024
        %v6259 = vmul.f32 %v4498, %v4498
        %v6260 = vmul.f32 %v4972, %v4972
        %v6261 = vmul.f32 %v5446, %v5446
        %v6262 = vmul.f32 %v5920, %v5920
        %v6263 = vmul.f32 %v3079, %v3079
        %v6264 = vmul.f32 %v3553, %v3553
        %v6265 = vmul.f32 %v4027, %v4027
        %v6266 = vmul.f32 %v4501, %v4501
        %v6267 = vmul.f32 %v4975, %v4975
        %v6268 = vmul.f32 %v5449, %v5449
        %v6269 = vmul.f32 %v5923, %v5923
        %v6270 = vmul.f32 %v3081, %v3081
        %v6271 = vmul.f32 %v3555, %v3555
        %v6272 = vmul.f32 %v4029, %v4029
        %v6273 = vmul.f32 %v4503, %v4503
        %v6274 = vmul.f32 %v4977, %v4977
        %v6275 = vmul.f32 %v5451, %v5451
        %v6276 = vmul.f32 %v5925, %v5925
        %v6277 = vmul.f32 %v3084, %v3084
        %v6278 = vmul.f32 %v3558, %v3558
        %v6279 = vmul.f32 %v4032, %v4032
        %v6280 = vmul.f32 %v4506, %v4506
        %v6281 = vmul.f32 %v4980, %v4980
        %v6282 = vmul.f32 %v5454, %v5454
        %v6283 = vmul.f32 %v5928, %v5928
        %v6284 = vmul.f32 %v3086, %v3086
        %v6285 = vmul.f32 %v3560, %v3560
        %v6286 = vmul.f32 %v4034, %v4034
        %v6287 = vmul.f32 %v4508, %v4508
        %v6288 = vmul.f32 %v4982, %v4982
        %v6289 = vmul.f32 %v5456, %v5456
        %v6290 = vmul.f32 %v5930, %v5930
        %v6291 = vmul.f32 %v3089, %v3089
        %v6292 = vmul.f32 %v3563, %v3563
        %v6293 = vmul.f32 %v4037, %v4037
        %v6294 = vmul.f32 %v4511, %v4511
        %v6295 = vmul.f32 %v4985, %v4985
        %v6296 = vmul.f32 %v5459, %v5459
        %v6297 = vmul.f32 %v5933, %v5933
        %v6298 = vmul.f32 %v3091, %v3091
        %v6299 = vmul.f32 %v3565, %v3565
        %v6300 = vmul.f32 %v4039, %v4039
        %v6301 = vmul.f32 %v4513, %v4513
        %v6302 = vmul.f32 %v4987, %v4987
        %v6303 = vmul.f32 %v5461, %v5461
        %v6304 = vmul.f32 %v5935, %v5935
        %v6305 = vmul.f32 %v3094, %v3094
        %v6306 = vmul.f32 %v3568, %v3568
        %v6307 = vmul.f32 %v4042, %v4042
        %v6308 = vmul.f32 %v4516, %v4516
        %v6309 = vmul.f32 %v4990, %v4990
        %v6310 = vmul.f32 %v5464, %v5464
        %v6311 = vmul.f32 %v5938, %v5938
        %v6312 = vmul.f32 %v3096, %v3096
        %v6313 = vmul.f32 %v3570, %v3570
        %v6314 = vmul.f32 %v4044, %v4044
        %v6315 = vmul.f32 %v4518, %v4518
        %v6316 = vmul.f32 %v4992, %v4992
        %v6317 = vmul.f32 %v5466, %v5466
        %v6318 = vmul.f32 %v5940, %v5940
        %v6319 = vmul.f32 %v3099, %v3099
        %v6320 = vmul.f32 %v3573, %v3573
        %v6321 = vmul.f32 %v4047, %v4047
        %v6322 = vmul.f32 %v4521, %v4521
        %v6323 = vmul.f32 %v4995, %v4995
        %v6324 = vmul.f32 %v5469, %v5469
        %v6325 = vmul.f32 %v5943, %v5943
        %v6326 = vmul.f32 %v3101, %v3101
        %v6327 = vmul.f32 %v3575, %v3575
        %v6328 = vmul.f32 %v4049, %v4049
        %v6329 = vmul.f32 %v4523, %v4523
        %v6330 = vmul.f32 %v4997, %v4997
        %v6331 = vmul.f32 %v5471, %v5471
        %v6332 = vmul.f32 %v5945, %v5945
        %v6333 = vmul.f32 %v3104, %v3104
        %v6334 = vmul.f32 %v3578, %v3578
        %v6335 = vmul.f32 %v4052, %v4052
        %v6336 = vmul.f32 %v4526, %v4526
        %v6337 = vmul.f32 %v5000, %v5000
        %v6338 = vmul.f32 %v5474, %v5474
        %v6339 = vmul.f32 %v5948, %v5948
        %v6340 = vmul.f32 %v3106, %v3106
        %v6341 = vmul.f32 %v3580, %v3580
        %v6342 = vmul.f32 %v4054, %v4054
        %v6343 = vmul.f32 %v4528, %v4528
        %v6344 = vmul.f32 %v5002, %v5002
        %v6345 = vmul.f32 %v5476, %v5476
        %v6346 = vmul.f32 %v5950, %v5950
        %v6347 = vmul.f32 %v3109, %v3109
        %v6348 = vmul.f32 %v3583, %v3583
        %v6349 = vmul.f32 %v4057, %v4057
        %v6350 = vmul.f32 %v4531, %v4531
        %v6351 = vmul.f32 %v5005, %v5005
        %v6352 = vmul.f32 %v5479, %v5479
        %v6353 = vmul.f32 %v5953, %v5953
        %v6354 = vmul.f32 %v3111, %v3111
        %v6355 = vmul.f32 %v3585, %v3585
        %v6356 = vmul.f32 %v4059, %v4059
        %v6357 = vmul.f32 %v4533, %v4533
        %v6358 = vmul.f32 %v5007, %v5007
        %v6359 = vmul.f32 %v5481, %v5481
        %v6360 = vmul.f32 %v5955, %v5955
        %v6361 = vmul.f32 %v3114, %v3114
        %v6362 = vmul.f32 %v3588, %v3588
        %v6363 = vmul.f32 %v4062, %v4062
        %v6364 = vmul.f32 %v4536, %v4536
        %v6365 = vmul.f32 %v5010, %v5010
        %v6366 = vmul.f32 %v5484, %v5484
        %v6367 = vmul.f32 %v5958, %v5958
        %v6368 = vmul.f32 %v3116, %v3116
        %v6369 = vmul.f32 %v3590, %v3590
        %v6370 = vmul.f32 %v4064, %v4064
        %v6371 = vmul.f32 %v4538, %v4538
        %v6372 = vmul.f32 %v5012, %v5012
        %v6373 = vmul.f32 %v5486, %v5486
        %v6374 = vmul.f32 %v5960, %v5960
        %v6375 = vmul.f32 %v3119, %v3119
        %v6376 = vmul.f32 %v3593, %v3593
        %v6377 = vmul.f32 %v4067, %v4067
        %v6378 = vmul.f32 %v4541, %v4541
        %v6379 = vmul.f32 %v5015, %v5015
        %v6380 = vmul.f32 %v5489, %v5489
        %v6381 = vmul.f32 %v5963, %v5963
        %v6382 = vmul.f32 %v3121, %v3121
        %v6383 = vmul.f32 %v3595, %v3595
        %v6384 = vmul.f32 %v4069, %v4069
        %v6385 = vmul.f32 %v4543, %v4543
        %v6386 = vmul.f32 %v5017, %v5017
        %v6387 = vmul.f32 %v5491, %v5491
        %v6388 = vmul.f32 %v5965, %v5965
        %v6389 = vmul.f32 %v3124, %v3124
        %v6390 = vmul.f32 %v3598, %v3598
        %v6391 = vmul.f32 %v4072, %v4072
        %v6392 = vmul.f32 %v4546, %v4546
        %v6393 = vmul.f32 %v5020, %v5020
        %v6394 = vmul.f32 %v5494, %v5494
        %v6395 = vmul.f32 %v5968, %v5968
        %v6396 = vmul.f32 %v3126, %v3126
        %v6397 = vmul.f32 %v3600, %v3600
        %v6398 = vmul.f32 %v4074, %v4074
        %v6399 = vmul.f32 %v4548, %v4548
        %v6400 = vmul.f32 %v5022, %v5022
        %v6401 = vmul.f32 %v5496, %v5496
        %v6402 = vmul.f32 %v5970, %v5970
        %v6403 = vmul.f32 %v3129, %v3129
        %v6404 = vmul.f32 %v3603, %v3603
        %v6405 = vmul.f32 %v4077, %v4077
        %v6406 = vmul.f32 %v4551, %v4551
        %v6407 = vmul.f32 %v5025, %v5025
        %v6408 = vmul.f32 %v5499, %v5499
        %v6409 = vmul.f32 %v5973, %v5973
        %v6410 = vmul.f32 %v3131, %v3131
        %v6411 = vmul.f32 %v3605, %v3605
        %v6412 = vmul.f32 %v4079, %v4079
        %v6413 = vmul.f32 %v4553, %v4553
        %v6414 = vmul.f32 %v5027, %v5027
        %v6415 = vmul.f32 %v5501, %v5501
        %v6416 = vmul.f32 %v5975, %v5975
        %v6417 = vmul.f32 %v3134, %v3134
        %v6418 = vmul.f32 %v3608, %v3608
        %v6419 = vmul.f32 %v4082, %v4082
        %v6420 = vmul.f32 %v4556, %v4556
        %v6421 = vmul.f32 %v5030, %v5030
        %v6422 = vmul.f32 %v5504, %v5504
        %v6423 = vmul.f32 %v5978, %v5978
        %v6424 = vmul.f32 %v3136, %v3136
        %v6425 = vmul.f32 %v3610, %v3610
        %v6426 = vmul.f32 %v4084, %v4084
        %v6427 = vmul.f32 %v4558, %v4558
        %v6428 = vmul.f32 %v5032, %v5032
        %v6429 = vmul.f32 %v5506, %v5506
        %v6430 = vmul.f32 %v5980, %v5980
        %v6431 = vadd.f32 %v6235, %v6236
        %v6432 = vadd.f32 %v6431, %v6237
        %v6433 = vadd.f32 %v6432, %v6238
        %v6434 = vadd.f32 %v6433, %v6239
        %v6435 = vadd.f32 %v6434, %v6240
        %v6436 = vsel %vm5987, %v6241, 0.0
        %v6437 = vadd.f32 %v6435, %v6436
        %6438 = vadd.xlane.f32.xlu0 %v6437
        %v6439 = vpop.xlane.xlu0 %6438
        %v6440 = vadd.f32 %v6242, %v6243
        %v6441 = vadd.f32 %v6440, %v6244
        %v6442 = vadd.f32 %v6441, %v6245
        %v6443 = vadd.f32 %v6442, %v6246
        %v6444 = vadd.f32 %v6443, %v6247
        %v6445 = vsel %vm5987, %v6248, 0.0
        %v6446 = vadd.f32 %v6444, %v6445
        %6447 = vadd.xlane.f32.xlu0 %v6446
        %v6448 = vpop.xlane.xlu0 %6447
        %v6449 = vadd.f32 %v6249, %v6250
        %v6450 = vadd.f32 %v6449, %v6251
        %v6451 = vadd.f32 %v6450, %v6252
        %v6452 = vadd.f32 %v6451, %v6253
        %v6453 = vadd.f32 %v6452, %v6254
        %v6454 = vsel %vm5987, %v6255, 0.0
        %v6455 = vadd.f32 %v6453, %v6454
        %6456 = vadd.xlane.f32.xlu0 %v6455
        %v6457 = vpop.xlane.xlu0 %6456
        %v6458 = vadd.f32 %v6256, %v6257
        %v6459 = vadd.f32 %v6458, %v6258
        %v6460 = vadd.f32 %v6459, %v6259
        %v6461 = vadd.f32 %v6460, %v6260
        %v6462 = vadd.f32 %v6461, %v6261
        %v6463 = vsel %vm5987, %v6262, 0.0
        %v6464 = vadd.f32 %v6462, %v6463
        %6465 = vadd.xlane.f32.xlu0 %v6464
        %v6466 = vpop.xlane.xlu0 %6465
        %v6467 = vadd.f32 %v6263, %v6264
        %v6468 = vadd.f32 %v6467, %v6265
        %v6469 = vadd.f32 %v6468, %v6266
        %v6470 = vadd.f32 %v6469, %v6267
        %v6471 = vadd.f32 %v6470, %v6268
        %v6472 = vsel %vm5987, %v6269, 0.0
        %v6473 = vadd.f32 %v6471, %v6472
        %6474 = vadd.xlane.f32.xlu0 %v6473
        %v6475 = vpop.xlane.xlu0 %6474
        %v6476 = vadd.f32 %v6270, %v6271
        %v6477 = vadd.f32 %v6476, %v6272
        %v6478 = vadd.f32 %v6477, %v6273
        %v6479 = vadd.f32 %v6478, %v6274
        %v6480 = vadd.f32 %v6479, %v6275
        %v6481 = vsel %vm5987, %v6276, 0.0
        %v6482 = vadd.f32 %v6480, %v6481
        %6483 = vadd.xlane.f32.xlu0 %v6482
        %v6484 = vpop.xlane.xlu0 %6483
        %v6485 = vadd.f32 %v6277, %v6278
        %v6486 = vadd.f32 %v6485, %v6279
        %v6487 = vadd.f32 %v6486, %v6280
        %v6488 = vadd.f32 %v6487, %v6281
        %v6489 = vadd.f32 %v6488, %v6282
        %v6490 = vsel %vm5987, %v6283, 0.0
        %v6491 = vadd.f32 %v6489, %v6490
        %6492 = vadd.xlane.f32.xlu0 %v6491
        %v6493 = vpop.xlane.xlu0 %6492
        %v6494 = vadd.f32 %v6284, %v6285
        %v6495 = vadd.f32 %v6494, %v6286
        %v6496 = vadd.f32 %v6495, %v6287
        %v6497 = vadd.f32 %v6496, %v6288
        %v6498 = vadd.f32 %v6497, %v6289
        %v6499 = vsel %vm5987, %v6290, 0.0
        %v6500 = vadd.f32 %v6498, %v6499
        %6501 = vadd.xlane.f32.xlu0 %v6500
        %v6502 = vpop.xlane.xlu0 %6501
        %v6503 = vadd.f32 %v6291, %v6292
        %v6504 = vadd.f32 %v6503, %v6293
        %v6505 = vadd.f32 %v6504, %v6294
        %v6506 = vadd.f32 %v6505, %v6295
        %v6507 = vadd.f32 %v6506, %v6296
        %v6508 = vsel %vm5987, %v6297, 0.0
        %v6509 = vadd.f32 %v6507, %v6508
        %6510 = vadd.xlane.f32.xlu0 %v6509
        %v6511 = vpop.xlane.xlu0 %6510
        %v6512 = vadd.f32 %v6298, %v6299
        %v6513 = vadd.f32 %v6512, %v6300
        %v6514 = vadd.f32 %v6513, %v6301
        %v6515 = vadd.f32 %v6514, %v6302
        %v6516 = vadd.f32 %v6515, %v6303
        %v6517 = vsel %vm5987, %v6304, 0.0
        %v6518 = vadd.f32 %v6516, %v6517
        %6519 = vadd.xlane.f32.xlu0 %v6518
        %v6520 = vpop.xlane.xlu0 %6519
        %v6521 = vadd.f32 %v6305, %v6306
        %v6522 = vadd.f32 %v6521, %v6307
        %v6523 = vadd.f32 %v6522, %v6308
        %v6524 = vadd.f32 %v6523, %v6309
        %v6525 = vadd.f32 %v6524, %v6310
        %v6526 = vsel %vm5987, %v6311, 0.0
        %v6527 = vadd.f32 %v6525, %v6526
        %6528 = vadd.xlane.f32.xlu0 %v6527
        %v6529 = vpop.xlane.xlu0 %6528
        %v6530 = vadd.f32 %v6312, %v6313
        %v6531 = vadd.f32 %v6530, %v6314
        %v6532 = vadd.f32 %v6531, %v6315
        %v6533 = vadd.f32 %v6532, %v6316
        %v6534 = vadd.f32 %v6533, %v6317
        %v6535 = vsel %vm5987, %v6318, 0.0
        %v6536 = vadd.f32 %v6534, %v6535
        %6537 = vadd.xlane.f32.xlu0 %v6536
        %v6538 = vpop.xlane.xlu0 %6537
        %v6539 = vadd.f32 %v6319, %v6320
        %v6540 = vadd.f32 %v6539, %v6321
        %v6541 = vadd.f32 %v6540, %v6322
        %v6542 = vadd.f32 %v6541, %v6323
        %v6543 = vadd.f32 %v6542, %v6324
        %v6544 = vsel %vm5987, %v6325, 0.0
        %v6545 = vadd.f32 %v6543, %v6544
        %6546 = vadd.xlane.f32.xlu0 %v6545
        %v6547 = vpop.xlane.xlu0 %6546
        %v6548 = vadd.f32 %v6326, %v6327
        %v6549 = vadd.f32 %v6548, %v6328
        %v6550 = vadd.f32 %v6549, %v6329
        %v6551 = vadd.f32 %v6550, %v6330
        %v6552 = vadd.f32 %v6551, %v6331
        %v6553 = vsel %vm5987, %v6332, 0.0
        %v6554 = vadd.f32 %v6552, %v6553
        %6555 = vadd.xlane.f32.xlu0 %v6554
        %v6556 = vpop.xlane.xlu0 %6555
        %v6557 = vadd.f32 %v6333, %v6334
        %v6558 = vadd.f32 %v6557, %v6335
        %v6559 = vadd.f32 %v6558, %v6336
        %v6560 = vadd.f32 %v6559, %v6337
        %v6561 = vadd.f32 %v6560, %v6338
        %v6562 = vsel %vm5987, %v6339, 0.0
        %v6563 = vadd.f32 %v6561, %v6562
        %6564 = vadd.xlane.f32.xlu0 %v6563
        %v6565 = vpop.xlane.xlu0 %6564
        %v6566 = vadd.f32 %v6340, %v6341
        %v6567 = vadd.f32 %v6566, %v6342
        %v6568 = vadd.f32 %v6567, %v6343
        %v6569 = vadd.f32 %v6568, %v6344
        %v6570 = vadd.f32 %v6569, %v6345
        %v6571 = vsel %vm5987, %v6346, 0.0
        %v6572 = vadd.f32 %v6570, %v6571
        %6573 = vadd.xlane.f32.xlu0 %v6572
        %v6574 = vpop.xlane.xlu0 %6573
        %v6575 = vadd.f32 %v6347, %v6348
        %v6576 = vadd.f32 %v6575, %v6349
        %v6577 = vadd.f32 %v6576, %v6350
        %v6578 = vadd.f32 %v6577, %v6351
        %v6579 = vadd.f32 %v6578, %v6352
        %v6580 = vsel %vm5987, %v6353, 0.0
        %v6581 = vadd.f32 %v6579, %v6580
        %6582 = vadd.xlane.f32.xlu0 %v6581
        %v6583 = vpop.xlane.xlu0 %6582
        %v6584 = vadd.f32 %v6354, %v6355
        %v6585 = vadd.f32 %v6584, %v6356
        %v6586 = vadd.f32 %v6585, %v6357
        %v6587 = vadd.f32 %v6586, %v6358
        %v6588 = vadd.f32 %v6587, %v6359
        %v6589 = vsel %vm5987, %v6360, 0.0
        %v6590 = vadd.f32 %v6588, %v6589
        %6591 = vadd.xlane.f32.xlu0 %v6590
        %v6592 = vpop.xlane.xlu0 %6591
        %v6593 = vadd.f32 %v6361, %v6362
        %v6594 = vadd.f32 %v6593, %v6363
        %v6595 = vadd.f32 %v6594, %v6364
        %v6596 = vadd.f32 %v6595, %v6365
        %v6597 = vadd.f32 %v6596, %v6366
        %v6598 = vsel %vm5987, %v6367, 0.0
        %v6599 = vadd.f32 %v6597, %v6598
        %6600 = vadd.xlane.f32.xlu0 %v6599
        %v6601 = vpop.xlane.xlu0 %6600
        %v6602 = vadd.f32 %v6368, %v6369
        %v6603 = vadd.f32 %v6602, %v6370
        %v6604 = vadd.f32 %v6603, %v6371
        %v6605 = vadd.f32 %v6604, %v6372
        %v6606 = vadd.f32 %v6605, %v6373
        %v6607 = vsel %vm5987, %v6374, 0.0
        %v6608 = vadd.f32 %v6606, %v6607
        %6609 = vadd.xlane.f32.xlu0 %v6608
        %v6610 = vpop.xlane.xlu0 %6609
        %v6611 = vadd.f32 %v6375, %v6376
        %v6612 = vadd.f32 %v6611, %v6377
        %v6613 = vadd.f32 %v6612, %v6378
        %v6614 = vadd.f32 %v6613, %v6379
        %v6615 = vadd.f32 %v6614, %v6380
        %v6616 = vsel %vm5987, %v6381, 0.0
        %v6617 = vadd.f32 %v6615, %v6616
        %6618 = vadd.xlane.f32.xlu0 %v6617
        %v6619 = vpop.xlane.xlu0 %6618
        %v6620 = vadd.f32 %v6382, %v6383
        %v6621 = vadd.f32 %v6620, %v6384
        %v6622 = vadd.f32 %v6621, %v6385
        %v6623 = vadd.f32 %v6622, %v6386
        %v6624 = vadd.f32 %v6623, %v6387
        %v6625 = vsel %vm5987, %v6388, 0.0
        %v6626 = vadd.f32 %v6624, %v6625
        %6627 = vadd.xlane.f32.xlu0 %v6626
        %v6628 = vpop.xlane.xlu0 %6627
        %v6629 = vadd.f32 %v6389, %v6390
        %v6630 = vadd.f32 %v6629, %v6391
        %v6631 = vadd.f32 %v6630, %v6392
        %v6632 = vadd.f32 %v6631, %v6393
        %v6633 = vadd.f32 %v6632, %v6394
        %v6634 = vsel %vm5987, %v6395, 0.0
        %v6635 = vadd.f32 %v6633, %v6634
        %6636 = vadd.xlane.f32.xlu0 %v6635
        %v6637 = vpop.xlane.xlu0 %6636
        %v6638 = vadd.f32 %v6396, %v6397
        %v6639 = vadd.f32 %v6638, %v6398
        %v6640 = vadd.f32 %v6639, %v6399
        %v6641 = vadd.f32 %v6640, %v6400
        %v6642 = vadd.f32 %v6641, %v6401
        %v6643 = vsel %vm5987, %v6402, 0.0
        %v6644 = vadd.f32 %v6642, %v6643
        %6645 = vadd.xlane.f32.xlu0 %v6644
        %v6646 = vpop.xlane.xlu0 %6645
        %v6647 = vadd.f32 %v6403, %v6404
        %v6648 = vadd.f32 %v6647, %v6405
        %v6649 = vadd.f32 %v6648, %v6406
        %v6650 = vadd.f32 %v6649, %v6407
        %v6651 = vadd.f32 %v6650, %v6408
        %v6652 = vsel %vm5987, %v6409, 0.0
        %v6653 = vadd.f32 %v6651, %v6652
        %6654 = vadd.xlane.f32.xlu0 %v6653
        %v6655 = vpop.xlane.xlu0 %6654
        %v6656 = vadd.f32 %v6410, %v6411
        %v6657 = vadd.f32 %v6656, %v6412
        %v6658 = vadd.f32 %v6657, %v6413
        %v6659 = vadd.f32 %v6658, %v6414
        %v6660 = vadd.f32 %v6659, %v6415
        %v6661 = vsel %vm5987, %v6416, 0.0
        %v6662 = vadd.f32 %v6660, %v6661
        %6663 = vadd.xlane.f32.xlu0 %v6662
        %v6664 = vpop.xlane.xlu0 %6663
        %v6665 = vadd.f32 %v6417, %v6418
        %v6666 = vadd.f32 %v6665, %v6419
        %v6667 = vadd.f32 %v6666, %v6420
        %v6668 = vadd.f32 %v6667, %v6421
        %v6669 = vadd.f32 %v6668, %v6422
        %v6670 = vsel %vm5987, %v6423, 0.0
        %v6671 = vadd.f32 %v6669, %v6670
        %6672 = vadd.xlane.f32.xlu0 %v6671
        %v6673 = vpop.xlane.xlu0 %6672
        %v6674 = vadd.f32 %v6424, %v6425
        %v6675 = vadd.f32 %v6674, %v6426
        %v6676 = vadd.f32 %v6675, %v6427
        %v6677 = vadd.f32 %v6676, %v6428
        %v6678 = vadd.f32 %v6677, %v6429
        %v6679 = vsel %vm5987, %v6430, 0.0
        %v6680 = vadd.f32 %v6678, %v6679
        %6681 = vadd.xlane.f32.xlu0 %v6680
        %v6682 = vpop.xlane.xlu0 %6681
        %v6683 = vmul.f32 %v5991, 0.0012755102
        %v6684 = vmul.f32 %v6000, 0.0012755102
        %v6685 = vmul.f32 %v6009, 0.0012755102
        %v6686 = vmul.f32 %v6018, 0.0012755102
        %v6687 = vmul.f32 %v6027, 0.0012755102
        %v6688 = vmul.f32 %v6036, 0.0012755102
        %v6689 = vmul.f32 %v6045, 0.0012755102
        %v6690 = vmul.f32 %v6054, 0.0012755102
        %v6691 = vmul.f32 %v6063, 0.0012755102
        %v6692 = vmul.f32 %v6072, 0.0012755102
        %v6693 = vmul.f32 %v6081, 0.0012755102
        %v6694 = vmul.f32 %v6090, 0.0012755102
        %v6695 = vmul.f32 %v6099, 0.0012755102
        %v6696 = vmul.f32 %v6108, 0.0012755102
        %v6697 = vmul.f32 %v6117, 0.0012755102
        %v6698 = vmul.f32 %v6126, 0.0012755102
        %v6699 = vmul.f32 %v6135, 0.0012755102
        %v6700 = vmul.f32 %v6144, 0.0012755102
        %v6701 = vmul.f32 %v6153, 0.0012755102
        %v6702 = vmul.f32 %v6162, 0.0012755102
        %v6703 = vmul.f32 %v6171, 0.0012755102
        %v6704 = vmul.f32 %v6180, 0.0012755102
        %v6705 = vmul.f32 %v6189, 0.0012755102
        %v6706 = vmul.f32 %v6198, 0.0012755102
        %v6707 = vmul.f32 %v6207, 0.0012755102
        %v6708 = vmul.f32 %v6216, 0.0012755102
        %v6709 = vmul.f32 %v6225, 0.0012755102
        %v6710 = vmul.f32 %v6234, 0.0012755102
        %v6711 = vmul.f32 %v6439, 0.0012755102
        %v6712 = vmul.f32 %v6448, 0.0012755102
        %v6713 = vmul.f32 %v6457, 0.0012755102
        %v6714 = vmul.f32 %v6466, 0.0012755102
        %v6715 = vmul.f32 %v6475, 0.0012755102
        %v6716 = vmul.f32 %v6484, 0.0012755102
        %v6717 = vmul.f32 %v6493, 0.0012755102
        %v6718 = vmul.f32 %v6502, 0.0012755102
        %v6719 = vmul.f32 %v6511, 0.0012755102
        %v6720 = vmul.f32 %v6520, 0.0012755102
        %v6721 = vmul.f32 %v6529, 0.0012755102
        %v6722 = vmul.f32 %v6538, 0.0012755102
        %v6723 = vmul.f32 %v6547, 0.0012755102
        %v6724 = vmul.f32 %v6556, 0.0012755102
        %v6725 = vmul.f32 %v6565, 0.0012755102
        %v6726 = vmul.f32 %v6574, 0.0012755102
        %v6727 = vmul.f32 %v6583, 0.0012755102
        %v6728 = vmul.f32 %v6592, 0.0012755102
        %v6729 = vmul.f32 %v6601, 0.0012755102
        %v6730 = vmul.f32 %v6610, 0.0012755102
        %v6731 = vmul.f32 %v6619, 0.0012755102
        %v6732 = vmul.f32 %v6628, 0.0012755102
        %v6733 = vmul.f32 %v6637, 0.0012755102
        %v6734 = vmul.f32 %v6646, 0.0012755102
        %v6735 = vmul.f32 %v6655, 0.0012755102
        %v6736 = vmul.f32 %v6664, 0.0012755102
        %v6737 = vmul.f32 %v6673, 0.0012755102
        %v6738 = vmul.f32 %v6682, 0.0012755102
        %v6739 = vmul.f32 %v6683, %v6683
        %v6740 = vmul.f32 %v6684, %v6684
        %v6741 = vmul.f32 %v6685, %v6685
        %v6742 = vmul.f32 %v6686, %v6686
        %v6743 = vmul.f32 %v6687, %v6687
        %v6744 = vmul.f32 %v6688, %v6688
        %v6745 = vmul.f32 %v6689, %v6689
        %v6746 = vmul.f32 %v6690, %v6690
        %v6747 = vmul.f32 %v6691, %v6691
        %v6748 = vmul.f32 %v6692, %v6692
        %v6749 = vmul.f32 %v6693, %v6693
        %v6750 = vmul.f32 %v6694, %v6694
        %v6751 = vmul.f32 %v6695, %v6695
        %v6752 = vmul.f32 %v6696, %v6696
        %v6753 = vmul.f32 %v6697, %v6697
        %v6754 = vmul.f32 %v6698, %v6698
        %v6755 = vmul.f32 %v6699, %v6699
        %v6756 = vmul.f32 %v6700, %v6700
        %v6757 = vmul.f32 %v6701, %v6701
        %v6758 = vmul.f32 %v6702, %v6702
        %v6759 = vmul.f32 %v6703, %v6703
        %v6760 = vmul.f32 %v6704, %v6704
        %v6761 = vmul.f32 %v6705, %v6705
        %v6762 = vmul.f32 %v6706, %v6706
        %v6763 = vmul.f32 %v6707, %v6707
        %v6764 = vmul.f32 %v6708, %v6708
        %v6765 = vmul.f32 %v6709, %v6709
        %v6766 = vmul.f32 %v6710, %v6710
        %v6767 = vsub.f32 %v6711, %v6739
        %v6768 = vsub.f32 %v6712, %v6740
        %v6769 = vsub.f32 %v6713, %v6741
        %v6770 = vsub.f32 %v6714, %v6742
        %v6771 = vsub.f32 %v6715, %v6743
        %v6772 = vsub.f32 %v6716, %v6744
        %v6773 = vsub.f32 %v6717, %v6745
        %v6774 = vsub.f32 %v6718, %v6746
        %v6775 = vsub.f32 %v6719, %v6747
        %v6776 = vsub.f32 %v6720, %v6748
        %v6777 = vsub.f32 %v6721, %v6749
        %v6778 = vsub.f32 %v6722, %v6750
        %v6779 = vsub.f32 %v6723, %v6751
        %v6780 = vsub.f32 %v6724, %v6752
        %v6781 = vsub.f32 %v6725, %v6753
        %v6782 = vsub.f32 %v6726, %v6754
        %v6783 = vsub.f32 %v6727, %v6755
        %v6784 = vsub.f32 %v6728, %v6756
        %v6785 = vsub.f32 %v6729, %v6757
        %v6786 = vsub.f32 %v6730, %v6758
        %v6787 = vsub.f32 %v6731, %v6759
        %v6788 = vsub.f32 %v6732, %v6760
        %v6789 = vsub.f32 %v6733, %v6761
        %v6790 = vsub.f32 %v6734, %v6762
        %v6791 = vsub.f32 %v6735, %v6763
        %v6792 = vsub.f32 %v6736, %v6764
        %v6793 = vsub.f32 %v6737, %v6765
        %v6794 = vsub.f32 %v6738, %v6766
        %v6795 = vadd.f32 %v6767, 1e-05
        %v6796 = vadd.f32 %v6768, 1e-05
        %v6797 = vadd.f32 %v6769, 1e-05
        %v6798 = vadd.f32 %v6770, 1e-05
        %v6799 = vadd.f32 %v6771, 1e-05
        %v6800 = vadd.f32 %v6772, 1e-05
        %v6801 = vadd.f32 %v6773, 1e-05
        %v6802 = vadd.f32 %v6774, 1e-05
        %v6803 = vadd.f32 %v6775, 1e-05
        %v6804 = vadd.f32 %v6776, 1e-05
        %v6805 = vadd.f32 %v6777, 1e-05
        %v6806 = vadd.f32 %v6778, 1e-05
        %v6807 = vadd.f32 %v6779, 1e-05
        %v6808 = vadd.f32 %v6780, 1e-05
        %v6809 = vadd.f32 %v6781, 1e-05
        %v6810 = vadd.f32 %v6782, 1e-05
        %v6811 = vadd.f32 %v6783, 1e-05
        %v6812 = vadd.f32 %v6784, 1e-05
        %v6813 = vadd.f32 %v6785, 1e-05
        %v6814 = vadd.f32 %v6786, 1e-05
        %v6815 = vadd.f32 %v6787, 1e-05
        %v6816 = vadd.f32 %v6788, 1e-05
        %v6817 = vadd.f32 %v6789, 1e-05
        %v6818 = vadd.f32 %v6790, 1e-05
        %v6819 = vadd.f32 %v6791, 1e-05
        %v6820 = vadd.f32 %v6792, 1e-05
        %v6821 = vadd.f32 %v6793, 1e-05
        %v6822 = vadd.f32 %v6794, 1e-05
        %v6823 = vrsqrt.pop %v6795
        %v6824 = vmul.f32 %v6823, %v6795
        %v6825 = vmul.f32 %v6824, %v6823
        %v6826 = vmul.f32 0.5, %v6825
        %v6827 = vsub.f32 1.5, %v6826
        %v6828 = vmul.f32 %v6823, %v6827
        %vm6829 = vweird.f32 %v6795
        %vm6830 = vweird.f32 %v6823
        %vm6831 = vmor %vm6829, %vm6830
        %v6832 = vsel %vm6831, %v6823, %v6828
        %v6833 = vrsqrt.pop %v6796
        %v6834 = vmul.f32 %v6833, %v6796
        %v6835 = vmul.f32 %v6834, %v6833
        %v6836 = vmul.f32 0.5, %v6835
        %v6837 = vsub.f32 1.5, %v6836
        %v6838 = vmul.f32 %v6833, %v6837
        %vm6839 = vweird.f32 %v6796
        %vm6840 = vweird.f32 %v6833
        %vm6841 = vmor %vm6839, %vm6840
        %v6842 = vsel %vm6841, %v6833, %v6838
        %v6843 = vrsqrt.pop %v6797
        %v6844 = vmul.f32 %v6843, %v6797
        %v6845 = vmul.f32 %v6844, %v6843
        %v6846 = vmul.f32 0.5, %v6845
        %v6847 = vsub.f32 1.5, %v6846
        %v6848 = vmul.f32 %v6843, %v6847
        %vm6849 = vweird.f32 %v6797
        %vm6850 = vweird.f32 %v6843
        %vm6851 = vmor %vm6849, %vm6850
        %v6852 = vsel %vm6851, %v6843, %v6848
        %v6853 = vrsqrt.pop %v6798
        %v6854 = vmul.f32 %v6853, %v6798
        %v6855 = vmul.f32 %v6854, %v6853
        %v6856 = vmul.f32 0.5, %v6855
        %v6857 = vsub.f32 1.5, %v6856
        %v6858 = vmul.f32 %v6853, %v6857
        %vm6859 = vweird.f32 %v6798
        %vm6860 = vweird.f32 %v6853
        %vm6861 = vmor %vm6859, %vm6860
        %v6862 = vsel %vm6861, %v6853, %v6858
        %v6863 = vrsqrt.pop %v6799
        %v6864 = vmul.f32 %v6863, %v6799
        %v6865 = vmul.f32 %v6864, %v6863
        %v6866 = vmul.f32 0.5, %v6865
        %v6867 = vsub.f32 1.5, %v6866
        %v6868 = vmul.f32 %v6863, %v6867
        %vm6869 = vweird.f32 %v6799
        %vm6870 = vweird.f32 %v6863
        %vm6871 = vmor %vm6869, %vm6870
        %v6872 = vsel %vm6871, %v6863, %v6868
        %v6873 = vrsqrt.pop %v6800
        %v6874 = vmul.f32 %v6873, %v6800
        %v6875 = vmul.f32 %v6874, %v6873
        %v6876 = vmul.f32 0.5, %v6875
        %v6877 = vsub.f32 1.5, %v6876
        %v6878 = vmul.f32 %v6873, %v6877
        %vm6879 = vweird.f32 %v6800
        %vm6880 = vweird.f32 %v6873
        %vm6881 = vmor %vm6879, %vm6880
        %v6882 = vsel %vm6881, %v6873, %v6878
        %v6883 = vrsqrt.pop %v6801
        %v6884 = vmul.f32 %v6883, %v6801
        %v6885 = vmul.f32 %v6884, %v6883
        %v6886 = vmul.f32 0.5, %v6885
        %v6887 = vsub.f32 1.5, %v6886
        %v6888 = vmul.f32 %v6883, %v6887
        %vm6889 = vweird.f32 %v6801
        %vm6890 = vweird.f32 %v6883
        %vm6891 = vmor %vm6889, %vm6890
        %v6892 = vsel %vm6891, %v6883, %v6888
        %v6893 = vrsqrt.pop %v6802
        %v6894 = vmul.f32 %v6893, %v6802
        %v6895 = vmul.f32 %v6894, %v6893
        %v6896 = vmul.f32 0.5, %v6895
        %v6897 = vsub.f32 1.5, %v6896
        %v6898 = vmul.f32 %v6893, %v6897
        %vm6899 = vweird.f32 %v6802
        %vm6900 = vweird.f32 %v6893
        %vm6901 = vmor %vm6899, %vm6900
        %v6902 = vsel %vm6901, %v6893, %v6898
        %v6903 = vrsqrt.pop %v6803
        %v6904 = vmul.f32 %v6903, %v6803
        %v6905 = vmul.f32 %v6904, %v6903
        %v6906 = vmul.f32 0.5, %v6905
        %v6907 = vsub.f32 1.5, %v6906
        %v6908 = vmul.f32 %v6903, %v6907
        %vm6909 = vweird.f32 %v6803
        %vm6910 = vweird.f32 %v6903
        %vm6911 = vmor %vm6909, %vm6910
        %v6912 = vsel %vm6911, %v6903, %v6908
        %v6913 = vrsqrt.pop %v6804
        %v6914 = vmul.f32 %v6913, %v6804
        %v6915 = vmul.f32 %v6914, %v6913
        %v6916 = vmul.f32 0.5, %v6915
        %v6917 = vsub.f32 1.5, %v6916
        %v6918 = vmul.f32 %v6913, %v6917
        %vm6919 = vweird.f32 %v6804
        %vm6920 = vweird.f32 %v6913
        %vm6921 = vmor %vm6919, %vm6920
        %v6922 = vsel %vm6921, %v6913, %v6918
        %v6923 = vrsqrt.pop %v6805
        %v6924 = vmul.f32 %v6923, %v6805
        %v6925 = vmul.f32 %v6924, %v6923
        %v6926 = vmul.f32 0.5, %v6925
        %v6927 = vsub.f32 1.5, %v6926
        %v6928 = vmul.f32 %v6923, %v6927
        %vm6929 = vweird.f32 %v6805
        %vm6930 = vweird.f32 %v6923
        %vm6931 = vmor %vm6929, %vm6930
        %v6932 = vsel %vm6931, %v6923, %v6928
        %v6933 = vrsqrt.pop %v6806
        %v6934 = vmul.f32 %v6933, %v6806
        %v6935 = vmul.f32 %v6934, %v6933
        %v6936 = vmul.f32 0.5, %v6935
        %v6937 = vsub.f32 1.5, %v6936
        %v6938 = vmul.f32 %v6933, %v6937
        %vm6939 = vweird.f32 %v6806
        %vm6940 = vweird.f32 %v6933
        %vm6941 = vmor %vm6939, %vm6940
        %v6942 = vsel %vm6941, %v6933, %v6938
        %v6943 = vrsqrt.pop %v6807
        %v6944 = vmul.f32 %v6943, %v6807
        %v6945 = vmul.f32 %v6944, %v6943
        %v6946 = vmul.f32 0.5, %v6945
        %v6947 = vsub.f32 1.5, %v6946
        %v6948 = vmul.f32 %v6943, %v6947
        %vm6949 = vweird.f32 %v6807
        %vm6950 = vweird.f32 %v6943
        %vm6951 = vmor %vm6949, %vm6950
        %v6952 = vsel %vm6951, %v6943, %v6948
        %v6953 = vrsqrt.pop %v6808
        %v6954 = vmul.f32 %v6953, %v6808
        %v6955 = vmul.f32 %v6954, %v6953
        %v6956 = vmul.f32 0.5, %v6955
        %v6957 = vsub.f32 1.5, %v6956
        %v6958 = vmul.f32 %v6953, %v6957
        %vm6959 = vweird.f32 %v6808
        %vm6960 = vweird.f32 %v6953
        %vm6961 = vmor %vm6959, %vm6960
        %v6962 = vsel %vm6961, %v6953, %v6958
        %v6963 = vrsqrt.pop %v6809
        %v6964 = vmul.f32 %v6963, %v6809
        %v6965 = vmul.f32 %v6964, %v6963
        %v6966 = vmul.f32 0.5, %v6965
        %v6967 = vsub.f32 1.5, %v6966
        %v6968 = vmul.f32 %v6963, %v6967
        %vm6969 = vweird.f32 %v6809
        %vm6970 = vweird.f32 %v6963
        %vm6971 = vmor %vm6969, %vm6970
        %v6972 = vsel %vm6971, %v6963, %v6968
        %v6973 = vrsqrt.pop %v6810
        %v6974 = vmul.f32 %v6973, %v6810
        %v6975 = vmul.f32 %v6974, %v6973
        %v6976 = vmul.f32 0.5, %v6975
        %v6977 = vsub.f32 1.5, %v6976
        %v6978 = vmul.f32 %v6973, %v6977
        %vm6979 = vweird.f32 %v6810
        %vm6980 = vweird.f32 %v6973
        %vm6981 = vmor %vm6979, %vm6980
        %v6982 = vsel %vm6981, %v6973, %v6978
        %v6983 = vrsqrt.pop %v6811
        %v6984 = vmul.f32 %v6983, %v6811
        %v6985 = vmul.f32 %v6984, %v6983
        %v6986 = vmul.f32 0.5, %v6985
        %v6987 = vsub.f32 1.5, %v6986
        %v6988 = vmul.f32 %v6983, %v6987
        %vm6989 = vweird.f32 %v6811
        %vm6990 = vweird.f32 %v6983
        %vm6991 = vmor %vm6989, %vm6990
        %v6992 = vsel %vm6991, %v6983, %v6988
        %v6993 = vrsqrt.pop %v6812
        %v6994 = vmul.f32 %v6993, %v6812
        %v6995 = vmul.f32 %v6994, %v6993
        %v6996 = vmul.f32 0.5, %v6995
        %v6997 = vsub.f32 1.5, %v6996
        %v6998 = vmul.f32 %v6993, %v6997
        %vm6999 = vweird.f32 %v6812
        %vm7000 = vweird.f32 %v6993
        %vm7001 = vmor %vm6999, %vm7000
        %v7002 = vsel %vm7001, %v6993, %v6998
        %v7003 = vrsqrt.pop %v6813
        %v7004 = vmul.f32 %v7003, %v6813
        %v7005 = vmul.f32 %v7004, %v7003
        %v7006 = vmul.f32 0.5, %v7005
        %v7007 = vsub.f32 1.5, %v7006
        %v7008 = vmul.f32 %v7003, %v7007
        %vm7009 = vweird.f32 %v6813
        %vm7010 = vweird.f32 %v7003
        %vm7011 = vmor %vm7009, %vm7010
        %v7012 = vsel %vm7011, %v7003, %v7008
        %v7013 = vrsqrt.pop %v6814
        %v7014 = vmul.f32 %v7013, %v6814
        %v7015 = vmul.f32 %v7014, %v7013
        %v7016 = vmul.f32 0.5, %v7015
        %v7017 = vsub.f32 1.5, %v7016
        %v7018 = vmul.f32 %v7013, %v7017
        %vm7019 = vweird.f32 %v6814
        %vm7020 = vweird.f32 %v7013
        %vm7021 = vmor %vm7019, %vm7020
        %v7022 = vsel %vm7021, %v7013, %v7018
        %v7023 = vrsqrt.pop %v6815
        %v7024 = vmul.f32 %v7023, %v6815
        %v7025 = vmul.f32 %v7024, %v7023
        %v7026 = vmul.f32 0.5, %v7025
        %v7027 = vsub.f32 1.5, %v7026
        %v7028 = vmul.f32 %v7023, %v7027
        %vm7029 = vweird.f32 %v6815
        %vm7030 = vweird.f32 %v7023
        %vm7031 = vmor %vm7029, %vm7030
        %v7032 = vsel %vm7031, %v7023, %v7028
        %v7033 = vrsqrt.pop %v6816
        %v7034 = vmul.f32 %v7033, %v6816
        %v7035 = vmul.f32 %v7034, %v7033
        %v7036 = vmul.f32 0.5, %v7035
        %v7037 = vsub.f32 1.5, %v7036
        %v7038 = vmul.f32 %v7033, %v7037
        %vm7039 = vweird.f32 %v6816
        %vm7040 = vweird.f32 %v7033
        %vm7041 = vmor %vm7039, %vm7040
        %v7042 = vsel %vm7041, %v7033, %v7038
        %v7043 = vrsqrt.pop %v6817
        %v7044 = vmul.f32 %v7043, %v6817
        %v7045 = vmul.f32 %v7044, %v7043
        %v7046 = vmul.f32 0.5, %v7045
        %v7047 = vsub.f32 1.5, %v7046
        %v7048 = vmul.f32 %v7043, %v7047
        %vm7049 = vweird.f32 %v6817
        %vm7050 = vweird.f32 %v7043
        %vm7051 = vmor %vm7049, %vm7050
        %v7052 = vsel %vm7051, %v7043, %v7048
        %v7053 = vrsqrt.pop %v6818
        %v7054 = vmul.f32 %v7053, %v6818
        %v7055 = vmul.f32 %v7054, %v7053
        %v7056 = vmul.f32 0.5, %v7055
        %v7057 = vsub.f32 1.5, %v7056
        %v7058 = vmul.f32 %v7053, %v7057
        %vm7059 = vweird.f32 %v6818
        %vm7060 = vweird.f32 %v7053
        %vm7061 = vmor %vm7059, %vm7060
        %v7062 = vsel %vm7061, %v7053, %v7058
        %v7063 = vrsqrt.pop %v6819
        %v7064 = vmul.f32 %v7063, %v6819
        %v7065 = vmul.f32 %v7064, %v7063
        %v7066 = vmul.f32 0.5, %v7065
        %v7067 = vsub.f32 1.5, %v7066
        %v7068 = vmul.f32 %v7063, %v7067
        %vm7069 = vweird.f32 %v6819
        %vm7070 = vweird.f32 %v7063
        %vm7071 = vmor %vm7069, %vm7070
        %v7072 = vsel %vm7071, %v7063, %v7068
        %v7073 = vrsqrt.pop %v6820
        %v7074 = vmul.f32 %v7073, %v6820
        %v7075 = vmul.f32 %v7074, %v7073
        %v7076 = vmul.f32 0.5, %v7075
        %v7077 = vsub.f32 1.5, %v7076
        %v7078 = vmul.f32 %v7073, %v7077
        %vm7079 = vweird.f32 %v6820
        %vm7080 = vweird.f32 %v7073
        %vm7081 = vmor %vm7079, %vm7080
        %v7082 = vsel %vm7081, %v7073, %v7078
        %v7083 = vrsqrt.pop %v6821
        %v7084 = vmul.f32 %v7083, %v6821
        %v7085 = vmul.f32 %v7084, %v7083
        %v7086 = vmul.f32 0.5, %v7085
        %v7087 = vsub.f32 1.5, %v7086
        %v7088 = vmul.f32 %v7083, %v7087
        %vm7089 = vweird.f32 %v6821
        %vm7090 = vweird.f32 %v7083
        %vm7091 = vmor %vm7089, %vm7090
        %v7092 = vsel %vm7091, %v7083, %v7088
        %v7093 = vrsqrt.pop %v6822
        %v7094 = vmul.f32 %v7093, %v6822
        %v7095 = vmul.f32 %v7094, %v7093
        %v7096 = vmul.f32 0.5, %v7095
        %v7097 = vsub.f32 1.5, %v7096
        %v7098 = vmul.f32 %v7093, %v7097
        %vm7099 = vweird.f32 %v6822
        %vm7100 = vweird.f32 %v7093
        %vm7101 = vmor %vm7099, %vm7100
        %v7102 = vsel %vm7101, %v7093, %v7098
        %v7103 = vld [vmem:[%s273] sm:$0xff]
        %v7104 = vld [vmem:[%s273 + $0x8] sm:$0xff]
        %v7105 = vld [vmem:[%s273 + $0x10] sm:$0xff]
        %v7106 = vld [vmem:[%s273 + $0x18] sm:$0xff]
        %v7107 = vld [vmem:[%s273 + $0x20] sm:$0xff]
        %v7108 = vld [vmem:[%s273 + $0x28] sm:$0xff]
        %v7109 = vld [vmem:[%s273 + $0x30] sm:$0xff]
        %v7110 = vld [vmem:[%s273 + $0x38] sm:$0xff]
        %v7111 = vld [vmem:[%s273 + $0x40] sm:$0xff]
        %v7112 = vld [vmem:[%s273 + $0x48] sm:$0xff]
        %v7113 = vld [vmem:[%s273 + $0x50] sm:$0xff]
        %v7114 = vld [vmem:[%s273 + $0x58] sm:$0xff]
        %v7115 = vld [vmem:[%s273 + $0x60] sm:$0xff]
        %v7116 = vld [vmem:[%s273 + $0x68] sm:$0xff]
        %v7117 = vld [vmem:[%s273 + $0x70] sm:$0xff]
        %v7118 = vld [vmem:[%s273 + $0x78] sm:$0xff]
        %v7119 = vld [vmem:[%s273 + $0x80] sm:$0xff]
        %v7120 = vld [vmem:[%s273 + $0x88] sm:$0xff]
        %v7121 = vld [vmem:[%s273 + $0x90] sm:$0xff]
        %v7122 = vld [vmem:[%s273 + $0x98] sm:$0xff]
        %v7123 = vld [vmem:[%s273 + $0xa0] sm:$0xff]
        %v7124 = vld [vmem:[%s273 + $0xa8] sm:$0xff]
        %v7125 = vld [vmem:[%s273 + $0xb0] sm:$0xff]
        %v7126 = vld [vmem:[%s273 + $0xb8] sm:$0xff]
        %v7127 = vld [vmem:[%s273 + $0xc0] sm:$0xff]
        %v7128 = vld [vmem:[%s273 + $0xc8] sm:$0xff]
        %v7129 = vld [vmem:[%s273 + $0xd0] sm:$0xff]
        %v7130 = vld [vmem:[%s273 + $0xd8] sm:$0xff]
        %v7131 = vmul.f32 %v7103, %v6832
        %v7132 = vmul.f32 %v7104, %v6842
        %v7133 = vmul.f32 %v7105, %v6852
        %v7134 = vmul.f32 %v7106, %v6862
        %v7135 = vmul.f32 %v7107, %v6872
        %v7136 = vmul.f32 %v7108, %v6882
        %v7137 = vmul.f32 %v7109, %v6892
        %v7138 = vmul.f32 %v7110, %v6902
        %v7139 = vmul.f32 %v7111, %v6912
        %v7140 = vmul.f32 %v7112, %v6922
        %v7141 = vmul.f32 %v7113, %v6932
        %v7142 = vmul.f32 %v7114, %v6942
        %v7143 = vmul.f32 %v7115, %v6952
        %v7144 = vmul.f32 %v7116, %v6962
        %v7145 = vmul.f32 %v7117, %v6972
        %v7146 = vmul.f32 %v7118, %v6982
        %v7147 = vmul.f32 %v7119, %v6992
        %v7148 = vmul.f32 %v7120, %v7002
        %v7149 = vmul.f32 %v7121, %v7012
        %v7150 = vmul.f32 %v7122, %v7022
        %v7151 = vmul.f32 %v7123, %v7032
        %v7152 = vmul.f32 %v7124, %v7042
        %v7153 = vmul.f32 %v7125, %v7052
        %v7154 = vmul.f32 %v7126, %v7062
        %v7155 = vmul.f32 %v7127, %v7072
        %v7156 = vmul.f32 %v7128, %v7082
        %v7157 = vmul.f32 %v7129, %v7092
        %v7158 = vmul.f32 %v7130, %v7102
        %v7159 = vld [vmem:[%s279] sm:$0xff]
        %v7160 = vld [vmem:[%s279 + $0x8] sm:$0xff]
        %v7161 = vld [vmem:[%s279 + $0x10] sm:$0xff]
        %v7162 = vld [vmem:[%s279 + $0x18] sm:$0xff]
        %v7163 = vld [vmem:[%s279 + $0x20] sm:$0xff]
        %v7164 = vld [vmem:[%s279 + $0x28] sm:$0xff]
        %v7165 = vld [vmem:[%s279 + $0x30] sm:$0xff]
        %v7166 = vld [vmem:[%s279 + $0x38] sm:$0xff]
        %v7167 = vld [vmem:[%s279 + $0x40] sm:$0xff]
        %v7168 = vld [vmem:[%s279 + $0x48] sm:$0xff]
        %v7169 = vld [vmem:[%s279 + $0x50] sm:$0xff]
        %v7170 = vld [vmem:[%s279 + $0x58] sm:$0xff]
        %v7171 = vld [vmem:[%s279 + $0x60] sm:$0xff]
        %v7172 = vld [vmem:[%s279 + $0x68] sm:$0xff]
        %v7173 = vld [vmem:[%s279 + $0x70] sm:$0xff]
        %v7174 = vld [vmem:[%s279 + $0x78] sm:$0xff]
        %v7175 = vld [vmem:[%s279 + $0x80] sm:$0xff]
        %v7176 = vld [vmem:[%s279 + $0x88] sm:$0xff]
        %v7177 = vld [vmem:[%s279 + $0x90] sm:$0xff]
        %v7178 = vld [vmem:[%s279 + $0x98] sm:$0xff]
        %v7179 = vld [vmem:[%s279 + $0xa0] sm:$0xff]
        %v7180 = vld [vmem:[%s279 + $0xa8] sm:$0xff]
        %v7181 = vld [vmem:[%s279 + $0xb0] sm:$0xff]
        %v7182 = vld [vmem:[%s279 + $0xb8] sm:$0xff]
        %v7183 = vld [vmem:[%s279 + $0xc0] sm:$0xff]
        %v7184 = vld [vmem:[%s279 + $0xc8] sm:$0xff]
        %v7185 = vld [vmem:[%s279 + $0xd0] sm:$0xff]
        %v7186 = vld [vmem:[%s279 + $0xd8] sm:$0xff]
        %v7187 = vmul.f32 %v6683, %v7131
        %v7188 = vmul.f32 %v6684, %v7132
        %v7189 = vmul.f32 %v6685, %v7133
        %v7190 = vmul.f32 %v6686, %v7134
        %v7191 = vmul.f32 %v6687, %v7135
        %v7192 = vmul.f32 %v6688, %v7136
        %v7193 = vmul.f32 %v6689, %v7137
        %v7194 = vmul.f32 %v6690, %v7138
        %v7195 = vmul.f32 %v6691, %v7139
        %v7196 = vmul.f32 %v6692, %v7140
        %v7197 = vmul.f32 %v6693, %v7141
        %v7198 = vmul.f32 %v6694, %v7142
        %v7199 = vmul.f32 %v6695, %v7143
        %v7200 = vmul.f32 %v6696, %v7144
        %v7201 = vmul.f32 %v6697, %v7145
        %v7202 = vmul.f32 %v6698, %v7146
        %v7203 = vmul.f32 %v6699, %v7147
        %v7204 = vmul.f32 %v6700, %v7148
        %v7205 = vmul.f32 %v6701, %v7149
        %v7206 = vmul.f32 %v6702, %v7150
        %v7207 = vmul.f32 %v6703, %v7151
        %v7208 = vmul.f32 %v6704, %v7152
        %v7209 = vmul.f32 %v6705, %v7153
        %v7210 = vmul.f32 %v6706, %v7154
        %v7211 = vmul.f32 %v6707, %v7155
        %v7212 = vmul.f32 %v6708, %v7156
        %v7213 = vmul.f32 %v6709, %v7157
        %v7214 = vmul.f32 %v6710, %v7158
        %v7215 = vsub.f32 %v7159, %v7187
        %v7216 = vsub.f32 %v7160, %v7188
        %v7217 = vsub.f32 %v7161, %v7189
        %v7218 = vsub.f32 %v7162, %v7190
        %v7219 = vsub.f32 %v7163, %v7191
        %v7220 = vsub.f32 %v7164, %v7192
        %v7221 = vsub.f32 %v7165, %v7193
        %v7222 = vsub.f32 %v7166, %v7194
        %v7223 = vsub.f32 %v7167, %v7195
        %v7224 = vsub.f32 %v7168, %v7196
        %v7225 = vsub.f32 %v7169, %v7197
        %v7226 = vsub.f32 %v7170, %v7198
        %v7227 = vsub.f32 %v7171, %v7199
        %v7228 = vsub.f32 %v7172, %v7200
        %v7229 = vsub.f32 %v7173, %v7201
        %v7230 = vsub.f32 %v7174, %v7202
        %v7231 = vsub.f32 %v7175, %v7203
        %v7232 = vsub.f32 %v7176, %v7204
        %v7233 = vsub.f32 %v7177, %v7205
        %v7234 = vsub.f32 %v7178, %v7206
        %v7235 = vsub.f32 %v7179, %v7207
        %v7236 = vsub.f32 %v7180, %v7208
        %v7237 = vsub.f32 %v7181, %v7209
        %v7238 = vsub.f32 %v7182, %v7210
        %v7239 = vsub.f32 %v7183, %v7211
        %v7240 = vsub.f32 %v7184, %v7212
        %v7241 = vsub.f32 %v7185, %v7213
        %v7242 = vsub.f32 %v7186, %v7214
        %7244 = vset.pattern.permute.xlu0 0
        %7245 = vperm.xlu0 %7244, %v7131
        %v7246 = vpop.permute.xlu0 %7245
        %7249 = vset.pattern.permute.xlu0 0
        %7250 = vperm.xlu0 %7249, %v7132
        %v7251 = vpop.permute.xlu0 %7250
        %7254 = vset.pattern.permute.xlu0 0
        %7255 = vperm.xlu0 %7254, %v7133
        %v7256 = vpop.permute.xlu0 %7255
        %7259 = vset.pattern.permute.xlu0 0
        %7260 = vperm.xlu0 %7259, %v7134
        %v7261 = vpop.permute.xlu0 %7260
        %7264 = vset.pattern.permute.xlu0 0
        %7265 = vperm.xlu0 %7264, %v7135
        %v7266 = vpop.permute.xlu0 %7265
        %7269 = vset.pattern.permute.xlu0 0
        %7270 = vperm.xlu0 %7269, %v7136
        %v7271 = vpop.permute.xlu0 %7270
        %7274 = vset.pattern.permute.xlu0 0
        %7275 = vperm.xlu0 %7274, %v7137
        %v7276 = vpop.permute.xlu0 %7275
        %7279 = vset.pattern.permute.xlu0 0
        %7280 = vperm.xlu0 %7279, %v7138
        %v7281 = vpop.permute.xlu0 %7280
        %7284 = vset.pattern.permute.xlu0 0
        %7285 = vperm.xlu0 %7284, %v7139
        %v7286 = vpop.permute.xlu0 %7285
        %7289 = vset.pattern.permute.xlu0 0
        %7290 = vperm.xlu0 %7289, %v7140
        %v7291 = vpop.permute.xlu0 %7290
        %7294 = vset.pattern.permute.xlu0 0
        %7295 = vperm.xlu0 %7294, %v7141
        %v7296 = vpop.permute.xlu0 %7295
        %7299 = vset.pattern.permute.xlu0 0
        %7300 = vperm.xlu0 %7299, %v7142
        %v7301 = vpop.permute.xlu0 %7300
        %7304 = vset.pattern.permute.xlu0 0
        %7305 = vperm.xlu0 %7304, %v7143
        %v7306 = vpop.permute.xlu0 %7305
        %7309 = vset.pattern.permute.xlu0 0
        %7310 = vperm.xlu0 %7309, %v7144
        %v7311 = vpop.permute.xlu0 %7310
        %7314 = vset.pattern.permute.xlu0 0
        %7315 = vperm.xlu0 %7314, %v7145
        %v7316 = vpop.permute.xlu0 %7315
        %7319 = vset.pattern.permute.xlu0 0
        %7320 = vperm.xlu0 %7319, %v7146
        %v7321 = vpop.permute.xlu0 %7320
        %7324 = vset.pattern.permute.xlu0 0
        %7325 = vperm.xlu0 %7324, %v7147
        %v7326 = vpop.permute.xlu0 %7325
        %7329 = vset.pattern.permute.xlu0 0
        %7330 = vperm.xlu0 %7329, %v7148
        %v7331 = vpop.permute.xlu0 %7330
        %7334 = vset.pattern.permute.xlu0 0
        %7335 = vperm.xlu0 %7334, %v7149
        %v7336 = vpop.permute.xlu0 %7335
        %7339 = vset.pattern.permute.xlu0 0
        %7340 = vperm.xlu0 %7339, %v7150
        %v7341 = vpop.permute.xlu0 %7340
        %7344 = vset.pattern.permute.xlu0 0
        %7345 = vperm.xlu0 %7344, %v7151
        %v7346 = vpop.permute.xlu0 %7345
        %7349 = vset.pattern.permute.xlu0 0
        %7350 = vperm.xlu0 %7349, %v7152
        %v7351 = vpop.permute.xlu0 %7350
        %7354 = vset.pattern.permute.xlu0 0
        %7355 = vperm.xlu0 %7354, %v7153
        %v7356 = vpop.permute.xlu0 %7355
        %7359 = vset.pattern.permute.xlu0 0
        %7360 = vperm.xlu0 %7359, %v7154
        %v7361 = vpop.permute.xlu0 %7360
        %7364 = vset.pattern.permute.xlu0 0
        %7365 = vperm.xlu0 %7364, %v7155
        %v7366 = vpop.permute.xlu0 %7365
        %7369 = vset.pattern.permute.xlu0 0
        %7370 = vperm.xlu0 %7369, %v7156
        %v7371 = vpop.permute.xlu0 %7370
        %7374 = vset.pattern.permute.xlu0 0
        %7375 = vperm.xlu0 %7374, %v7157
        %v7376 = vpop.permute.xlu0 %7375
        %7379 = vset.pattern.permute.xlu0 0
        %7380 = vperm.xlu0 %7379, %v7158
        %v7381 = vpop.permute.xlu0 %7380
        %v7383 = vmul.f32 %v3069, %v7246
        %v7384 = vmul.f32 %v3543, %v7246
        %v7385 = vmul.f32 %v4017, %v7246
        %v7386 = vmul.f32 %v4491, %v7246
        %v7387 = vmul.f32 %v4965, %v7246
        %v7388 = vmul.f32 %v5439, %v7246
        %v7389 = vmul.f32 %v5913, %v7246
        %v7390 = vmul.f32 %v3071, %v7251
        %v7391 = vmul.f32 %v3545, %v7251
        %v7392 = vmul.f32 %v4019, %v7251
        %v7393 = vmul.f32 %v4493, %v7251
        %v7394 = vmul.f32 %v4967, %v7251
        %v7395 = vmul.f32 %v5441, %v7251
        %v7396 = vmul.f32 %v5915, %v7251
        %v7397 = vmul.f32 %v3074, %v7256
        %v7398 = vmul.f32 %v3548, %v7256
        %v7399 = vmul.f32 %v4022, %v7256
        %v7400 = vmul.f32 %v4496, %v7256
        %v7401 = vmul.f32 %v4970, %v7256
        %v7402 = vmul.f32 %v5444, %v7256
        %v7403 = vmul.f32 %v5918, %v7256
        %v7404 = vmul.f32 %v3076, %v7261
        %v7405 = vmul.f32 %v3550, %v7261
        %v7406 = vmul.f32 %v4024, %v7261
        %v7407 = vmul.f32 %v4498, %v7261
        %v7408 = vmul.f32 %v4972, %v7261
        %v7409 = vmul.f32 %v5446, %v7261
        %v7410 = vmul.f32 %v5920, %v7261
        %v7411 = vmul.f32 %v3079, %v7266
        %v7412 = vmul.f32 %v3553, %v7266
        %v7413 = vmul.f32 %v4027, %v7266
        %v7414 = vmul.f32 %v4501, %v7266
        %v7415 = vmul.f32 %v4975, %v7266
        %v7416 = vmul.f32 %v5449, %v7266
        %v7417 = vmul.f32 %v5923, %v7266
        %v7418 = vmul.f32 %v3081, %v7271
        %v7419 = vmul.f32 %v3555, %v7271
        %v7420 = vmul.f32 %v4029, %v7271
        %v7421 = vmul.f32 %v4503, %v7271
        %v7422 = vmul.f32 %v4977, %v7271
        %v7423 = vmul.f32 %v5451, %v7271
        %v7424 = vmul.f32 %v5925, %v7271
        %v7425 = vmul.f32 %v3084, %v7276
        %v7426 = vmul.f32 %v3558, %v7276
        %v7427 = vmul.f32 %v4032, %v7276
        %v7428 = vmul.f32 %v4506, %v7276
        %v7429 = vmul.f32 %v4980, %v7276
        %v7430 = vmul.f32 %v5454, %v7276
        %v7431 = vmul.f32 %v5928, %v7276
        %v7432 = vmul.f32 %v3086, %v7281
        %v7433 = vmul.f32 %v3560, %v7281
        %v7434 = vmul.f32 %v4034, %v7281
        %v7435 = vmul.f32 %v4508, %v7281
        %v7436 = vmul.f32 %v4982, %v7281
        %v7437 = vmul.f32 %v5456, %v7281
        %v7438 = vmul.f32 %v5930, %v7281
        %v7439 = vmul.f32 %v3089, %v7286
        %v7440 = vmul.f32 %v3563, %v7286
        %v7441 = vmul.f32 %v4037, %v7286
        %v7442 = vmul.f32 %v4511, %v7286
        %v7443 = vmul.f32 %v4985, %v7286
        %v7444 = vmul.f32 %v5459, %v7286
        %v7445 = vmul.f32 %v5933, %v7286
        %v7446 = vmul.f32 %v3091, %v7291
        %v7447 = vmul.f32 %v3565, %v7291
        %v7448 = vmul.f32 %v4039, %v7291
        %v7449 = vmul.f32 %v4513, %v7291
        %v7450 = vmul.f32 %v4987, %v7291
        %v7451 = vmul.f32 %v5461, %v7291
        %v7452 = vmul.f32 %v5935, %v7291
        %v7453 = vmul.f32 %v3094, %v7296
        %v7454 = vmul.f32 %v3568, %v7296
        %v7455 = vmul.f32 %v4042, %v7296
        %v7456 = vmul.f32 %v4516, %v7296
        %v7457 = vmul.f32 %v4990, %v7296
        %v7458 = vmul.f32 %v5464, %v7296
        %v7459 = vmul.f32 %v5938, %v7296
        %v7460 = vmul.f32 %v3096, %v7301
        %v7461 = vmul.f32 %v3570, %v7301
        %v7462 = vmul.f32 %v4044, %v7301
        %v7463 = vmul.f32 %v4518, %v7301
        %v7464 = vmul.f32 %v4992, %v7301
        %v7465 = vmul.f32 %v5466, %v7301
        %v7466 = vmul.f32 %v5940, %v7301
        %v7467 = vmul.f32 %v3099, %v7306
        %v7468 = vmul.f32 %v3573, %v7306
        %v7469 = vmul.f32 %v4047, %v7306
        %v7470 = vmul.f32 %v4521, %v7306
        %v7471 = vmul.f32 %v4995, %v7306
        %v7472 = vmul.f32 %v5469, %v7306
        %v7473 = vmul.f32 %v5943, %v7306
        %v7474 = vmul.f32 %v3101, %v7311
        %v7475 = vmul.f32 %v3575, %v7311
        %v7476 = vmul.f32 %v4049, %v7311
        %v7477 = vmul.f32 %v4523, %v7311
        %v7478 = vmul.f32 %v4997, %v7311
        %v7479 = vmul.f32 %v5471, %v7311
        %v7480 = vmul.f32 %v5945, %v7311
        %v7481 = vmul.f32 %v3104, %v7316
        %v7482 = vmul.f32 %v3578, %v7316
        %v7483 = vmul.f32 %v4052, %v7316
        %v7484 = vmul.f32 %v4526, %v7316
        %v7485 = vmul.f32 %v5000, %v7316
        %v7486 = vmul.f32 %v5474, %v7316
        %v7487 = vmul.f32 %v5948, %v7316
        %v7488 = vmul.f32 %v3106, %v7321
        %v7489 = vmul.f32 %v3580, %v7321
        %v7490 = vmul.f32 %v4054, %v7321
        %v7491 = vmul.f32 %v4528, %v7321
        %v7492 = vmul.f32 %v5002, %v7321
        %v7493 = vmul.f32 %v5476, %v7321
        %v7494 = vmul.f32 %v5950, %v7321
        %v7495 = vmul.f32 %v3109, %v7326
        %v7496 = vmul.f32 %v3583, %v7326
        %v7497 = vmul.f32 %v4057, %v7326
        %v7498 = vmul.f32 %v4531, %v7326
        %v7499 = vmul.f32 %v5005, %v7326
        %v7500 = vmul.f32 %v5479, %v7326
        %v7501 = vmul.f32 %v5953, %v7326
        %v7502 = vmul.f32 %v3111, %v7331
        %v7503 = vmul.f32 %v3585, %v7331
        %v7504 = vmul.f32 %v4059, %v7331
        %v7505 = vmul.f32 %v4533, %v7331
        %v7506 = vmul.f32 %v5007, %v7331
        %v7507 = vmul.f32 %v5481, %v7331
        %v7508 = vmul.f32 %v5955, %v7331
        %v7509 = vmul.f32 %v3114, %v7336
        %v7510 = vmul.f32 %v3588, %v7336
        %v7511 = vmul.f32 %v4062, %v7336
        %v7512 = vmul.f32 %v4536, %v7336
        %v7513 = vmul.f32 %v5010, %v7336
        %v7514 = vmul.f32 %v5484, %v7336
        %v7515 = vmul.f32 %v5958, %v7336
        %v7516 = vmul.f32 %v3116, %v7341
        %v7517 = vmul.f32 %v3590, %v7341
        %v7518 = vmul.f32 %v4064, %v7341
        %v7519 = vmul.f32 %v4538, %v7341
        %v7520 = vmul.f32 %v5012, %v7341
        %v7521 = vmul.f32 %v5486, %v7341
        %v7522 = vmul.f32 %v5960, %v7341
        %v7523 = vmul.f32 %v3119, %v7346
        %v7524 = vmul.f32 %v3593, %v7346
        %v7525 = vmul.f32 %v4067, %v7346
        %v7526 = vmul.f32 %v4541, %v7346
        %v7527 = vmul.f32 %v5015, %v7346
        %v7528 = vmul.f32 %v5489, %v7346
        %v7529 = vmul.f32 %v5963, %v7346
        %v7530 = vmul.f32 %v3121, %v7351
        %v7531 = vmul.f32 %v3595, %v7351
        %v7532 = vmul.f32 %v4069, %v7351
        %v7533 = vmul.f32 %v4543, %v7351
        %v7534 = vmul.f32 %v5017, %v7351
        %v7535 = vmul.f32 %v5491, %v7351
        %v7536 = vmul.f32 %v5965, %v7351
        %v7537 = vmul.f32 %v3124, %v7356
        %v7538 = vmul.f32 %v3598, %v7356
        %v7539 = vmul.f32 %v4072, %v7356
        %v7540 = vmul.f32 %v4546, %v7356
        %v7541 = vmul.f32 %v5020, %v7356
        %v7542 = vmul.f32 %v5494, %v7356
        %v7543 = vmul.f32 %v5968, %v7356
        %v7544 = vmul.f32 %v3126, %v7361
        %v7545 = vmul.f32 %v3600, %v7361
        %v7546 = vmul.f32 %v4074, %v7361
        %v7547 = vmul.f32 %v4548, %v7361
        %v7548 = vmul.f32 %v5022, %v7361
        %v7549 = vmul.f32 %v5496, %v7361
        %v7550 = vmul.f32 %v5970, %v7361
        %v7551 = vmul.f32 %v3129, %v7366
        %v7552 = vmul.f32 %v3603, %v7366
        %v7553 = vmul.f32 %v4077, %v7366
        %v7554 = vmul.f32 %v4551, %v7366
        %v7555 = vmul.f32 %v5025, %v7366
        %v7556 = vmul.f32 %v5499, %v7366
        %v7557 = vmul.f32 %v5973, %v7366
        %v7558 = vmul.f32 %v3131, %v7371
        %v7559 = vmul.f32 %v3605, %v7371
        %v7560 = vmul.f32 %v4079, %v7371
        %v7561 = vmul.f32 %v4553, %v7371
        %v7562 = vmul.f32 %v5027, %v7371
        %v7563 = vmul.f32 %v5501, %v7371
        %v7564 = vmul.f32 %v5975, %v7371
        %v7565 = vmul.f32 %v3134, %v7376
        %v7566 = vmul.f32 %v3608, %v7376
        %v7567 = vmul.f32 %v4082, %v7376
        %v7568 = vmul.f32 %v4556, %v7376
        %v7569 = vmul.f32 %v5030, %v7376
        %v7570 = vmul.f32 %v5504, %v7376
        %v7571 = vmul.f32 %v5978, %v7376
        %v7572 = vmul.f32 %v3136, %v7381
        %v7573 = vmul.f32 %v3610, %v7381
        %v7574 = vmul.f32 %v4084, %v7381
        %v7575 = vmul.f32 %v4558, %v7381
        %v7576 = vmul.f32 %v5032, %v7381
        %v7577 = vmul.f32 %v5506, %v7381
        %v7578 = vmul.f32 %v5980, %v7381
        %7580 = vset.pattern.permute.xlu0 0
        %7581 = vperm.xlu0 %7580, %v7215
        %v7582 = vpop.permute.xlu0 %7581
        %7585 = vset.pattern.permute.xlu0 0
        %7586 = vperm.xlu0 %7585, %v7216
        %v7587 = vpop.permute.xlu0 %7586
        %7590 = vset.pattern.permute.xlu0 0
        %7591 = vperm.xlu0 %7590, %v7217
        %v7592 = vpop.permute.xlu0 %7591
        %7595 = vset.pattern.permute.xlu0 0
        %7596 = vperm.xlu0 %7595, %v7218
        %v7597 = vpop.permute.xlu0 %7596
        %7600 = vset.pattern.permute.xlu0 0
        %7601 = vperm.xlu0 %7600, %v7219
        %v7602 = vpop.permute.xlu0 %7601
        %7605 = vset.pattern.permute.xlu0 0
        %7606 = vperm.xlu0 %7605, %v7220
        %v7607 = vpop.permute.xlu0 %7606
        %7610 = vset.pattern.permute.xlu0 0
        %7611 = vperm.xlu0 %7610, %v7221
        %v7612 = vpop.permute.xlu0 %7611
        %7615 = vset.pattern.permute.xlu0 0
        %7616 = vperm.xlu0 %7615, %v7222
        %v7617 = vpop.permute.xlu0 %7616
        %7620 = vset.pattern.permute.xlu0 0
        %7621 = vperm.xlu0 %7620, %v7223
        %v7622 = vpop.permute.xlu0 %7621
        %7625 = vset.pattern.permute.xlu0 0
        %7626 = vperm.xlu0 %7625, %v7224
        %v7627 = vpop.permute.xlu0 %7626
        %7630 = vset.pattern.permute.xlu0 0
        %7631 = vperm.xlu0 %7630, %v7225
        %v7632 = vpop.permute.xlu0 %7631
        %7635 = vset.pattern.permute.xlu0 0
        %7636 = vperm.xlu0 %7635, %v7226
        %v7637 = vpop.permute.xlu0 %7636
        %7640 = vset.pattern.permute.xlu0 0
        %7641 = vperm.xlu0 %7640, %v7227
        %v7642 = vpop.permute.xlu0 %7641
        %7645 = vset.pattern.permute.xlu0 0
        %7646 = vperm.xlu0 %7645, %v7228
        %v7647 = vpop.permute.xlu0 %7646
        %7650 = vset.pattern.permute.xlu0 0
        %7651 = vperm.xlu0 %7650, %v7229
        %v7652 = vpop.permute.xlu0 %7651
        %7655 = vset.pattern.permute.xlu0 0
        %7656 = vperm.xlu0 %7655, %v7230
        %v7657 = vpop.permute.xlu0 %7656
        %7660 = vset.pattern.permute.xlu0 0
        %7661 = vperm.xlu0 %7660, %v7231
        %v7662 = vpop.permute.xlu0 %7661
        %7665 = vset.pattern.permute.xlu0 0
        %7666 = vperm.xlu0 %7665, %v7232
        %v7667 = vpop.permute.xlu0 %7666
        %7670 = vset.pattern.permute.xlu0 0
        %7671 = vperm.xlu0 %7670, %v7233
        %v7672 = vpop.permute.xlu0 %7671
        %7675 = vset.pattern.permute.xlu0 0
        %7676 = vperm.xlu0 %7675, %v7234
        %v7677 = vpop.permute.xlu0 %7676
        %7680 = vset.pattern.permute.xlu0 0
        %7681 = vperm.xlu0 %7680, %v7235
        %v7682 = vpop.permute.xlu0 %7681
        %7685 = vset.pattern.permute.xlu0 0
        %7686 = vperm.xlu0 %7685, %v7236
        %v7687 = vpop.permute.xlu0 %7686
        %7690 = vset.pattern.permute.xlu0 0
        %7691 = vperm.xlu0 %7690, %v7237
        %v7692 = vpop.permute.xlu0 %7691
        %7695 = vset.pattern.permute.xlu0 0
        %7696 = vperm.xlu0 %7695, %v7238
        %v7697 = vpop.permute.xlu0 %7696
        %7700 = vset.pattern.permute.xlu0 0
        %7701 = vperm.xlu0 %7700, %v7239
        %v7702 = vpop.permute.xlu0 %7701
        %7705 = vset.pattern.permute.xlu0 0
        %7706 = vperm.xlu0 %7705, %v7240
        %v7707 = vpop.permute.xlu0 %7706
        %7710 = vset.pattern.permute.xlu0 0
        %7711 = vperm.xlu0 %7710, %v7241
        %v7712 = vpop.permute.xlu0 %7711
        %7715 = vset.pattern.permute.xlu0 0
        %7716 = vperm.xlu0 %7715, %v7242
        %v7717 = vpop.permute.xlu0 %7716
        %v7719 = vadd.f32 %v7383, %v7582
        %v7720 = vadd.f32 %v7384, %v7582
        %v7721 = vadd.f32 %v7385, %v7582
        %v7722 = vadd.f32 %v7386, %v7582
        %v7723 = vadd.f32 %v7387, %v7582
        %v7724 = vadd.f32 %v7388, %v7582
        %v7725 = vadd.f32 %v7389, %v7582
        %v7726 = vadd.f32 %v7390, %v7587
        %v7727 = vadd.f32 %v7391, %v7587
        %v7728 = vadd.f32 %v7392, %v7587
        %v7729 = vadd.f32 %v7393, %v7587
        %v7730 = vadd.f32 %v7394, %v7587
        %v7731 = vadd.f32 %v7395, %v7587
        %v7732 = vadd.f32 %v7396, %v7587
        %v7733 = vadd.f32 %v7397, %v7592
        %v7734 = vadd.f32 %v7398, %v7592
        %v7735 = vadd.f32 %v7399, %v7592
        %v7736 = vadd.f32 %v7400, %v7592
        %v7737 = vadd.f32 %v7401, %v7592
        %v7738 = vadd.f32 %v7402, %v7592
        %v7739 = vadd.f32 %v7403, %v7592
        %v7740 = vadd.f32 %v7404, %v7597
        %v7741 = vadd.f32 %v7405, %v7597
        %v7742 = vadd.f32 %v7406, %v7597
        %v7743 = vadd.f32 %v7407, %v7597
        %v7744 = vadd.f32 %v7408, %v7597
        %v7745 = vadd.f32 %v7409, %v7597
        %v7746 = vadd.f32 %v7410, %v7597
        %v7747 = vadd.f32 %v7411, %v7602
        %v7748 = vadd.f32 %v7412, %v7602
        %v7749 = vadd.f32 %v7413, %v7602
        %v7750 = vadd.f32 %v7414, %v7602
        %v7751 = vadd.f32 %v7415, %v7602
        %v7752 = vadd.f32 %v7416, %v7602
        %v7753 = vadd.f32 %v7417, %v7602
        %v7754 = vadd.f32 %v7418, %v7607
        %v7755 = vadd.f32 %v7419, %v7607
        %v7756 = vadd.f32 %v7420, %v7607
        %v7757 = vadd.f32 %v7421, %v7607
        %v7758 = vadd.f32 %v7422, %v7607
        %v7759 = vadd.f32 %v7423, %v7607
        %v7760 = vadd.f32 %v7424, %v7607
        %v7761 = vadd.f32 %v7425, %v7612
        %v7762 = vadd.f32 %v7426, %v7612
        %v7763 = vadd.f32 %v7427, %v7612
        %v7764 = vadd.f32 %v7428, %v7612
        %v7765 = vadd.f32 %v7429, %v7612
        %v7766 = vadd.f32 %v7430, %v7612
        %v7767 = vadd.f32 %v7431, %v7612
        %v7768 = vadd.f32 %v7432, %v7617
        %v7769 = vadd.f32 %v7433, %v7617
        %v7770 = vadd.f32 %v7434, %v7617
        %v7771 = vadd.f32 %v7435, %v7617
        %v7772 = vadd.f32 %v7436, %v7617
        %v7773 = vadd.f32 %v7437, %v7617
        %v7774 = vadd.f32 %v7438, %v7617
        %v7775 = vadd.f32 %v7439, %v7622
        %v7776 = vadd.f32 %v7440, %v7622
        %v7777 = vadd.f32 %v7441, %v7622
        %v7778 = vadd.f32 %v7442, %v7622
        %v7779 = vadd.f32 %v7443, %v7622
        %v7780 = vadd.f32 %v7444, %v7622
        %v7781 = vadd.f32 %v7445, %v7622
        %v7782 = vadd.f32 %v7446, %v7627
        %v7783 = vadd.f32 %v7447, %v7627
        %v7784 = vadd.f32 %v7448, %v7627
        %v7785 = vadd.f32 %v7449, %v7627
        %v7786 = vadd.f32 %v7450, %v7627
        %v7787 = vadd.f32 %v7451, %v7627
        %v7788 = vadd.f32 %v7452, %v7627
        %v7789 = vadd.f32 %v7453, %v7632
        %v7790 = vadd.f32 %v7454, %v7632
        %v7791 = vadd.f32 %v7455, %v7632
        %v7792 = vadd.f32 %v7456, %v7632
        %v7793 = vadd.f32 %v7457, %v7632
        %v7794 = vadd.f32 %v7458, %v7632
        %v7795 = vadd.f32 %v7459, %v7632
        %v7796 = vadd.f32 %v7460, %v7637
        %v7797 = vadd.f32 %v7461, %v7637
        %v7798 = vadd.f32 %v7462, %v7637
        %v7799 = vadd.f32 %v7463, %v7637
        %v7800 = vadd.f32 %v7464, %v7637
        %v7801 = vadd.f32 %v7465, %v7637
        %v7802 = vadd.f32 %v7466, %v7637
        %v7803 = vadd.f32 %v7467, %v7642
        %v7804 = vadd.f32 %v7468, %v7642
        %v7805 = vadd.f32 %v7469, %v7642
        %v7806 = vadd.f32 %v7470, %v7642
        %v7807 = vadd.f32 %v7471, %v7642
        %v7808 = vadd.f32 %v7472, %v7642
        %v7809 = vadd.f32 %v7473, %v7642
        %v7810 = vadd.f32 %v7474, %v7647
        %v7811 = vadd.f32 %v7475, %v7647
        %v7812 = vadd.f32 %v7476, %v7647
        %v7813 = vadd.f32 %v7477, %v7647
        %v7814 = vadd.f32 %v7478, %v7647
        %v7815 = vadd.f32 %v7479, %v7647
        %v7816 = vadd.f32 %v7480, %v7647
        %v7817 = vadd.f32 %v7481, %v7652
        %v7818 = vadd.f32 %v7482, %v7652
        %v7819 = vadd.f32 %v7483, %v7652
        %v7820 = vadd.f32 %v7484, %v7652
        %v7821 = vadd.f32 %v7485, %v7652
        %v7822 = vadd.f32 %v7486, %v7652
        %v7823 = vadd.f32 %v7487, %v7652
        %v7824 = vadd.f32 %v7488, %v7657
        %v7825 = vadd.f32 %v7489, %v7657
        %v7826 = vadd.f32 %v7490, %v7657
        %v7827 = vadd.f32 %v7491, %v7657
        %v7828 = vadd.f32 %v7492, %v7657
        %v7829 = vadd.f32 %v7493, %v7657
        %v7830 = vadd.f32 %v7494, %v7657
        %v7831 = vadd.f32 %v7495, %v7662
        %v7832 = vadd.f32 %v7496, %v7662
        %v7833 = vadd.f32 %v7497, %v7662
        %v7834 = vadd.f32 %v7498, %v7662
        %v7835 = vadd.f32 %v7499, %v7662
        %v7836 = vadd.f32 %v7500, %v7662
        %v7837 = vadd.f32 %v7501, %v7662
        %v7838 = vadd.f32 %v7502, %v7667
        %v7839 = vadd.f32 %v7503, %v7667
        %v7840 = vadd.f32 %v7504, %v7667
        %v7841 = vadd.f32 %v7505, %v7667
        %v7842 = vadd.f32 %v7506, %v7667
        %v7843 = vadd.f32 %v7507, %v7667
        %v7844 = vadd.f32 %v7508, %v7667
        %v7845 = vadd.f32 %v7509, %v7672
        %v7846 = vadd.f32 %v7510, %v7672
        %v7847 = vadd.f32 %v7511, %v7672
        %v7848 = vadd.f32 %v7512, %v7672
        %v7849 = vadd.f32 %v7513, %v7672
        %v7850 = vadd.f32 %v7514, %v7672
        %v7851 = vadd.f32 %v7515, %v7672
        %v7852 = vadd.f32 %v7516, %v7677
        %v7853 = vadd.f32 %v7517, %v7677
        %v7854 = vadd.f32 %v7518, %v7677
        %v7855 = vadd.f32 %v7519, %v7677
        %v7856 = vadd.f32 %v7520, %v7677
        %v7857 = vadd.f32 %v7521, %v7677
        %v7858 = vadd.f32 %v7522, %v7677
        %v7859 = vadd.f32 %v7523, %v7682
        %v7860 = vadd.f32 %v7524, %v7682
        %v7861 = vadd.f32 %v7525, %v7682
        %v7862 = vadd.f32 %v7526, %v7682
        %v7863 = vadd.f32 %v7527, %v7682
        %v7864 = vadd.f32 %v7528, %v7682
        %v7865 = vadd.f32 %v7529, %v7682
        %v7866 = vadd.f32 %v7530, %v7687
        %v7867 = vadd.f32 %v7531, %v7687
        %v7868 = vadd.f32 %v7532, %v7687
        %v7869 = vadd.f32 %v7533, %v7687
        %v7870 = vadd.f32 %v7534, %v7687
        %v7871 = vadd.f32 %v7535, %v7687
        %v7872 = vadd.f32 %v7536, %v7687
        %v7873 = vadd.f32 %v7537, %v7692
        %v7874 = vadd.f32 %v7538, %v7692
        %v7875 = vadd.f32 %v7539, %v7692
        %v7876 = vadd.f32 %v7540, %v7692
        %v7877 = vadd.f32 %v7541, %v7692
        %v7878 = vadd.f32 %v7542, %v7692
        %v7879 = vadd.f32 %v7543, %v7692
        %v7880 = vadd.f32 %v7544, %v7697
        %v7881 = vadd.f32 %v7545, %v7697
        %v7882 = vadd.f32 %v7546, %v7697
        %v7883 = vadd.f32 %v7547, %v7697
        %v7884 = vadd.f32 %v7548, %v7697
        %v7885 = vadd.f32 %v7549, %v7697
        %v7886 = vadd.f32 %v7550, %v7697
        %v7887 = vadd.f32 %v7551, %v7702
        %v7888 = vadd.f32 %v7552, %v7702
        %v7889 = vadd.f32 %v7553, %v7702
        %v7890 = vadd.f32 %v7554, %v7702
        %v7891 = vadd.f32 %v7555, %v7702
        %v7892 = vadd.f32 %v7556, %v7702
        %v7893 = vadd.f32 %v7557, %v7702
        %v7894 = vadd.f32 %v7558, %v7707
        %v7895 = vadd.f32 %v7559, %v7707
        %v7896 = vadd.f32 %v7560, %v7707
        %v7897 = vadd.f32 %v7561, %v7707
        %v7898 = vadd.f32 %v7562, %v7707
        %v7899 = vadd.f32 %v7563, %v7707
        %v7900 = vadd.f32 %v7564, %v7707
        %v7901 = vadd.f32 %v7565, %v7712
        %v7902 = vadd.f32 %v7566, %v7712
        %v7903 = vadd.f32 %v7567, %v7712
        %v7904 = vadd.f32 %v7568, %v7712
        %v7905 = vadd.f32 %v7569, %v7712
        %v7906 = vadd.f32 %v7570, %v7712
        %v7907 = vadd.f32 %v7571, %v7712
        %v7908 = vadd.f32 %v7572, %v7717
        %v7909 = vadd.f32 %v7573, %v7717
        %v7910 = vadd.f32 %v7574, %v7717
        %v7911 = vadd.f32 %v7575, %v7717
        %v7912 = vadd.f32 %v7576, %v7717
        %v7913 = vadd.f32 %v7577, %v7717
        %v7914 = vadd.f32 %v7578, %v7717
        %v7915 = vmax.f32 %v7719, 0.0
        %v7916 = vmax.f32 %v7720, 0.0
        %v7917 = vmax.f32 %v7721, 0.0
        %v7918 = vmax.f32 %v7722, 0.0
        %v7919 = vmax.f32 %v7723, 0.0
        %v7920 = vmax.f32 %v7724, 0.0
        %v7921 = vmax.f32 %v7725, 0.0
        %v7922 = vmax.f32 %v7726, 0.0
        %v7923 = vmax.f32 %v7727, 0.0
        %v7924 = vmax.f32 %v7728, 0.0
        %v7925 = vmax.f32 %v7729, 0.0
        %v7926 = vmax.f32 %v7730, 0.0
        %v7927 = vmax.f32 %v7731, 0.0
        %v7928 = vmax.f32 %v7732, 0.0
        %v7929 = vmax.f32 %v7733, 0.0
        %v7930 = vmax.f32 %v7734, 0.0
        %v7931 = vmax.f32 %v7735, 0.0
        %v7932 = vmax.f32 %v7736, 0.0
        %v7933 = vmax.f32 %v7737, 0.0
        %v7934 = vmax.f32 %v7738, 0.0
        %v7935 = vmax.f32 %v7739, 0.0
        %v7936 = vmax.f32 %v7740, 0.0
        %v7937 = vmax.f32 %v7741, 0.0
        %v7938 = vmax.f32 %v7742, 0.0
        %v7939 = vmax.f32 %v7743, 0.0
        %v7940 = vmax.f32 %v7744, 0.0
        %v7941 = vmax.f32 %v7745, 0.0
        %v7942 = vmax.f32 %v7746, 0.0
        %v7943 = vmax.f32 %v7747, 0.0
        %v7944 = vmax.f32 %v7748, 0.0
        %v7945 = vmax.f32 %v7749, 0.0
        %v7946 = vmax.f32 %v7750, 0.0
        %v7947 = vmax.f32 %v7751, 0.0
        %v7948 = vmax.f32 %v7752, 0.0
        %v7949 = vmax.f32 %v7753, 0.0
        %v7950 = vmax.f32 %v7754, 0.0
        %v7951 = vmax.f32 %v7755, 0.0
        %v7952 = vmax.f32 %v7756, 0.0
        %v7953 = vmax.f32 %v7757, 0.0
        %v7954 = vmax.f32 %v7758, 0.0
        %v7955 = vmax.f32 %v7759, 0.0
        %v7956 = vmax.f32 %v7760, 0.0
        %v7957 = vmax.f32 %v7761, 0.0
        %v7958 = vmax.f32 %v7762, 0.0
        %v7959 = vmax.f32 %v7763, 0.0
        %v7960 = vmax.f32 %v7764, 0.0
        %v7961 = vmax.f32 %v7765, 0.0
        %v7962 = vmax.f32 %v7766, 0.0
        %v7963 = vmax.f32 %v7767, 0.0
        %v7964 = vmax.f32 %v7768, 0.0
        %v7965 = vmax.f32 %v7769, 0.0
        %v7966 = vmax.f32 %v7770, 0.0
        %v7967 = vmax.f32 %v7771, 0.0
        %v7968 = vmax.f32 %v7772, 0.0
        %v7969 = vmax.f32 %v7773, 0.0
        %v7970 = vmax.f32 %v7774, 0.0
        %v7971 = vmax.f32 %v7775, 0.0
        %v7972 = vmax.f32 %v7776, 0.0
        %v7973 = vmax.f32 %v7777, 0.0
        %v7974 = vmax.f32 %v7778, 0.0
        %v7975 = vmax.f32 %v7779, 0.0
        %v7976 = vmax.f32 %v7780, 0.0
        %v7977 = vmax.f32 %v7781, 0.0
        %v7978 = vmax.f32 %v7782, 0.0
        %v7979 = vmax.f32 %v7783, 0.0
        %v7980 = vmax.f32 %v7784, 0.0
        %v7981 = vmax.f32 %v7785, 0.0
        %v7982 = vmax.f32 %v7786, 0.0
        %v7983 = vmax.f32 %v7787, 0.0
        %v7984 = vmax.f32 %v7788, 0.0
        %v7985 = vmax.f32 %v7789, 0.0
        %v7986 = vmax.f32 %v7790, 0.0
        %v7987 = vmax.f32 %v7791, 0.0
        %v7988 = vmax.f32 %v7792, 0.0
        %v7989 = vmax.f32 %v7793, 0.0
        %v7990 = vmax.f32 %v7794, 0.0
        %v7991 = vmax.f32 %v7795, 0.0
        %v7992 = vmax.f32 %v7796, 0.0
        %v7993 = vmax.f32 %v7797, 0.0
        %v7994 = vmax.f32 %v7798, 0.0
        %v7995 = vmax.f32 %v7799, 0.0
        %v7996 = vmax.f32 %v7800, 0.0
        %v7997 = vmax.f32 %v7801, 0.0
        %v7998 = vmax.f32 %v7802, 0.0
        %v7999 = vmax.f32 %v7803, 0.0
        %v8000 = vmax.f32 %v7804, 0.0
        %v8001 = vmax.f32 %v7805, 0.0
        %v8002 = vmax.f32 %v7806, 0.0
        %v8003 = vmax.f32 %v7807, 0.0
        %v8004 = vmax.f32 %v7808, 0.0
        %v8005 = vmax.f32 %v7809, 0.0
        %v8006 = vmax.f32 %v7810, 0.0
        %v8007 = vmax.f32 %v7811, 0.0
        %v8008 = vmax.f32 %v7812, 0.0
        %v8009 = vmax.f32 %v7813, 0.0
        %v8010 = vmax.f32 %v7814, 0.0
        %v8011 = vmax.f32 %v7815, 0.0
        %v8012 = vmax.f32 %v7816, 0.0
        %v8013 = vmax.f32 %v7817, 0.0
        %v8014 = vmax.f32 %v7818, 0.0
        %v8015 = vmax.f32 %v7819, 0.0
        %v8016 = vmax.f32 %v7820, 0.0
        %v8017 = vmax.f32 %v7821, 0.0
        %v8018 = vmax.f32 %v7822, 0.0
        %v8019 = vmax.f32 %v7823, 0.0
        %v8020 = vmax.f32 %v7824, 0.0
        %v8021 = vmax.f32 %v7825, 0.0
        %v8022 = vmax.f32 %v7826, 0.0
        %v8023 = vmax.f32 %v7827, 0.0
        %v8024 = vmax.f32 %v7828, 0.0
        %v8025 = vmax.f32 %v7829, 0.0
        %v8026 = vmax.f32 %v7830, 0.0
        %v8027 = vmax.f32 %v7831, 0.0
        %v8028 = vmax.f32 %v7832, 0.0
        %v8029 = vmax.f32 %v7833, 0.0
        %v8030 = vmax.f32 %v7834, 0.0
        %v8031 = vmax.f32 %v7835, 0.0
        %v8032 = vmax.f32 %v7836, 0.0
        %v8033 = vmax.f32 %v7837, 0.0
        %v8034 = vmax.f32 %v7838, 0.0
        %v8035 = vmax.f32 %v7839, 0.0
        %v8036 = vmax.f32 %v7840, 0.0
        %v8037 = vmax.f32 %v7841, 0.0
        %v8038 = vmax.f32 %v7842, 0.0
        %v8039 = vmax.f32 %v7843, 0.0
        %v8040 = vmax.f32 %v7844, 0.0
        %v8041 = vmax.f32 %v7845, 0.0
        %v8042 = vmax.f32 %v7846, 0.0
        %v8043 = vmax.f32 %v7847, 0.0
        %v8044 = vmax.f32 %v7848, 0.0
        %v8045 = vmax.f32 %v7849, 0.0
        %v8046 = vmax.f32 %v7850, 0.0
        %v8047 = vmax.f32 %v7851, 0.0
        %v8048 = vmax.f32 %v7852, 0.0
        %v8049 = vmax.f32 %v7853, 0.0
        %v8050 = vmax.f32 %v7854, 0.0
        %v8051 = vmax.f32 %v7855, 0.0
        %v8052 = vmax.f32 %v7856, 0.0
        %v8053 = vmax.f32 %v7857, 0.0
        %v8054 = vmax.f32 %v7858, 0.0
        %v8055 = vmax.f32 %v7859, 0.0
        %v8056 = vmax.f32 %v7860, 0.0
        %v8057 = vmax.f32 %v7861, 0.0
        %v8058 = vmax.f32 %v7862, 0.0
        %v8059 = vmax.f32 %v7863, 0.0
        %v8060 = vmax.f32 %v7864, 0.0
        %v8061 = vmax.f32 %v7865, 0.0
        %v8062 = vmax.f32 %v7866, 0.0
        %v8063 = vmax.f32 %v7867, 0.0
        %v8064 = vmax.f32 %v7868, 0.0
        %v8065 = vmax.f32 %v7869, 0.0
        %v8066 = vmax.f32 %v7870, 0.0
        %v8067 = vmax.f32 %v7871, 0.0
        %v8068 = vmax.f32 %v7872, 0.0
        %v8069 = vmax.f32 %v7873, 0.0
        %v8070 = vmax.f32 %v7874, 0.0
        %v8071 = vmax.f32 %v7875, 0.0
        %v8072 = vmax.f32 %v7876, 0.0
        %v8073 = vmax.f32 %v7877, 0.0
        %v8074 = vmax.f32 %v7878, 0.0
        %v8075 = vmax.f32 %v7879, 0.0
        %v8076 = vmax.f32 %v7880, 0.0
        %v8077 = vmax.f32 %v7881, 0.0
        %v8078 = vmax.f32 %v7882, 0.0
        %v8079 = vmax.f32 %v7883, 0.0
        %v8080 = vmax.f32 %v7884, 0.0
        %v8081 = vmax.f32 %v7885, 0.0
        %v8082 = vmax.f32 %v7886, 0.0
        %v8083 = vmax.f32 %v7887, 0.0
        %v8084 = vmax.f32 %v7888, 0.0
        %v8085 = vmax.f32 %v7889, 0.0
        %v8086 = vmax.f32 %v7890, 0.0
        %v8087 = vmax.f32 %v7891, 0.0
        %v8088 = vmax.f32 %v7892, 0.0
        %v8089 = vmax.f32 %v7893, 0.0
        %v8090 = vmax.f32 %v7894, 0.0
        %v8091 = vmax.f32 %v7895, 0.0
        %v8092 = vmax.f32 %v7896, 0.0
        %v8093 = vmax.f32 %v7897, 0.0
        %v8094 = vmax.f32 %v7898, 0.0
        %v8095 = vmax.f32 %v7899, 0.0
        %v8096 = vmax.f32 %v7900, 0.0
        %v8097 = vmax.f32 %v7901, 0.0
        %v8098 = vmax.f32 %v7902, 0.0
        %v8099 = vmax.f32 %v7903, 0.0
        %v8100 = vmax.f32 %v7904, 0.0
        %v8101 = vmax.f32 %v7905, 0.0
        %v8102 = vmax.f32 %v7906, 0.0
        %v8103 = vmax.f32 %v7907, 0.0
        %v8104 = vmax.f32 %v7908, 0.0
        %v8105 = vmax.f32 %v7909, 0.0
        %v8106 = vmax.f32 %v7910, 0.0
        %v8107 = vmax.f32 %v7911, 0.0
        %v8108 = vmax.f32 %v7912, 0.0
        %v8109 = vmax.f32 %v7913, 0.0
        %v8110 = vmax.f32 %v7914, 0.0
        %8111 = vst [vmem:[%s267] sm:$0xff] %v7915
        %8112 = vst [vmem:[%s267 + $0x8] sm:$0xff] %v7916
        %8113 = vst [vmem:[%s267 + $0x10] sm:$0xff] %v7917
        %8114 = vst [vmem:[%s267 + $0x18] sm:$0xff] %v7918
        %8115 = vst [vmem:[%s267 + $0x20] sm:$0xff] %v7919
        %8116 = vst [vmem:[%s267 + $0x28] sm:$0xff] %v7920
        %8117 = vst.msk [vmem:[%s267 + $0x30] sm:$0xff] %vm5987, %v7921
        %8118 = vst [vmem:[%s267 + $0x38] sm:$0xff] %v7922
        %8119 = vst [vmem:[%s267 + $0x40] sm:$0xff] %v7923
        %8120 = vst [vmem:[%s267 + $0x48] sm:$0xff] %v7924
        %8121 = vst [vmem:[%s267 + $0x50] sm:$0xff] %v7925
        %8122 = vst [vmem:[%s267 + $0x58] sm:$0xff] %v7926
        %8123 = vst [vmem:[%s267 + $0x60] sm:$0xff] %v7927
        %8124 = vst.msk [vmem:[%s267 + $0x68] sm:$0xff] %vm5987, %v7928
        %8125 = vst [vmem:[%s267 + $0x70] sm:$0xff] %v7929
        %8126 = vst [vmem:[%s267 + $0x78] sm:$0xff] %v7930
        %8127 = vst [vmem:[%s267 + $0x80] sm:$0xff] %v7931
        %8128 = vst [vmem:[%s267 + $0x88] sm:$0xff] %v7932
        %8129 = vst [vmem:[%s267 + $0x90] sm:$0xff] %v7933
        %8130 = vst [vmem:[%s267 + $0x98] sm:$0xff] %v7934
        %8131 = vst.msk [vmem:[%s267 + $0xa0] sm:$0xff] %vm5987, %v7935
        %8132 = vst [vmem:[%s267 + $0xa8] sm:$0xff] %v7936
        %8133 = vst [vmem:[%s267 + $0xb0] sm:$0xff] %v7937
        %8134 = vst [vmem:[%s267 + $0xb8] sm:$0xff] %v7938
        %8135 = vst [vmem:[%s267 + $0xc0] sm:$0xff] %v7939
        %8136 = vst [vmem:[%s267 + $0xc8] sm:$0xff] %v7940
        %8137 = vst [vmem:[%s267 + $0xd0] sm:$0xff] %v7941
        %8138 = vst.msk [vmem:[%s267 + $0xd8] sm:$0xff] %vm5987, %v7942
        %8139 = vst [vmem:[%s267 + $0xe0] sm:$0xff] %v7943
        %8140 = vst [vmem:[%s267 + $0xe8] sm:$0xff] %v7944
        %8141 = vst [vmem:[%s267 + $0xf0] sm:$0xff] %v7945
        %8142 = vst [vmem:[%s267 + $0xf8] sm:$0xff] %v7946
        %8143 = vst [vmem:[%s267 + $0x100] sm:$0xff] %v7947
        %8144 = vst [vmem:[%s267 + $0x108] sm:$0xff] %v7948
        %8145 = vst.msk [vmem:[%s267 + $0x110] sm:$0xff] %vm5987, %v7949
        %8146 = vst [vmem:[%s267 + $0x118] sm:$0xff] %v7950
        %8147 = vst [vmem:[%s267 + $0x120] sm:$0xff] %v7951
        %8148 = vst [vmem:[%s267 + $0x128] sm:$0xff] %v7952
        %8149 = vst [vmem:[%s267 + $0x130] sm:$0xff] %v7953
        %8150 = vst [vmem:[%s267 + $0x138] sm:$0xff] %v7954
        %8151 = vst [vmem:[%s267 + $0x140] sm:$0xff] %v7955
        %8152 = vst.msk [vmem:[%s267 + $0x148] sm:$0xff] %vm5987, %v7956
        %8153 = vst [vmem:[%s267 + $0x150] sm:$0xff] %v7957
        %8154 = vst [vmem:[%s267 + $0x158] sm:$0xff] %v7958
        %8155 = vst [vmem:[%s267 + $0x160] sm:$0xff] %v7959
        %8156 = vst [vmem:[%s267 + $0x168] sm:$0xff] %v7960
        %8157 = vst [vmem:[%s267 + $0x170] sm:$0xff] %v7961
        %8158 = vst [vmem:[%s267 + $0x178] sm:$0xff] %v7962
        %8159 = vst.msk [vmem:[%s267 + $0x180] sm:$0xff] %vm5987, %v7963
        %8160 = vst [vmem:[%s267 + $0x188] sm:$0xff] %v7964
        %8161 = vst [vmem:[%s267 + $0x190] sm:$0xff] %v7965
        %8162 = vst [vmem:[%s267 + $0x198] sm:$0xff] %v7966
        %8163 = vst [vmem:[%s267 + $0x1a0] sm:$0xff] %v7967
        %8164 = vst [vmem:[%s267 + $0x1a8] sm:$0xff] %v7968
        %8165 = vst [vmem:[%s267 + $0x1b0] sm:$0xff] %v7969
        %8166 = vst.msk [vmem:[%s267 + $0x1b8] sm:$0xff] %vm5987, %v7970
        %8167 = vst [vmem:[%s267 + $0x1c0] sm:$0xff] %v7971
        %8168 = vst [vmem:[%s267 + $0x1c8] sm:$0xff] %v7972
        %8169 = vst [vmem:[%s267 + $0x1d0] sm:$0xff] %v7973
        %8170 = vst [vmem:[%s267 + $0x1d8] sm:$0xff] %v7974
        %8171 = vst [vmem:[%s267 + $0x1e0] sm:$0xff] %v7975
        %8172 = vst [vmem:[%s267 + $0x1e8] sm:$0xff] %v7976
        %8173 = vst.msk [vmem:[%s267 + $0x1f0] sm:$0xff] %vm5987, %v7977
        %8174 = vst [vmem:[%s267 + $0x1f8] sm:$0xff] %v7978
        %8175 = vst [vmem:[%s267 + $0x200] sm:$0xff] %v7979
        %8176 = vst [vmem:[%s267 + $0x208] sm:$0xff] %v7980
        %8177 = vst [vmem:[%s267 + $0x210] sm:$0xff] %v7981
        %8178 = vst [vmem:[%s267 + $0x218] sm:$0xff] %v7982
        %8179 = vst [vmem:[%s267 + $0x220] sm:$0xff] %v7983
        %8180 = vst.msk [vmem:[%s267 + $0x228] sm:$0xff] %vm5987, %v7984
        %8181 = vst [vmem:[%s267 + $0x230] sm:$0xff] %v7985
        %8182 = vst [vmem:[%s267 + $0x238] sm:$0xff] %v7986
        %8183 = vst [vmem:[%s267 + $0x240] sm:$0xff] %v7987
        %8184 = vst [vmem:[%s267 + $0x248] sm:$0xff] %v7988
        %8185 = vst [vmem:[%s267 + $0x250] sm:$0xff] %v7989
        %8186 = vst [vmem:[%s267 + $0x258] sm:$0xff] %v7990
        %8187 = vst.msk [vmem:[%s267 + $0x260] sm:$0xff] %vm5987, %v7991
        %8188 = vst [vmem:[%s267 + $0x268] sm:$0xff] %v7992
        %8189 = vst [vmem:[%s267 + $0x270] sm:$0xff] %v7993
        %8190 = vst [vmem:[%s267 + $0x278] sm:$0xff] %v7994
        %8191 = vst [vmem:[%s267 + $0x280] sm:$0xff] %v7995
        %8192 = vst [vmem:[%s267 + $0x288] sm:$0xff] %v7996
        %8193 = vst [vmem:[%s267 + $0x290] sm:$0xff] %v7997
        %8194 = vst.msk [vmem:[%s267 + $0x298] sm:$0xff] %vm5987, %v7998
        %8195 = vst [vmem:[%s267 + $0x2a0] sm:$0xff] %v7999
        %8196 = vst [vmem:[%s267 + $0x2a8] sm:$0xff] %v8000
        %8197 = vst [vmem:[%s267 + $0x2b0] sm:$0xff] %v8001
        %8198 = vst [vmem:[%s267 + $0x2b8] sm:$0xff] %v8002
        %8199 = vst [vmem:[%s267 + $0x2c0] sm:$0xff] %v8003
        %8200 = vst [vmem:[%s267 + $0x2c8] sm:$0xff] %v8004
        %8201 = vst.msk [vmem:[%s267 + $0x2d0] sm:$0xff] %vm5987, %v8005
        %8202 = vst [vmem:[%s267 + $0x2d8] sm:$0xff] %v8006
        %8203 = vst [vmem:[%s267 + $0x2e0] sm:$0xff] %v8007
        %8204 = vst [vmem:[%s267 + $0x2e8] sm:$0xff] %v8008
        %8205 = vst [vmem:[%s267 + $0x2f0] sm:$0xff] %v8009
        %8206 = vst [vmem:[%s267 + $0x2f8] sm:$0xff] %v8010
        %8207 = vst [vmem:[%s267 + $0x300] sm:$0xff] %v8011
        %8208 = vst.msk [vmem:[%s267 + $0x308] sm:$0xff] %vm5987, %v8012
        %8209 = vst [vmem:[%s267 + $0x310] sm:$0xff] %v8013
        %8210 = vst [vmem:[%s267 + $0x318] sm:$0xff] %v8014
        %8211 = vst [vmem:[%s267 + $0x320] sm:$0xff] %v8015
        %8212 = vst [vmem:[%s267 + $0x328] sm:$0xff] %v8016
        %8213 = vst [vmem:[%s267 + $0x330] sm:$0xff] %v8017
        %8214 = vst [vmem:[%s267 + $0x338] sm:$0xff] %v8018
        %8215 = vst.msk [vmem:[%s267 + $0x340] sm:$0xff] %vm5987, %v8019
        %8216 = vst [vmem:[%s267 + $0x348] sm:$0xff] %v8020
        %8217 = vst [vmem:[%s267 + $0x350] sm:$0xff] %v8021
        %8218 = vst [vmem:[%s267 + $0x358] sm:$0xff] %v8022
        %8219 = vst [vmem:[%s267 + $0x360] sm:$0xff] %v8023
        %8220 = vst [vmem:[%s267 + $0x368] sm:$0xff] %v8024
        %8221 = vst [vmem:[%s267 + $0x370] sm:$0xff] %v8025
        %8222 = vst.msk [vmem:[%s267 + $0x378] sm:$0xff] %vm5987, %v8026
        %8223 = vst [vmem:[%s267 + $0x380] sm:$0xff] %v8027
        %8224 = vst [vmem:[%s267 + $0x388] sm:$0xff] %v8028
        %8225 = vst [vmem:[%s267 + $0x390] sm:$0xff] %v8029
        %8226 = vst [vmem:[%s267 + $0x398] sm:$0xff] %v8030
        %8227 = vst [vmem:[%s267 + $0x3a0] sm:$0xff] %v8031
        %8228 = vst [vmem:[%s267 + $0x3a8] sm:$0xff] %v8032
        %8229 = vst.msk [vmem:[%s267 + $0x3b0] sm:$0xff] %vm5987, %v8033
        %8230 = vst [vmem:[%s267 + $0x3b8] sm:$0xff] %v8034
        %8231 = vst [vmem:[%s267 + $0x3c0] sm:$0xff] %v8035
        %8232 = vst [vmem:[%s267 + $0x3c8] sm:$0xff] %v8036
        %8233 = vst [vmem:[%s267 + $0x3d0] sm:$0xff] %v8037
        %8234 = vst [vmem:[%s267 + $0x3d8] sm:$0xff] %v8038
        %8235 = vst [vmem:[%s267 + $0x3e0] sm:$0xff] %v8039
        %8236 = vst.msk [vmem:[%s267 + $0x3e8] sm:$0xff] %vm5987, %v8040
        %8237 = vst [vmem:[%s267 + $0x3f0] sm:$0xff] %v8041
        %8238 = vst [vmem:[%s267 + $0x3f8] sm:$0xff] %v8042
        %8239 = vst [vmem:[%s267 + $0x400] sm:$0xff] %v8043
        %8240 = vst [vmem:[%s267 + $0x408] sm:$0xff] %v8044
        %8241 = vst [vmem:[%s267 + $0x410] sm:$0xff] %v8045
        %8242 = vst [vmem:[%s267 + $0x418] sm:$0xff] %v8046
        %8243 = vst.msk [vmem:[%s267 + $0x420] sm:$0xff] %vm5987, %v8047
        %8244 = vst [vmem:[%s267 + $0x428] sm:$0xff] %v8048
        %8245 = vst [vmem:[%s267 + $0x430] sm:$0xff] %v8049
        %8246 = vst [vmem:[%s267 + $0x438] sm:$0xff] %v8050
        %8247 = vst [vmem:[%s267 + $0x440] sm:$0xff] %v8051
        %8248 = vst [vmem:[%s267 + $0x448] sm:$0xff] %v8052
        %8249 = vst [vmem:[%s267 + $0x450] sm:$0xff] %v8053
        %8250 = vst.msk [vmem:[%s267 + $0x458] sm:$0xff] %vm5987, %v8054
        %8251 = vst [vmem:[%s267 + $0x460] sm:$0xff] %v8055
        %8252 = vst [vmem:[%s267 + $0x468] sm:$0xff] %v8056
        %8253 = vst [vmem:[%s267 + $0x470] sm:$0xff] %v8057
        %8254 = vst [vmem:[%s267 + $0x478] sm:$0xff] %v8058
        %8255 = vst [vmem:[%s267 + $0x480] sm:$0xff] %v8059
        %8256 = vst [vmem:[%s267 + $0x488] sm:$0xff] %v8060
        %8257 = vst.msk [vmem:[%s267 + $0x490] sm:$0xff] %vm5987, %v8061
        %8258 = vst [vmem:[%s267 + $0x498] sm:$0xff] %v8062
        %8259 = vst [vmem:[%s267 + $0x4a0] sm:$0xff] %v8063
        %8260 = vst [vmem:[%s267 + $0x4a8] sm:$0xff] %v8064
        %8261 = vst [vmem:[%s267 + $0x4b0] sm:$0xff] %v8065
        %8262 = vst [vmem:[%s267 + $0x4b8] sm:$0xff] %v8066
        %8263 = vst [vmem:[%s267 + $0x4c0] sm:$0xff] %v8067
        %8264 = vst.msk [vmem:[%s267 + $0x4c8] sm:$0xff] %vm5987, %v8068
        %8265 = vst [vmem:[%s267 + $0x4d0] sm:$0xff] %v8069
        %8266 = vst [vmem:[%s267 + $0x4d8] sm:$0xff] %v8070
        %8267 = vst [vmem:[%s267 + $0x4e0] sm:$0xff] %v8071
        %8268 = vst [vmem:[%s267 + $0x4e8] sm:$0xff] %v8072
        %8269 = vst [vmem:[%s267 + $0x4f0] sm:$0xff] %v8073
        %8270 = vst [vmem:[%s267 + $0x4f8] sm:$0xff] %v8074
        %8271 = vst.msk [vmem:[%s267 + $0x500] sm:$0xff] %vm5987, %v8075
        %8272 = vst [vmem:[%s267 + $0x508] sm:$0xff] %v8076
        %8273 = vst [vmem:[%s267 + $0x510] sm:$0xff] %v8077
        %8274 = vst [vmem:[%s267 + $0x518] sm:$0xff] %v8078
        %8275 = vst [vmem:[%s267 + $0x520] sm:$0xff] %v8079
        %8276 = vst [vmem:[%s267 + $0x528] sm:$0xff] %v8080
        %8277 = vst [vmem:[%s267 + $0x530] sm:$0xff] %v8081
        %8278 = vst.msk [vmem:[%s267 + $0x538] sm:$0xff] %vm5987, %v8082
        %8279 = vst [vmem:[%s267 + $0x540] sm:$0xff] %v8083
        %8280 = vst [vmem:[%s267 + $0x548] sm:$0xff] %v8084
        %8281 = vst [vmem:[%s267 + $0x550] sm:$0xff] %v8085
        %8282 = vst [vmem:[%s267 + $0x558] sm:$0xff] %v8086
        %8283 = vst [vmem:[%s267 + $0x560] sm:$0xff] %v8087
        %8284 = vst [vmem:[%s267 + $0x568] sm:$0xff] %v8088
        %8285 = vst.msk [vmem:[%s267 + $0x570] sm:$0xff] %vm5987, %v8089
        %8286 = vst [vmem:[%s267 + $0x578] sm:$0xff] %v8090
        %8287 = vst [vmem:[%s267 + $0x580] sm:$0xff] %v8091
        %8288 = vst [vmem:[%s267 + $0x588] sm:$0xff] %v8092
        %8289 = vst [vmem:[%s267 + $0x590] sm:$0xff] %v8093
        %8290 = vst [vmem:[%s267 + $0x598] sm:$0xff] %v8094
        %8291 = vst [vmem:[%s267 + $0x5a0] sm:$0xff] %v8095
        %8292 = vst.msk [vmem:[%s267 + $0x5a8] sm:$0xff] %vm5987, %v8096
        %8293 = vst [vmem:[%s267 + $0x5b0] sm:$0xff] %v8097
        %8294 = vst [vmem:[%s267 + $0x5b8] sm:$0xff] %v8098
        %8295 = vst [vmem:[%s267 + $0x5c0] sm:$0xff] %v8099
        %8296 = vst [vmem:[%s267 + $0x5c8] sm:$0xff] %v8100
        %8297 = vst [vmem:[%s267 + $0x5d0] sm:$0xff] %v8101
        %8298 = vst [vmem:[%s267 + $0x5d8] sm:$0xff] %v8102
        %8299 = vst.msk [vmem:[%s267 + $0x5e0] sm:$0xff] %vm5987, %v8103
        %8300 = vst [vmem:[%s267 + $0x5e8] sm:$0xff] %v8104
        %8301 = vst [vmem:[%s267 + $0x5f0] sm:$0xff] %v8105
        %8302 = vst [vmem:[%s267 + $0x5f8] sm:$0xff] %v8106
        %8303 = vst [vmem:[%s267 + $0x600] sm:$0xff] %v8107
        %8304 = vst [vmem:[%s267 + $0x608] sm:$0xff] %v8108
        %8305 = vst [vmem:[%s267 + $0x610] sm:$0xff] %v8109
        %8306 = vst.msk [vmem:[%s267 + $0x618] sm:$0xff] %vm5987, %v8110
        %s8307 = sand.u32 %s129, 1
        %s8308 = scalar_lea.sflag [#allocation4], %s8307
        %s8309 = sand.u32 %s129, 1
        %s8310 = smul.addr %s8309, 1568
        %s8311 = scalar_lea.vmem [#allocation7], %s8310
        // Predicated region
        $region45: #{tpu_custom_call.1} parent=35 // pred_check
          %p8312 = pneg %p139
        $region46: #{tpu_custom_call.1} parent=35 // pred_check_branch
          %8314 = sbr.rel (%p8312) target = $region48
        $region47: #{tpu_custom_call.1} parent=35 // pred_region
          %s8315 = smul.u32 28, %s22
          %8317 = vsyncadd %s8308, 0
          %s8318 = smul.addr %s8315, 7
          %s8319 = smul.addr %s8318, 8
          %s8320 = scalar_lea.hbm %s4, %s8319
          %s8321 = sshll.u32 %s8311, 4
          %s8322 = int_to_ptr.vmem [resolvable:$true] %s8321
          %s8323 = sshll.u32 %s8320, 4
          %s8324 = int_to_ptr.hbm [resolvable:$true] %s8323
          %8329 = dma.vmem_to_hbm [thread:$0]  %s8322, 25088, %s8324, %s8308, 896, 896, 56
        $region48: #{tpu_custom_call.1} parent=35 // pred_fallthru
          _
      $region36: #{tpu_custom_call.1} parent=5 // pred_fallthru
        _
      %p8330 = scmp.le.s32.totalorder 2, %s17
      // Predicated region
      $region49: #{tpu_custom_call.1} parent=5 // pred_check
        %p8331 = pneg %p8330
      $region50: #{tpu_custom_call.1} parent=5 // pred_check_branch
        %8333 = sbr.rel (%p8331) target = $region52
      $region51: #{tpu_custom_call.1} parent=5 // pred_region
        %s8334 = ssub.s32 %s17, 2
        // Predicated region
        $region53: #{tpu_custom_call.1} parent=51 // pred_check
          %p8335 = pneg %p145
        $region54: #{tpu_custom_call.1} parent=51 // pred_check_branch
          %8337 = sbr.rel (%p8335) target = $region56
        $region55: #{tpu_custom_call.1} parent=51 // pred_region
          %s8338 = sand.u32 %s130, 1
          %s8339 = scalar_lea.sflag [#allocation4], %s8338
          %s8340 = sand.u32 %s130, 1
          %s8341 = smul.addr %s8340, 1568
          %s8342 = scalar_lea.vmem [#allocation7], %s8341
          %8344 = dma.done %s8339, 25088
        $region56: #{tpu_custom_call.1} parent=51 // pred_fallthru
          _
      $region52: #{tpu_custom_call.1} parent=5 // pred_fallthru
        _
    $region6: #{tpu_custom_call.1} parent=1 // loop_footer
      %s21 = sadd.s32 1, %s17
    $region7: #{tpu_custom_call.1} parent=1 // loop_footer_branch
      %16 = sbr.rel target = $region3
    $region8: #{tpu_custom_call.1} parent=1 // loop_exit
      _
    %8345 = vsyncpa [#allocation3], 1
    %s8346 = scalar_lea.sflag [#allocation3], 1
    %8347 = vsyncpa %s8346, 1
    %8348 = vsyncpa [#allocation6], 1
    %s8349 = scalar_lea.sflag [#allocation6], 1
    %8350 = vsyncpa %s8349, 1
    %8351 = vsyncpa [#allocation4], 1
    %s8352 = scalar_lea.sflag [#allocation4], 1
    %8353 = vsyncpa %s8352, 1

</llo_original>
